<compile_context>
chip_gen: v6e
topology: v6e:2x2x1
jax: 0.10.0
libtpu: 0.0.40
codegen_flags: <defaults>
</compile_context>

<pallas_src>
import math

import jax
import jax.numpy as jnp
from jax.experimental import pallas as pl
from jax.experimental.pallas import tpu as pltpu

# ---- model hyper-parameters (from the reference module) ----
EMBED_DIM = 32
HIDDEN_DIM = 64
MAX_LEN = 15
NUM_CLASSES = 1
NUM_HEADS = 4
HEAD_DIM = EMBED_DIM // NUM_HEADS
NUM_ENC_LAYERS = 4
NUM_DEC_LAYERS = 6          # nn.Transformer default num_decoder_layers
LN_EPS = 1e-5
VOCAB_SIZE = 50             # synthetic vocab (original derives it from a text corpus)
NEG_INF = -1e30


# ------------------------------------------------------------------ in-kernel helpers

def _layernorm(z, g, b):
    mean = jnp.mean(z, axis=-1, keepdims=True)
    c = z - mean
    var = jnp.mean(c * c, axis=-1, keepdims=True)
    return c * jax.lax.rsqrt(var + LN_EPS) * g + b


def _head_masks():
    # (1, E) 0/1 lane masks selecting each attention head's feature slice.
    lane = jax.lax.broadcasted_iota(jnp.int32, (1, EMBED_DIM), 1)
    return [jnp.where((lane >= h * HEAD_DIM) & (lane < (h + 1) * HEAD_DIM), 1.0, 0.0)
            for h in range(NUM_HEADS)]


def _attention(q_src, kv_src, wq, bq, wk, bk, wv, bv, wo, bo, head_masks, seq_mask):
    """Multi-head attention on (M, E) activations (rows attention-batch-major).

    seq_mask is an (M, M) additive block-diagonal mask restricting attention to rows that share
    the same attention-batch (max_len position); per-head lane masks isolate each head without any
    reshape/transpose of the activation.
    """
    scale = 1.0 / math.sqrt(HEAD_DIM)
    q = jnp.dot(q_src, wq, preferred_element_type=jnp.float32) + bq
    k = jnp.dot(kv_src, wk, preferred_element_type=jnp.float32) + bk
    v = jnp.dot(kv_src, wv, preferred_element_type=jnp.float32) + bv
    kt = k.T
    out = jnp.zeros_like(q)
    for hm in head_masks:                       # static NUM_HEADS loop
        s = jnp.dot(q * (hm * scale), kt, preferred_element_type=jnp.float32) + seq_mask
        s = s - jnp.max(s, axis=-1, keepdims=True)
        p = jnp.exp(s)
        p = p / jnp.sum(p, axis=-1, keepdims=True)
        out = out + jnp.dot(p, v * hm, preferred_element_type=jnp.float32)
    return jnp.dot(out, wo, preferred_element_type=jnp.float32) + bo


# ------------------------------------------------------------------ fused stack kernels

def _encoder_stack_kernel(src_ref, mask_ref,
                          wq, bq, wk, bk, wv, bv, wo, bo,
                          ln1g, ln1b, ln2g, ln2b,
                          w1, b1, w2, b2,
                          ng, nb,
                          mem_ref, x_scr):
    layer = pl.program_id(0)

    @pl.when(layer == 0)
    def _():
        x_scr[...] = src_ref[...]

    head_masks = _head_masks()
    seq_mask = mask_ref[...]

    x = x_scr[...]
    sa = _attention(x, x, wq[0], bq[0], wk[0], bk[0], wv[0], bv[0], wo[0], bo[0],
                    head_masks, seq_mask)
    x = _layernorm(x + sa, ln1g[0], ln1b[0])
    h = jnp.maximum(jnp.dot(x, w1[0], preferred_element_type=jnp.float32) + b1[0], 0.0)
    ff = jnp.dot(h, w2[0], preferred_element_type=jnp.float32) + b2[0]
    x = _layernorm(x + ff, ln2g[0], ln2b[0])

    x_scr[...] = x          # activation stays resident in VMEM across layers
    mem_ref[...] = x        # keep output buffer initialized every step

    @pl.when(layer == pl.num_programs(0) - 1)
    def _():
        mem_ref[...] = _layernorm(x, ng[...], nb[...])      # final encoder LayerNorm (no add)


def _decoder_stack_kernel(tgt_ref, mem_ref, mask_ref,
                          swq, sbq, swk, sbk, swv, sbv, swo, sbo,
                          cwq, cbq, cwk, cbk, cwv, cbv, cwo, cbo,
                          ln1g, ln1b, ln2g, ln2b, ln3g, ln3b,
                          w1, b1, w2, b2,
                          ng, nb,
                          out_ref, y_scr):
    layer = pl.program_id(0)

    @pl.when(layer == 0)
    def _():
        y_scr[...] = tgt_ref[...]

    head_masks = _head_masks()
    seq_mask = mask_ref[...]

    y = y_scr[...]
    sa = _attention(y, y, swq[0], sbq[0], swk[0], sbk[0], swv[0], sbv[0], swo[0], sbo[0],
                    head_masks, seq_mask)
    y = _layernorm(y + sa, ln1g[0], ln1b[0])
    ca = _attention(y, mem_ref[...], cwq[0], cbq[0], cwk[0], cbk[0], cwv[0], cbv[0],
                    cwo[0], cbo[0], head_masks, seq_mask)
    y = _layernorm(y + ca, ln2g[0], ln2b[0])
    h = jnp.maximum(jnp.dot(y, w1[0], preferred_element_type=jnp.float32) + b1[0], 0.0)
    ff = jnp.dot(h, w2[0], preferred_element_type=jnp.float32) + b2[0]
    y = _layernorm(y + ff, ln3g[0], ln3b[0])

    y_scr[...] = y
    out_ref[...] = y

    @pl.when(layer == pl.num_programs(0) - 1)
    def _():
        out_ref[...] = _layernorm(y, ng[...], nb[...])      # final decoder LayerNorm (no add)


def _head_kernel(x_ref, wfc_ref, bfc_ref, wout_ref, bout_ref, o_ref):
    h = jnp.maximum(
        jnp.dot(x_ref[...], wfc_ref[...], preferred_element_type=jnp.float32) + bfc_ref[...], 0.0)
    z = jnp.dot(h, wout_ref[...], preferred_element_type=jnp.float32) + bout_ref[...]
    o_ref[...] = jax.nn.sigmoid(z)


# ------------------------------------------------------------------ pallas_call wrappers

_ENC_STACKED = ["sa_wq", "sa_bq", "sa_wk", "sa_bk", "sa_wv", "sa_bv", "sa_wo", "sa_bo",
                "ln1g", "ln1b", "ln2g", "ln2b", "w1", "b1", "w2", "b2"]
_DEC_STACKED = ["sa_wq", "sa_bq", "sa_wk", "sa_bk", "sa_wv", "sa_bv", "sa_wo", "sa_bo",
                "ca_wq", "ca_bq", "ca_wk", "ca_bk", "ca_wv", "ca_bv", "ca_wo", "ca_bo",
                "ln1g", "ln1b", "ln2g", "ln2b", "ln3g", "ln3b",
                "w1", "b1", "w2", "b2"]


def _layer_spec(shape):
    # stacked-per-layer weight: block (1, *shape), stream layer l via the index_map
    nd = len(shape)
    return pl.BlockSpec((1,) + tuple(shape), lambda l, _nd=nd: (l,) + (0,) * _nd)


def _full_spec(shape):
    nd = len(shape)
    return pl.BlockSpec(tuple(shape), lambda l, _nd=nd: (0,) * _nd)


def encoder_forward(src, seq_mask, ep):
    m = src.shape[0]
    stacked = [ep[n] for n in _ENC_STACKED]
    grid_spec = pltpu.PrefetchScalarGridSpec(
        num_scalar_prefetch=0,
        grid=(NUM_ENC_LAYERS,),
        in_specs=([_full_spec(src.shape), _full_spec(seq_mask.shape)]
                  + [_layer_spec(a.shape[1:]) for a in stacked]
                  + [_full_spec(ep["ng"].shape), _full_spec(ep["nb"].shape)]),
        out_specs=_full_spec((m, EMBED_DIM)),
        scratch_shapes=[pltpu.VMEM((m, EMBED_DIM), jnp.float32)],
    )
    return pl.pallas_call(
        _encoder_stack_kernel,
        out_shape=jax.ShapeDtypeStruct((m, EMBED_DIM), jnp.float32),
        grid_spec=grid_spec,
        compiler_params=pltpu.CompilerParams(dimension_semantics=("arbitrary",)),
    )(src, seq_mask, *stacked, ep["ng"], ep["nb"])


def decoder_forward(tgt, memory, seq_mask, dp):
    m = tgt.shape[0]
    stacked = [dp[n] for n in _DEC_STACKED]
    grid_spec = pltpu.PrefetchScalarGridSpec(
        num_scalar_prefetch=0,
        grid=(NUM_DEC_LAYERS,),
        in_specs=([_full_spec(tgt.shape), _full_spec(memory.shape), _full_spec(seq_mask.shape)]
                  + [_layer_spec(a.shape[1:]) for a in stacked]
                  + [_full_spec(dp["ng"].shape), _full_spec(dp["nb"].shape)]),
        out_specs=_full_spec((m, EMBED_DIM)),
        scratch_shapes=[pltpu.VMEM((m, EMBED_DIM), jnp.float32)],
    )
    return pl.pallas_call(
        _decoder_stack_kernel,
        out_shape=jax.ShapeDtypeStruct((m, EMBED_DIM), jnp.float32),
        grid_spec=grid_spec,
        compiler_params=pltpu.CompilerParams(dimension_semantics=("arbitrary",)),
    )(tgt, memory, seq_mask, *stacked, dp["ng"], dp["nb"])


def head_forward(flat, hp):
    b = flat.shape[0]
    return pl.pallas_call(
        _head_kernel,
        out_shape=jax.ShapeDtypeStruct((b, NUM_CLASSES), jnp.float32),
        in_specs=[pl.BlockSpec(memory_space=pltpu.MemorySpace.VMEM) for _ in range(5)],
        out_specs=pl.BlockSpec(memory_space=pltpu.MemorySpace.VMEM),
    )(flat, hp["fcw"], hp["fcb"], hp["outw"], hp["outb"])


# ------------------------------------------------------------------ model forward

def transformer_forward(params, x_tokens):
    batch, t = x_tokens.shape                     # t == MAX_LEN
    # TODO(synk): embedding gather + positional add kept as plain-JAX glue (tiny; no Pallas gather).
    emb3 = params["emb"][x_tokens.T] + params["pos"][0][:, None, :]     # (t, batch, E)
    src = emb3.reshape(t * batch, EMBED_DIM)      # rows attention-batch-major: row = t_idx*batch + b

    # block-diagonal additive score mask: rows attend to each other iff same max_len position.
    groups = jnp.repeat(jnp.arange(t, dtype=jnp.int32), batch)
    seq_mask = jnp.where(groups[:, None] == groups[None, :], 0.0, NEG_INF).astype(jnp.float32)

    memory = encoder_forward(src, seq_mask, params["enc"])
    dec = decoder_forward(src, memory, seq_mask, params["dec"])          # (t*batch, E)

    flat = dec.reshape(t, batch, EMBED_DIM).transpose(1, 0, 2).reshape(batch, t * EMBED_DIM)
    return head_forward(flat, params["head"])


# ------------------------------------------------------------------ parameter init

def _init_linear_stack(key, n, fan_in, fan_out):
    kw, kb = jax.random.split(key)
    w = jax.random.normal(kw, (n, fan_in, fan_out), jnp.float32) * (1.0 / math.sqrt(fan_in))
    b = jax.random.normal(kb, (n, 1, fan_out), jnp.float32) * 0.01
    return w, b


def _init_attn_stack(key, n, prefix):
    ks = jax.random.split(key, 4)
    p = {}
    p[prefix + "wq"], p[prefix + "bq"] = _init_linear_stack(ks[0], n, EMBED_DIM, EMBED_DIM)
    p[prefix + "wk"], p[prefix + "bk"] = _init_linear_stack(ks[1], n, EMBED_DIM, EMBED_DIM)
    p[prefix + "wv"], p[prefix + "bv"] = _init_linear_stack(ks[2], n, EMBED_DIM, EMBED_DIM)
    p[prefix + "wo"], p[prefix + "bo"] = _init_linear_stack(ks[3], n, EMBED_DIM, EMBED_DIM)
    return p


def _ln_stack(n):
    return (jnp.ones((n, 1, EMBED_DIM), jnp.float32),
            jnp.zeros((n, 1, EMBED_DIM), jnp.float32))


def init_params(key, vocab_size):
    keys = jax.random.split(key, 6)
    emb = jax.random.normal(keys[0], (vocab_size, EMBED_DIM), jnp.float32) * 0.1
    pos = jax.random.normal(keys[1], (1, MAX_LEN, EMBED_DIM), jnp.float32) * 0.1

    # encoder stack (per-layer weights stacked on a leading layer axis)
    ek = jax.random.split(keys[2], 3)
    enc = _init_attn_stack(ek[0], NUM_ENC_LAYERS, "sa_")
    enc["w1"], enc["b1"] = _init_linear_stack(ek[1], NUM_ENC_LAYERS, EMBED_DIM, HIDDEN_DIM)
    enc["w2"], enc["b2"] = _init_linear_stack(ek[2], NUM_ENC_LAYERS, HIDDEN_DIM, EMBED_DIM)
    enc["ln1g"], enc["ln1b"] = _ln_stack(NUM_ENC_LAYERS)
    enc["ln2g"], enc["ln2b"] = _ln_stack(NUM_ENC_LAYERS)
    enc["ng"] = jnp.ones((1, EMBED_DIM), jnp.float32)
    enc["nb"] = jnp.zeros((1, EMBED_DIM), jnp.float32)

    # decoder stack
    dk = jax.random.split(keys[3], 4)
    dec = _init_attn_stack(dk[0], NUM_DEC_LAYERS, "sa_")
    dec.update(_init_attn_stack(dk[1], NUM_DEC_LAYERS, "ca_"))
    dec["w1"], dec["b1"] = _init_linear_stack(dk[2], NUM_DEC_LAYERS, EMBED_DIM, HIDDEN_DIM)
    dec["w2"], dec["b2"] = _init_linear_stack(dk[3], NUM_DEC_LAYERS, HIDDEN_DIM, EMBED_DIM)
    dec["ln1g"], dec["ln1b"] = _ln_stack(NUM_DEC_LAYERS)
    dec["ln2g"], dec["ln2b"] = _ln_stack(NUM_DEC_LAYERS)
    dec["ln3g"], dec["ln3b"] = _ln_stack(NUM_DEC_LAYERS)
    dec["ng"] = jnp.ones((1, EMBED_DIM), jnp.float32)
    dec["nb"] = jnp.zeros((1, EMBED_DIM), jnp.float32)

    # classification head
    kfw, kfb = jax.random.split(keys[4])
    kow, kob = jax.random.split(keys[5])
    head = {
        "fcw": jax.random.normal(kfw, (EMBED_DIM * MAX_LEN, HIDDEN_DIM), jnp.float32)
               * (1.0 / math.sqrt(EMBED_DIM * MAX_LEN)),
        "fcb": jax.random.normal(kfb, (1, HIDDEN_DIM), jnp.float32) * 0.01,
        "outw": jax.random.normal(kow, (HIDDEN_DIM, NUM_CLASSES), jnp.float32)
                * (1.0 / math.sqrt(HIDDEN_DIM)),
        "outb": jax.random.normal(kob, (1, NUM_CLASSES), jnp.float32) * 0.01,
    }
    return dict(emb=emb, pos=pos, enc=enc, dec=dec, head=head)


if __name__ == "__main__":
    key = jax.random.PRNGKey(0)
    kp, kx = jax.random.split(key)
    params = init_params(kp, VOCAB_SIZE)

    batch = 2
    x = jax.random.randint(kx, (batch, MAX_LEN), 0, VOCAB_SIZE, dtype=jnp.int32)

    fwd = jax.jit(transformer_forward)
    out = jax.block_until_ready(fwd(params, x))

    assert out.shape == (batch, NUM_CLASSES)
    assert bool(jnp.all(jnp.isfinite(out)))
    assert bool(jnp.all((out >= 0.0) & (out <= 1.0)))
    print("KERNEL_OK")
</pallas_src>

<mosaic_0001>
module attributes {stable_mosaic.version = 11 : i64} {
  func.func @_encoder_stack_kernel(%arg0: i32, %arg1: memref<30x32xf32, #tpu.memory_space<vmem>>, %arg2: memref<30x30xf32, #tpu.memory_space<vmem>>, %arg3: memref<1x32x32xf32, #tpu.memory_space<vmem>>, %arg4: memref<1x1x32xf32, #tpu.memory_space<vmem>>, %arg5: memref<1x32x32xf32, #tpu.memory_space<vmem>>, %arg6: memref<1x1x32xf32, #tpu.memory_space<vmem>>, %arg7: memref<1x32x32xf32, #tpu.memory_space<vmem>>, %arg8: memref<1x1x32xf32, #tpu.memory_space<vmem>>, %arg9: memref<1x32x32xf32, #tpu.memory_space<vmem>>, %arg10: memref<1x1x32xf32, #tpu.memory_space<vmem>>, %arg11: memref<1x1x32xf32, #tpu.memory_space<vmem>>, %arg12: memref<1x1x32xf32, #tpu.memory_space<vmem>>, %arg13: memref<1x1x32xf32, #tpu.memory_space<vmem>>, %arg14: memref<1x1x32xf32, #tpu.memory_space<vmem>>, %arg15: memref<1x32x64xf32, #tpu.memory_space<vmem>>, %arg16: memref<1x1x64xf32, #tpu.memory_space<vmem>>, %arg17: memref<1x64x32xf32, #tpu.memory_space<vmem>>, %arg18: memref<1x1x32xf32, #tpu.memory_space<vmem>>, %arg19: memref<1x32xf32, #tpu.memory_space<vmem>>, %arg20: memref<1x32xf32, #tpu.memory_space<vmem>>, %arg21: memref<30x32xf32, #tpu.memory_space<vmem>>, %arg22: memref<30x32xf32, #tpu.memory_space<vmem>>) attributes {dimension_semantics = [#tpu.dimension_semantics<arbitrary>], iteration_bounds = array<i64: 4>, scalar_prefetch = 0 : i64, scratch_operands = 1 : i64, tpu.core_type = #tpu.core_type<tc>, window_params = [{pipeline_mode = #tpu.pipeline_mode<synchronous>, transform_indices = @transform_0, window_bounds = array<i64: 30, 32>}, {pipeline_mode = #tpu.pipeline_mode<synchronous>, transform_indices = @transform_1, window_bounds = array<i64: 30, 30>}, {transform_indices = @transform_2, window_bounds = array<i64: 1, 32, 32>}, {transform_indices = @transform_3, window_bounds = array<i64: 1, 1, 32>}, {transform_indices = @transform_4, window_bounds = array<i64: 1, 32, 32>}, {transform_indices = @transform_5, window_bounds = array<i64: 1, 1, 32>}, {transform_indices = @transform_6, window_bounds = array<i64: 1, 32, 32>}, {transform_indices = @transform_7, window_bounds = array<i64: 1, 1, 32>}, {transform_indices = @transform_8, window_bounds = array<i64: 1, 32, 32>}, {transform_indices = @transform_9, window_bounds = array<i64: 1, 1, 32>}, {transform_indices = @transform_10, window_bounds = array<i64: 1, 1, 32>}, {transform_indices = @transform_11, window_bounds = array<i64: 1, 1, 32>}, {transform_indices = @transform_12, window_bounds = array<i64: 1, 1, 32>}, {transform_indices = @transform_13, window_bounds = array<i64: 1, 1, 32>}, {transform_indices = @transform_14, window_bounds = array<i64: 1, 32, 64>}, {transform_indices = @transform_15, window_bounds = array<i64: 1, 1, 64>}, {transform_indices = @transform_16, window_bounds = array<i64: 1, 64, 32>}, {transform_indices = @transform_17, window_bounds = array<i64: 1, 1, 32>}, {pipeline_mode = #tpu.pipeline_mode<synchronous>, transform_indices = @transform_18, window_bounds = array<i64: 1, 32>}, {pipeline_mode = #tpu.pipeline_mode<synchronous>, transform_indices = @transform_19, window_bounds = array<i64: 1, 32>}, {pipeline_mode = #tpu.pipeline_mode<synchronous>, transform_indices = @transform_20, window_bounds = array<i64: 30, 32>}]} {
    %c0_i32 = arith.constant 0 : i32
    %0 = arith.cmpi eq, %arg0, %c0_i32 : i32
    %1 = arith.extui %0 : i1 to i32
    %c0_i32_0 = arith.constant 0 : i32
    %2 = arith.cmpi ne, %1, %c0_i32_0 : i32
    scf.if %2 {
      %c0_106 = arith.constant 0 : index
      %c0_107 = arith.constant 0 : index
      %215 = vector.load %arg1[%c0_106, %c0_107] : memref<30x32xf32, #tpu.memory_space<vmem>>, vector<30x32xf32>
      %c0_108 = arith.constant 0 : index
      %c0_109 = arith.constant 0 : index
      %216 = vector.load %arg22[%c0_108, %c0_109] : memref<30x32xf32, #tpu.memory_space<vmem>>, vector<30x32xf32>
      tpu.vector_store %arg22[%c0_108, %c0_109], %215 {strides = array<i32>} : memref<30x32xf32, #tpu.memory_space<vmem>>, vector<30x32xf32>,
    } else {
    }
    %3 = tpu.iota {dimensions = array<i32: 1>} : vector<1x32xi32>
    %c0_i32_1 = arith.constant 0 : i32
    %4 = vector.broadcast %c0_i32_1 : i32 to vector<1x32xi32>
    %5 = arith.cmpi sge, %3, %4 : vector<1x32xi32>
    %c8_i32 = arith.constant 8 : i32
    %6 = vector.broadcast %c8_i32 : i32 to vector<1x32xi32>
    %7 = arith.cmpi slt, %3, %6 : vector<1x32xi32>
    %8 = arith.andi %5, %7 : vector<1x32xi1>
    %cst = arith.constant 1.000000e+00 : f32
    %cst_2 = arith.constant 0.000000e+00 : f32
    %9 = vector.broadcast %cst : f32 to vector<1x32xf32>
    %10 = vector.broadcast %cst_2 : f32 to vector<1x32xf32>
    %11 = arith.select %8, %9, %10 : vector<1x32xi1>, vector<1x32xf32>
    %c8_i32_3 = arith.constant 8 : i32
    %12 = vector.broadcast %c8_i32_3 : i32 to vector<1x32xi32>
    %13 = arith.cmpi sge, %3, %12 : vector<1x32xi32>
    %c16_i32 = arith.constant 16 : i32
    %14 = vector.broadcast %c16_i32 : i32 to vector<1x32xi32>
    %15 = arith.cmpi slt, %3, %14 : vector<1x32xi32>
    %16 = arith.andi %13, %15 : vector<1x32xi1>
    %cst_4 = arith.constant 1.000000e+00 : f32
    %cst_5 = arith.constant 0.000000e+00 : f32
    %17 = vector.broadcast %cst_4 : f32 to vector<1x32xf32>
    %18 = vector.broadcast %cst_5 : f32 to vector<1x32xf32>
    %19 = arith.select %16, %17, %18 : vector<1x32xi1>, vector<1x32xf32>
    %c16_i32_6 = arith.constant 16 : i32
    %20 = vector.broadcast %c16_i32_6 : i32 to vector<1x32xi32>
    %21 = arith.cmpi sge, %3, %20 : vector<1x32xi32>
    %c24_i32 = arith.constant 24 : i32
    %22 = vector.broadcast %c24_i32 : i32 to vector<1x32xi32>
    %23 = arith.cmpi slt, %3, %22 : vector<1x32xi32>
    %24 = arith.andi %21, %23 : vector<1x32xi1>
    %cst_7 = arith.constant 1.000000e+00 : f32
    %cst_8 = arith.constant 0.000000e+00 : f32
    %25 = vector.broadcast %cst_7 : f32 to vector<1x32xf32>
    %26 = vector.broadcast %cst_8 : f32 to vector<1x32xf32>
    %27 = arith.select %24, %25, %26 : vector<1x32xi1>, vector<1x32xf32>
    %c24_i32_9 = arith.constant 24 : i32
    %28 = vector.broadcast %c24_i32_9 : i32 to vector<1x32xi32>
    %29 = arith.cmpi sge, %3, %28 : vector<1x32xi32>
    %c32_i32 = arith.constant 32 : i32
    %30 = vector.broadcast %c32_i32 : i32 to vector<1x32xi32>
    %31 = arith.cmpi slt, %3, %30 : vector<1x32xi32>
    %32 = arith.andi %29, %31 : vector<1x32xi1>
    %cst_10 = arith.constant 1.000000e+00 : f32
    %cst_11 = arith.constant 0.000000e+00 : f32
    %33 = vector.broadcast %cst_10 : f32 to vector<1x32xf32>
    %34 = vector.broadcast %cst_11 : f32 to vector<1x32xf32>
    %35 = arith.select %32, %33, %34 : vector<1x32xi1>, vector<1x32xf32>
    %c0 = arith.constant 0 : index
    %c0_12 = arith.constant 0 : index
    %36 = vector.load %arg2[%c0, %c0_12] : memref<30x30xf32, #tpu.memory_space<vmem>>, vector<30x30xf32>
    %c0_13 = arith.constant 0 : index
    %c0_14 = arith.constant 0 : index
    %37 = vector.load %arg22[%c0_13, %c0_14] : memref<30x32xf32, #tpu.memory_space<vmem>>, vector<30x32xf32>
    %c0_15 = arith.constant 0 : index
    %c0_16 = arith.constant 0 : index
    %c0_17 = arith.constant 0 : index
    %38 = vector.load %arg3[%c0_15, %c0_16, %c0_17] : memref<1x32x32xf32, #tpu.memory_space<vmem>>, vector<1x32x32xf32>
    %39 = vector.shape_cast %38 : vector<1x32x32xf32> to vector<32x32xf32>
    %c0_18 = arith.constant 0 : index
    %c0_19 = arith.constant 0 : index
    %c0_20 = arith.constant 0 : index
    %40 = vector.load %arg4[%c0_18, %c0_19, %c0_20] : memref<1x1x32xf32, #tpu.memory_space<vmem>>, vector<1x1x32xf32>
    %41 = vector.shape_cast %40 : vector<1x1x32xf32> to vector<1x32xf32>
    %c0_21 = arith.constant 0 : index
    %c0_22 = arith.constant 0 : index
    %c0_23 = arith.constant 0 : index
    %42 = vector.load %arg5[%c0_21, %c0_22, %c0_23] : memref<1x32x32xf32, #tpu.memory_space<vmem>>, vector<1x32x32xf32>
    %43 = vector.shape_cast %42 : vector<1x32x32xf32> to vector<32x32xf32>
    %c0_24 = arith.constant 0 : index
    %c0_25 = arith.constant 0 : index
    %c0_26 = arith.constant 0 : index
    %44 = vector.load %arg6[%c0_24, %c0_25, %c0_26] : memref<1x1x32xf32, #tpu.memory_space<vmem>>, vector<1x1x32xf32>
    %45 = vector.shape_cast %44 : vector<1x1x32xf32> to vector<1x32xf32>
    %c0_27 = arith.constant 0 : index
    %c0_28 = arith.constant 0 : index
    %c0_29 = arith.constant 0 : index
    %46 = vector.load %arg7[%c0_27, %c0_28, %c0_29] : memref<1x32x32xf32, #tpu.memory_space<vmem>>, vector<1x32x32xf32>
    %47 = vector.shape_cast %46 : vector<1x32x32xf32> to vector<32x32xf32>
    %c0_30 = arith.constant 0 : index
    %c0_31 = arith.constant 0 : index
    %c0_32 = arith.constant 0 : index
    %48 = vector.load %arg8[%c0_30, %c0_31, %c0_32] : memref<1x1x32xf32, #tpu.memory_space<vmem>>, vector<1x1x32xf32>
    %49 = vector.shape_cast %48 : vector<1x1x32xf32> to vector<1x32xf32>
    %c0_33 = arith.constant 0 : index
    %c0_34 = arith.constant 0 : index
    %c0_35 = arith.constant 0 : index
    %50 = vector.load %arg9[%c0_33, %c0_34, %c0_35] : memref<1x32x32xf32, #tpu.memory_space<vmem>>, vector<1x32x32xf32>
    %51 = vector.shape_cast %50 : vector<1x32x32xf32> to vector<32x32xf32>
    %c0_36 = arith.constant 0 : index
    %c0_37 = arith.constant 0 : index
    %c0_38 = arith.constant 0 : index
    %52 = vector.load %arg10[%c0_36, %c0_37, %c0_38] : memref<1x1x32xf32, #tpu.memory_space<vmem>>, vector<1x1x32xf32>
    %53 = vector.shape_cast %52 : vector<1x1x32xf32> to vector<1x32xf32>
    %cst_39 = arith.constant dense<0.000000e+00> : vector<30x32xf32>
    %54 = tpu.matmul %37, %39, %cst_39 {dimension_numbers = #tpu.dot_dimension_numbers<[1], [0], [0], [1], [0, 0, 1, 1], [], []>} : vector<30x32xf32>, vector<32x32xf32>, vector<30x32xf32> -> vector<30x32xf32>
    %55 = vector.broadcast %41 : vector<1x32xf32> to vector<30x32xf32>
    %56 = arith.addf %54, %55 : vector<30x32xf32>
    %cst_40 = arith.constant dense<0.000000e+00> : vector<30x32xf32>
    %57 = tpu.matmul %37, %43, %cst_40 {dimension_numbers = #tpu.dot_dimension_numbers<[1], [0], [0], [1], [0, 0, 1, 1], [], []>} : vector<30x32xf32>, vector<32x32xf32>, vector<30x32xf32> -> vector<30x32xf32>
    %58 = vector.broadcast %45 : vector<1x32xf32> to vector<30x32xf32>
    %59 = arith.addf %57, %58 : vector<30x32xf32>
    %cst_41 = arith.constant dense<0.000000e+00> : vector<30x32xf32>
    %60 = tpu.matmul %37, %47, %cst_41 {dimension_numbers = #tpu.dot_dimension_numbers<[1], [0], [0], [1], [0, 0, 1, 1], [], []>} : vector<30x32xf32>, vector<32x32xf32>, vector<30x32xf32> -> vector<30x32xf32>
    %61 = vector.broadcast %49 : vector<1x32xf32> to vector<30x32xf32>
    %62 = arith.addf %60, %61 : vector<30x32xf32>
    %63 = tpu.transpose %59, [1, 0] : vector<30x32xf32> -> vector<32x30xf32>
    %cst_42 = arith.constant 0.000000e+00 : f32
    %64 = vector.broadcast %cst_42 : f32 to vector<30x32xf32>
    %cst_43 = arith.constant 0.353553385 : f32
    %65 = vector.broadcast %cst_43 : f32 to vector<1x32xf32>
    %66 = arith.mulf %11, %65 : vector<1x32xf32>
    %67 = vector.broadcast %66 : vector<1x32xf32> to vector<30x32xf32>
    %68 = arith.mulf %56, %67 : vector<30x32xf32>
    %cst_44 = arith.constant dense<0.000000e+00> : vector<30x30xf32>
    %69 = tpu.matmul %68, %63, %cst_44 {dimension_numbers = #tpu.dot_dimension_numbers<[1], [0], [0], [1], [0, 0, 1, 1], [], []>} : vector<30x32xf32>, vector<32x30xf32>, vector<30x30xf32> -> vector<30x30xf32>
    %70 = arith.addf %69, %36 : vector<30x30xf32>
    %cst_45 = arith.constant dense<0xFF800000> : vector<30xf32>
    %71 = vector.multi_reduction <maximumf>, %70, %cst_45 [1] : vector<30x30xf32> to vector<30xf32>
    %72 = vector.shape_cast %71 : vector<30xf32> to vector<30x1xf32>
    %73 = vector.broadcast %72 : vector<30x1xf32> to vector<30x30xf32>
    %74 = arith.subf %70, %73 : vector<30x30xf32>
    %75 = math.exp %74 : vector<30x30xf32>
    %cst_46 = arith.constant dense<0.000000e+00> : vector<30xf32>
    %76 = vector.multi_reduction <add>, %75, %cst_46 [1] : vector<30x30xf32> to vector<30xf32>
    %77 = vector.shape_cast %76 : vector<30xf32> to vector<30x1xf32>
    %78 = vector.broadcast %77 : vector<30x1xf32> to vector<30x30xf32>
    %79 = arith.divf %75, %78 : vector<30x30xf32>
    %80 = vector.broadcast %11 : vector<1x32xf32> to vector<30x32xf32>
    %81 = arith.mulf %62, %80 : vector<30x32xf32>
    %cst_47 = arith.constant dense<0.000000e+00> : vector<30x32xf32>
    %82 = tpu.matmul %79, %81, %cst_47 {dimension_numbers = #tpu.dot_dimension_numbers<[1], [0], [0], [1], [0, 0, 1, 1], [], []>} : vector<30x30xf32>, vector<30x32xf32>, vector<30x32xf32> -> vector<30x32xf32>
    %83 = arith.addf %64, %82 : vector<30x32xf32>
    %cst_48 = arith.constant 0.353553385 : f32
    %84 = vector.broadcast %cst_48 : f32 to vector<1x32xf32>
    %85 = arith.mulf %19, %84 : vector<1x32xf32>
    %86 = vector.broadcast %85 : vector<1x32xf32> to vector<30x32xf32>
    %87 = arith.mulf %56, %86 : vector<30x32xf32>
    %cst_49 = arith.constant dense<0.000000e+00> : vector<30x30xf32>
    %88 = tpu.matmul %87, %63, %cst_49 {dimension_numbers = #tpu.dot_dimension_numbers<[1], [0], [0], [1], [0, 0, 1, 1], [], []>} : vector<30x32xf32>, vector<32x30xf32>, vector<30x30xf32> -> vector<30x30xf32>
    %89 = arith.addf %88, %36 : vector<30x30xf32>
    %cst_50 = arith.constant dense<0xFF800000> : vector<30xf32>
    %90 = vector.multi_reduction <maximumf>, %89, %cst_50 [1] : vector<30x30xf32> to vector<30xf32>
    %91 = vector.shape_cast %90 : vector<30xf32> to vector<30x1xf32>
    %92 = vector.broadcast %91 : vector<30x1xf32> to vector<30x30xf32>
    %93 = arith.subf %89, %92 : vector<30x30xf32>
    %94 = math.exp %93 : vector<30x30xf32>
    %cst_51 = arith.constant dense<0.000000e+00> : vector<30xf32>
    %95 = vector.multi_reduction <add>, %94, %cst_51 [1] : vector<30x30xf32> to vector<30xf32>
    %96 = vector.shape_cast %95 : vector<30xf32> to vector<30x1xf32>
    %97 = vector.broadcast %96 : vector<30x1xf32> to vector<30x30xf32>
    %98 = arith.divf %94, %97 : vector<30x30xf32>
    %99 = vector.broadcast %19 : vector<1x32xf32> to vector<30x32xf32>
    %100 = arith.mulf %62, %99 : vector<30x32xf32>
    %cst_52 = arith.constant dense<0.000000e+00> : vector<30x32xf32>
    %101 = tpu.matmul %98, %100, %cst_52 {dimension_numbers = #tpu.dot_dimension_numbers<[1], [0], [0], [1], [0, 0, 1, 1], [], []>} : vector<30x30xf32>, vector<30x32xf32>, vector<30x32xf32> -> vector<30x32xf32>
    %102 = arith.addf %83, %101 : vector<30x32xf32>
    %cst_53 = arith.constant 0.353553385 : f32
    %103 = vector.broadcast %cst_53 : f32 to vector<1x32xf32>
    %104 = arith.mulf %27, %103 : vector<1x32xf32>
    %105 = vector.broadcast %104 : vector<1x32xf32> to vector<30x32xf32>
    %106 = arith.mulf %56, %105 : vector<30x32xf32>
    %cst_54 = arith.constant dense<0.000000e+00> : vector<30x30xf32>
    %107 = tpu.matmul %106, %63, %cst_54 {dimension_numbers = #tpu.dot_dimension_numbers<[1], [0], [0], [1], [0, 0, 1, 1], [], []>} : vector<30x32xf32>, vector<32x30xf32>, vector<30x30xf32> -> vector<30x30xf32>
    %108 = arith.addf %107, %36 : vector<30x30xf32>
    %cst_55 = arith.constant dense<0xFF800000> : vector<30xf32>
    %109 = vector.multi_reduction <maximumf>, %108, %cst_55 [1] : vector<30x30xf32> to vector<30xf32>
    %110 = vector.shape_cast %109 : vector<30xf32> to vector<30x1xf32>
    %111 = vector.broadcast %110 : vector<30x1xf32> to vector<30x30xf32>
    %112 = arith.subf %108, %111 : vector<30x30xf32>
    %113 = math.exp %112 : vector<30x30xf32>
    %cst_56 = arith.constant dense<0.000000e+00> : vector<30xf32>
    %114 = vector.multi_reduction <add>, %113, %cst_56 [1] : vector<30x30xf32> to vector<30xf32>
    %115 = vector.shape_cast %114 : vector<30xf32> to vector<30x1xf32>
    %116 = vector.broadcast %115 : vector<30x1xf32> to vector<30x30xf32>
    %117 = arith.divf %113, %116 : vector<30x30xf32>
    %118 = vector.broadcast %27 : vector<1x32xf32> to vector<30x32xf32>
    %119 = arith.mulf %62, %118 : vector<30x32xf32>
    %cst_57 = arith.constant dense<0.000000e+00> : vector<30x32xf32>
    %120 = tpu.matmul %117, %119, %cst_57 {dimension_numbers = #tpu.dot_dimension_numbers<[1], [0], [0], [1], [0, 0, 1, 1], [], []>} : vector<30x30xf32>, vector<30x32xf32>, vector<30x32xf32> -> vector<30x32xf32>
    %121 = arith.addf %102, %120 : vector<30x32xf32>
    %cst_58 = arith.constant 0.353553385 : f32
    %122 = vector.broadcast %cst_58 : f32 to vector<1x32xf32>
    %123 = arith.mulf %35, %122 : vector<1x32xf32>
    %124 = vector.broadcast %123 : vector<1x32xf32> to vector<30x32xf32>
    %125 = arith.mulf %56, %124 : vector<30x32xf32>
    %cst_59 = arith.constant dense<0.000000e+00> : vector<30x30xf32>
    %126 = tpu.matmul %125, %63, %cst_59 {dimension_numbers = #tpu.dot_dimension_numbers<[1], [0], [0], [1], [0, 0, 1, 1], [], []>} : vector<30x32xf32>, vector<32x30xf32>, vector<30x30xf32> -> vector<30x30xf32>
    %127 = arith.addf %126, %36 : vector<30x30xf32>
    %cst_60 = arith.constant dense<0xFF800000> : vector<30xf32>
    %128 = vector.multi_reduction <maximumf>, %127, %cst_60 [1] : vector<30x30xf32> to vector<30xf32>
    %129 = vector.shape_cast %128 : vector<30xf32> to vector<30x1xf32>
    %130 = vector.broadcast %129 : vector<30x1xf32> to vector<30x30xf32>
    %131 = arith.subf %127, %130 : vector<30x30xf32>
    %132 = math.exp %131 : vector<30x30xf32>
    %cst_61 = arith.constant dense<0.000000e+00> : vector<30xf32>
    %133 = vector.multi_reduction <add>, %132, %cst_61 [1] : vector<30x30xf32> to vector<30xf32>
    %134 = vector.shape_cast %133 : vector<30xf32> to vector<30x1xf32>
    %135 = vector.broadcast %134 : vector<30x1xf32> to vector<30x30xf32>
    %136 = arith.divf %132, %135 : vector<30x30xf32>
    %137 = vector.broadcast %35 : vector<1x32xf32> to vector<30x32xf32>
    %138 = arith.mulf %62, %137 : vector<30x32xf32>
    %cst_62 = arith.constant dense<0.000000e+00> : vector<30x32xf32>
    %139 = tpu.matmul %136, %138, %cst_62 {dimension_numbers = #tpu.dot_dimension_numbers<[1], [0], [0], [1], [0, 0, 1, 1], [], []>} : vector<30x30xf32>, vector<30x32xf32>, vector<30x32xf32> -> vector<30x32xf32>
    %140 = arith.addf %121, %139 : vector<30x32xf32>
    %cst_63 = arith.constant dense<0.000000e+00> : vector<30x32xf32>
    %141 = tpu.matmul %140, %51, %cst_63 {dimension_numbers = #tpu.dot_dimension_numbers<[1], [0], [0], [1], [0, 0, 1, 1], [], []>} : vector<30x32xf32>, vector<32x32xf32>, vector<30x32xf32> -> vector<30x32xf32>
    %142 = vector.broadcast %53 : vector<1x32xf32> to vector<30x32xf32>
    %143 = arith.addf %141, %142 : vector<30x32xf32>
    %144 = arith.addf %37, %143 : vector<30x32xf32>
    %c0_64 = arith.constant 0 : index
    %c0_65 = arith.constant 0 : index
    %c0_66 = arith.constant 0 : index
    %145 = vector.load %arg11[%c0_64, %c0_65, %c0_66] : memref<1x1x32xf32, #tpu.memory_space<vmem>>, vector<1x1x32xf32>
    %146 = vector.shape_cast %145 : vector<1x1x32xf32> to vector<1x32xf32>
    %c0_67 = arith.constant 0 : index
    %c0_68 = arith.constant 0 : index
    %c0_69 = arith.constant 0 : index
    %147 = vector.load %arg12[%c0_67, %c0_68, %c0_69] : memref<1x1x32xf32, #tpu.memory_space<vmem>>, vector<1x1x32xf32>
    %148 = vector.shape_cast %147 : vector<1x1x32xf32> to vector<1x32xf32>
    %cst_70 = arith.constant dense<0.000000e+00> : vector<30xf32>
    %149 = vector.multi_reduction <add>, %144, %cst_70 [1] : vector<30x32xf32> to vector<30xf32>
    %150 = vector.shape_cast %149 : vector<30xf32> to vector<30x1xf32>
    %cst_71 = arith.constant 3.200000e+01 : f32
    %151 = vector.broadcast %cst_71 : f32 to vector<30x1xf32>
    %152 = arith.divf %150, %151 : vector<30x1xf32>
    %153 = vector.broadcast %152 : vector<30x1xf32> to vector<30x32xf32>
    %154 = arith.subf %144, %153 : vector<30x32xf32>
    %155 = arith.mulf %154, %154 : vector<30x32xf32>
    %cst_72 = arith.constant dense<0.000000e+00> : vector<30xf32>
    %156 = vector.multi_reduction <add>, %155, %cst_72 [1] : vector<30x32xf32> to vector<30xf32>
    %157 = vector.shape_cast %156 : vector<30xf32> to vector<30x1xf32>
    %cst_73 = arith.constant 3.200000e+01 : f32
    %158 = vector.broadcast %cst_73 : f32 to vector<30x1xf32>
    %159 = arith.divf %157, %158 : vector<30x1xf32>
    %cst_74 = arith.constant 9.99999974E-6 : f32
    %160 = vector.broadcast %cst_74 : f32 to vector<30x1xf32>
    %161 = arith.addf %159, %160 : vector<30x1xf32>
    %162 = math.rsqrt %161 : vector<30x1xf32>
    %163 = vector.broadcast %162 : vector<30x1xf32> to vector<30x32xf32>
    %164 = arith.mulf %154, %163 : vector<30x32xf32>
    %165 = vector.broadcast %146 : vector<1x32xf32> to vector<30x32xf32>
    %166 = arith.mulf %164, %165 : vector<30x32xf32>
    %167 = vector.broadcast %148 : vector<1x32xf32> to vector<30x32xf32>
    %168 = arith.addf %166, %167 : vector<30x32xf32>
    %c0_75 = arith.constant 0 : index
    %c0_76 = arith.constant 0 : index
    %c0_77 = arith.constant 0 : index
    %169 = vector.load %arg15[%c0_75, %c0_76, %c0_77] : memref<1x32x64xf32, #tpu.memory_space<vmem>>, vector<1x32x64xf32>
    %170 = vector.shape_cast %169 : vector<1x32x64xf32> to vector<32x64xf32>
    %cst_78 = arith.constant dense<0.000000e+00> : vector<30x64xf32>
    %171 = tpu.matmul %168, %170, %cst_78 {dimension_numbers = #tpu.dot_dimension_numbers<[1], [0], [0], [1], [0, 0, 1, 1], [], []>} : vector<30x32xf32>, vector<32x64xf32>, vector<30x64xf32> -> vector<30x64xf32>
    %c0_79 = arith.constant 0 : index
    %c0_80 = arith.constant 0 : index
    %c0_81 = arith.constant 0 : index
    %172 = vector.load %arg16[%c0_79, %c0_80, %c0_81] : memref<1x1x64xf32, #tpu.memory_space<vmem>>, vector<1x1x64xf32>
    %173 = vector.shape_cast %172 : vector<1x1x64xf32> to vector<1x64xf32>
    %174 = vector.broadcast %173 : vector<1x64xf32> to vector<30x64xf32>
    %175 = arith.addf %171, %174 : vector<30x64xf32>
    %cst_82 = arith.constant 0.000000e+00 : f32
    %176 = vector.broadcast %cst_82 : f32 to vector<30x64xf32>
    %177 = arith.maximumf %175, %176 : vector<30x64xf32>
    %c0_83 = arith.constant 0 : index
    %c0_84 = arith.constant 0 : index
    %c0_85 = arith.constant 0 : index
    %178 = vector.load %arg17[%c0_83, %c0_84, %c0_85] : memref<1x64x32xf32, #tpu.memory_space<vmem>>, vector<1x64x32xf32>
    %179 = vector.shape_cast %178 : vector<1x64x32xf32> to vector<64x32xf32>
    %cst_86 = arith.constant dense<0.000000e+00> : vector<30x32xf32>
    %180 = tpu.matmul %177, %179, %cst_86 {dimension_numbers = #tpu.dot_dimension_numbers<[1], [0], [0], [1], [0, 0, 1, 1], [], []>} : vector<30x64xf32>, vector<64x32xf32>, vector<30x32xf32> -> vector<30x32xf32>
    %c0_87 = arith.constant 0 : index
    %c0_88 = arith.constant 0 : index
    %c0_89 = arith.constant 0 : index
    %181 = vector.load %arg18[%c0_87, %c0_88, %c0_89] : memref<1x1x32xf32, #tpu.memory_space<vmem>>, vector<1x1x32xf32>
    %182 = vector.shape_cast %181 : vector<1x1x32xf32> to vector<1x32xf32>
    %183 = vector.broadcast %182 : vector<1x32xf32> to vector<30x32xf32>
    %184 = arith.addf %180, %183 : vector<30x32xf32>
    %185 = arith.addf %168, %184 : vector<30x32xf32>
    %c0_90 = arith.constant 0 : index
    %c0_91 = arith.constant 0 : index
    %c0_92 = arith.constant 0 : index
    %186 = vector.load %arg13[%c0_90, %c0_91, %c0_92] : memref<1x1x32xf32, #tpu.memory_space<vmem>>, vector<1x1x32xf32>
    %187 = vector.shape_cast %186 : vector<1x1x32xf32> to vector<1x32xf32>
    %c0_93 = arith.constant 0 : index
    %c0_94 = arith.constant 0 : index
    %c0_95 = arith.constant 0 : index
    %188 = vector.load %arg14[%c0_93, %c0_94, %c0_95] : memref<1x1x32xf32, #tpu.memory_space<vmem>>, vector<1x1x32xf32>
    %189 = vector.shape_cast %188 : vector<1x1x32xf32> to vector<1x32xf32>
    %cst_96 = arith.constant dense<0.000000e+00> : vector<30xf32>
    %190 = vector.multi_reduction <add>, %185, %cst_96 [1] : vector<30x32xf32> to vector<30xf32>
    %191 = vector.shape_cast %190 : vector<30xf32> to vector<30x1xf32>
    %cst_97 = arith.constant 3.200000e+01 : f32
    %192 = vector.broadcast %cst_97 : f32 to vector<30x1xf32>
    %193 = arith.divf %191, %192 : vector<30x1xf32>
    %194 = vector.broadcast %193 : vector<30x1xf32> to vector<30x32xf32>
    %195 = arith.subf %185, %194 : vector<30x32xf32>
    %196 = arith.mulf %195, %195 : vector<30x32xf32>
    %cst_98 = arith.constant dense<0.000000e+00> : vector<30xf32>
    %197 = vector.multi_reduction <add>, %196, %cst_98 [1] : vector<30x32xf32> to vector<30xf32>
    %198 = vector.shape_cast %197 : vector<30xf32> to vector<30x1xf32>
    %cst_99 = arith.constant 3.200000e+01 : f32
    %199 = vector.broadcast %cst_99 : f32 to vector<30x1xf32>
    %200 = arith.divf %198, %199 : vector<30x1xf32>
    %cst_100 = arith.constant 9.99999974E-6 : f32
    %201 = vector.broadcast %cst_100 : f32 to vector<30x1xf32>
    %202 = arith.addf %200, %201 : vector<30x1xf32>
    %203 = math.rsqrt %202 : vector<30x1xf32>
    %204 = vector.broadcast %203 : vector<30x1xf32> to vector<30x32xf32>
    %205 = arith.mulf %195, %204 : vector<30x32xf32>
    %206 = vector.broadcast %187 : vector<1x32xf32> to vector<30x32xf32>
    %207 = arith.mulf %205, %206 : vector<30x32xf32>
    %208 = vector.broadcast %189 : vector<1x32xf32> to vector<30x32xf32>
    %209 = arith.addf %207, %208 : vector<30x32xf32>
    %c0_101 = arith.constant 0 : index
    %c0_102 = arith.constant 0 : index
    %210 = vector.load %arg22[%c0_101, %c0_102] : memref<30x32xf32, #tpu.memory_space<vmem>>, vector<30x32xf32>
    tpu.vector_store %arg22[%c0_101, %c0_102], %209 {strides = array<i32>} : memref<30x32xf32, #tpu.memory_space<vmem>>, vector<30x32xf32>,
    %c0_103 = arith.constant 0 : index
    %c0_104 = arith.constant 0 : index
    %211 = vector.load %arg21[%c0_103, %c0_104] : memref<30x32xf32, #tpu.memory_space<vmem>>, vector<30x32xf32>
    tpu.vector_store %arg21[%c0_103, %c0_104], %209 {strides = array<i32>} : memref<30x32xf32, #tpu.memory_space<vmem>>, vector<30x32xf32>,
    %c3_i32 = arith.constant 3 : i32
    %212 = arith.cmpi eq, %arg0, %c3_i32 : i32
    %213 = arith.extui %212 : i1 to i32
    %c0_i32_105 = arith.constant 0 : i32
    %214 = arith.cmpi ne, %213, %c0_i32_105 : i32
    scf.if %214 {
      %c0_106 = arith.constant 0 : index
      %c0_107 = arith.constant 0 : index
      %215 = vector.load %arg19[%c0_106, %c0_107] : memref<1x32xf32, #tpu.memory_space<vmem>>, vector<1x32xf32>
      %c0_108 = arith.constant 0 : index
      %c0_109 = arith.constant 0 : index
      %216 = vector.load %arg20[%c0_108, %c0_109] : memref<1x32xf32, #tpu.memory_space<vmem>>, vector<1x32xf32>
      %cst_110 = arith.constant dense<0.000000e+00> : vector<30xf32>
      %217 = vector.multi_reduction <add>, %209, %cst_110 [1] : vector<30x32xf32> to vector<30xf32>
      %218 = vector.shape_cast %217 : vector<30xf32> to vector<30x1xf32>
      %cst_111 = arith.constant 3.200000e+01 : f32
      %219 = vector.broadcast %cst_111 : f32 to vector<30x1xf32>
      %220 = arith.divf %218, %219 : vector<30x1xf32>
      %221 = vector.broadcast %220 : vector<30x1xf32> to vector<30x32xf32>
      %222 = arith.subf %209, %221 : vector<30x32xf32>
      %223 = arith.mulf %222, %222 : vector<30x32xf32>
      %cst_112 = arith.constant dense<0.000000e+00> : vector<30xf32>
      %224 = vector.multi_reduction <add>, %223, %cst_112 [1] : vector<30x32xf32> to vector<30xf32>
      %225 = vector.shape_cast %224 : vector<30xf32> to vector<30x1xf32>
      %cst_113 = arith.constant 3.200000e+01 : f32
      %226 = vector.broadcast %cst_113 : f32 to vector<30x1xf32>
      %227 = arith.divf %225, %226 : vector<30x1xf32>
      %cst_114 = arith.constant 9.99999974E-6 : f32
      %228 = vector.broadcast %cst_114 : f32 to vector<30x1xf32>
      %229 = arith.addf %227, %228 : vector<30x1xf32>
      %230 = math.rsqrt %229 : vector<30x1xf32>
      %231 = vector.broadcast %230 : vector<30x1xf32> to vector<30x32xf32>
      %232 = arith.mulf %222, %231 : vector<30x32xf32>
      %233 = vector.broadcast %215 : vector<1x32xf32> to vector<30x32xf32>
      %234 = arith.mulf %232, %233 : vector<30x32xf32>
      %235 = vector.broadcast %216 : vector<1x32xf32> to vector<30x32xf32>
      %236 = arith.addf %234, %235 : vector<30x32xf32>
      %c0_115 = arith.constant 0 : index
      %c0_116 = arith.constant 0 : index
      %237 = vector.load %arg21[%c0_115, %c0_116] : memref<30x32xf32, #tpu.memory_space<vmem>>, vector<30x32xf32>
      tpu.vector_store %arg21[%c0_115, %c0_116], %236 {strides = array<i32>} : memref<30x32xf32, #tpu.memory_space<vmem>>, vector<30x32xf32>,
    } else {
    }
    return
  }
  func.func @transform_0(%arg0: i32) -> (i32, i32) {
    %c0_i32 = arith.constant 0 : i32
    %c0_i32_0 = arith.constant 0 : i32
    %c0_i32_1 = arith.constant 0 : i32
    return %c0_i32, %c0_i32_0 : i32, i32
  }
  func.func @transform_1(%arg0: i32) -> (i32, i32) {
    %c0_i32 = arith.constant 0 : i32
    %c0_i32_0 = arith.constant 0 : i32
    %c0_i32_1 = arith.constant 0 : i32
    return %c0_i32, %c0_i32_0 : i32, i32
  }
  func.func @transform_2(%arg0: i32) -> (i32, i32, i32) {
    %c0_i32 = arith.constant 0 : i32
    %c0_i32_0 = arith.constant 0 : i32
    %c0_i32_1 = arith.constant 0 : i32
    return %arg0, %c0_i32, %c0_i32_0 : i32, i32, i32
  }
  func.func @transform_3(%arg0: i32) -> (i32, i32, i32) {
    %c0_i32 = arith.constant 0 : i32
    %c0_i32_0 = arith.constant 0 : i32
    %c0_i32_1 = arith.constant 0 : i32
    return %arg0, %c0_i32, %c0_i32_0 : i32, i32, i32
  }
  func.func @transform_4(%arg0: i32) -> (i32, i32, i32) {
    %c0_i32 = arith.constant 0 : i32
    %c0_i32_0 = arith.constant 0 : i32
    %c0_i32_1 = arith.constant 0 : i32
    return %arg0, %c0_i32, %c0_i32_0 : i32, i32, i32
  }
  func.func @transform_5(%arg0: i32) -> (i32, i32, i32) {
    %c0_i32 = arith.constant 0 : i32
    %c0_i32_0 = arith.constant 0 : i32
    %c0_i32_1 = arith.constant 0 : i32
    return %arg0, %c0_i32, %c0_i32_0 : i32, i32, i32
  }
  func.func @transform_6(%arg0: i32) -> (i32, i32, i32) {
    %c0_i32 = arith.constant 0 : i32
    %c0_i32_0 = arith.constant 0 : i32
    %c0_i32_1 = arith.constant 0 : i32
    return %arg0, %c0_i32, %c0_i32_0 : i32, i32, i32
  }
  func.func @transform_7(%arg0: i32) -> (i32, i32, i32) {
    %c0_i32 = arith.constant 0 : i32
    %c0_i32_0 = arith.constant 0 : i32
    %c0_i32_1 = arith.constant 0 : i32
    return %arg0, %c0_i32, %c0_i32_0 : i32, i32, i32
  }
  func.func @transform_8(%arg0: i32) -> (i32, i32, i32) {
    %c0_i32 = arith.constant 0 : i32
    %c0_i32_0 = arith.constant 0 : i32
    %c0_i32_1 = arith.constant 0 : i32
    return %arg0, %c0_i32, %c0_i32_0 : i32, i32, i32
  }
  func.func @transform_9(%arg0: i32) -> (i32, i32, i32) {
    %c0_i32 = arith.constant 0 : i32
    %c0_i32_0 = arith.constant 0 : i32
    %c0_i32_1 = arith.constant 0 : i32
    return %arg0, %c0_i32, %c0_i32_0 : i32, i32, i32
  }
  func.func @transform_10(%arg0: i32) -> (i32, i32, i32) {
    %c0_i32 = arith.constant 0 : i32
    %c0_i32_0 = arith.constant 0 : i32
    %c0_i32_1 = arith.constant 0 : i32
    return %arg0, %c0_i32, %c0_i32_0 : i32, i32, i32
  }
  func.func @transform_11(%arg0: i32) -> (i32, i32, i32) {
    %c0_i32 = arith.constant 0 : i32
    %c0_i32_0 = arith.constant 0 : i32
    %c0_i32_1 = arith.constant 0 : i32
    return %arg0, %c0_i32, %c0_i32_0 : i32, i32, i32
  }
  func.func @transform_12(%arg0: i32) -> (i32, i32, i32) {
    %c0_i32 = arith.constant 0 : i32
    %c0_i32_0 = arith.constant 0 : i32
    %c0_i32_1 = arith.constant 0 : i32
    return %arg0, %c0_i32, %c0_i32_0 : i32, i32, i32
  }
  func.func @transform_13(%arg0: i32) -> (i32, i32, i32) {
    %c0_i32 = arith.constant 0 : i32
    %c0_i32_0 = arith.constant 0 : i32
    %c0_i32_1 = arith.constant 0 : i32
    return %arg0, %c0_i32, %c0_i32_0 : i32, i32, i32
  }
  func.func @transform_14(%arg0: i32) -> (i32, i32, i32) {
    %c0_i32 = arith.constant 0 : i32
    %c0_i32_0 = arith.constant 0 : i32
    %c0_i32_1 = arith.constant 0 : i32
    return %arg0, %c0_i32, %c0_i32_0 : i32, i32, i32
  }
  func.func @transform_15(%arg0: i32) -> (i32, i32, i32) {
    %c0_i32 = arith.constant 0 : i32
    %c0_i32_0 = arith.constant 0 : i32
    %c0_i32_1 = arith.constant 0 : i32
    return %arg0, %c0_i32, %c0_i32_0 : i32, i32, i32
  }
  func.func @transform_16(%arg0: i32) -> (i32, i32, i32) {
    %c0_i32 = arith.constant 0 : i32
    %c0_i32_0 = arith.constant 0 : i32
    %c0_i32_1 = arith.constant 0 : i32
    return %arg0, %c0_i32, %c0_i32_0 : i32, i32, i32
  }
  func.func @transform_17(%arg0: i32) -> (i32, i32, i32) {
    %c0_i32 = arith.constant 0 : i32
    %c0_i32_0 = arith.constant 0 : i32
    %c0_i32_1 = arith.constant 0 : i32
    return %arg0, %c0_i32, %c0_i32_0 : i32, i32, i32
  }
  func.func @transform_18(%arg0: i32) -> (i32, i32) {
    %c0_i32 = arith.constant 0 : i32
    %c0_i32_0 = arith.constant 0 : i32
    %c0_i32_1 = arith.constant 0 : i32
    return %c0_i32, %c0_i32_0 : i32, i32
  }
  func.func @transform_19(%arg0: i32) -> (i32, i32) {
    %c0_i32 = arith.constant 0 : i32
    %c0_i32_0 = arith.constant 0 : i32
    %c0_i32_1 = arith.constant 0 : i32
    return %c0_i32, %c0_i32_0 : i32, i32
  }
  func.func @transform_20(%arg0: i32) -> (i32, i32) {
    %c0_i32 = arith.constant 0 : i32
    %c0_i32_0 = arith.constant 0 : i32
    %c0_i32_1 = arith.constant 0 : i32
    return %c0_i32, %c0_i32_0 : i32, i32
  }
}

module attributes {stable_mosaic.version = 11 : i64} {
  func.func @_decoder_stack_kernel(%arg0: i32, %arg1: memref<30x32xf32, #tpu.memory_space<vmem>>, %arg2: memref<30x32xf32, #tpu.memory_space<vmem>>, %arg3: memref<30x30xf32, #tpu.memory_space<vmem>>, %arg4: memref<1x32x32xf32, #tpu.memory_space<vmem>>, %arg5: memref<1x1x32xf32, #tpu.memory_space<vmem>>, %arg6: memref<1x32x32xf32, #tpu.memory_space<vmem>>, %arg7: memref<1x1x32xf32, #tpu.memory_space<vmem>>, %arg8: memref<1x32x32xf32, #tpu.memory_space<vmem>>, %arg9: memref<1x1x32xf32, #tpu.memory_space<vmem>>, %arg10: memref<1x32x32xf32, #tpu.memory_space<vmem>>, %arg11: memref<1x1x32xf32, #tpu.memory_space<vmem>>, %arg12: memref<1x32x32xf32, #tpu.memory_space<vmem>>, %arg13: memref<1x1x32xf32, #tpu.memory_space<vmem>>, %arg14: memref<1x32x32xf32, #tpu.memory_space<vmem>>, %arg15: memref<1x1x32xf32, #tpu.memory_space<vmem>>, %arg16: memref<1x32x32xf32, #tpu.memory_space<vmem>>, %arg17: memref<1x1x32xf32, #tpu.memory_space<vmem>>, %arg18: memref<1x32x32xf32, #tpu.memory_space<vmem>>, %arg19: memref<1x1x32xf32, #tpu.memory_space<vmem>>, %arg20: memref<1x1x32xf32, #tpu.memory_space<vmem>>, %arg21: memref<1x1x32xf32, #tpu.memory_space<vmem>>, %arg22: memref<1x1x32xf32, #tpu.memory_space<vmem>>, %arg23: memref<1x1x32xf32, #tpu.memory_space<vmem>>, %arg24: memref<1x1x32xf32, #tpu.memory_space<vmem>>, %arg25: memref<1x1x32xf32, #tpu.memory_space<vmem>>, %arg26: memref<1x32x64xf32, #tpu.memory_space<vmem>>, %arg27: memref<1x1x64xf32, #tpu.memory_space<vmem>>, %arg28: memref<1x64x32xf32, #tpu.memory_space<vmem>>, %arg29: memref<1x1x32xf32, #tpu.memory_space<vmem>>, %arg30: memref<1x32xf32, #tpu.memory_space<vmem>>, %arg31: memref<1x32xf32, #tpu.memory_space<vmem>>, %arg32: memref<30x32xf32, #tpu.memory_space<vmem>>, %arg33: memref<30x32xf32, #tpu.memory_space<vmem>>) attributes {dimension_semantics = [#tpu.dimension_semantics<arbitrary>], iteration_bounds = array<i64: 6>, scalar_prefetch = 0 : i64, scratch_operands = 1 : i64, tpu.core_type = #tpu.core_type<tc>, window_params = [{pipeline_mode = #tpu.pipeline_mode<synchronous>, transform_indices = @transform_0, window_bounds = array<i64: 30, 32>}, {pipeline_mode = #tpu.pipeline_mode<synchronous>, transform_indices = @transform_1, window_bounds = array<i64: 30, 32>}, {pipeline_mode = #tpu.pipeline_mode<synchronous>, transform_indices = @transform_2, window_bounds = array<i64: 30, 30>}, {transform_indices = @transform_3, window_bounds = array<i64: 1, 32, 32>}, {transform_indices = @transform_4, window_bounds = array<i64: 1, 1, 32>}, {transform_indices = @transform_5, window_bounds = array<i64: 1, 32, 32>}, {transform_indices = @transform_6, window_bounds = array<i64: 1, 1, 32>}, {transform_indices = @transform_7, window_bounds = array<i64: 1, 32, 32>}, {transform_indices = @transform_8, window_bounds = array<i64: 1, 1, 32>}, {transform_indices = @transform_9, window_bounds = array<i64: 1, 32, 32>}, {transform_indices = @transform_10, window_bounds = array<i64: 1, 1, 32>}, {transform_indices = @transform_11, window_bounds = array<i64: 1, 32, 32>}, {transform_indices = @transform_12, window_bounds = array<i64: 1, 1, 32>}, {transform_indices = @transform_13, window_bounds = array<i64: 1, 32, 32>}, {transform_indices = @transform_14, window_bounds = array<i64: 1, 1, 32>}, {transform_indices = @transform_15, window_bounds = array<i64: 1, 32, 32>}, {transform_indices = @transform_16, window_bounds = array<i64: 1, 1, 32>}, {transform_indices = @transform_17, window_bounds = array<i64: 1, 32, 32>}, {transform_indices = @transform_18, window_bounds = array<i64: 1, 1, 32>}, {transform_indices = @transform_19, window_bounds = array<i64: 1, 1, 32>}, {transform_indices = @transform_20, window_bounds = array<i64: 1, 1, 32>}, {transform_indices = @transform_21, window_bounds = array<i64: 1, 1, 32>}, {transform_indices = @transform_22, window_bounds = array<i64: 1, 1, 32>}, {transform_indices = @transform_23, window_bounds = array<i64: 1, 1, 32>}, {transform_indices = @transform_24, window_bounds = array<i64: 1, 1, 32>}, {transform_indices = @transform_25, window_bounds = array<i64: 1, 32, 64>}, {transform_indices = @transform_26, window_bounds = array<i64: 1, 1, 64>}, {transform_indices = @transform_27, window_bounds = array<i64: 1, 64, 32>}, {transform_indices = @transform_28, window_bounds = array<i64: 1, 1, 32>}, {pipeline_mode = #tpu.pipeline_mode<synchronous>, transform_indices = @transform_29, window_bounds = array<i64: 1, 32>}, {pipeline_mode = #tpu.pipeline_mode<synchronous>, transform_indices = @transform_30, window_bounds = array<i64: 1, 32>}, {pipeline_mode = #tpu.pipeline_mode<synchronous>, transform_indices = @transform_31, window_bounds = array<i64: 30, 32>}]} {
    %c0_i32 = arith.constant 0 : i32
    %0 = arith.cmpi eq, %arg0, %c0_i32 : i32
    %1 = arith.extui %0 : i1 to i32
    %c0_i32_0 = arith.constant 0 : i32
    %2 = arith.cmpi ne, %1, %c0_i32_0 : i32
    scf.if %2 {
      %c0_168 = arith.constant 0 : index
      %c0_169 = arith.constant 0 : index
      %347 = vector.load %arg1[%c0_168, %c0_169] : memref<30x32xf32, #tpu.memory_space<vmem>>, vector<30x32xf32>
      %c0_170 = arith.constant 0 : index
      %c0_171 = arith.constant 0 : index
      %348 = vector.load %arg33[%c0_170, %c0_171] : memref<30x32xf32, #tpu.memory_space<vmem>>, vector<30x32xf32>
      tpu.vector_store %arg33[%c0_170, %c0_171], %347 {strides = array<i32>} : memref<30x32xf32, #tpu.memory_space<vmem>>, vector<30x32xf32>,
    } else {
    }
    %3 = tpu.iota {dimensions = array<i32: 1>} : vector<1x32xi32>
    %c0_i32_1 = arith.constant 0 : i32
    %4 = vector.broadcast %c0_i32_1 : i32 to vector<1x32xi32>
    %5 = arith.cmpi sge, %3, %4 : vector<1x32xi32>
    %c8_i32 = arith.constant 8 : i32
    %6 = vector.broadcast %c8_i32 : i32 to vector<1x32xi32>
    %7 = arith.cmpi slt, %3, %6 : vector<1x32xi32>
    %8 = arith.andi %5, %7 : vector<1x32xi1>
    %cst = arith.constant 1.000000e+00 : f32
    %cst_2 = arith.constant 0.000000e+00 : f32
    %9 = vector.broadcast %cst : f32 to vector<1x32xf32>
    %10 = vector.broadcast %cst_2 : f32 to vector<1x32xf32>
    %11 = arith.select %8, %9, %10 : vector<1x32xi1>, vector<1x32xf32>
    %c8_i32_3 = arith.constant 8 : i32
    %12 = vector.broadcast %c8_i32_3 : i32 to vector<1x32xi32>
    %13 = arith.cmpi sge, %3, %12 : vector<1x32xi32>
    %c16_i32 = arith.constant 16 : i32
    %14 = vector.broadcast %c16_i32 : i32 to vector<1x32xi32>
    %15 = arith.cmpi slt, %3, %14 : vector<1x32xi32>
    %16 = arith.andi %13, %15 : vector<1x32xi1>
    %cst_4 = arith.constant 1.000000e+00 : f32
    %cst_5 = arith.constant 0.000000e+00 : f32
    %17 = vector.broadcast %cst_4 : f32 to vector<1x32xf32>
    %18 = vector.broadcast %cst_5 : f32 to vector<1x32xf32>
    %19 = arith.select %16, %17, %18 : vector<1x32xi1>, vector<1x32xf32>
    %c16_i32_6 = arith.constant 16 : i32
    %20 = vector.broadcast %c16_i32_6 : i32 to vector<1x32xi32>
    %21 = arith.cmpi sge, %3, %20 : vector<1x32xi32>
    %c24_i32 = arith.constant 24 : i32
    %22 = vector.broadcast %c24_i32 : i32 to vector<1x32xi32>
    %23 = arith.cmpi slt, %3, %22 : vector<1x32xi32>
    %24 = arith.andi %21, %23 : vector<1x32xi1>
    %cst_7 = arith.constant 1.000000e+00 : f32
    %cst_8 = arith.constant 0.000000e+00 : f32
    %25 = vector.broadcast %cst_7 : f32 to vector<1x32xf32>
    %26 = vector.broadcast %cst_8 : f32 to vector<1x32xf32>
    %27 = arith.select %24, %25, %26 : vector<1x32xi1>, vector<1x32xf32>
    %c24_i32_9 = arith.constant 24 : i32
    %28 = vector.broadcast %c24_i32_9 : i32 to vector<1x32xi32>
    %29 = arith.cmpi sge, %3, %28 : vector<1x32xi32>
    %c32_i32 = arith.constant 32 : i32
    %30 = vector.broadcast %c32_i32 : i32 to vector<1x32xi32>
    %31 = arith.cmpi slt, %3, %30 : vector<1x32xi32>
    %32 = arith.andi %29, %31 : vector<1x32xi1>
    %cst_10 = arith.constant 1.000000e+00 : f32
    %cst_11 = arith.constant 0.000000e+00 : f32
    %33 = vector.broadcast %cst_10 : f32 to vector<1x32xf32>
    %34 = vector.broadcast %cst_11 : f32 to vector<1x32xf32>
    %35 = arith.select %32, %33, %34 : vector<1x32xi1>, vector<1x32xf32>
    %c0 = arith.constant 0 : index
    %c0_12 = arith.constant 0 : index
    %36 = vector.load %arg3[%c0, %c0_12] : memref<30x30xf32, #tpu.memory_space<vmem>>, vector<30x30xf32>
    %c0_13 = arith.constant 0 : index
    %c0_14 = arith.constant 0 : index
    %37 = vector.load %arg33[%c0_13, %c0_14] : memref<30x32xf32, #tpu.memory_space<vmem>>, vector<30x32xf32>
    %c0_15 = arith.constant 0 : index
    %c0_16 = arith.constant 0 : index
    %c0_17 = arith.constant 0 : index
    %38 = vector.load %arg4[%c0_15, %c0_16, %c0_17] : memref<1x32x32xf32, #tpu.memory_space<vmem>>, vector<1x32x32xf32>
    %39 = vector.shape_cast %38 : vector<1x32x32xf32> to vector<32x32xf32>
    %c0_18 = arith.constant 0 : index
    %c0_19 = arith.constant 0 : index
    %c0_20 = arith.constant 0 : index
    %40 = vector.load %arg5[%c0_18, %c0_19, %c0_20] : memref<1x1x32xf32, #tpu.memory_space<vmem>>, vector<1x1x32xf32>
    %41 = vector.shape_cast %40 : vector<1x1x32xf32> to vector<1x32xf32>
    %c0_21 = arith.constant 0 : index
    %c0_22 = arith.constant 0 : index
    %c0_23 = arith.constant 0 : index
    %42 = vector.load %arg6[%c0_21, %c0_22, %c0_23] : memref<1x32x32xf32, #tpu.memory_space<vmem>>, vector<1x32x32xf32>
    %43 = vector.shape_cast %42 : vector<1x32x32xf32> to vector<32x32xf32>
    %c0_24 = arith.constant 0 : index
    %c0_25 = arith.constant 0 : index
    %c0_26 = arith.constant 0 : index
    %44 = vector.load %arg7[%c0_24, %c0_25, %c0_26] : memref<1x1x32xf32, #tpu.memory_space<vmem>>, vector<1x1x32xf32>
    %45 = vector.shape_cast %44 : vector<1x1x32xf32> to vector<1x32xf32>
    %c0_27 = arith.constant 0 : index
    %c0_28 = arith.constant 0 : index
    %c0_29 = arith.constant 0 : index
    %46 = vector.load %arg8[%c0_27, %c0_28, %c0_29] : memref<1x32x32xf32, #tpu.memory_space<vmem>>, vector<1x32x32xf32>
    %47 = vector.shape_cast %46 : vector<1x32x32xf32> to vector<32x32xf32>
    %c0_30 = arith.constant 0 : index
    %c0_31 = arith.constant 0 : index
    %c0_32 = arith.constant 0 : index
    %48 = vector.load %arg9[%c0_30, %c0_31, %c0_32] : memref<1x1x32xf32, #tpu.memory_space<vmem>>, vector<1x1x32xf32>
    %49 = vector.shape_cast %48 : vector<1x1x32xf32> to vector<1x32xf32>
    %c0_33 = arith.constant 0 : index
    %c0_34 = arith.constant 0 : index
    %c0_35 = arith.constant 0 : index
    %50 = vector.load %arg10[%c0_33, %c0_34, %c0_35] : memref<1x32x32xf32, #tpu.memory_space<vmem>>, vector<1x32x32xf32>
    %51 = vector.shape_cast %50 : vector<1x32x32xf32> to vector<32x32xf32>
    %c0_36 = arith.constant 0 : index
    %c0_37 = arith.constant 0 : index
    %c0_38 = arith.constant 0 : index
    %52 = vector.load %arg11[%c0_36, %c0_37, %c0_38] : memref<1x1x32xf32, #tpu.memory_space<vmem>>, vector<1x1x32xf32>
    %53 = vector.shape_cast %52 : vector<1x1x32xf32> to vector<1x32xf32>
    %cst_39 = arith.constant dense<0.000000e+00> : vector<30x32xf32>
    %54 = tpu.matmul %37, %39, %cst_39 {dimension_numbers = #tpu.dot_dimension_numbers<[1], [0], [0], [1], [0, 0, 1, 1], [], []>} : vector<30x32xf32>, vector<32x32xf32>, vector<30x32xf32> -> vector<30x32xf32>
    %55 = vector.broadcast %41 : vector<1x32xf32> to vector<30x32xf32>
    %56 = arith.addf %54, %55 : vector<30x32xf32>
    %cst_40 = arith.constant dense<0.000000e+00> : vector<30x32xf32>
    %57 = tpu.matmul %37, %43, %cst_40 {dimension_numbers = #tpu.dot_dimension_numbers<[1], [0], [0], [1], [0, 0, 1, 1], [], []>} : vector<30x32xf32>, vector<32x32xf32>, vector<30x32xf32> -> vector<30x32xf32>
    %58 = vector.broadcast %45 : vector<1x32xf32> to vector<30x32xf32>
    %59 = arith.addf %57, %58 : vector<30x32xf32>
    %cst_41 = arith.constant dense<0.000000e+00> : vector<30x32xf32>
    %60 = tpu.matmul %37, %47, %cst_41 {dimension_numbers = #tpu.dot_dimension_numbers<[1], [0], [0], [1], [0, 0, 1, 1], [], []>} : vector<30x32xf32>, vector<32x32xf32>, vector<30x32xf32> -> vector<30x32xf32>
    %61 = vector.broadcast %49 : vector<1x32xf32> to vector<30x32xf32>
    %62 = arith.addf %60, %61 : vector<30x32xf32>
    %63 = tpu.transpose %59, [1, 0] : vector<30x32xf32> -> vector<32x30xf32>
    %cst_42 = arith.constant 0.000000e+00 : f32
    %64 = vector.broadcast %cst_42 : f32 to vector<30x32xf32>
    %cst_43 = arith.constant 0.353553385 : f32
    %65 = vector.broadcast %cst_43 : f32 to vector<1x32xf32>
    %66 = arith.mulf %11, %65 : vector<1x32xf32>
    %67 = vector.broadcast %66 : vector<1x32xf32> to vector<30x32xf32>
    %68 = arith.mulf %56, %67 : vector<30x32xf32>
    %cst_44 = arith.constant dense<0.000000e+00> : vector<30x30xf32>
    %69 = tpu.matmul %68, %63, %cst_44 {dimension_numbers = #tpu.dot_dimension_numbers<[1], [0], [0], [1], [0, 0, 1, 1], [], []>} : vector<30x32xf32>, vector<32x30xf32>, vector<30x30xf32> -> vector<30x30xf32>
    %70 = arith.addf %69, %36 : vector<30x30xf32>
    %cst_45 = arith.constant dense<0xFF800000> : vector<30xf32>
    %71 = vector.multi_reduction <maximumf>, %70, %cst_45 [1] : vector<30x30xf32> to vector<30xf32>
    %72 = vector.shape_cast %71 : vector<30xf32> to vector<30x1xf32>
    %73 = vector.broadcast %72 : vector<30x1xf32> to vector<30x30xf32>
    %74 = arith.subf %70, %73 : vector<30x30xf32>
    %75 = math.exp %74 : vector<30x30xf32>
    %cst_46 = arith.constant dense<0.000000e+00> : vector<30xf32>
    %76 = vector.multi_reduction <add>, %75, %cst_46 [1] : vector<30x30xf32> to vector<30xf32>
    %77 = vector.shape_cast %76 : vector<30xf32> to vector<30x1xf32>
    %78 = vector.broadcast %77 : vector<30x1xf32> to vector<30x30xf32>
    %79 = arith.divf %75, %78 : vector<30x30xf32>
    %80 = vector.broadcast %11 : vector<1x32xf32> to vector<30x32xf32>
    %81 = arith.mulf %62, %80 : vector<30x32xf32>
    %cst_47 = arith.constant dense<0.000000e+00> : vector<30x32xf32>
    %82 = tpu.matmul %79, %81, %cst_47 {dimension_numbers = #tpu.dot_dimension_numbers<[1], [0], [0], [1], [0, 0, 1, 1], [], []>} : vector<30x30xf32>, vector<30x32xf32>, vector<30x32xf32> -> vector<30x32xf32>
    %83 = arith.addf %64, %82 : vector<30x32xf32>
    %cst_48 = arith.constant 0.353553385 : f32
    %84 = vector.broadcast %cst_48 : f32 to vector<1x32xf32>
    %85 = arith.mulf %19, %84 : vector<1x32xf32>
    %86 = vector.broadcast %85 : vector<1x32xf32> to vector<30x32xf32>
    %87 = arith.mulf %56, %86 : vector<30x32xf32>
    %cst_49 = arith.constant dense<0.000000e+00> : vector<30x30xf32>
    %88 = tpu.matmul %87, %63, %cst_49 {dimension_numbers = #tpu.dot_dimension_numbers<[1], [0], [0], [1], [0, 0, 1, 1], [], []>} : vector<30x32xf32>, vector<32x30xf32>, vector<30x30xf32> -> vector<30x30xf32>
    %89 = arith.addf %88, %36 : vector<30x30xf32>
    %cst_50 = arith.constant dense<0xFF800000> : vector<30xf32>
    %90 = vector.multi_reduction <maximumf>, %89, %cst_50 [1] : vector<30x30xf32> to vector<30xf32>
    %91 = vector.shape_cast %90 : vector<30xf32> to vector<30x1xf32>
    %92 = vector.broadcast %91 : vector<30x1xf32> to vector<30x30xf32>
    %93 = arith.subf %89, %92 : vector<30x30xf32>
    %94 = math.exp %93 : vector<30x30xf32>
    %cst_51 = arith.constant dense<0.000000e+00> : vector<30xf32>
    %95 = vector.multi_reduction <add>, %94, %cst_51 [1] : vector<30x30xf32> to vector<30xf32>
    %96 = vector.shape_cast %95 : vector<30xf32> to vector<30x1xf32>
    %97 = vector.broadcast %96 : vector<30x1xf32> to vector<30x30xf32>
    %98 = arith.divf %94, %97 : vector<30x30xf32>
    %99 = vector.broadcast %19 : vector<1x32xf32> to vector<30x32xf32>
    %100 = arith.mulf %62, %99 : vector<30x32xf32>
    %cst_52 = arith.constant dense<0.000000e+00> : vector<30x32xf32>
    %101 = tpu.matmul %98, %100, %cst_52 {dimension_numbers = #tpu.dot_dimension_numbers<[1], [0], [0], [1], [0, 0, 1, 1], [], []>} : vector<30x30xf32>, vector<30x32xf32>, vector<30x32xf32> -> vector<30x32xf32>
    %102 = arith.addf %83, %101 : vector<30x32xf32>
    %cst_53 = arith.constant 0.353553385 : f32
    %103 = vector.broadcast %cst_53 : f32 to vector<1x32xf32>
    %104 = arith.mulf %27, %103 : vector<1x32xf32>
    %105 = vector.broadcast %104 : vector<1x32xf32> to vector<30x32xf32>
    %106 = arith.mulf %56, %105 : vector<30x32xf32>
    %cst_54 = arith.constant dense<0.000000e+00> : vector<30x30xf32>
    %107 = tpu.matmul %106, %63, %cst_54 {dimension_numbers = #tpu.dot_dimension_numbers<[1], [0], [0], [1], [0, 0, 1, 1], [], []>} : vector<30x32xf32>, vector<32x30xf32>, vector<30x30xf32> -> vector<30x30xf32>
    %108 = arith.addf %107, %36 : vector<30x30xf32>
    %cst_55 = arith.constant dense<0xFF800000> : vector<30xf32>
    %109 = vector.multi_reduction <maximumf>, %108, %cst_55 [1] : vector<30x30xf32> to vector<30xf32>
    %110 = vector.shape_cast %109 : vector<30xf32> to vector<30x1xf32>
    %111 = vector.broadcast %110 : vector<30x1xf32> to vector<30x30xf32>
    %112 = arith.subf %108, %111 : vector<30x30xf32>
    %113 = math.exp %112 : vector<30x30xf32>
    %cst_56 = arith.constant dense<0.000000e+00> : vector<30xf32>
    %114 = vector.multi_reduction <add>, %113, %cst_56 [1] : vector<30x30xf32> to vector<30xf32>
    %115 = vector.shape_cast %114 : vector<30xf32> to vector<30x1xf32>
    %116 = vector.broadcast %115 : vector<30x1xf32> to vector<30x30xf32>
    %117 = arith.divf %113, %116 : vector<30x30xf32>
    %118 = vector.broadcast %27 : vector<1x32xf32> to vector<30x32xf32>
    %119 = arith.mulf %62, %118 : vector<30x32xf32>
    %cst_57 = arith.constant dense<0.000000e+00> : vector<30x32xf32>
    %120 = tpu.matmul %117, %119, %cst_57 {dimension_numbers = #tpu.dot_dimension_numbers<[1], [0], [0], [1], [0, 0, 1, 1], [], []>} : vector<30x30xf32>, vector<30x32xf32>, vector<30x32xf32> -> vector<30x32xf32>
    %121 = arith.addf %102, %120 : vector<30x32xf32>
    %cst_58 = arith.constant 0.353553385 : f32
    %122 = vector.broadcast %cst_58 : f32 to vector<1x32xf32>
    %123 = arith.mulf %35, %122 : vector<1x32xf32>
    %124 = vector.broadcast %123 : vector<1x32xf32> to vector<30x32xf32>
    %125 = arith.mulf %56, %124 : vector<30x32xf32>
    %cst_59 = arith.constant dense<0.000000e+00> : vector<30x30xf32>
    %126 = tpu.matmul %125, %63, %cst_59 {dimension_numbers = #tpu.dot_dimension_numbers<[1], [0], [0], [1], [0, 0, 1, 1], [], []>} : vector<30x32xf32>, vector<32x30xf32>, vector<30x30xf32> -> vector<30x30xf32>
    %127 = arith.addf %126, %36 : vector<30x30xf32>
    %cst_60 = arith.constant dense<0xFF800000> : vector<30xf32>
    %128 = vector.multi_reduction <maximumf>, %127, %cst_60 [1] : vector<30x30xf32> to vector<30xf32>
    %129 = vector.shape_cast %128 : vector<30xf32> to vector<30x1xf32>
    %130 = vector.broadcast %129 : vector<30x1xf32> to vector<30x30xf32>
    %131 = arith.subf %127, %130 : vector<30x30xf32>
    %132 = math.exp %131 : vector<30x30xf32>
    %cst_61 = arith.constant dense<0.000000e+00> : vector<30xf32>
    %133 = vector.multi_reduction <add>, %132, %cst_61 [1] : vector<30x30xf32> to vector<30xf32>
    %134 = vector.shape_cast %133 : vector<30xf32> to vector<30x1xf32>
    %135 = vector.broadcast %134 : vector<30x1xf32> to vector<30x30xf32>
    %136 = arith.divf %132, %135 : vector<30x30xf32>
    %137 = vector.broadcast %35 : vector<1x32xf32> to vector<30x32xf32>
    %138 = arith.mulf %62, %137 : vector<30x32xf32>
    %cst_62 = arith.constant dense<0.000000e+00> : vector<30x32xf32>
    %139 = tpu.matmul %136, %138, %cst_62 {dimension_numbers = #tpu.dot_dimension_numbers<[1], [0], [0], [1], [0, 0, 1, 1], [], []>} : vector<30x30xf32>, vector<30x32xf32>, vector<30x32xf32> -> vector<30x32xf32>
    %140 = arith.addf %121, %139 : vector<30x32xf32>
    %cst_63 = arith.constant dense<0.000000e+00> : vector<30x32xf32>
    %141 = tpu.matmul %140, %51, %cst_63 {dimension_numbers = #tpu.dot_dimension_numbers<[1], [0], [0], [1], [0, 0, 1, 1], [], []>} : vector<30x32xf32>, vector<32x32xf32>, vector<30x32xf32> -> vector<30x32xf32>
    %142 = vector.broadcast %53 : vector<1x32xf32> to vector<30x32xf32>
    %143 = arith.addf %141, %142 : vector<30x32xf32>
    %144 = arith.addf %37, %143 : vector<30x32xf32>
    %c0_64 = arith.constant 0 : index
    %c0_65 = arith.constant 0 : index
    %c0_66 = arith.constant 0 : index
    %145 = vector.load %arg20[%c0_64, %c0_65, %c0_66] : memref<1x1x32xf32, #tpu.memory_space<vmem>>, vector<1x1x32xf32>
    %146 = vector.shape_cast %145 : vector<1x1x32xf32> to vector<1x32xf32>
    %c0_67 = arith.constant 0 : index
    %c0_68 = arith.constant 0 : index
    %c0_69 = arith.constant 0 : index
    %147 = vector.load %arg21[%c0_67, %c0_68, %c0_69] : memref<1x1x32xf32, #tpu.memory_space<vmem>>, vector<1x1x32xf32>
    %148 = vector.shape_cast %147 : vector<1x1x32xf32> to vector<1x32xf32>
    %cst_70 = arith.constant dense<0.000000e+00> : vector<30xf32>
    %149 = vector.multi_reduction <add>, %144, %cst_70 [1] : vector<30x32xf32> to vector<30xf32>
    %150 = vector.shape_cast %149 : vector<30xf32> to vector<30x1xf32>
    %cst_71 = arith.constant 3.200000e+01 : f32
    %151 = vector.broadcast %cst_71 : f32 to vector<30x1xf32>
    %152 = arith.divf %150, %151 : vector<30x1xf32>
    %153 = vector.broadcast %152 : vector<30x1xf32> to vector<30x32xf32>
    %154 = arith.subf %144, %153 : vector<30x32xf32>
    %155 = arith.mulf %154, %154 : vector<30x32xf32>
    %cst_72 = arith.constant dense<0.000000e+00> : vector<30xf32>
    %156 = vector.multi_reduction <add>, %155, %cst_72 [1] : vector<30x32xf32> to vector<30xf32>
    %157 = vector.shape_cast %156 : vector<30xf32> to vector<30x1xf32>
    %cst_73 = arith.constant 3.200000e+01 : f32
    %158 = vector.broadcast %cst_73 : f32 to vector<30x1xf32>
    %159 = arith.divf %157, %158 : vector<30x1xf32>
    %cst_74 = arith.constant 9.99999974E-6 : f32
    %160 = vector.broadcast %cst_74 : f32 to vector<30x1xf32>
    %161 = arith.addf %159, %160 : vector<30x1xf32>
    %162 = math.rsqrt %161 : vector<30x1xf32>
    %163 = vector.broadcast %162 : vector<30x1xf32> to vector<30x32xf32>
    %164 = arith.mulf %154, %163 : vector<30x32xf32>
    %165 = vector.broadcast %146 : vector<1x32xf32> to vector<30x32xf32>
    %166 = arith.mulf %164, %165 : vector<30x32xf32>
    %167 = vector.broadcast %148 : vector<1x32xf32> to vector<30x32xf32>
    %168 = arith.addf %166, %167 : vector<30x32xf32>
    %c0_75 = arith.constant 0 : index
    %c0_76 = arith.constant 0 : index
    %169 = vector.load %arg2[%c0_75, %c0_76] : memref<30x32xf32, #tpu.memory_space<vmem>>, vector<30x32xf32>
    %c0_77 = arith.constant 0 : index
    %c0_78 = arith.constant 0 : index
    %c0_79 = arith.constant 0 : index
    %170 = vector.load %arg12[%c0_77, %c0_78, %c0_79] : memref<1x32x32xf32, #tpu.memory_space<vmem>>, vector<1x32x32xf32>
    %171 = vector.shape_cast %170 : vector<1x32x32xf32> to vector<32x32xf32>
    %c0_80 = arith.constant 0 : index
    %c0_81 = arith.constant 0 : index
    %c0_82 = arith.constant 0 : index
    %172 = vector.load %arg13[%c0_80, %c0_81, %c0_82] : memref<1x1x32xf32, #tpu.memory_space<vmem>>, vector<1x1x32xf32>
    %173 = vector.shape_cast %172 : vector<1x1x32xf32> to vector<1x32xf32>
    %c0_83 = arith.constant 0 : index
    %c0_84 = arith.constant 0 : index
    %c0_85 = arith.constant 0 : index
    %174 = vector.load %arg14[%c0_83, %c0_84, %c0_85] : memref<1x32x32xf32, #tpu.memory_space<vmem>>, vector<1x32x32xf32>
    %175 = vector.shape_cast %174 : vector<1x32x32xf32> to vector<32x32xf32>
    %c0_86 = arith.constant 0 : index
    %c0_87 = arith.constant 0 : index
    %c0_88 = arith.constant 0 : index
    %176 = vector.load %arg15[%c0_86, %c0_87, %c0_88] : memref<1x1x32xf32, #tpu.memory_space<vmem>>, vector<1x1x32xf32>
    %177 = vector.shape_cast %176 : vector<1x1x32xf32> to vector<1x32xf32>
    %c0_89 = arith.constant 0 : index
    %c0_90 = arith.constant 0 : index
    %c0_91 = arith.constant 0 : index
    %178 = vector.load %arg16[%c0_89, %c0_90, %c0_91] : memref<1x32x32xf32, #tpu.memory_space<vmem>>, vector<1x32x32xf32>
    %179 = vector.shape_cast %178 : vector<1x32x32xf32> to vector<32x32xf32>
    %c0_92 = arith.constant 0 : index
    %c0_93 = arith.constant 0 : index
    %c0_94 = arith.constant 0 : index
    %180 = vector.load %arg17[%c0_92, %c0_93, %c0_94] : memref<1x1x32xf32, #tpu.memory_space<vmem>>, vector<1x1x32xf32>
    %181 = vector.shape_cast %180 : vector<1x1x32xf32> to vector<1x32xf32>
    %c0_95 = arith.constant 0 : index
    %c0_96 = arith.constant 0 : index
    %c0_97 = arith.constant 0 : index
    %182 = vector.load %arg18[%c0_95, %c0_96, %c0_97] : memref<1x32x32xf32, #tpu.memory_space<vmem>>, vector<1x32x32xf32>
    %183 = vector.shape_cast %182 : vector<1x32x32xf32> to vector<32x32xf32>
    %c0_98 = arith.constant 0 : index
    %c0_99 = arith.constant 0 : index
    %c0_100 = arith.constant 0 : index
    %184 = vector.load %arg19[%c0_98, %c0_99, %c0_100] : memref<1x1x32xf32, #tpu.memory_space<vmem>>, vector<1x1x32xf32>
    %185 = vector.shape_cast %184 : vector<1x1x32xf32> to vector<1x32xf32>
    %cst_101 = arith.constant dense<0.000000e+00> : vector<30x32xf32>
    %186 = tpu.matmul %168, %171, %cst_101 {dimension_numbers = #tpu.dot_dimension_numbers<[1], [0], [0], [1], [0, 0, 1, 1], [], []>} : vector<30x32xf32>, vector<32x32xf32>, vector<30x32xf32> -> vector<30x32xf32>
    %187 = vector.broadcast %173 : vector<1x32xf32> to vector<30x32xf32>
    %188 = arith.addf %186, %187 : vector<30x32xf32>
    %cst_102 = arith.constant dense<0.000000e+00> : vector<30x32xf32>
    %189 = tpu.matmul %169, %175, %cst_102 {dimension_numbers = #tpu.dot_dimension_numbers<[1], [0], [0], [1], [0, 0, 1, 1], [], []>} : vector<30x32xf32>, vector<32x32xf32>, vector<30x32xf32> -> vector<30x32xf32>
    %190 = vector.broadcast %177 : vector<1x32xf32> to vector<30x32xf32>
    %191 = arith.addf %189, %190 : vector<30x32xf32>
    %cst_103 = arith.constant dense<0.000000e+00> : vector<30x32xf32>
    %192 = tpu.matmul %169, %179, %cst_103 {dimension_numbers = #tpu.dot_dimension_numbers<[1], [0], [0], [1], [0, 0, 1, 1], [], []>} : vector<30x32xf32>, vector<32x32xf32>, vector<30x32xf32> -> vector<30x32xf32>
    %193 = vector.broadcast %181 : vector<1x32xf32> to vector<30x32xf32>
    %194 = arith.addf %192, %193 : vector<30x32xf32>
    %195 = tpu.transpose %191, [1, 0] : vector<30x32xf32> -> vector<32x30xf32>
    %cst_104 = arith.constant 0.000000e+00 : f32
    %196 = vector.broadcast %cst_104 : f32 to vector<30x32xf32>
    %cst_105 = arith.constant 0.353553385 : f32
    %197 = vector.broadcast %cst_105 : f32 to vector<1x32xf32>
    %198 = arith.mulf %11, %197 : vector<1x32xf32>
    %199 = vector.broadcast %198 : vector<1x32xf32> to vector<30x32xf32>
    %200 = arith.mulf %188, %199 : vector<30x32xf32>
    %cst_106 = arith.constant dense<0.000000e+00> : vector<30x30xf32>
    %201 = tpu.matmul %200, %195, %cst_106 {dimension_numbers = #tpu.dot_dimension_numbers<[1], [0], [0], [1], [0, 0, 1, 1], [], []>} : vector<30x32xf32>, vector<32x30xf32>, vector<30x30xf32> -> vector<30x30xf32>
    %202 = arith.addf %201, %36 : vector<30x30xf32>
    %cst_107 = arith.constant dense<0xFF800000> : vector<30xf32>
    %203 = vector.multi_reduction <maximumf>, %202, %cst_107 [1] : vector<30x30xf32> to vector<30xf32>
    %204 = vector.shape_cast %203 : vector<30xf32> to vector<30x1xf32>
    %205 = vector.broadcast %204 : vector<30x1xf32> to vector<30x30xf32>
    %206 = arith.subf %202, %205 : vector<30x30xf32>
    %207 = math.exp %206 : vector<30x30xf32>
    %cst_108 = arith.constant dense<0.000000e+00> : vector<30xf32>
    %208 = vector.multi_reduction <add>, %207, %cst_108 [1] : vector<30x30xf32> to vector<30xf32>
    %209 = vector.shape_cast %208 : vector<30xf32> to vector<30x1xf32>
    %210 = vector.broadcast %209 : vector<30x1xf32> to vector<30x30xf32>
    %211 = arith.divf %207, %210 : vector<30x30xf32>
    %212 = vector.broadcast %11 : vector<1x32xf32> to vector<30x32xf32>
    %213 = arith.mulf %194, %212 : vector<30x32xf32>
    %cst_109 = arith.constant dense<0.000000e+00> : vector<30x32xf32>
    %214 = tpu.matmul %211, %213, %cst_109 {dimension_numbers = #tpu.dot_dimension_numbers<[1], [0], [0], [1], [0, 0, 1, 1], [], []>} : vector<30x30xf32>, vector<30x32xf32>, vector<30x32xf32> -> vector<30x32xf32>
    %215 = arith.addf %196, %214 : vector<30x32xf32>
    %cst_110 = arith.constant 0.353553385 : f32
    %216 = vector.broadcast %cst_110 : f32 to vector<1x32xf32>
    %217 = arith.mulf %19, %216 : vector<1x32xf32>
    %218 = vector.broadcast %217 : vector<1x32xf32> to vector<30x32xf32>
    %219 = arith.mulf %188, %218 : vector<30x32xf32>
    %cst_111 = arith.constant dense<0.000000e+00> : vector<30x30xf32>
    %220 = tpu.matmul %219, %195, %cst_111 {dimension_numbers = #tpu.dot_dimension_numbers<[1], [0], [0], [1], [0, 0, 1, 1], [], []>} : vector<30x32xf32>, vector<32x30xf32>, vector<30x30xf32> -> vector<30x30xf32>
    %221 = arith.addf %220, %36 : vector<30x30xf32>
    %cst_112 = arith.constant dense<0xFF800000> : vector<30xf32>
    %222 = vector.multi_reduction <maximumf>, %221, %cst_112 [1] : vector<30x30xf32> to vector<30xf32>
    %223 = vector.shape_cast %222 : vector<30xf32> to vector<30x1xf32>
    %224 = vector.broadcast %223 : vector<30x1xf32> to vector<30x30xf32>
    %225 = arith.subf %221, %224 : vector<30x30xf32>
    %226 = math.exp %225 : vector<30x30xf32>
    %cst_113 = arith.constant dense<0.000000e+00> : vector<30xf32>
    %227 = vector.multi_reduction <add>, %226, %cst_113 [1] : vector<30x30xf32> to vector<30xf32>
    %228 = vector.shape_cast %227 : vector<30xf32> to vector<30x1xf32>
    %229 = vector.broadcast %228 : vector<30x1xf32> to vector<30x30xf32>
    %230 = arith.divf %226, %229 : vector<30x30xf32>
    %231 = vector.broadcast %19 : vector<1x32xf32> to vector<30x32xf32>
    %232 = arith.mulf %194, %231 : vector<30x32xf32>
    %cst_114 = arith.constant dense<0.000000e+00> : vector<30x32xf32>
    %233 = tpu.matmul %230, %232, %cst_114 {dimension_numbers = #tpu.dot_dimension_numbers<[1], [0], [0], [1], [0, 0, 1, 1], [], []>} : vector<30x30xf32>, vector<30x32xf32>, vector<30x32xf32> -> vector<30x32xf32>
    %234 = arith.addf %215, %233 : vector<30x32xf32>
    %cst_115 = arith.constant 0.353553385 : f32
    %235 = vector.broadcast %cst_115 : f32 to vector<1x32xf32>
    %236 = arith.mulf %27, %235 : vector<1x32xf32>
    %237 = vector.broadcast %236 : vector<1x32xf32> to vector<30x32xf32>
    %238 = arith.mulf %188, %237 : vector<30x32xf32>
    %cst_116 = arith.constant dense<0.000000e+00> : vector<30x30xf32>
    %239 = tpu.matmul %238, %195, %cst_116 {dimension_numbers = #tpu.dot_dimension_numbers<[1], [0], [0], [1], [0, 0, 1, 1], [], []>} : vector<30x32xf32>, vector<32x30xf32>, vector<30x30xf32> -> vector<30x30xf32>
    %240 = arith.addf %239, %36 : vector<30x30xf32>
    %cst_117 = arith.constant dense<0xFF800000> : vector<30xf32>
    %241 = vector.multi_reduction <maximumf>, %240, %cst_117 [1] : vector<30x30xf32> to vector<30xf32>
    %242 = vector.shape_cast %241 : vector<30xf32> to vector<30x1xf32>
    %243 = vector.broadcast %242 : vector<30x1xf32> to vector<30x30xf32>
    %244 = arith.subf %240, %243 : vector<30x30xf32>
    %245 = math.exp %244 : vector<30x30xf32>
    %cst_118 = arith.constant dense<0.000000e+00> : vector<30xf32>
    %246 = vector.multi_reduction <add>, %245, %cst_118 [1] : vector<30x30xf32> to vector<30xf32>
    %247 = vector.shape_cast %246 : vector<30xf32> to vector<30x1xf32>
    %248 = vector.broadcast %247 : vector<30x1xf32> to vector<30x30xf32>
    %249 = arith.divf %245, %248 : vector<30x30xf32>
    %250 = vector.broadcast %27 : vector<1x32xf32> to vector<30x32xf32>
    %251 = arith.mulf %194, %250 : vector<30x32xf32>
    %cst_119 = arith.constant dense<0.000000e+00> : vector<30x32xf32>
    %252 = tpu.matmul %249, %251, %cst_119 {dimension_numbers = #tpu.dot_dimension_numbers<[1], [0], [0], [1], [0, 0, 1, 1], [], []>} : vector<30x30xf32>, vector<30x32xf32>, vector<30x32xf32> -> vector<30x32xf32>
    %253 = arith.addf %234, %252 : vector<30x32xf32>
    %cst_120 = arith.constant 0.353553385 : f32
    %254 = vector.broadcast %cst_120 : f32 to vector<1x32xf32>
    %255 = arith.mulf %35, %254 : vector<1x32xf32>
    %256 = vector.broadcast %255 : vector<1x32xf32> to vector<30x32xf32>
    %257 = arith.mulf %188, %256 : vector<30x32xf32>
    %cst_121 = arith.constant dense<0.000000e+00> : vector<30x30xf32>
    %258 = tpu.matmul %257, %195, %cst_121 {dimension_numbers = #tpu.dot_dimension_numbers<[1], [0], [0], [1], [0, 0, 1, 1], [], []>} : vector<30x32xf32>, vector<32x30xf32>, vector<30x30xf32> -> vector<30x30xf32>
    %259 = arith.addf %258, %36 : vector<30x30xf32>
    %cst_122 = arith.constant dense<0xFF800000> : vector<30xf32>
    %260 = vector.multi_reduction <maximumf>, %259, %cst_122 [1] : vector<30x30xf32> to vector<30xf32>
    %261 = vector.shape_cast %260 : vector<30xf32> to vector<30x1xf32>
    %262 = vector.broadcast %261 : vector<30x1xf32> to vector<30x30xf32>
    %263 = arith.subf %259, %262 : vector<30x30xf32>
    %264 = math.exp %263 : vector<30x30xf32>
    %cst_123 = arith.constant dense<0.000000e+00> : vector<30xf32>
    %265 = vector.multi_reduction <add>, %264, %cst_123 [1] : vector<30x30xf32> to vector<30xf32>
    %266 = vector.shape_cast %265 : vector<30xf32> to vector<30x1xf32>
    %267 = vector.broadcast %266 : vector<30x1xf32> to vector<30x30xf32>
    %268 = arith.divf %264, %267 : vector<30x30xf32>
    %269 = vector.broadcast %35 : vector<1x32xf32> to vector<30x32xf32>
    %270 = arith.mulf %194, %269 : vector<30x32xf32>
    %cst_124 = arith.constant dense<0.000000e+00> : vector<30x32xf32>
    %271 = tpu.matmul %268, %270, %cst_124 {dimension_numbers = #tpu.dot_dimension_numbers<[1], [0], [0], [1], [0, 0, 1, 1], [], []>} : vector<30x30xf32>, vector<30x32xf32>, vector<30x32xf32> -> vector<30x32xf32>
    %272 = arith.addf %253, %271 : vector<30x32xf32>
    %cst_125 = arith.constant dense<0.000000e+00> : vector<30x32xf32>
    %273 = tpu.matmul %272, %183, %cst_125 {dimension_numbers = #tpu.dot_dimension_numbers<[1], [0], [0], [1], [0, 0, 1, 1], [], []>} : vector<30x32xf32>, vector<32x32xf32>, vector<30x32xf32> -> vector<30x32xf32>
    %274 = vector.broadcast %185 : vector<1x32xf32> to vector<30x32xf32>
    %275 = arith.addf %273, %274 : vector<30x32xf32>
    %276 = arith.addf %168, %275 : vector<30x32xf32>
    %c0_126 = arith.constant 0 : index
    %c0_127 = arith.constant 0 : index
    %c0_128 = arith.constant 0 : index
    %277 = vector.load %arg22[%c0_126, %c0_127, %c0_128] : memref<1x1x32xf32, #tpu.memory_space<vmem>>, vector<1x1x32xf32>
    %278 = vector.shape_cast %277 : vector<1x1x32xf32> to vector<1x32xf32>
    %c0_129 = arith.constant 0 : index
    %c0_130 = arith.constant 0 : index
    %c0_131 = arith.constant 0 : index
    %279 = vector.load %arg23[%c0_129, %c0_130, %c0_131] : memref<1x1x32xf32, #tpu.memory_space<vmem>>, vector<1x1x32xf32>
    %280 = vector.shape_cast %279 : vector<1x1x32xf32> to vector<1x32xf32>
    %cst_132 = arith.constant dense<0.000000e+00> : vector<30xf32>
    %281 = vector.multi_reduction <add>, %276, %cst_132 [1] : vector<30x32xf32> to vector<30xf32>
    %282 = vector.shape_cast %281 : vector<30xf32> to vector<30x1xf32>
    %cst_133 = arith.constant 3.200000e+01 : f32
    %283 = vector.broadcast %cst_133 : f32 to vector<30x1xf32>
    %284 = arith.divf %282, %283 : vector<30x1xf32>
    %285 = vector.broadcast %284 : vector<30x1xf32> to vector<30x32xf32>
    %286 = arith.subf %276, %285 : vector<30x32xf32>
    %287 = arith.mulf %286, %286 : vector<30x32xf32>
    %cst_134 = arith.constant dense<0.000000e+00> : vector<30xf32>
    %288 = vector.multi_reduction <add>, %287, %cst_134 [1] : vector<30x32xf32> to vector<30xf32>
    %289 = vector.shape_cast %288 : vector<30xf32> to vector<30x1xf32>
    %cst_135 = arith.constant 3.200000e+01 : f32
    %290 = vector.broadcast %cst_135 : f32 to vector<30x1xf32>
    %291 = arith.divf %289, %290 : vector<30x1xf32>
    %cst_136 = arith.constant 9.99999974E-6 : f32
    %292 = vector.broadcast %cst_136 : f32 to vector<30x1xf32>
    %293 = arith.addf %291, %292 : vector<30x1xf32>
    %294 = math.rsqrt %293 : vector<30x1xf32>
    %295 = vector.broadcast %294 : vector<30x1xf32> to vector<30x32xf32>
    %296 = arith.mulf %286, %295 : vector<30x32xf32>
    %297 = vector.broadcast %278 : vector<1x32xf32> to vector<30x32xf32>
    %298 = arith.mulf %296, %297 : vector<30x32xf32>
    %299 = vector.broadcast %280 : vector<1x32xf32> to vector<30x32xf32>
    %300 = arith.addf %298, %299 : vector<30x32xf32>
    %c0_137 = arith.constant 0 : index
    %c0_138 = arith.constant 0 : index
    %c0_139 = arith.constant 0 : index
    %301 = vector.load %arg26[%c0_137, %c0_138, %c0_139] : memref<1x32x64xf32, #tpu.memory_space<vmem>>, vector<1x32x64xf32>
    %302 = vector.shape_cast %301 : vector<1x32x64xf32> to vector<32x64xf32>
    %cst_140 = arith.constant dense<0.000000e+00> : vector<30x64xf32>
    %303 = tpu.matmul %300, %302, %cst_140 {dimension_numbers = #tpu.dot_dimension_numbers<[1], [0], [0], [1], [0, 0, 1, 1], [], []>} : vector<30x32xf32>, vector<32x64xf32>, vector<30x64xf32> -> vector<30x64xf32>
    %c0_141 = arith.constant 0 : index
    %c0_142 = arith.constant 0 : index
    %c0_143 = arith.constant 0 : index
    %304 = vector.load %arg27[%c0_141, %c0_142, %c0_143] : memref<1x1x64xf32, #tpu.memory_space<vmem>>, vector<1x1x64xf32>
    %305 = vector.shape_cast %304 : vector<1x1x64xf32> to vector<1x64xf32>
    %306 = vector.broadcast %305 : vector<1x64xf32> to vector<30x64xf32>
    %307 = arith.addf %303, %306 : vector<30x64xf32>
    %cst_144 = arith.constant 0.000000e+00 : f32
    %308 = vector.broadcast %cst_144 : f32 to vector<30x64xf32>
    %309 = arith.maximumf %307, %308 : vector<30x64xf32>
    %c0_145 = arith.constant 0 : index
    %c0_146 = arith.constant 0 : index
    %c0_147 = arith.constant 0 : index
    %310 = vector.load %arg28[%c0_145, %c0_146, %c0_147] : memref<1x64x32xf32, #tpu.memory_space<vmem>>, vector<1x64x32xf32>
    %311 = vector.shape_cast %310 : vector<1x64x32xf32> to vector<64x32xf32>
    %cst_148 = arith.constant dense<0.000000e+00> : vector<30x32xf32>
    %312 = tpu.matmul %309, %311, %cst_148 {dimension_numbers = #tpu.dot_dimension_numbers<[1], [0], [0], [1], [0, 0, 1, 1], [], []>} : vector<30x64xf32>, vector<64x32xf32>, vector<30x32xf32> -> vector<30x32xf32>
    %c0_149 = arith.constant 0 : index
    %c0_150 = arith.constant 0 : index
    %c0_151 = arith.constant 0 : index
    %313 = vector.load %arg29[%c0_149, %c0_150, %c0_151] : memref<1x1x32xf32, #tpu.memory_space<vmem>>, vector<1x1x32xf32>
    %314 = vector.shape_cast %313 : vector<1x1x32xf32> to vector<1x32xf32>
    %315 = vector.broadcast %314 : vector<1x32xf32> to vector<30x32xf32>
    %316 = arith.addf %312, %315 : vector<30x32xf32>
    %317 = arith.addf %300, %316 : vector<30x32xf32>
    %c0_152 = arith.constant 0 : index
    %c0_153 = arith.constant 0 : index
    %c0_154 = arith.constant 0 : index
    %318 = vector.load %arg24[%c0_152, %c0_153, %c0_154] : memref<1x1x32xf32, #tpu.memory_space<vmem>>, vector<1x1x32xf32>
    %319 = vector.shape_cast %318 : vector<1x1x32xf32> to vector<1x32xf32>
    %c0_155 = arith.constant 0 : index
    %c0_156 = arith.constant 0 : index
    %c0_157 = arith.constant 0 : index
    %320 = vector.load %arg25[%c0_155, %c0_156, %c0_157] : memref<1x1x32xf32, #tpu.memory_space<vmem>>, vector<1x1x32xf32>
    %321 = vector.shape_cast %320 : vector<1x1x32xf32> to vector<1x32xf32>
    %cst_158 = arith.constant dense<0.000000e+00> : vector<30xf32>
    %322 = vector.multi_reduction <add>, %317, %cst_158 [1] : vector<30x32xf32> to vector<30xf32>
    %323 = vector.shape_cast %322 : vector<30xf32> to vector<30x1xf32>
    %cst_159 = arith.constant 3.200000e+01 : f32
    %324 = vector.broadcast %cst_159 : f32 to vector<30x1xf32>
    %325 = arith.divf %323, %324 : vector<30x1xf32>
    %326 = vector.broadcast %325 : vector<30x1xf32> to vector<30x32xf32>
    %327 = arith.subf %317, %326 : vector<30x32xf32>
    %328 = arith.mulf %327, %327 : vector<30x32xf32>
    %cst_160 = arith.constant dense<0.000000e+00> : vector<30xf32>
    %329 = vector.multi_reduction <add>, %328, %cst_160 [1] : vector<30x32xf32> to vector<30xf32>
    %330 = vector.shape_cast %329 : vector<30xf32> to vector<30x1xf32>
    %cst_161 = arith.constant 3.200000e+01 : f32
    %331 = vector.broadcast %cst_161 : f32 to vector<30x1xf32>
    %332 = arith.divf %330, %331 : vector<30x1xf32>
    %cst_162 = arith.constant 9.99999974E-6 : f32
    %333 = vector.broadcast %cst_162 : f32 to vector<30x1xf32>
    %334 = arith.addf %332, %333 : vector<30x1xf32>
    %335 = math.rsqrt %334 : vector<30x1xf32>
    %336 = vector.broadcast %335 : vector<30x1xf32> to vector<30x32xf32>
    %337 = arith.mulf %327, %336 : vector<30x32xf32>
    %338 = vector.broadcast %319 : vector<1x32xf32> to vector<30x32xf32>
    %339 = arith.mulf %337, %338 : vector<30x32xf32>
    %340 = vector.broadcast %321 : vector<1x32xf32> to vector<30x32xf32>
    %341 = arith.addf %339, %340 : vector<30x32xf32>
    %c0_163 = arith.constant 0 : index
    %c0_164 = arith.constant 0 : index
    %342 = vector.load %arg33[%c0_163, %c0_164] : memref<30x32xf32, #tpu.memory_space<vmem>>, vector<30x32xf32>
    tpu.vector_store %arg33[%c0_163, %c0_164], %341 {strides = array<i32>} : memref<30x32xf32, #tpu.memory_space<vmem>>, vector<30x32xf32>,
    %c0_165 = arith.constant 0 : index
    %c0_166 = arith.constant 0 : index
    %343 = vector.load %arg32[%c0_165, %c0_166] : memref<30x32xf32, #tpu.memory_space<vmem>>, vector<30x32xf32>
    tpu.vector_store %arg32[%c0_165, %c0_166], %341 {strides = array<i32>} : memref<30x32xf32, #tpu.memory_space<vmem>>, vector<30x32xf32>,
    %c5_i32 = arith.constant 5 : i32
    %344 = arith.cmpi eq, %arg0, %c5_i32 : i32
    %345 = arith.extui %344 : i1 to i32
    %c0_i32_167 = arith.constant 0 : i32
    %346 = arith.cmpi ne, %345, %c0_i32_167 : i32
    scf.if %346 {
      %c0_168 = arith.constant 0 : index
      %c0_169 = arith.constant 0 : index
      %347 = vector.load %arg30[%c0_168, %c0_169] : memref<1x32xf32, #tpu.memory_space<vmem>>, vector<1x32xf32>
      %c0_170 = arith.constant 0 : index
      %c0_171 = arith.constant 0 : index
      %348 = vector.load %arg31[%c0_170, %c0_171] : memref<1x32xf32, #tpu.memory_space<vmem>>, vector<1x32xf32>
      %cst_172 = arith.constant dense<0.000000e+00> : vector<30xf32>
      %349 = vector.multi_reduction <add>, %341, %cst_172 [1] : vector<30x32xf32> to vector<30xf32>
      %350 = vector.shape_cast %349 : vector<30xf32> to vector<30x1xf32>
      %cst_173 = arith.constant 3.200000e+01 : f32
      %351 = vector.broadcast %cst_173 : f32 to vector<30x1xf32>
      %352 = arith.divf %350, %351 : vector<30x1xf32>
      %353 = vector.broadcast %352 : vector<30x1xf32> to vector<30x32xf32>
      %354 = arith.subf %341, %353 : vector<30x32xf32>
      %355 = arith.mulf %354, %354 : vector<30x32xf32>
      %cst_174 = arith.constant dense<0.000000e+00> : vector<30xf32>
      %356 = vector.multi_reduction <add>, %355, %cst_174 [1] : vector<30x32xf32> to vector<30xf32>
      %357 = vector.shape_cast %356 : vector<30xf32> to vector<30x1xf32>
      %cst_175 = arith.constant 3.200000e+01 : f32
      %358 = vector.broadcast %cst_175 : f32 to vector<30x1xf32>
      %359 = arith.divf %357, %358 : vector<30x1xf32>
      %cst_176 = arith.constant 9.99999974E-6 : f32
      %360 = vector.broadcast %cst_176 : f32 to vector<30x1xf32>
      %361 = arith.addf %359, %360 : vector<30x1xf32>
      %362 = math.rsqrt %361 : vector<30x1xf32>
      %363 = vector.broadcast %362 : vector<30x1xf32> to vector<30x32xf32>
      %364 = arith.mulf %354, %363 : vector<30x32xf32>
      %365 = vector.broadcast %347 : vector<1x32xf32> to vector<30x32xf32>
      %366 = arith.mulf %364, %365 : vector<30x32xf32>
      %367 = vector.broadcast %348 : vector<1x32xf32> to vector<30x32xf32>
      %368 = arith.addf %366, %367 : vector<30x32xf32>
      %c0_177 = arith.constant 0 : index
      %c0_178 = arith.constant 0 : index
      %369 = vector.load %arg32[%c0_177, %c0_178] : memref<30x32xf32, #tpu.memory_space<vmem>>, vector<30x32xf32>
      tpu.vector_store %arg32[%c0_177, %c0_178], %368 {strides = array<i32>} : memref<30x32xf32, #tpu.memory_space<vmem>>, vector<30x32xf32>,
    } else {
    }
    return
  }
  func.func @transform_0(%arg0: i32) -> (i32, i32) {
    %c0_i32 = arith.constant 0 : i32
    %c0_i32_0 = arith.constant 0 : i32
    %c0_i32_1 = arith.constant 0 : i32
    return %c0_i32, %c0_i32_0 : i32, i32
  }
  func.func @transform_1(%arg0: i32) -> (i32, i32) {
    %c0_i32 = arith.constant 0 : i32
    %c0_i32_0 = arith.constant 0 : i32
    %c0_i32_1 = arith.constant 0 : i32
    return %c0_i32, %c0_i32_0 : i32, i32
  }
  func.func @transform_2(%arg0: i32) -> (i32, i32) {
    %c0_i32 = arith.constant 0 : i32
    %c0_i32_0 = arith.constant 0 : i32
    %c0_i32_1 = arith.constant 0 : i32
    return %c0_i32, %c0_i32_0 : i32, i32
  }
  func.func @transform_3(%arg0: i32) -> (i32, i32, i32) {
    %c0_i32 = arith.constant 0 : i32
    %c0_i32_0 = arith.constant 0 : i32
    %c0_i32_1 = arith.constant 0 : i32
    return %arg0, %c0_i32, %c0_i32_0 : i32, i32, i32
  }
  func.func @transform_4(%arg0: i32) -> (i32, i32, i32) {
    %c0_i32 = arith.constant 0 : i32
    %c0_i32_0 = arith.constant 0 : i32
    %c0_i32_1 = arith.constant 0 : i32
    return %arg0, %c0_i32, %c0_i32_0 : i32, i32, i32
  }
  func.func @transform_5(%arg0: i32) -> (i32, i32, i32) {
    %c0_i32 = arith.constant 0 : i32
    %c0_i32_0 = arith.constant 0 : i32
    %c0_i32_1 = arith.constant 0 : i32
    return %arg0, %c0_i32, %c0_i32_0 : i32, i32, i32
  }
  func.func @transform_6(%arg0: i32) -> (i32, i32, i32) {
    %c0_i32 = arith.constant 0 : i32
    %c0_i32_0 = arith.constant 0 : i32
    %c0_i32_1 = arith.constant 0 : i32
    return %arg0, %c0_i32, %c0_i32_0 : i32, i32, i32
  }
  func.func @transform_7(%arg0: i32) -> (i32, i32, i32) {
    %c0_i32 = arith.constant 0 : i32
    %c0_i32_0 = arith.constant 0 : i32
    %c0_i32_1 = arith.constant 0 : i32
    return %arg0, %c0_i32, %c0_i32_0 : i32, i32, i32
  }
  func.func @transform_8(%arg0: i32) -> (i32, i32, i32) {
    %c0_i32 = arith.constant 0 : i32
    %c0_i32_0 = arith.constant 0 : i32
    %c0_i32_1 = arith.constant 0 : i32
    return %arg0, %c0_i32, %c0_i32_0 : i32, i32, i32
  }
  func.func @transform_9(%arg0: i32) -> (i32, i32, i32) {
    %c0_i32 = arith.constant 0 : i32
    %c0_i32_0 = arith.constant 0 : i32
    %c0_i32_1 = arith.constant 0 : i32
    return %arg0, %c0_i32, %c0_i32_0 : i32, i32, i32
  }
  func.func @transform_10(%arg0: i32) -> (i32, i32, i32) {
    %c0_i32 = arith.constant 0 : i32
    %c0_i32_0 = arith.constant 0 : i32
    %c0_i32_1 = arith.constant 0 : i32
    return %arg0, %c0_i32, %c0_i32_0 : i32, i32, i32
  }
  func.func @transform_11(%arg0: i32) -> (i32, i32, i32) {
    %c0_i32 = arith.constant 0 : i32
    %c0_i32_0 = arith.constant 0 : i32
    %c0_i32_1 = arith.constant 0 : i32
    return %arg0, %c0_i32, %c0_i32_0 : i32, i32, i32
  }
  func.func @transform_12(%arg0: i32) -> (i32, i32, i32) {
    %c0_i32 = arith.constant 0 : i32
    %c0_i32_0 = arith.constant 0 : i32
    %c0_i32_1 = arith.constant 0 : i32
    return %arg0, %c0_i32, %c0_i32_0 : i32, i32, i32
  }
  func.func @transform_13(%arg0: i32) -> (i32, i32, i32) {
    %c0_i32 = arith.constant 0 : i32
    %c0_i32_0 = arith.constant 0 : i32
    %c0_i32_1 = arith.constant 0 : i32
    return %arg0, %c0_i32, %c0_i32_0 : i32, i32, i32
  }
  func.func @transform_14(%arg0: i32) -> (i32, i32, i32) {
    %c0_i32 = arith.constant 0 : i32
    %c0_i32_0 = arith.constant 0 : i32
    %c0_i32_1 = arith.constant 0 : i32
    return %arg0, %c0_i32, %c0_i32_0 : i32, i32, i32
  }
  func.func @transform_15(%arg0: i32) -> (i32, i32, i32) {
    %c0_i32 = arith.constant 0 : i32
    %c0_i32_0 = arith.constant 0 : i32
    %c0_i32_1 = arith.constant 0 : i32
    return %arg0, %c0_i32, %c0_i32_0 : i32, i32, i32
  }
  func.func @transform_16(%arg0: i32) -> (i32, i32, i32) {
    %c0_i32 = arith.constant 0 : i32
    %c0_i32_0 = arith.constant 0 : i32
    %c0_i32_1 = arith.constant 0 : i32
    return %arg0, %c0_i32, %c0_i32_0 : i32, i32, i32
  }
  func.func @transform_17(%arg0: i32) -> (i32, i32, i32) {
    %c0_i32 = arith.constant 0 : i32
    %c0_i32_0 = arith.constant 0 : i32
    %c0_i32_1 = arith.constant 0 : i32
    return %arg0, %c0_i32, %c0_i32_0 : i32, i32, i32
  }
  func.func @transform_18(%arg0: i32) -> (i32, i32, i32) {
    %c0_i32 = arith.constant 0 : i32
    %c0_i32_0 = arith.constant 0 : i32
    %c0_i32_1 = arith.constant 0 : i32
    return %arg0, %c0_i32, %c0_i32_0 : i32, i32, i32
  }
  func.func @transform_19(%arg0: i32) -> (i32, i32, i32) {
    %c0_i32 = arith.constant 0 : i32
    %c0_i32_0 = arith.constant 0 : i32
    %c0_i32_1 = arith.constant 0 : i32
    return %arg0, %c0_i32, %c0_i32_0 : i32, i32, i32
  }
  func.func @transform_20(%arg0: i32) -> (i32, i32, i32) {
    %c0_i32 = arith.constant 0 : i32
    %c0_i32_0 = arith.constant 0 : i32
    %c0_i32_1 = arith.constant 0 : i32
    return %arg0, %c0_i32, %c0_i32_0 : i32, i32, i32
  }
  func.func @transform_21(%arg0: i32) -> (i32, i32, i32) {
    %c0_i32 = arith.constant 0 : i32
    %c0_i32_0 = arith.constant 0 : i32
    %c0_i32_1 = arith.constant 0 : i32
    return %arg0, %c0_i32, %c0_i32_0 : i32, i32, i32
  }
  func.func @transform_22(%arg0: i32) -> (i32, i32, i32) {
    %c0_i32 = arith.constant 0 : i32
    %c0_i32_0 = arith.constant 0 : i32
    %c0_i32_1 = arith.constant 0 : i32
    return %arg0, %c0_i32, %c0_i32_0 : i32, i32, i32
  }
  func.func @transform_23(%arg0: i32) -> (i32, i32, i32) {
    %c0_i32 = arith.constant 0 : i32
    %c0_i32_0 = arith.constant 0 : i32
    %c0_i32_1 = arith.constant 0 : i32
    return %arg0, %c0_i32, %c0_i32_0 : i32, i32, i32
  }
  func.func @transform_24(%arg0: i32) -> (i32, i32, i32) {
    %c0_i32 = arith.constant 0 : i32
    %c0_i32_0 = arith.constant 0 : i32
    %c0_i32_1 = arith.constant 0 : i32
    return %arg0, %c0_i32, %c0_i32_0 : i32, i32, i32
  }
  func.func @transform_25(%arg0: i32) -> (i32, i32, i32) {
    %c0_i32 = arith.constant 0 : i32
    %c0_i32_0 = arith.constant 0 : i32
    %c0_i32_1 = arith.constant 0 : i32
    return %arg0, %c0_i32, %c0_i32_0 : i32, i32, i32
  }
  func.func @transform_26(%arg0: i32) -> (i32, i32, i32) {
    %c0_i32 = arith.constant 0 : i32
    %c0_i32_0 = arith.constant 0 : i32
    %c0_i32_1 = arith.constant 0 : i32
    return %arg0, %c0_i32, %c0_i32_0 : i32, i32, i32
  }
  func.func @transform_27(%arg0: i32) -> (i32, i32, i32) {
    %c0_i32 = arith.constant 0 : i32
    %c0_i32_0 = arith.constant 0 : i32
    %c0_i32_1 = arith.constant 0 : i32
    return %arg0, %c0_i32, %c0_i32_0 : i32, i32, i32
  }
  func.func @transform_28(%arg0: i32) -> (i32, i32, i32) {
    %c0_i32 = arith.constant 0 : i32
    %c0_i32_0 = arith.constant 0 : i32
    %c0_i32_1 = arith.constant 0 : i32
    return %arg0, %c0_i32, %c0_i32_0 : i32, i32, i32
  }
  func.func @transform_29(%arg0: i32) -> (i32, i32) {
    %c0_i32 = arith.constant 0 : i32
    %c0_i32_0 = arith.constant 0 : i32
    %c0_i32_1 = arith.constant 0 : i32
    return %c0_i32, %c0_i32_0 : i32, i32
  }
  func.func @transform_30(%arg0: i32) -> (i32, i32) {
    %c0_i32 = arith.constant 0 : i32
    %c0_i32_0 = arith.constant 0 : i32
    %c0_i32_1 = arith.constant 0 : i32
    return %c0_i32, %c0_i32_0 : i32, i32
  }
  func.func @transform_31(%arg0: i32) -> (i32, i32) {
    %c0_i32 = arith.constant 0 : i32
    %c0_i32_0 = arith.constant 0 : i32
    %c0_i32_1 = arith.constant 0 : i32
    return %c0_i32, %c0_i32_0 : i32, i32
  }
}

module attributes {stable_mosaic.version = 11 : i64} {
  func.func @_head_kernel(%arg0: memref<2x480xf32, #tpu.memory_space<vmem>>, %arg1: memref<480x64xf32, #tpu.memory_space<vmem>>, %arg2: memref<1x64xf32, #tpu.memory_space<vmem>>, %arg3: memref<64x1xf32, #tpu.memory_space<vmem>>, %arg4: memref<1x1xf32, #tpu.memory_space<vmem>>, %arg5: memref<2x1xf32, #tpu.memory_space<vmem>>) attributes {dimension_semantics = [], scalar_prefetch = 0 : i64, scratch_operands = 0 : i64, tpu.core_type = #tpu.core_type<tc>} {
    %c0 = arith.constant 0 : index
    %c0_0 = arith.constant 0 : index
    %0 = vector.load %arg0[%c0, %c0_0] : memref<2x480xf32, #tpu.memory_space<vmem>>, vector<2x480xf32>
    %c0_1 = arith.constant 0 : index
    %c0_2 = arith.constant 0 : index
    %1 = vector.load %arg1[%c0_1, %c0_2] : memref<480x64xf32, #tpu.memory_space<vmem>>, vector<480x64xf32>
    %cst = arith.constant dense<0.000000e+00> : vector<2x64xf32>
    %2 = tpu.matmul %0, %1, %cst {dimension_numbers = #tpu.dot_dimension_numbers<[1], [0], [0], [1], [0, 0, 1, 1], [], []>} : vector<2x480xf32>, vector<480x64xf32>, vector<2x64xf32> -> vector<2x64xf32>
    %c0_3 = arith.constant 0 : index
    %c0_4 = arith.constant 0 : index
    %3 = vector.load %arg2[%c0_3, %c0_4] : memref<1x64xf32, #tpu.memory_space<vmem>>, vector<1x64xf32>
    %4 = vector.broadcast %3 : vector<1x64xf32> to vector<2x64xf32>
    %5 = arith.addf %2, %4 : vector<2x64xf32>
    %cst_5 = arith.constant 0.000000e+00 : f32
    %6 = vector.broadcast %cst_5 : f32 to vector<2x64xf32>
    %7 = arith.maximumf %5, %6 : vector<2x64xf32>
    %c0_6 = arith.constant 0 : index
    %c0_7 = arith.constant 0 : index
    %8 = vector.load %arg3[%c0_6, %c0_7] : memref<64x1xf32, #tpu.memory_space<vmem>>, vector<64x1xf32>
    %cst_8 = arith.constant dense<0.000000e+00> : vector<2x1xf32>
    %9 = tpu.matmul %7, %8, %cst_8 {dimension_numbers = #tpu.dot_dimension_numbers<[1], [0], [0], [1], [0, 0, 1, 1], [], []>} : vector<2x64xf32>, vector<64x1xf32>, vector<2x1xf32> -> vector<2x1xf32>
    %c0_9 = arith.constant 0 : index
    %c0_10 = arith.constant 0 : index
    %10 = vector.load %arg4[%c0_9, %c0_10] : memref<1x1xf32, #tpu.memory_space<vmem>>, vector<1x1xf32>
    %11 = vector.broadcast %10 : vector<1x1xf32> to vector<2x1xf32>
    %12 = arith.addf %9, %11 : vector<2x1xf32>
    %13 = arith.negf %12 : vector<2x1xf32>
    %14 = math.exp %13 : vector<2x1xf32>
    %cst_11 = arith.constant 1.000000e+00 : f32
    %15 = vector.broadcast %cst_11 : f32 to vector<2x1xf32>
    %16 = arith.addf %15, %14 : vector<2x1xf32>
    %17 = arith.divf %15, %16 : vector<2x1xf32>
    %c0_12 = arith.constant 0 : index
    %c0_13 = arith.constant 0 : index
    %18 = vector.load %arg5[%c0_12, %c0_13] : memref<2x1xf32, #tpu.memory_space<vmem>>, vector<2x1xf32>
    tpu.vector_store %arg5[%c0_12, %c0_13], %17 {strides = array<i32>} : memref<2x1xf32, #tpu.memory_space<vmem>>, vector<2x1xf32>,
    return
  }
}

</mosaic_0001>

<llo_original>
// kernel: transformer_forward.5
$region0: #{transformer_forward.5}
  #allocation0 [shape = 'u32[]', space=smem, size = 0x4, offset = 0x4, fixed_abs, tag = 'smem constant byte address 0x4 - core index']
  #allocation1 [shape = 'u32[144,128]{1,0:T(1,128)}', space=vmem, size = 0x12000, scoped, tag = 'internal scratch']
  #allocation2 [shape = 'f32[1,1]{1,0:T(1,128)S(1)}', space=vmem, size = 0x200, scoped, tag = 'scoped memory for transformer_forward.5']
  %s0 = inlined_call_operand.vmem [shape: f32[2,480], index: 0, kind: input, shape index: {}]
  %s1 = inlined_call_operand.vmem [shape: f32[480,64], index: 1, kind: input, shape index: {}]
  %s2 = inlined_call_operand.vmem [shape: f32[1,64], index: 2, kind: input, shape index: {}]
  %s3 = inlined_call_operand.vmem [shape: f32[64,1], index: 3, kind: input, shape index: {}]
  %s4 = inlined_call_operand.<no memory space> [shape: f32[1,1], index: 4, kind: input, shape index: {}]
  %s5 = inlined_call_operand.vmem [shape: f32[2,1], index: 5, kind: output, shape index: {}]
  %s6 = sld [smem:[#allocation0]]
  $region30: #{transformer_forward.5} parent=0
    _
  %s8 = ssub.s32 1, %s6
  %s9 = scalar_select 0, %s8, %s6
  %v10 = vstv %s4
  %11 = vst [vmem:[#allocation2] sm:$0x1] %v10
  // Predicated region
  $region2: #{transformer_forward.5} parent=0 // pred_check
    _
  $region3: #{transformer_forward.5} parent=0 // pred_check_branch
    %13 = sbr.rel (0) target = $region5
  $region4: #{transformer_forward.5} parent=0 // pred_region
    _
  $region5: #{transformer_forward.5} parent=0 // pred_fallthru
    _
  // Predicated region
  $region6: #{transformer_forward.5} parent=0 // pred_check
    _
  $region7: #{transformer_forward.5} parent=0 // pred_check_branch
    %15 = sbr.rel (0) target = $region9
  $region8: #{transformer_forward.5} parent=0 // pred_region
    _
  $region9: #{transformer_forward.5} parent=0 // pred_fallthru
    _
  // Predicated region
  $region10: #{transformer_forward.5} parent=0 // pred_check
    _
  $region11: #{transformer_forward.5} parent=0 // pred_check_branch
    %17 = sbr.rel (0) target = $region13
  $region12: #{transformer_forward.5} parent=0 // pred_region
    _
  $region13: #{transformer_forward.5} parent=0 // pred_fallthru
    _
  // Predicated region
  $region14: #{transformer_forward.5} parent=0 // pred_check
    _
  $region15: #{transformer_forward.5} parent=0 // pred_check_branch
    %19 = sbr.rel (0) target = $region17
  $region16: #{transformer_forward.5} parent=0 // pred_region
    _
  $region17: #{transformer_forward.5} parent=0 // pred_fallthru
    _
  // Predicated region
  $region18: #{transformer_forward.5} parent=0 // pred_check
    _
  $region19: #{transformer_forward.5} parent=0 // pred_check_branch
    %21 = sbr.rel (0) target = $region21
  $region20: #{transformer_forward.5} parent=0 // pred_region
    _
  $region21: #{transformer_forward.5} parent=0 // pred_fallthru
    _
  %v22 = vld [vmem:[%s0] sm:$0xff]
  %v23 = vld [vmem:[%s1] sm:$0xff]
  %v24 = vld [vmem:[%s1 + $0x8] sm:$0xff]
  %v25 = vld [vmem:[%s1 + $0x10] sm:$0xff]
  %v26 = vld [vmem:[%s1 + $0x18] sm:$0xff]
  %v27 = vld [vmem:[%s1 + $0x20] sm:$0xff]
  %v28 = vld [vmem:[%s1 + $0x28] sm:$0xff]
  %v29 = vld [vmem:[%s1 + $0x30] sm:$0xff]
  %v30 = vld [vmem:[%s1 + $0x38] sm:$0xff]
  %v31 = vld [vmem:[%s1 + $0x40] sm:$0xff]
  %v32 = vld [vmem:[%s1 + $0x48] sm:$0xff]
  %v33 = vld [vmem:[%s1 + $0x50] sm:$0xff]
  %v34 = vld [vmem:[%s1 + $0x58] sm:$0xff]
  %v35 = vld [vmem:[%s1 + $0x60] sm:$0xff]
  %v36 = vld [vmem:[%s1 + $0x68] sm:$0xff]
  %v37 = vld [vmem:[%s1 + $0x70] sm:$0xff]
  %v38 = vld [vmem:[%s1 + $0x78] sm:$0xff]
  %v39 = vld [vmem:[%s1 + $0x80] sm:$0xff]
  %v40 = vld [vmem:[%s1 + $0x88] sm:$0xff]
  %v41 = vld [vmem:[%s1 + $0x90] sm:$0xff]
  %v42 = vld [vmem:[%s1 + $0x98] sm:$0xff]
  %v43 = vld [vmem:[%s1 + $0xa0] sm:$0xff]
  %v44 = vld [vmem:[%s1 + $0xa8] sm:$0xff]
  %v45 = vld [vmem:[%s1 + $0xb0] sm:$0xff]
  %v46 = vld [vmem:[%s1 + $0xb8] sm:$0xff]
  %v47 = vld [vmem:[%s1 + $0xc0] sm:$0xff]
  %v48 = vld [vmem:[%s1 + $0xc8] sm:$0xff]
  %v49 = vld [vmem:[%s1 + $0xd0] sm:$0xff]
  %v50 = vld [vmem:[%s1 + $0xd8] sm:$0xff]
  %v51 = vld [vmem:[%s1 + $0xe0] sm:$0xff]
  %v52 = vld [vmem:[%s1 + $0xe8] sm:$0xff]
  %v53 = vld [vmem:[%s1 + $0xf0] sm:$0xff]
  %v54 = vld [vmem:[%s1 + $0xf8] sm:$0xff]
  %v55 = vld [vmem:[%s1 + $0x100] sm:$0xff]
  %v56 = vld [vmem:[%s1 + $0x108] sm:$0xff]
  %v57 = vld [vmem:[%s1 + $0x110] sm:$0xff]
  %v58 = vld [vmem:[%s1 + $0x118] sm:$0xff]
  %v59 = vld [vmem:[%s1 + $0x120] sm:$0xff]
  %v60 = vld [vmem:[%s1 + $0x128] sm:$0xff]
  %v61 = vld [vmem:[%s1 + $0x130] sm:$0xff]
  %v62 = vld [vmem:[%s1 + $0x138] sm:$0xff]
  %v63 = vld [vmem:[%s1 + $0x140] sm:$0xff]
  %v64 = vld [vmem:[%s1 + $0x148] sm:$0xff]
  %v65 = vld [vmem:[%s1 + $0x150] sm:$0xff]
  %v66 = vld [vmem:[%s1 + $0x158] sm:$0xff]
  %v67 = vld [vmem:[%s1 + $0x160] sm:$0xff]
  %v68 = vld [vmem:[%s1 + $0x168] sm:$0xff]
  %v69 = vld [vmem:[%s1 + $0x170] sm:$0xff]
  %v70 = vld [vmem:[%s1 + $0x178] sm:$0xff]
  %v71 = vld [vmem:[%s1 + $0x180] sm:$0xff]
  %v72 = vld [vmem:[%s1 + $0x188] sm:$0xff]
  %v73 = vld [vmem:[%s1 + $0x190] sm:$0xff]
  %v74 = vld [vmem:[%s1 + $0x198] sm:$0xff]
  %v75 = vld [vmem:[%s1 + $0x1a0] sm:$0xff]
  %v76 = vld [vmem:[%s1 + $0x1a8] sm:$0xff]
  %v77 = vld [vmem:[%s1 + $0x1b0] sm:$0xff]
  %v78 = vld [vmem:[%s1 + $0x1b8] sm:$0xff]
  %v79 = vld [vmem:[%s1 + $0x1c0] sm:$0xff]
  %v80 = vld [vmem:[%s1 + $0x1c8] sm:$0xff]
  %v81 = vld [vmem:[%s1 + $0x1d0] sm:$0xff]
  %v82 = vld [vmem:[%s1 + $0x1d8] sm:$0xff]
  %v83 = vld [vmem:[%s2] sm:$0x1]
  %v85 = vlaneseq
  %v86 = vshrl.u32 %v85, 7
  %v87 = vsub.s32 0, %v86
  %v88 = vrot.slane %v83, %v87
  %v91 = vcombine.high %v22, %v22
  %v93 = vunpack.c.l.s4 1983009808
  %v94 = vunpack.c.0.s8 %v93
  %v95 = vlaneseq
  %v96 = vshrl.u32 %v95, 7
  %v97 = vsub.s32 %v94, %v96
  %v98 = vrot.slane %v22, %v97
  %v100 = vunpack.c.l.s4 1983009808
  %v101 = vunpack.c.0.s8 %v100
  %v102 = vlaneseq
  %v103 = vshrl.u32 %v102, 7
  %v104 = vsub.s32 %v101, %v103
  %v105 = vrot.slane %v91, %v104
  %v106 = vcombine.high %v98, %v98
  %v107 = vcombine.high %v105, %v105
  %vm111 = vcmask 785408
  %v112 = vsel %vm111, %v107, 0
  %114 = vmatprep.subr.mxu0 0.0
  %115 = vmatpush1.msra.mxu0 %v38
  %116 = vmatprep.subr.mxu0 0.0
  %117 = vmatpush1.msra.mxu0 %v37
  %118 = vmatprep.subr.mxu0 0.0
  %119 = vmatpush1.msra.mxu0 %v36
  %120 = vmatprep.subr.mxu0 0.0
  %121 = vmatpush1.msra.mxu0 %v35
  %122 = vmatprep.subr.mxu0 0.0
  %123 = vmatpush1.msra.mxu0 %v34
  %124 = vmatprep.subr.mxu0 0.0
  %125 = vmatpush1.msra.mxu0 %v33
  %126 = vmatprep.subr.mxu0 0.0
  %127 = vmatpush1.msra.mxu0 %v32
  %128 = vmatprep.subr.mxu0 0.0
  %129 = vmatpush1.msra.mxu0 %v31
  %130 = vmatprep.subr.mxu0 0.0
  %131 = vmatpush1.msra.mxu0 %v30
  %132 = vmatprep.subr.mxu0 0.0
  %133 = vmatpush1.msra.mxu0 %v29
  %134 = vmatprep.subr.mxu0 0.0
  %135 = vmatpush1.msra.mxu0 %v28
  %136 = vmatprep.subr.mxu0 0.0
  %137 = vmatpush1.msra.mxu0 %v27
  %138 = vmatprep.subr.mxu0 0.0
  %139 = vmatpush1.msra.mxu0 %v26
  %140 = vmatprep.subr.mxu0 0.0
  %141 = vmatpush1.msra.mxu0 %v25
  %142 = vmatprep.subr.mxu0 0.0
  %143 = vmatpush1.msra.mxu0 %v24
  %144 = vmatprep.subr.mxu0 0.0
  %145 = vmatpush1.msra.mxu0 %v23
  %146 = vmatprep.subr.mxu0 0.0
  %147 = vmatpush2.msra.mxu0 %v54
  %148 = vmatprep.subr.mxu0 0.0
  %149 = vmatpush2.msra.mxu0 %v53
  %150 = vmatprep.subr.mxu0 0.0
  %151 = vmatpush2.msra.mxu0 %v52
  %152 = vmatprep.subr.mxu0 0.0
  %153 = vmatpush2.msra.mxu0 %v51
  %154 = vmatprep.subr.mxu0 0.0
  %155 = vmatpush2.msra.mxu0 %v50
  %156 = vmatprep.subr.mxu0 0.0
  %157 = vmatpush2.msra.mxu0 %v49
  %158 = vmatprep.subr.mxu0 0.0
  %159 = vmatpush2.msra.mxu0 %v48
  %160 = vmatprep.subr.mxu0 0.0
  %161 = vmatpush2.msra.mxu0 %v47
  %162 = vmatprep.subr.mxu0 0.0
  %163 = vmatpush2.msra.mxu0 %v46
  %164 = vmatprep.subr.mxu0 0.0
  %165 = vmatpush2.msra.mxu0 %v45
  %166 = vmatprep.subr.mxu0 0.0
  %167 = vmatpush2.msra.mxu0 %v44
  %168 = vmatprep.subr.mxu0 0.0
  %169 = vmatpush2.msra.mxu0 %v43
  %170 = vmatprep.subr.mxu0 0.0
  %171 = vmatpush2.msra.mxu0 %v42
  %172 = vmatprep.subr.mxu0 0.0
  %173 = vmatpush2.msra.mxu0 %v41
  %174 = vmatprep.subr.mxu0 0.0
  %175 = vmatpush2.msra.mxu0 %v40
  %176 = vmatprep.subr.mxu0 0.0
  %177 = vmatpush2.msra.mxu0 %v39
  %178 = vmatprep.mubr.f32.mxu0 %v106
  %179 = vmatmul.mubr.f32.gmra.mxu0 %v98
  %v180 = vpop.f32.mrf.mxu0
  %v181 = vadd.f32 %v88, %v180
  %v182 = vpop.f32.mrf.mxu0
  %183 = vdwg.mxu0
  %184 = vmatprep.subr.mxu0 0.0
  %185 = vmatpush1.msra.mxu0 %v70
  %186 = vmatprep.subr.mxu0 0.0
  %187 = vmatpush1.msra.mxu0 %v69
  %188 = vmatprep.subr.mxu0 0.0
  %189 = vmatpush1.msra.mxu0 %v68
  %190 = vmatprep.subr.mxu0 0.0
  %191 = vmatpush1.msra.mxu0 %v67
  %192 = vmatprep.subr.mxu0 0.0
  %193 = vmatpush1.msra.mxu0 %v66
  %194 = vmatprep.subr.mxu0 0.0
  %195 = vmatpush1.msra.mxu0 %v65
  %196 = vmatprep.subr.mxu0 0.0
  %197 = vmatpush1.msra.mxu0 %v64
  %198 = vmatprep.subr.mxu0 0.0
  %199 = vmatpush1.msra.mxu0 %v63
  %200 = vmatprep.subr.mxu0 0.0
  %201 = vmatpush1.msra.mxu0 %v62
  %202 = vmatprep.subr.mxu0 0.0
  %203 = vmatpush1.msra.mxu0 %v61
  %204 = vmatprep.subr.mxu0 0.0
  %205 = vmatpush1.msra.mxu0 %v60
  %206 = vmatprep.subr.mxu0 0.0
  %207 = vmatpush1.msra.mxu0 %v59
  %208 = vmatprep.subr.mxu0 0.0
  %209 = vmatpush1.msra.mxu0 %v58
  %210 = vmatprep.subr.mxu0 0.0
  %211 = vmatpush1.msra.mxu0 %v57
  %212 = vmatprep.subr.mxu0 0.0
  %213 = vmatpush1.msra.mxu0 %v56
  %214 = vmatprep.subr.mxu0 0.0
  %215 = vmatpush1.msra.mxu0 %v55
  %216 = vmatprep.subr.mxu0 0.0
  %217 = vmatpush2.msra.mxu0 0.0
  %218 = vmatprep.subr.mxu0 0.0
  %219 = vmatpush2.msra.mxu0 0.0
  %220 = vmatprep.subr.mxu0 0.0
  %221 = vmatpush2.msra.mxu0 0.0
  %222 = vmatprep.subr.mxu0 0.0
  %223 = vmatpush2.msra.mxu0 0.0
  %224 = vmatprep.subr.mxu0 0.0
  %225 = vmatpush2.msra.mxu0 %v82
  %226 = vmatprep.subr.mxu0 0.0
  %227 = vmatpush2.msra.mxu0 %v81
  %228 = vmatprep.subr.mxu0 0.0
  %229 = vmatpush2.msra.mxu0 %v80
  %230 = vmatprep.subr.mxu0 0.0
  %231 = vmatpush2.msra.mxu0 %v79
  %232 = vmatprep.subr.mxu0 0.0
  %233 = vmatpush2.msra.mxu0 %v78
  %234 = vmatprep.subr.mxu0 0.0
  %235 = vmatpush2.msra.mxu0 %v77
  %236 = vmatprep.subr.mxu0 0.0
  %237 = vmatpush2.msra.mxu0 %v76
  %238 = vmatprep.subr.mxu0 0.0
  %239 = vmatpush2.msra.mxu0 %v75
  %240 = vmatprep.subr.mxu0 0.0
  %241 = vmatpush2.msra.mxu0 %v74
  %242 = vmatprep.subr.mxu0 0.0
  %243 = vmatpush2.msra.mxu0 %v73
  %244 = vmatprep.subr.mxu0 0.0
  %245 = vmatpush2.msra.mxu0 %v72
  %246 = vmatprep.subr.mxu0 0.0
  %247 = vmatpush2.msra.mxu0 %v71
  %248 = vmatprep.mubr.f32.mxu0 %v112
  %249 = vmatmul.mubr.f32.gmra.mxu0 %v105
  %v250 = vpop.f32.mrf.mxu0
  %v251 = vadd.f32 %v181, %v250
  %v252 = vpop.f32.mrf.mxu0
  %253 = vdwg.mxu0
  %v254 = vmax.f32 %v251, 0.0
  %v255 = vld [vmem:[%s3] sm:$0xff]
  %v256 = vld [vmem:[%s3 + $0x8] sm:$0xff]
  %v257 = vld [vmem:[%s3 + $0x10] sm:$0xff]
  %v258 = vld [vmem:[%s3 + $0x18] sm:$0xff]
  %v259 = vld [vmem:[%s3 + $0x20] sm:$0xff]
  %v260 = vld [vmem:[%s3 + $0x28] sm:$0xff]
  %v261 = vld [vmem:[%s3 + $0x30] sm:$0xff]
  %v262 = vld [vmem:[%s3 + $0x38] sm:$0xff]
  %v263 = vld [vmem:[#allocation2] sm:$0x1]
  %v265 = vlaneseq
  %v266 = vshrl.u32 %v265, 7
  %v267 = vsub.s32 0, %v266
  %v268 = vrot.slane %v263, %v267
  %vm270 = vcmask 523264
  %v272 = vsel %vm270, %v254, 0
  %274 = vmatprep.subr.mxu0 0.0
  %275 = vmatpush1.msra.mxu0 0.0
  %276 = vmatprep.subr.mxu0 0.0
  %277 = vmatpush1.msra.mxu0 0.0
  %278 = vmatprep.subr.mxu0 0.0
  %279 = vmatpush1.msra.mxu0 0.0
  %280 = vmatprep.subr.mxu0 0.0
  %281 = vmatpush1.msra.mxu0 0.0
  %282 = vmatprep.subr.mxu0 0.0
  %283 = vmatpush1.msra.mxu0 0.0
  %284 = vmatprep.subr.mxu0 0.0
  %285 = vmatpush1.msra.mxu0 0.0
  %286 = vmatprep.subr.mxu0 0.0
  %287 = vmatpush1.msra.mxu0 0.0
  %288 = vmatprep.subr.mxu0 0.0
  %289 = vmatpush1.msra.mxu0 0.0
  %290 = vmatprep.subr.mxu0 0.0
  %291 = vmatpush1.msra.mxu0 %v262
  %292 = vmatprep.subr.mxu0 0.0
  %293 = vmatpush1.msra.mxu0 %v261
  %294 = vmatprep.subr.mxu0 0.0
  %295 = vmatpush1.msra.mxu0 %v260
  %296 = vmatprep.subr.mxu0 0.0
  %297 = vmatpush1.msra.mxu0 %v259
  %298 = vmatprep.subr.mxu0 0.0
  %299 = vmatpush1.msra.mxu0 %v258
  %300 = vmatprep.subr.mxu0 0.0
  %301 = vmatpush1.msra.mxu0 %v257
  %302 = vmatprep.subr.mxu0 0.0
  %303 = vmatpush1.msra.mxu0 %v256
  %304 = vmatprep.subr.mxu0 0.0
  %305 = vmatpush1.msra.mxu0 %v255
  %306 = vmatprep.subr.mxu0 0.0
  %307 = vmatpush2.msra.mxu0 0.0
  %308 = vmatprep.subr.mxu0 0.0
  %309 = vmatpush2.msra.mxu0 0.0
  %310 = vmatprep.subr.mxu0 0.0
  %311 = vmatpush2.msra.mxu0 0.0
  %312 = vmatprep.subr.mxu0 0.0
  %313 = vmatpush2.msra.mxu0 0.0
  %314 = vmatprep.subr.mxu0 0.0
  %315 = vmatpush2.msra.mxu0 0.0
  %316 = vmatprep.subr.mxu0 0.0
  %317 = vmatpush2.msra.mxu0 0.0
  %318 = vmatprep.subr.mxu0 0.0
  %319 = vmatpush2.msra.mxu0 0.0
  %320 = vmatprep.subr.mxu0 0.0
  %321 = vmatpush2.msra.mxu0 0.0
  %322 = vmatprep.subr.mxu0 0.0
  %323 = vmatpush2.msra.mxu0 0.0
  %324 = vmatprep.subr.mxu0 0.0
  %325 = vmatpush2.msra.mxu0 0.0
  %326 = vmatprep.subr.mxu0 0.0
  %327 = vmatpush2.msra.mxu0 0.0
  %328 = vmatprep.subr.mxu0 0.0
  %329 = vmatpush2.msra.mxu0 0.0
  %330 = vmatprep.subr.mxu0 0.0
  %331 = vmatpush2.msra.mxu0 0.0
  %332 = vmatprep.subr.mxu0 0.0
  %333 = vmatpush2.msra.mxu0 0.0
  %334 = vmatprep.subr.mxu0 0.0
  %335 = vmatpush2.msra.mxu0 0.0
  %336 = vmatprep.subr.mxu0 0.0
  %337 = vmatpush2.msra.mxu0 0.0
  %338 = vmatprep.mubr.f32.mxu0 0.0
  %339 = vmatmul.mubr.f32.gmra.mxu0 %v272
  %v340 = vpop.f32.mrf.mxu0
  %v341 = vadd.f32 %v268, %v340
  %v342 = vpop.f32.mrf.mxu0
  %343 = vdwg.mxu0
  %v344 = vxor.u32 %v341, 2147483648
  %v345 = vmul.f32 %v344, 1.442695
  %v346 = vpow.pop %v345
  %v347 = vadd.f32 %v346, 1.0
  %v348 = vrcp.pop %v347
  %v349 = vmul.f32 1.0, %v348
  %vm350 = vcmask 1024
  %351 = vst.msk [vmem:[%s5] sm:$0x3] %vm350, %v349
  // Predicated region
  $region22: #{transformer_forward.5} parent=0 // pred_check
    _
  $region23: #{transformer_forward.5} parent=0 // pred_check_branch
    %353 = sbr.rel (0) target = $region25
  $region24: #{transformer_forward.5} parent=0 // pred_region
    _
  $region25: #{transformer_forward.5} parent=0 // pred_fallthru
    _
  // Predicated region
  $region26: #{transformer_forward.5} parent=0 // pred_check
    _
  $region27: #{transformer_forward.5} parent=0 // pred_check_branch
    %355 = sbr.rel (0) target = $region29
  $region28: #{transformer_forward.5} parent=0 // pred_region
    _
  $region29: #{transformer_forward.5} parent=0 // pred_fallthru
    _

// kernel: transformer_forward.3
$region0: #{transformer_forward.3}
  #allocation0 [shape = 'u32[]', space=smem, size = 0x4, offset = 0x4, fixed_abs, tag = 'smem constant byte address 0x4 - core index']
  #allocation1 [shape = 'u32[144,128]{1,0:T(1,128)}', space=vmem, size = 0x12000, scoped, tag = 'internal scratch']
  #allocation2 [shape = 'f32[30,32]{1,0:T(8,128)}', space=vmem, size = 0x4000, scoped, tag = 'scratch operand']
  %s0 = inlined_call_operand.vmem [shape: f32[30,32], index: 0, kind: input, shape index: {}]
  %s1 = inlined_call_operand.vmem [shape: f32[30,30], index: 1, kind: input, shape index: {}]
  %s2 = inlined_call_operand.vmem [shape: f32[4,32,32], index: 2, kind: input, shape index: {}]
  %s3 = inlined_call_operand.vmem [shape: f32[4,1,32], index: 3, kind: input, shape index: {}]
  %s4 = inlined_call_operand.vmem [shape: f32[4,32,32], index: 4, kind: input, shape index: {}]
  %s5 = inlined_call_operand.hbm [shape: f32[4,1,32], index: 5, kind: input, shape index: {}]
  %s6 = inlined_call_operand.vmem [shape: f32[4,32,32], index: 6, kind: input, shape index: {}]
  %s7 = inlined_call_operand.hbm [shape: f32[4,1,32], index: 7, kind: input, shape index: {}]
  %s8 = inlined_call_operand.vmem [shape: f32[4,32,32], index: 8, kind: input, shape index: {}]
  %s9 = inlined_call_operand.hbm [shape: f32[4,1,32], index: 9, kind: input, shape index: {}]
  %s10 = inlined_call_operand.vmem [shape: f32[4,1,32], index: 10, kind: input, shape index: {}]
  %s11 = inlined_call_operand.vmem [shape: f32[4,1,32], index: 11, kind: input, shape index: {}]
  %s12 = inlined_call_operand.vmem [shape: f32[4,1,32], index: 12, kind: input, shape index: {}]
  %s13 = inlined_call_operand.hbm [shape: f32[4,1,32], index: 13, kind: input, shape index: {}]
  %s14 = inlined_call_operand.vmem [shape: f32[4,32,64], index: 14, kind: input, shape index: {}]
  %s15 = inlined_call_operand.hbm [shape: f32[4,1,64], index: 15, kind: input, shape index: {}]
  %s16 = inlined_call_operand.vmem [shape: f32[4,64,32], index: 16, kind: input, shape index: {}]
  %s17 = inlined_call_operand.hbm [shape: f32[4,1,32], index: 17, kind: input, shape index: {}]
  %s18 = inlined_call_operand.hbm [shape: f32[1,32], index: 18, kind: input, shape index: {}]
  %s19 = inlined_call_operand.vmem [shape: f32[1,32], index: 19, kind: input, shape index: {}]
  %s20 = inlined_call_operand.vmem [shape: f32[30,32], index: 20, kind: output, shape index: {}]
  %s21 = sld [smem:[#allocation0]]
  $region149: #{transformer_forward.3} parent=0
    _
  %s23 = ssub.s32 1, %s21
  %s24 = scalar_select 0, %s23, %s21
  $region1: #{transformer_forward.3} parent=0
    #allocation3 [shape = 'u8[1024]{0}', space=vmem, size = 0x400, scoped, tag = 'input window, operand 5']
    #allocation4 [shape = 's32[2]{0}', space=sflag, size = 0x8, scoped, tag = 'scoped memory for transformer_forward.3']
    #allocation5 [shape = 'u8[1024]{0}', space=vmem, size = 0x400, scoped, tag = 'input window, operand 7']
    #allocation6 [shape = 's32[2]{0}', space=sflag, size = 0x8, scoped, tag = 'scoped memory for transformer_forward.3']
    #allocation7 [shape = 'u8[1024]{0}', space=vmem, size = 0x400, scoped, tag = 'input window, operand 9']
    #allocation8 [shape = 'u8[1024]{0}', space=vmem, size = 0x400, scoped, tag = 'input window, operand 13']
    #allocation9 [shape = 's32[2]{0}', space=sflag, size = 0x8, scoped, tag = 'scoped memory for transformer_forward.3']
    #allocation10 [shape = 'u8[1024]{0}', space=vmem, size = 0x400, scoped, tag = 'input window, operand 15']
    #allocation11 [shape = 'u8[1024]{0}', space=vmem, size = 0x400, scoped, tag = 'input window, operand 17']
    #allocation12 [shape = 's32[2]{0}', space=sflag, size = 0x8, scoped, tag = 'scoped memory for transformer_forward.3']
    #allocation13 [shape = 'u8[512]{0}', space=vmem, size = 0x400, scoped, tag = 'input window, operand 18, single buffered']
    %25 = vsyncpa [#allocation4], 0
    %s26 = scalar_lea.sflag [#allocation4], 1
    %27 = vsyncpa %s26, 0
    %28 = vsyncpa [#allocation6], 0
    %s29 = scalar_lea.sflag [#allocation6], 1
    %30 = vsyncpa %s29, 0
    %31 = vsyncpa [#allocation9], 0
    %s32 = scalar_lea.sflag [#allocation9], 1
    %33 = vsyncpa %s32, 0
    %34 = vsyncpa [#allocation12], 0
    %s35 = scalar_lea.sflag [#allocation12], 1
    %36 = vsyncpa %s35, 0
    loop: start=0, step=1, limit=6
    $region2: #{transformer_forward.3} parent=1 // loop_pre_header
      _
    $region3: #{transformer_forward.3} parent=1 // loop_header
      %s38 = sphi 0, %s42
      %p39 = scmp.ge.s32.totalorder %s38, 6
      %s46 = sphi 0, %s46
      %s48 = sphi 0, %s46
      %s49 = sphi 0, %s48
      %s63 = sphi 0, %s49
      %s67 = sphi 0, %s67
      %s69 = sphi 0, %s67
      %s70 = sphi 0, %s69
      %s84 = sphi 0, %s70
      %s90 = sphi 0, %s92
      %s93 = sphi 0, %s90
      %s94 = sphi 0, %s93
      %s110 = sphi 0, %s94
      %s116 = sphi 0, %s118
      %s119 = sphi 0, %s116
      %s120 = sphi 0, %s119
      %s136 = sphi 0, %s120
      %s142 = sphi 0, %s144
      %s145 = sphi 0, %s142
      %s146 = sphi 0, %s145
      %s162 = sphi 0, %s146
      %s168 = sphi 0, %s170
      %s171 = sphi 0, %s168
      %s172 = sphi 0, %s171
      %s188 = sphi 0, %s172
      %s194 = sphi 0, %s196
      %s197 = sphi 0, %s194
      %s198 = sphi 0, %s197
      %s214 = sphi 0, %s198
      %s220 = sphi 0, %s222
      %s223 = sphi 0, %s220
      %s224 = sphi 0, %s223
      %s240 = sphi 0, %s224
      %s246 = sphi 0, %s248
      %s249 = sphi 0, %s246
      %s250 = sphi 0, %s249
      %s266 = sphi 0, %s250
      %s272 = sphi 0, %s274
      %s275 = sphi 0, %s272
      %s276 = sphi 0, %s275
      %s292 = sphi 0, %s276
      %s298 = sphi 0, %s300
      %s301 = sphi 0, %s298
      %s302 = sphi 0, %s301
      %s318 = sphi 0, %s302
      %s324 = sphi 0, %s326
      %s327 = sphi 0, %s324
      %s328 = sphi 0, %s327
      %s344 = sphi 0, %s328
      %s350 = sphi 0, %s352
      %s353 = sphi 0, %s350
      %s354 = sphi 0, %s353
      %s370 = sphi 0, %s354
      %s376 = sphi 0, %s378
      %s379 = sphi 0, %s376
      %s380 = sphi 0, %s379
      %s396 = sphi 0, %s380
      %s402 = sphi 0, %s404
      %s405 = sphi 0, %s402
      %s406 = sphi 0, %s405
      %s422 = sphi 0, %s406
      %s428 = sphi 0, %s430
      %s431 = sphi 0, %s428
      %s432 = sphi 0, %s431
      %s448 = sphi 0, %s432
      %s454 = sphi 0, %s456
      %s457 = sphi 0, %s454
      %s458 = sphi 0, %s457
      %s474 = sphi 0, %s458
      %s480 = sphi 0, %s482
      %s483 = sphi 0, %s480
      %s484 = sphi 0, %s483
      %s500 = sphi 0, %s484
      %s504 = sphi 0, %s504
      %s506 = sphi 0, %s504
      %s507 = sphi 0, %s506
      %s521 = sphi 0, %s507
      %s525 = sphi 0, %s525
      %s527 = sphi 0, %s525
      %s528 = sphi 0, %s527
      %s542 = sphi 0, %s528
      %s546 = sphi 0, %s546
      %s548 = sphi 0, %s546
      %s549 = sphi 0, %s548
      %s563 = sphi 0, %s549
    $region4: #{transformer_forward.3} parent=1 // loop_header_branch
      %41 = sbr.rel (%p39) target = $region8
    $region5: #{transformer_forward.3} parent=1 // loop_body
      %s43 = ssub.s32 %s38, 1
      %s44 = ssub.s32 %s38, 2
      %s45 = sadd.s32 %s38, 1
      %s47 = sadd.s32 %s46, 1
      %p50 = scmp.eq.s32.totalorder %s38, 3
      %p51 = scmp.ne.s32.totalorder %s46, %s48
      %p52 = scmp.eq.s32.totalorder %s38, 0
      %p53 = por %p51, %p52
      %p54 = scmp.ne.s32.totalorder %s46, %s48
      %p55 = scmp.eq.s32.totalorder %s43, 3
      %p56 = por %p54, %p55
      %p57 = scmp.ne.s32.totalorder %s48, %s49
      %p58 = scmp.eq.s32.totalorder %s43, 0
      %p59 = por %p57, %p58
      %p60 = scmp.ne.s32.totalorder %s48, %s49
      %p61 = scmp.eq.s32.totalorder %s44, 3
      %p62 = por %p60, %p61
      %p64 = scmp.ne.s32.totalorder %s49, %s63
      %p65 = scmp.eq.s32.totalorder %s44, 0
      %p66 = por %p64, %p65
      %s68 = sadd.s32 %s67, 1
      %p71 = scmp.eq.s32.totalorder %s38, 3
      %p72 = scmp.ne.s32.totalorder %s67, %s69
      %p73 = scmp.eq.s32.totalorder %s38, 0
      %p74 = por %p72, %p73
      %p75 = scmp.ne.s32.totalorder %s67, %s69
      %p76 = scmp.eq.s32.totalorder %s43, 3
      %p77 = por %p75, %p76
      %p78 = scmp.ne.s32.totalorder %s69, %s70
      %p79 = scmp.eq.s32.totalorder %s43, 0
      %p80 = por %p78, %p79
      %p81 = scmp.ne.s32.totalorder %s69, %s70
      %p82 = scmp.eq.s32.totalorder %s44, 3
      %p83 = por %p81, %p82
      %p85 = scmp.ne.s32.totalorder %s70, %s84
      %p86 = scmp.eq.s32.totalorder %s44, 0
      %p87 = por %p85, %p86
      %s88 = ssub.s32 %s38, %s45
      %p89 = scmp.eq.s32.totalorder %s88, 0
      %s91 = sadd.s32 %s90, 1
      %s92 = scalar_select %p89, %s90, %s91
      %p95 = pneg %p89
      %p96 = scmp.eq.s32.totalorder %s38, 3
      %p97 = por %p95, %p96
      %p98 = scmp.ne.s32.totalorder %s90, %s93
      %p99 = scmp.eq.s32.totalorder %s38, 0
      %p100 = por %p98, %p99
      %p101 = scmp.ne.s32.totalorder %s90, %s93
      %p102 = scmp.eq.s32.totalorder %s43, 3
      %p103 = por %p101, %p102
      %p104 = scmp.ne.s32.totalorder %s93, %s94
      %p105 = scmp.eq.s32.totalorder %s43, 0
      %p106 = por %p104, %p105
      %p107 = scmp.ne.s32.totalorder %s93, %s94
      %p108 = scmp.eq.s32.totalorder %s44, 3
      %p109 = por %p107, %p108
      %p111 = scmp.ne.s32.totalorder %s94, %s110
      %p112 = scmp.eq.s32.totalorder %s44, 0
      %p113 = por %p111, %p112
      %s114 = ssub.s32 %s38, %s45
      %p115 = scmp.eq.s32.totalorder %s114, 0
      %s117 = sadd.s32 %s116, 1
      %s118 = scalar_select %p115, %s116, %s117
      %p121 = pneg %p115
      %p122 = scmp.eq.s32.totalorder %s38, 3
      %p123 = por %p121, %p122
      %p124 = scmp.ne.s32.totalorder %s116, %s119
      %p125 = scmp.eq.s32.totalorder %s38, 0
      %p126 = por %p124, %p125
      %p127 = scmp.ne.s32.totalorder %s116, %s119
      %p128 = scmp.eq.s32.totalorder %s43, 3
      %p129 = por %p127, %p128
      %p130 = scmp.ne.s32.totalorder %s119, %s120
      %p131 = scmp.eq.s32.totalorder %s43, 0
      %p132 = por %p130, %p131
      %p133 = scmp.ne.s32.totalorder %s119, %s120
      %p134 = scmp.eq.s32.totalorder %s44, 3
      %p135 = por %p133, %p134
      %p137 = scmp.ne.s32.totalorder %s120, %s136
      %p138 = scmp.eq.s32.totalorder %s44, 0
      %p139 = por %p137, %p138
      %s140 = ssub.s32 %s38, %s45
      %p141 = scmp.eq.s32.totalorder %s140, 0
      %s143 = sadd.s32 %s142, 1
      %s144 = scalar_select %p141, %s142, %s143
      %p147 = pneg %p141
      %p148 = scmp.eq.s32.totalorder %s38, 3
      %p149 = por %p147, %p148
      %p150 = scmp.ne.s32.totalorder %s142, %s145
      %p151 = scmp.eq.s32.totalorder %s38, 0
      %p152 = por %p150, %p151
      %p153 = scmp.ne.s32.totalorder %s142, %s145
      %p154 = scmp.eq.s32.totalorder %s43, 3
      %p155 = por %p153, %p154
      %p156 = scmp.ne.s32.totalorder %s145, %s146
      %p157 = scmp.eq.s32.totalorder %s43, 0
      %p158 = por %p156, %p157
      %p159 = scmp.ne.s32.totalorder %s145, %s146
      %p160 = scmp.eq.s32.totalorder %s44, 3
      %p161 = por %p159, %p160
      %p163 = scmp.ne.s32.totalorder %s146, %s162
      %p164 = scmp.eq.s32.totalorder %s44, 0
      %p165 = por %p163, %p164
      %s166 = ssub.s32 %s38, %s45
      %p167 = scmp.eq.s32.totalorder %s166, 0
      %s169 = sadd.s32 %s168, 1
      %s170 = scalar_select %p167, %s168, %s169
      %p173 = pneg %p167
      %p174 = scmp.eq.s32.totalorder %s38, 3
      %p175 = por %p173, %p174
      %p176 = scmp.ne.s32.totalorder %s168, %s171
      %p177 = scmp.eq.s32.totalorder %s38, 0
      %p178 = por %p176, %p177
      %p179 = scmp.ne.s32.totalorder %s168, %s171
      %p180 = scmp.eq.s32.totalorder %s43, 3
      %p181 = por %p179, %p180
      %p182 = scmp.ne.s32.totalorder %s171, %s172
      %p183 = scmp.eq.s32.totalorder %s43, 0
      %p184 = por %p182, %p183
      %p185 = scmp.ne.s32.totalorder %s171, %s172
      %p186 = scmp.eq.s32.totalorder %s44, 3
      %p187 = por %p185, %p186
      %p189 = scmp.ne.s32.totalorder %s172, %s188
      %p190 = scmp.eq.s32.totalorder %s44, 0
      %p191 = por %p189, %p190
      %s192 = ssub.s32 %s38, %s45
      %p193 = scmp.eq.s32.totalorder %s192, 0
      %s195 = sadd.s32 %s194, 1
      %s196 = scalar_select %p193, %s194, %s195
      %p199 = pneg %p193
      %p200 = scmp.eq.s32.totalorder %s38, 3
      %p201 = por %p199, %p200
      %p202 = scmp.ne.s32.totalorder %s194, %s197
      %p203 = scmp.eq.s32.totalorder %s38, 0
      %p204 = por %p202, %p203
      %p205 = scmp.ne.s32.totalorder %s194, %s197
      %p206 = scmp.eq.s32.totalorder %s43, 3
      %p207 = por %p205, %p206
      %p208 = scmp.ne.s32.totalorder %s197, %s198
      %p209 = scmp.eq.s32.totalorder %s43, 0
      %p210 = por %p208, %p209
      %p211 = scmp.ne.s32.totalorder %s197, %s198
      %p212 = scmp.eq.s32.totalorder %s44, 3
      %p213 = por %p211, %p212
      %p215 = scmp.ne.s32.totalorder %s198, %s214
      %p216 = scmp.eq.s32.totalorder %s44, 0
      %p217 = por %p215, %p216
      %s218 = ssub.s32 %s38, %s45
      %p219 = scmp.eq.s32.totalorder %s218, 0
      %s221 = sadd.s32 %s220, 1
      %s222 = scalar_select %p219, %s220, %s221
      %p225 = pneg %p219
      %p226 = scmp.eq.s32.totalorder %s38, 3
      %p227 = por %p225, %p226
      %p228 = scmp.ne.s32.totalorder %s220, %s223
      %p229 = scmp.eq.s32.totalorder %s38, 0
      %p230 = por %p228, %p229
      %p231 = scmp.ne.s32.totalorder %s220, %s223
      %p232 = scmp.eq.s32.totalorder %s43, 3
      %p233 = por %p231, %p232
      %p234 = scmp.ne.s32.totalorder %s223, %s224
      %p235 = scmp.eq.s32.totalorder %s43, 0
      %p236 = por %p234, %p235
      %p237 = scmp.ne.s32.totalorder %s223, %s224
      %p238 = scmp.eq.s32.totalorder %s44, 3
      %p239 = por %p237, %p238
      %p241 = scmp.ne.s32.totalorder %s224, %s240
      %p242 = scmp.eq.s32.totalorder %s44, 0
      %p243 = por %p241, %p242
      %s244 = ssub.s32 %s38, %s45
      %p245 = scmp.eq.s32.totalorder %s244, 0
      %s247 = sadd.s32 %s246, 1
      %s248 = scalar_select %p245, %s246, %s247
      %p251 = pneg %p245
      %p252 = scmp.eq.s32.totalorder %s38, 3
      %p253 = por %p251, %p252
      %p254 = scmp.ne.s32.totalorder %s246, %s249
      %p255 = scmp.eq.s32.totalorder %s38, 0
      %p256 = por %p254, %p255
      %p257 = scmp.ne.s32.totalorder %s246, %s249
      %p258 = scmp.eq.s32.totalorder %s43, 3
      %p259 = por %p257, %p258
      %p260 = scmp.ne.s32.totalorder %s249, %s250
      %p261 = scmp.eq.s32.totalorder %s43, 0
      %p262 = por %p260, %p261
      %p263 = scmp.ne.s32.totalorder %s249, %s250
      %p264 = scmp.eq.s32.totalorder %s44, 3
      %p265 = por %p263, %p264
      %p267 = scmp.ne.s32.totalorder %s250, %s266
      %p268 = scmp.eq.s32.totalorder %s44, 0
      %p269 = por %p267, %p268
      %s270 = ssub.s32 %s38, %s45
      %p271 = scmp.eq.s32.totalorder %s270, 0
      %s273 = sadd.s32 %s272, 1
      %s274 = scalar_select %p271, %s272, %s273
      %p277 = pneg %p271
      %p278 = scmp.eq.s32.totalorder %s38, 3
      %p279 = por %p277, %p278
      %p280 = scmp.ne.s32.totalorder %s272, %s275
      %p281 = scmp.eq.s32.totalorder %s38, 0
      %p282 = por %p280, %p281
      %p283 = scmp.ne.s32.totalorder %s272, %s275
      %p284 = scmp.eq.s32.totalorder %s43, 3
      %p285 = por %p283, %p284
      %p286 = scmp.ne.s32.totalorder %s275, %s276
      %p287 = scmp.eq.s32.totalorder %s43, 0
      %p288 = por %p286, %p287
      %p289 = scmp.ne.s32.totalorder %s275, %s276
      %p290 = scmp.eq.s32.totalorder %s44, 3
      %p291 = por %p289, %p290
      %p293 = scmp.ne.s32.totalorder %s276, %s292
      %p294 = scmp.eq.s32.totalorder %s44, 0
      %p295 = por %p293, %p294
      %s296 = ssub.s32 %s38, %s45
      %p297 = scmp.eq.s32.totalorder %s296, 0
      %s299 = sadd.s32 %s298, 1
      %s300 = scalar_select %p297, %s298, %s299
      %p303 = pneg %p297
      %p304 = scmp.eq.s32.totalorder %s38, 3
      %p305 = por %p303, %p304
      %p306 = scmp.ne.s32.totalorder %s298, %s301
      %p307 = scmp.eq.s32.totalorder %s38, 0
      %p308 = por %p306, %p307
      %p309 = scmp.ne.s32.totalorder %s298, %s301
      %p310 = scmp.eq.s32.totalorder %s43, 3
      %p311 = por %p309, %p310
      %p312 = scmp.ne.s32.totalorder %s301, %s302
      %p313 = scmp.eq.s32.totalorder %s43, 0
      %p314 = por %p312, %p313
      %p315 = scmp.ne.s32.totalorder %s301, %s302
      %p316 = scmp.eq.s32.totalorder %s44, 3
      %p317 = por %p315, %p316
      %p319 = scmp.ne.s32.totalorder %s302, %s318
      %p320 = scmp.eq.s32.totalorder %s44, 0
      %p321 = por %p319, %p320
      %s322 = ssub.s32 %s38, %s45
      %p323 = scmp.eq.s32.totalorder %s322, 0
      %s325 = sadd.s32 %s324, 1
      %s326 = scalar_select %p323, %s324, %s325
      %p329 = pneg %p323
      %p330 = scmp.eq.s32.totalorder %s38, 3
      %p331 = por %p329, %p330
      %p332 = scmp.ne.s32.totalorder %s324, %s327
      %p333 = scmp.eq.s32.totalorder %s38, 0
      %p334 = por %p332, %p333
      %p335 = scmp.ne.s32.totalorder %s324, %s327
      %p336 = scmp.eq.s32.totalorder %s43, 3
      %p337 = por %p335, %p336
      %p338 = scmp.ne.s32.totalorder %s327, %s328
      %p339 = scmp.eq.s32.totalorder %s43, 0
      %p340 = por %p338, %p339
      %p341 = scmp.ne.s32.totalorder %s327, %s328
      %p342 = scmp.eq.s32.totalorder %s44, 3
      %p343 = por %p341, %p342
      %p345 = scmp.ne.s32.totalorder %s328, %s344
      %p346 = scmp.eq.s32.totalorder %s44, 0
      %p347 = por %p345, %p346
      %s348 = ssub.s32 %s38, %s45
      %p349 = scmp.eq.s32.totalorder %s348, 0
      %s351 = sadd.s32 %s350, 1
      %s352 = scalar_select %p349, %s350, %s351
      %p355 = pneg %p349
      %p356 = scmp.eq.s32.totalorder %s38, 3
      %p357 = por %p355, %p356
      %p358 = scmp.ne.s32.totalorder %s350, %s353
      %p359 = scmp.eq.s32.totalorder %s38, 0
      %p360 = por %p358, %p359
      %p361 = scmp.ne.s32.totalorder %s350, %s353
      %p362 = scmp.eq.s32.totalorder %s43, 3
      %p363 = por %p361, %p362
      %p364 = scmp.ne.s32.totalorder %s353, %s354
      %p365 = scmp.eq.s32.totalorder %s43, 0
      %p366 = por %p364, %p365
      %p367 = scmp.ne.s32.totalorder %s353, %s354
      %p368 = scmp.eq.s32.totalorder %s44, 3
      %p369 = por %p367, %p368
      %p371 = scmp.ne.s32.totalorder %s354, %s370
      %p372 = scmp.eq.s32.totalorder %s44, 0
      %p373 = por %p371, %p372
      %s374 = ssub.s32 %s38, %s45
      %p375 = scmp.eq.s32.totalorder %s374, 0
      %s377 = sadd.s32 %s376, 1
      %s378 = scalar_select %p375, %s376, %s377
      %p381 = pneg %p375
      %p382 = scmp.eq.s32.totalorder %s38, 3
      %p383 = por %p381, %p382
      %p384 = scmp.ne.s32.totalorder %s376, %s379
      %p385 = scmp.eq.s32.totalorder %s38, 0
      %p386 = por %p384, %p385
      %p387 = scmp.ne.s32.totalorder %s376, %s379
      %p388 = scmp.eq.s32.totalorder %s43, 3
      %p389 = por %p387, %p388
      %p390 = scmp.ne.s32.totalorder %s379, %s380
      %p391 = scmp.eq.s32.totalorder %s43, 0
      %p392 = por %p390, %p391
      %p393 = scmp.ne.s32.totalorder %s379, %s380
      %p394 = scmp.eq.s32.totalorder %s44, 3
      %p395 = por %p393, %p394
      %p397 = scmp.ne.s32.totalorder %s380, %s396
      %p398 = scmp.eq.s32.totalorder %s44, 0
      %p399 = por %p397, %p398
      %s400 = ssub.s32 %s38, %s45
      %p401 = scmp.eq.s32.totalorder %s400, 0
      %s403 = sadd.s32 %s402, 1
      %s404 = scalar_select %p401, %s402, %s403
      %p407 = pneg %p401
      %p408 = scmp.eq.s32.totalorder %s38, 3
      %p409 = por %p407, %p408
      %p410 = scmp.ne.s32.totalorder %s402, %s405
      %p411 = scmp.eq.s32.totalorder %s38, 0
      %p412 = por %p410, %p411
      %p413 = scmp.ne.s32.totalorder %s402, %s405
      %p414 = scmp.eq.s32.totalorder %s43, 3
      %p415 = por %p413, %p414
      %p416 = scmp.ne.s32.totalorder %s405, %s406
      %p417 = scmp.eq.s32.totalorder %s43, 0
      %p418 = por %p416, %p417
      %p419 = scmp.ne.s32.totalorder %s405, %s406
      %p420 = scmp.eq.s32.totalorder %s44, 3
      %p421 = por %p419, %p420
      %p423 = scmp.ne.s32.totalorder %s406, %s422
      %p424 = scmp.eq.s32.totalorder %s44, 0
      %p425 = por %p423, %p424
      %s426 = ssub.s32 %s38, %s45
      %p427 = scmp.eq.s32.totalorder %s426, 0
      %s429 = sadd.s32 %s428, 1
      %s430 = scalar_select %p427, %s428, %s429
      %p433 = pneg %p427
      %p434 = scmp.eq.s32.totalorder %s38, 3
      %p435 = por %p433, %p434
      %p436 = scmp.ne.s32.totalorder %s428, %s431
      %p437 = scmp.eq.s32.totalorder %s38, 0
      %p438 = por %p436, %p437
      %p439 = scmp.ne.s32.totalorder %s428, %s431
      %p440 = scmp.eq.s32.totalorder %s43, 3
      %p441 = por %p439, %p440
      %p442 = scmp.ne.s32.totalorder %s431, %s432
      %p443 = scmp.eq.s32.totalorder %s43, 0
      %p444 = por %p442, %p443
      %p445 = scmp.ne.s32.totalorder %s431, %s432
      %p446 = scmp.eq.s32.totalorder %s44, 3
      %p447 = por %p445, %p446
      %p449 = scmp.ne.s32.totalorder %s432, %s448
      %p450 = scmp.eq.s32.totalorder %s44, 0
      %p451 = por %p449, %p450
      %s452 = ssub.s32 %s38, %s45
      %p453 = scmp.eq.s32.totalorder %s452, 0
      %s455 = sadd.s32 %s454, 1
      %s456 = scalar_select %p453, %s454, %s455
      %p459 = pneg %p453
      %p460 = scmp.eq.s32.totalorder %s38, 3
      %p461 = por %p459, %p460
      %p462 = scmp.ne.s32.totalorder %s454, %s457
      %p463 = scmp.eq.s32.totalorder %s38, 0
      %p464 = por %p462, %p463
      %p465 = scmp.ne.s32.totalorder %s454, %s457
      %p466 = scmp.eq.s32.totalorder %s43, 3
      %p467 = por %p465, %p466
      %p468 = scmp.ne.s32.totalorder %s457, %s458
      %p469 = scmp.eq.s32.totalorder %s43, 0
      %p470 = por %p468, %p469
      %p471 = scmp.ne.s32.totalorder %s457, %s458
      %p472 = scmp.eq.s32.totalorder %s44, 3
      %p473 = por %p471, %p472
      %p475 = scmp.ne.s32.totalorder %s458, %s474
      %p476 = scmp.eq.s32.totalorder %s44, 0
      %p477 = por %p475, %p476
      %s478 = ssub.s32 %s38, %s45
      %p479 = scmp.eq.s32.totalorder %s478, 0
      %s481 = sadd.s32 %s480, 1
      %s482 = scalar_select %p479, %s480, %s481
      %p485 = pneg %p479
      %p486 = scmp.eq.s32.totalorder %s38, 3
      %p487 = por %p485, %p486
      %p488 = scmp.ne.s32.totalorder %s480, %s483
      %p489 = scmp.eq.s32.totalorder %s38, 0
      %p490 = por %p488, %p489
      %p491 = scmp.ne.s32.totalorder %s480, %s483
      %p492 = scmp.eq.s32.totalorder %s43, 3
      %p493 = por %p491, %p492
      %p494 = scmp.ne.s32.totalorder %s483, %s484
      %p495 = scmp.eq.s32.totalorder %s43, 0
      %p496 = por %p494, %p495
      %p497 = scmp.ne.s32.totalorder %s483, %s484
      %p498 = scmp.eq.s32.totalorder %s44, 3
      %p499 = por %p497, %p498
      %p501 = scmp.ne.s32.totalorder %s484, %s500
      %p502 = scmp.eq.s32.totalorder %s44, 0
      %p503 = por %p501, %p502
      %s505 = sadd.s32 %s504, 1
      %p508 = scmp.eq.s32.totalorder %s38, 3
      %p509 = scmp.ne.s32.totalorder %s504, %s506
      %p510 = scmp.eq.s32.totalorder %s38, 0
      %p511 = por %p509, %p510
      %p512 = scmp.ne.s32.totalorder %s504, %s506
      %p513 = scmp.eq.s32.totalorder %s43, 3
      %p514 = por %p512, %p513
      %p515 = scmp.ne.s32.totalorder %s506, %s507
      %p516 = scmp.eq.s32.totalorder %s43, 0
      %p517 = por %p515, %p516
      %p518 = scmp.ne.s32.totalorder %s506, %s507
      %p519 = scmp.eq.s32.totalorder %s44, 3
      %p520 = por %p518, %p519
      %p522 = scmp.ne.s32.totalorder %s507, %s521
      %p523 = scmp.eq.s32.totalorder %s44, 0
      %p524 = por %p522, %p523
      %s526 = sadd.s32 %s525, 1
      %p529 = scmp.eq.s32.totalorder %s38, 3
      %p530 = scmp.ne.s32.totalorder %s525, %s527
      %p531 = scmp.eq.s32.totalorder %s38, 0
      %p532 = por %p530, %p531
      %p533 = scmp.ne.s32.totalorder %s525, %s527
      %p534 = scmp.eq.s32.totalorder %s43, 3
      %p535 = por %p533, %p534
      %p536 = scmp.ne.s32.totalorder %s527, %s528
      %p537 = scmp.eq.s32.totalorder %s43, 0
      %p538 = por %p536, %p537
      %p539 = scmp.ne.s32.totalorder %s527, %s528
      %p540 = scmp.eq.s32.totalorder %s44, 3
      %p541 = por %p539, %p540
      %p543 = scmp.ne.s32.totalorder %s528, %s542
      %p544 = scmp.eq.s32.totalorder %s44, 0
      %p545 = por %p543, %p544
      %s547 = sadd.s32 %s546, 1
      %p550 = scmp.eq.s32.totalorder %s38, 3
      %p551 = scmp.ne.s32.totalorder %s546, %s548
      %p552 = scmp.eq.s32.totalorder %s38, 0
      %p553 = por %p551, %p552
      %p554 = scmp.ne.s32.totalorder %s546, %s548
      %p555 = scmp.eq.s32.totalorder %s43, 3
      %p556 = por %p554, %p555
      %p557 = scmp.ne.s32.totalorder %s548, %s549
      %p558 = scmp.eq.s32.totalorder %s43, 0
      %p559 = por %p557, %p558
      %p560 = scmp.ne.s32.totalorder %s548, %s549
      %p561 = scmp.eq.s32.totalorder %s44, 3
      %p562 = por %p560, %p561
      %p564 = scmp.ne.s32.totalorder %s549, %s563
      %p565 = scmp.eq.s32.totalorder %s44, 0
      %p566 = por %p564, %p565
      %p567 = scmp.le.s32.totalorder 1, %s38
      %p568 = scmp.lt.s32.totalorder %s38, 5
      %p569 = pnand %p567, %p568
      %p570 = pneg %p569
      // Predicated region
      $region9: #{transformer_forward.3} parent=5 // pred_check
        _
      $region10: #{transformer_forward.3} parent=5 // pred_check_branch
        %572 = sbr.rel (%p569) target = $region12
      $region11: #{transformer_forward.3} parent=5 // pred_region
        %s573 = ssub.s32 %s38, 1
        // Predicated region
        $region13: #{transformer_forward.3} parent=11 // pred_check
          %p574 = pneg %p59
        $region14: #{transformer_forward.3} parent=11 // pred_check_branch
          %576 = sbr.rel (%p574) target = $region16
        $region15: #{transformer_forward.3} parent=11 // pred_region
          _
        $region16: #{transformer_forward.3} parent=11 // pred_fallthru
          _
        // Predicated region
        $region17: #{transformer_forward.3} parent=11 // pred_check
          %p577 = pneg %p80
        $region18: #{transformer_forward.3} parent=11 // pred_check_branch
          %579 = sbr.rel (%p577) target = $region20
        $region19: #{transformer_forward.3} parent=11 // pred_region
          _
        $region20: #{transformer_forward.3} parent=11 // pred_fallthru
          _
        // Predicated region
        $region21: #{transformer_forward.3} parent=11 // pred_check
          %p580 = pneg %p517
        $region22: #{transformer_forward.3} parent=11 // pred_check_branch
          %582 = sbr.rel (%p580) target = $region24
        $region23: #{transformer_forward.3} parent=11 // pred_region
          %s584 = ssub.s32 16, 16
          %585 = vsyncadd [#allocation12], %s584
          %s587 = sshll.u32 [#allocation13], 4
          %s588 = int_to_ptr.vmem [resolvable:$true] %s587
          %590 = dma.hbm_to_vmem [thread:$0]  %s18, 16, %s588, [#allocation12]
        $region24: #{transformer_forward.3} parent=11 // pred_fallthru
          _
        // Predicated region
        $region25: #{transformer_forward.3} parent=11 // pred_check
          %p591 = pneg %p538
        $region26: #{transformer_forward.3} parent=11 // pred_check_branch
          %593 = sbr.rel (%p591) target = $region28
        $region27: #{transformer_forward.3} parent=11 // pred_region
          _
        $region28: #{transformer_forward.3} parent=11 // pred_fallthru
          _
      $region12: #{transformer_forward.3} parent=5 // pred_fallthru
        _
      %p594 = scmp.lt.s32.totalorder %s38, 4
      // Predicated region
      $region29: #{transformer_forward.3} parent=5 // pred_check
        %p595 = pneg %p594
      $region30: #{transformer_forward.3} parent=5 // pred_check_branch
        %597 = sbr.rel (%p595) target = $region32
      $region31: #{transformer_forward.3} parent=5 // pred_region
        // Predicated region
        $region33: #{transformer_forward.3} parent=31 // pred_check
          %p598 = pneg %p100
        $region34: #{transformer_forward.3} parent=31 // pred_check_branch
          %600 = sbr.rel (%p598) target = $region36
        $region35: #{transformer_forward.3} parent=31 // pred_region
          %p601 = scmp.lt.s32.totalorder %s38, 3
          %s602 = scalar_select %p601, %s38, 3
          %s603 = smul.addr %s602, 4
          %s604 = smul.addr %s603, 8
          %s605 = scalar_lea.vmem %s2, %s604
        $region36: #{transformer_forward.3} parent=31 // pred_fallthru
          _
        // Predicated region
        $region37: #{transformer_forward.3} parent=31 // pred_check
          %p606 = pneg %p126
        $region38: #{transformer_forward.3} parent=31 // pred_check_branch
          %608 = sbr.rel (%p606) target = $region40
        $region39: #{transformer_forward.3} parent=31 // pred_region
          %p609 = scmp.lt.s32.totalorder %s38, 3
          %s610 = scalar_select %p609, %s38, 3
          %s611 = scalar_lea.vmem %s3, %s610
        $region40: #{transformer_forward.3} parent=31 // pred_fallthru
          _
        // Predicated region
        $region41: #{transformer_forward.3} parent=31 // pred_check
          %p612 = pneg %p152
        $region42: #{transformer_forward.3} parent=31 // pred_check_branch
          %614 = sbr.rel (%p612) target = $region44
        $region43: #{transformer_forward.3} parent=31 // pred_region
          %p615 = scmp.lt.s32.totalorder %s38, 3
          %s616 = scalar_select %p615, %s38, 3
          %s617 = smul.addr %s616, 4
          %s618 = smul.addr %s617, 8
          %s619 = scalar_lea.vmem %s4, %s618
        $region44: #{transformer_forward.3} parent=31 // pred_fallthru
          _
        // Predicated region
        $region45: #{transformer_forward.3} parent=31 // pred_check
          %p620 = pneg %p178
        $region46: #{transformer_forward.3} parent=31 // pred_check_branch
          %622 = sbr.rel (%p620) target = $region48
        $region47: #{transformer_forward.3} parent=31 // pred_region
          %s623 = sand.u32 %s168, 1
          %s624 = scalar_lea.sflag [#allocation4], %s623
          %s625 = sand.u32 %s168, 1
          %s626 = scalar_lea.vmem [#allocation3], %s625
          %s628 = ssub.s32 16, 16
          %629 = vsyncadd %s624, %s628
          %s630 = smul.addr %s38, 16
          %s631 = scalar_lea.hbm %s5, %s630
          %s633 = sshll.u32 %s626, 4
          %s634 = int_to_ptr.vmem [resolvable:$true] %s633
          %636 = dma.hbm_to_vmem [thread:$0]  %s631, 16, %s634, %s624
        $region48: #{transformer_forward.3} parent=31 // pred_fallthru
          _
        // Predicated region
        $region49: #{transformer_forward.3} parent=31 // pred_check
          %p637 = pneg %p204
        $region50: #{transformer_forward.3} parent=31 // pred_check_branch
          %639 = sbr.rel (%p637) target = $region52
        $region51: #{transformer_forward.3} parent=31 // pred_region
          %p640 = scmp.lt.s32.totalorder %s38, 3
          %s641 = scalar_select %p640, %s38, 3
          %s642 = smul.addr %s641, 4
          %s643 = smul.addr %s642, 8
          %s644 = scalar_lea.vmem %s6, %s643
        $region52: #{transformer_forward.3} parent=31 // pred_fallthru
          _
        // Predicated region
        $region53: #{transformer_forward.3} parent=31 // pred_check
          %p645 = pneg %p230
        $region54: #{transformer_forward.3} parent=31 // pred_check_branch
          %647 = sbr.rel (%p645) target = $region56
        $region55: #{transformer_forward.3} parent=31 // pred_region
          %s648 = sand.u32 %s38, 1
          %s649 = scalar_lea.sflag [#allocation6], %s648
          %s650 = sand.u32 %s220, 1
          %s651 = scalar_lea.vmem [#allocation5], %s650
          %s653 = ssub.s32 16, 16
          %654 = vsyncadd %s649, %s653
          %s655 = smul.addr %s38, 16
          %s656 = scalar_lea.hbm %s7, %s655
          %s658 = sshll.u32 %s651, 4
          %s659 = int_to_ptr.vmem [resolvable:$true] %s658
          %661 = dma.hbm_to_vmem [thread:$0]  %s656, 16, %s659, %s649
        $region56: #{transformer_forward.3} parent=31 // pred_fallthru
          _
        // Predicated region
        $region57: #{transformer_forward.3} parent=31 // pred_check
          %p662 = pneg %p256
        $region58: #{transformer_forward.3} parent=31 // pred_check_branch
          %664 = sbr.rel (%p662) target = $region60
        $region59: #{transformer_forward.3} parent=31 // pred_region
          %p665 = scmp.lt.s32.totalorder %s38, 3
          %s666 = scalar_select %p665, %s38, 3
          %s667 = smul.addr %s666, 4
          %s668 = smul.addr %s667, 8
          %s669 = scalar_lea.vmem %s8, %s668
        $region60: #{transformer_forward.3} parent=31 // pred_fallthru
          _
        // Predicated region
        $region61: #{transformer_forward.3} parent=31 // pred_check
          %p670 = pneg %p282
        $region62: #{transformer_forward.3} parent=31 // pred_check_branch
          %672 = sbr.rel (%p670) target = $region64
        $region63: #{transformer_forward.3} parent=31 // pred_region
          %s673 = sand.u32 %s38, 1
          %s674 = scalar_lea.sflag [#allocation6], %s673
          %s675 = sand.u32 %s272, 1
          %s676 = scalar_lea.vmem [#allocation7], %s675
          %s678 = ssub.s32 16, 16
          %679 = vsyncadd %s674, %s678
          %s680 = smul.addr %s38, 16
          %s681 = scalar_lea.hbm %s9, %s680
          %s683 = sshll.u32 %s676, 4
          %s684 = int_to_ptr.vmem [resolvable:$true] %s683
          %686 = dma.hbm_to_vmem [thread:$0]  %s681, 16, %s684, %s674
        $region64: #{transformer_forward.3} parent=31 // pred_fallthru
          _
        // Predicated region
        $region65: #{transformer_forward.3} parent=31 // pred_check
          %p687 = pneg %p308
        $region66: #{transformer_forward.3} parent=31 // pred_check_branch
          %689 = sbr.rel (%p687) target = $region68
        $region67: #{transformer_forward.3} parent=31 // pred_region
          %p690 = scmp.lt.s32.totalorder %s38, 3
          %s691 = scalar_select %p690, %s38, 3
          %s692 = scalar_lea.vmem %s10, %s691
        $region68: #{transformer_forward.3} parent=31 // pred_fallthru
          _
        // Predicated region
        $region69: #{transformer_forward.3} parent=31 // pred_check
          %p693 = pneg %p334
        $region70: #{transformer_forward.3} parent=31 // pred_check_branch
          %695 = sbr.rel (%p693) target = $region72
        $region71: #{transformer_forward.3} parent=31 // pred_region
          %p696 = scmp.lt.s32.totalorder %s38, 3
          %s697 = scalar_select %p696, %s38, 3
          %s698 = scalar_lea.vmem %s11, %s697
        $region72: #{transformer_forward.3} parent=31 // pred_fallthru
          _
        // Predicated region
        $region73: #{transformer_forward.3} parent=31 // pred_check
          %p699 = pneg %p360
        $region74: #{transformer_forward.3} parent=31 // pred_check_branch
          %701 = sbr.rel (%p699) target = $region76
        $region75: #{transformer_forward.3} parent=31 // pred_region
          %p702 = scmp.lt.s32.totalorder %s38, 3
          %s703 = scalar_select %p702, %s38, 3
          %s704 = scalar_lea.vmem %s12, %s703
        $region76: #{transformer_forward.3} parent=31 // pred_fallthru
          _
        // Predicated region
        $region77: #{transformer_forward.3} parent=31 // pred_check
          %p705 = pneg %p386
        $region78: #{transformer_forward.3} parent=31 // pred_check_branch
          %707 = sbr.rel (%p705) target = $region80
        $region79: #{transformer_forward.3} parent=31 // pred_region
          %s708 = sand.u32 %s38, 1
          %s709 = scalar_lea.sflag [#allocation9], %s708
          %s710 = sand.u32 %s376, 1
          %s711 = scalar_lea.vmem [#allocation8], %s710
          %s713 = ssub.s32 16, 16
          %714 = vsyncadd %s709, %s713
          %s715 = smul.addr %s38, 16
          %s716 = scalar_lea.hbm %s13, %s715
          %s718 = sshll.u32 %s711, 4
          %s719 = int_to_ptr.vmem [resolvable:$true] %s718
          %721 = dma.hbm_to_vmem [thread:$0]  %s716, 16, %s719, %s709
        $region80: #{transformer_forward.3} parent=31 // pred_fallthru
          _
        // Predicated region
        $region81: #{transformer_forward.3} parent=31 // pred_check
          %p722 = pneg %p412
        $region82: #{transformer_forward.3} parent=31 // pred_check_branch
          %724 = sbr.rel (%p722) target = $region84
        $region83: #{transformer_forward.3} parent=31 // pred_region
          %p725 = scmp.lt.s32.totalorder %s38, 3
          %s726 = scalar_select %p725, %s38, 3
          %s727 = smul.addr %s726, 4
          %s728 = smul.addr %s727, 8
          %s729 = scalar_lea.vmem %s14, %s728
        $region84: #{transformer_forward.3} parent=31 // pred_fallthru
          _
        // Predicated region
        $region85: #{transformer_forward.3} parent=31 // pred_check
          %p730 = pneg %p438
        $region86: #{transformer_forward.3} parent=31 // pred_check_branch
          %732 = sbr.rel (%p730) target = $region88
        $region87: #{transformer_forward.3} parent=31 // pred_region
          %s733 = sand.u32 %s38, 1
          %s734 = scalar_lea.sflag [#allocation9], %s733
          %s735 = sand.u32 %s428, 1
          %s736 = scalar_lea.vmem [#allocation10], %s735
          %s738 = ssub.s32 16, 16
          %739 = vsyncadd %s734, %s738
          %s740 = smul.addr %s38, 16
          %s741 = scalar_lea.hbm %s15, %s740
          %s743 = sshll.u32 %s736, 4
          %s744 = int_to_ptr.vmem [resolvable:$true] %s743
          %746 = dma.hbm_to_vmem [thread:$0]  %s741, 16, %s744, %s734
        $region88: #{transformer_forward.3} parent=31 // pred_fallthru
          _
        // Predicated region
        $region89: #{transformer_forward.3} parent=31 // pred_check
          %p747 = pneg %p464
        $region90: #{transformer_forward.3} parent=31 // pred_check_branch
          %749 = sbr.rel (%p747) target = $region92
        $region91: #{transformer_forward.3} parent=31 // pred_region
          %p750 = scmp.lt.s32.totalorder %s38, 3
          %s751 = scalar_select %p750, %s38, 3
          %s752 = smul.addr %s751, 8
          %s753 = smul.addr %s752, 8
          %s754 = scalar_lea.vmem %s16, %s753
        $region92: #{transformer_forward.3} parent=31 // pred_fallthru
          _
        // Predicated region
        $region93: #{transformer_forward.3} parent=31 // pred_check
          %p755 = pneg %p490
        $region94: #{transformer_forward.3} parent=31 // pred_check_branch
          %757 = sbr.rel (%p755) target = $region96
        $region95: #{transformer_forward.3} parent=31 // pred_region
          %s758 = sand.u32 %s38, 1
          %s759 = scalar_lea.sflag [#allocation12], %s758
          %s760 = sand.u32 %s480, 1
          %s761 = scalar_lea.vmem [#allocation11], %s760
          %s763 = ssub.s32 16, 16
          %764 = vsyncadd %s759, %s763
          %s765 = smul.addr %s38, 16
          %s766 = scalar_lea.hbm %s17, %s765
          %s768 = sshll.u32 %s761, 4
          %s769 = int_to_ptr.vmem [resolvable:$true] %s768
          %771 = dma.hbm_to_vmem [thread:$0]  %s766, 16, %s769, %s759
        $region96: #{transformer_forward.3} parent=31 // pred_fallthru
          _
      $region32: #{transformer_forward.3} parent=5 // pred_fallthru
        _
      %p772 = scmp.le.s32.totalorder 1, %s38
      %p773 = scmp.lt.s32.totalorder %s38, 5
      %p774 = pnand %p772, %p773
      %p775 = pneg %p774
      // Predicated region
      $region97: #{transformer_forward.3} parent=5 // pred_check
        _
      $region98: #{transformer_forward.3} parent=5 // pred_check_branch
        %777 = sbr.rel (%p774) target = $region100
      $region99: #{transformer_forward.3} parent=5 // pred_region
        %s778 = ssub.s32 %s38, 1
        %s779 = sand.u32 %s171, 1
        %s780 = scalar_lea.sflag [#allocation4], %s779
        %s781 = sand.u32 %s171, 1
        %s782 = scalar_lea.vmem [#allocation3], %s781
        // Predicated region
        $region101: #{transformer_forward.3} parent=99 // pred_check
          %p783 = pneg %p184
        $region102: #{transformer_forward.3} parent=99 // pred_check_branch
          %785 = sbr.rel (%p783) target = $region104
        $region103: #{transformer_forward.3} parent=99 // pred_region
          %786 = dma.done %s780, 16
        $region104: #{transformer_forward.3} parent=99 // pred_fallthru
          _
        %s787 = sand.u32 %s43, 1
        %s788 = scalar_lea.sflag [#allocation6], %s787
        %s789 = sand.u32 %s223, 1
        %s790 = scalar_lea.vmem [#allocation5], %s789
        // Predicated region
        $region105: #{transformer_forward.3} parent=99 // pred_check
          %p791 = pneg %p236
        $region106: #{transformer_forward.3} parent=99 // pred_check_branch
          %793 = sbr.rel (%p791) target = $region108
        $region107: #{transformer_forward.3} parent=99 // pred_region
          %794 = dma.done %s788, 16
        $region108: #{transformer_forward.3} parent=99 // pred_fallthru
          _
        %s795 = sand.u32 %s43, 1
        %s796 = scalar_lea.sflag [#allocation6], %s795
        %s797 = sand.u32 %s275, 1
        %s798 = scalar_lea.vmem [#allocation7], %s797
        // Predicated region
        $region109: #{transformer_forward.3} parent=99 // pred_check
          %p799 = pneg %p288
        $region110: #{transformer_forward.3} parent=99 // pred_check_branch
          %801 = sbr.rel (%p799) target = $region112
        $region111: #{transformer_forward.3} parent=99 // pred_region
          %802 = dma.done %s796, 16
        $region112: #{transformer_forward.3} parent=99 // pred_fallthru
          _
        %s803 = sand.u32 %s43, 1
        %s804 = scalar_lea.sflag [#allocation9], %s803
        %s805 = sand.u32 %s379, 1
        %s806 = scalar_lea.vmem [#allocation8], %s805
        // Predicated region
        $region113: #{transformer_forward.3} parent=99 // pred_check
          %p807 = pneg %p392
        $region114: #{transformer_forward.3} parent=99 // pred_check_branch
          %809 = sbr.rel (%p807) target = $region116
        $region115: #{transformer_forward.3} parent=99 // pred_region
          %810 = dma.done %s804, 16
        $region116: #{transformer_forward.3} parent=99 // pred_fallthru
          _
        %s811 = sand.u32 %s43, 1
        %s812 = scalar_lea.sflag [#allocation9], %s811
        %s813 = sand.u32 %s431, 1
        %s814 = scalar_lea.vmem [#allocation10], %s813
        // Predicated region
        $region117: #{transformer_forward.3} parent=99 // pred_check
          %p815 = pneg %p444
        $region118: #{transformer_forward.3} parent=99 // pred_check_branch
          %817 = sbr.rel (%p815) target = $region120
        $region119: #{transformer_forward.3} parent=99 // pred_region
          %818 = dma.done %s812, 16
        $region120: #{transformer_forward.3} parent=99 // pred_fallthru
          _
        %s819 = sand.u32 %s43, 1
        %s820 = scalar_lea.sflag [#allocation12], %s819
        %s821 = sand.u32 %s483, 1
        %s822 = scalar_lea.vmem [#allocation11], %s821
        // Predicated region
        $region121: #{transformer_forward.3} parent=99 // pred_check
          %p823 = pneg %p496
        $region122: #{transformer_forward.3} parent=99 // pred_check_branch
          %825 = sbr.rel (%p823) target = $region124
        $region123: #{transformer_forward.3} parent=99 // pred_region
          %826 = dma.done %s820, 16
        $region124: #{transformer_forward.3} parent=99 // pred_fallthru
          _
        // Predicated region
        $region125: #{transformer_forward.3} parent=99 // pred_check
          %p827 = pneg %p517
        $region126: #{transformer_forward.3} parent=99 // pred_check_branch
          %829 = sbr.rel (%p827) target = $region128
        $region127: #{transformer_forward.3} parent=99 // pred_region
          %830 = dma.done [#allocation12], 16
        $region128: #{transformer_forward.3} parent=99 // pred_fallthru
          _
        %p831 = pneg %p59
        %p832 = pneg %p56
        %p833 = pneg %p80
        %p834 = pneg %p77
        %p835 = scmp.lt.s32.totalorder %s43, 3
        %s836 = scalar_select %p835, %s43, 3
        %s837 = smul.addr %s836, 4
        %s838 = smul.addr %s837, 8
        %s839 = scalar_lea.vmem %s2, %s838
        %p840 = pneg %p106
        %p841 = pneg %p103
        %p842 = scmp.lt.s32.totalorder %s43, 3
        %s843 = scalar_select %p842, %s43, 3
        %s844 = scalar_lea.vmem %s3, %s843
        %p845 = pneg %p132
        %p846 = pneg %p129
        %p847 = scmp.lt.s32.totalorder %s43, 3
        %s848 = scalar_select %p847, %s43, 3
        %s849 = smul.addr %s848, 4
        %s850 = smul.addr %s849, 8
        %s851 = scalar_lea.vmem %s4, %s850
        %p852 = pneg %p158
        %p853 = pneg %p155
        %s854 = sand.u32 %s171, 1
        %s855 = scalar_lea.sflag [#allocation4], %s854
        %s856 = sand.u32 %s171, 1
        %s857 = scalar_lea.vmem [#allocation3], %s856
        %p858 = pneg %p184
        %p859 = pneg %p181
        %p860 = scmp.lt.s32.totalorder %s43, 3
        %s861 = scalar_select %p860, %s43, 3
        %s862 = smul.addr %s861, 4
        %s863 = smul.addr %s862, 8
        %s864 = scalar_lea.vmem %s6, %s863
        %p865 = pneg %p210
        %p866 = pneg %p207
        %s867 = sand.u32 %s43, 1
        %s868 = scalar_lea.sflag [#allocation6], %s867
        %s869 = sand.u32 %s223, 1
        %s870 = scalar_lea.vmem [#allocation5], %s869
        %p871 = pneg %p236
        %p872 = pneg %p233
        %p873 = scmp.lt.s32.totalorder %s43, 3
        %s874 = scalar_select %p873, %s43, 3
        %s875 = smul.addr %s874, 4
        %s876 = smul.addr %s875, 8
        %s877 = scalar_lea.vmem %s8, %s876
        %p878 = pneg %p262
        %p879 = pneg %p259
        %s880 = sand.u32 %s43, 1
        %s881 = scalar_lea.sflag [#allocation6], %s880
        %s882 = sand.u32 %s275, 1
        %s883 = scalar_lea.vmem [#allocation7], %s882
        %p884 = pneg %p288
        %p885 = pneg %p285
        %p886 = scmp.lt.s32.totalorder %s43, 3
        %s887 = scalar_select %p886, %s43, 3
        %s888 = scalar_lea.vmem %s10, %s887
        %p889 = pneg %p314
        %p890 = pneg %p311
        %p891 = scmp.lt.s32.totalorder %s43, 3
        %s892 = scalar_select %p891, %s43, 3
        %s893 = scalar_lea.vmem %s11, %s892
        %p894 = pneg %p340
        %p895 = pneg %p337
        %p896 = scmp.lt.s32.totalorder %s43, 3
        %s897 = scalar_select %p896, %s43, 3
        %s898 = scalar_lea.vmem %s12, %s897
        %p899 = pneg %p366
        %p900 = pneg %p363
        %s901 = sand.u32 %s43, 1
        %s902 = scalar_lea.sflag [#allocation9], %s901
        %s903 = sand.u32 %s379, 1
        %s904 = scalar_lea.vmem [#allocation8], %s903
        %p905 = pneg %p392
        %p906 = pneg %p389
        %p907 = scmp.lt.s32.totalorder %s43, 3
        %s908 = scalar_select %p907, %s43, 3
        %s909 = smul.addr %s908, 4
        %s910 = smul.addr %s909, 8
        %s911 = scalar_lea.vmem %s14, %s910
        %p912 = pneg %p418
        %p913 = pneg %p415
        %s914 = sand.u32 %s43, 1
        %s915 = scalar_lea.sflag [#allocation9], %s914
        %s916 = sand.u32 %s431, 1
        %s917 = scalar_lea.vmem [#allocation10], %s916
        %p918 = pneg %p444
        %p919 = pneg %p441
        %p920 = scmp.lt.s32.totalorder %s43, 3
        %s921 = scalar_select %p920, %s43, 3
        %s922 = smul.addr %s921, 8
        %s923 = smul.addr %s922, 8
        %s924 = scalar_lea.vmem %s16, %s923
        %p925 = pneg %p470
        %p926 = pneg %p467
        %s927 = sand.u32 %s43, 1
        %s928 = scalar_lea.sflag [#allocation12], %s927
        %s929 = sand.u32 %s483, 1
        %s930 = scalar_lea.vmem [#allocation11], %s929
        %p931 = pneg %p496
        %p932 = pneg %p493
        %p933 = pneg %p517
        %p934 = pneg %p514
        %p935 = pneg %p538
        %p936 = pneg %p535
        %p937 = pneg %p559
        %p938 = pneg %p556
        %p939 = scmp.lt.s32.totalorder %s43, 3
        %s940 = scalar_select %p939, %s43, 3
        %s941 = smul.addr %s940, 4
        %s942 = smul.addr %s941, 8
        %s943 = scalar_lea.vmem %s2, %s942
        %p944 = scmp.lt.s32.totalorder %s43, 3
        %s945 = scalar_select %p944, %s43, 3
        %s946 = scalar_lea.vmem %s3, %s945
        %p947 = scmp.lt.s32.totalorder %s43, 3
        %s948 = scalar_select %p947, %s43, 3
        %s949 = smul.addr %s948, 4
        %s950 = smul.addr %s949, 8
        %s951 = scalar_lea.vmem %s4, %s950
        %p952 = scmp.lt.s32.totalorder %s43, 3
        %s953 = scalar_select %p952, %s43, 3
        %s954 = smul.addr %s953, 4
        %s955 = smul.addr %s954, 8
        %s956 = scalar_lea.vmem %s6, %s955
        %p957 = scmp.lt.s32.totalorder %s43, 3
        %s958 = scalar_select %p957, %s43, 3
        %s959 = smul.addr %s958, 4
        %s960 = smul.addr %s959, 8
        %s961 = scalar_lea.vmem %s8, %s960
        %p962 = scmp.lt.s32.totalorder %s43, 3
        %s963 = scalar_select %p962, %s43, 3
        %s964 = scalar_lea.vmem %s10, %s963
        %p965 = scmp.lt.s32.totalorder %s43, 3
        %s966 = scalar_select %p965, %s43, 3
        %s967 = scalar_lea.vmem %s11, %s966
        %p968 = scmp.lt.s32.totalorder %s43, 3
        %s969 = scalar_select %p968, %s43, 3
        %s970 = scalar_lea.vmem %s12, %s969
        %p971 = scmp.lt.s32.totalorder %s43, 3
        %s972 = scalar_select %p971, %s43, 3
        %s973 = smul.addr %s972, 4
        %s974 = smul.addr %s973, 8
        %s975 = scalar_lea.vmem %s14, %s974
        %p976 = scmp.lt.s32.totalorder %s43, 3
        %s977 = scalar_select %p976, %s43, 3
        %s978 = smul.addr %s977, 8
        %s979 = smul.addr %s978, 8
        %s980 = scalar_lea.vmem %s16, %s979
        %p981 = scmp.eq.s32.totalorder %s43, 0
        // Predicated region
        $region129: #{transformer_forward.3} parent=99 // pred_check
          %p982 = pneg %p981
        $region130: #{transformer_forward.3} parent=99 // pred_check_branch
          %984 = sbr.rel (%p982) target = $region132
        $region131: #{transformer_forward.3} parent=99 // pred_region
          %v985 = vld [vmem:[%s0] sm:$0xff]
          %v986 = vld [vmem:[%s0 + $0x8] sm:$0xff]
          %v987 = vld [vmem:[%s0 + $0x10] sm:$0xff]
          %v988 = vld [vmem:[%s0 + $0x18] sm:$0x3f]
          %vm989 = vcmask 261120
          %990 = vst.msk [vmem:[#allocation2] sm:$0xff] %vm989, %v985
          %991 = vst.msk [vmem:[#allocation2 + $0x8] sm:$0xff] %vm989, %v986
          %992 = vst.msk [vmem:[#allocation2 + $0x10] sm:$0xff] %vm989, %v987
          %vm993 = vcmask 259072
          %994 = vst.msk [vmem:[#allocation2 + $0x18] sm:$0x3f] %vm993, %v988
        $region132: #{transformer_forward.3} parent=99 // pred_fallthru
          _
        %v995 = vlaneseq
        %v996 = vand.u32 %v995, 127
        %vm997 = vcmp.ge.s32.totalorder %v996, 0
        %vm998 = vcmp.lt.s32.totalorder %v996, 8
        %vm999 = vmand %vm997, %vm998
        %v1000 = vsel %vm999, 1.0, 0.0
        %vm1001 = vcmp.ge.s32.totalorder %v996, 8
        %vm1002 = vcmp.lt.s32.totalorder %v996, 16
        %vm1003 = vmand %vm1001, %vm1002
        %v1004 = vsel %vm1003, 1.0, 0.0
        %vm1005 = vcmp.ge.s32.totalorder %v996, 16
        %vm1006 = vcmp.lt.s32.totalorder %v996, 24
        %vm1007 = vmand %vm1005, %vm1006
        %v1008 = vsel %vm1007, 1.0, 0.0
        %vm1009 = vcmp.ge.s32.totalorder %v996, 24
        %vm1010 = vcmp.lt.s32.totalorder %v996, 32
        %vm1011 = vmand %vm1009, %vm1010
        %v1012 = vsel %vm1011, 1.0, 0.0
        %v1013 = vld [vmem:[%s1] sm:$0xff]
        %v1014 = vld [vmem:[%s1 + $0x8] sm:$0xff]
        %v1015 = vld [vmem:[%s1 + $0x10] sm:$0xff]
        %v1016 = vld [vmem:[%s1 + $0x18] sm:$0x3f]
        %v1017 = vld [vmem:[#allocation2] sm:$0xff]
        %v1018 = vld [vmem:[#allocation2 + $0x8] sm:$0xff]
        %v1019 = vld [vmem:[#allocation2 + $0x10] sm:$0xff]
        %v1020 = vld [vmem:[#allocation2 + $0x18] sm:$0x3f]
        %v1021 = vld [vmem:[%s943] sm:$0xff]
        %v1022 = vld [vmem:[%s943 + $0x8] sm:$0xff]
        %v1023 = vld [vmem:[%s943 + $0x10] sm:$0xff]
        %v1024 = vld [vmem:[%s943 + $0x18] sm:$0xff]
        %v1025 = vld [vmem:[%s946] sm:$0x1]
        %v1026 = vld [vmem:[%s951] sm:$0xff]
        %v1027 = vld [vmem:[%s951 + $0x8] sm:$0xff]
        %v1028 = vld [vmem:[%s951 + $0x10] sm:$0xff]
        %v1029 = vld [vmem:[%s951 + $0x18] sm:$0xff]
        %v1030 = vld [vmem:[%s782] sm:$0x1]
        %v1031 = vld [vmem:[%s956] sm:$0xff]
        %v1032 = vld [vmem:[%s956 + $0x8] sm:$0xff]
        %v1033 = vld [vmem:[%s956 + $0x10] sm:$0xff]
        %v1034 = vld [vmem:[%s956 + $0x18] sm:$0xff]
        %v1035 = vld [vmem:[%s790] sm:$0x1]
        %v1036 = vld [vmem:[%s961] sm:$0xff]
        %v1037 = vld [vmem:[%s961 + $0x8] sm:$0xff]
        %v1038 = vld [vmem:[%s961 + $0x10] sm:$0xff]
        %v1039 = vld [vmem:[%s961 + $0x18] sm:$0xff]
        %v1040 = vld [vmem:[%s798] sm:$0x1]
        %v1042 = vlaneseq
        %v1043 = vshrl.u32 %v1042, 7
        %v1044 = vsub.s32 0, %v1043
        %v1045 = vrot.slane %v1025, %v1044
        %vm1047 = vcmask 261120
        %v1049 = vsel %vm1047, %v1017, 0
        %v1052 = vsel %vm1047, %v1018, 0
        %v1055 = vsel %vm1047, %v1019, 0
        %v1058 = vsel %vm1047, %v1020, 0
        %1060 = vmatprep.subr.mxu0 0.0
        %1061 = vmatpush1.msra.mxu0 0.0
        %1062 = vmatprep.subr.mxu0 0.0
        %1063 = vmatpush1.msra.mxu0 0.0
        %1064 = vmatprep.subr.mxu0 0.0
        %1065 = vmatpush1.msra.mxu0 0.0
        %1066 = vmatprep.subr.mxu0 0.0
        %1067 = vmatpush1.msra.mxu0 0.0
        %1068 = vmatprep.subr.mxu0 0.0
        %1069 = vmatpush1.msra.mxu0 0.0
        %1070 = vmatprep.subr.mxu0 0.0
        %1071 = vmatpush1.msra.mxu0 0.0
        %1072 = vmatprep.subr.mxu0 0.0
        %1073 = vmatpush1.msra.mxu0 0.0
        %1074 = vmatprep.subr.mxu0 0.0
        %1075 = vmatpush1.msra.mxu0 0.0
        %1076 = vmatprep.subr.mxu0 0.0
        %1077 = vmatpush1.msra.mxu0 0.0
        %1078 = vmatprep.subr.mxu0 0.0
        %1079 = vmatpush1.msra.mxu0 0.0
        %1080 = vmatprep.subr.mxu0 0.0
        %1081 = vmatpush1.msra.mxu0 0.0
        %1082 = vmatprep.subr.mxu0 0.0
        %1083 = vmatpush1.msra.mxu0 0.0
        %1084 = vmatprep.subr.mxu0 0.0
        %1085 = vmatpush1.msra.mxu0 %v1024
        %1086 = vmatprep.subr.mxu0 0.0
        %1087 = vmatpush1.msra.mxu0 %v1023
        %1088 = vmatprep.subr.mxu0 0.0
        %1089 = vmatpush1.msra.mxu0 %v1022
        %1090 = vmatprep.subr.mxu0 0.0
        %1091 = vmatpush1.msra.mxu0 %v1021
        %1092 = vmatprep.subr.mxu0 0.0
        %1093 = vmatpush2.msra.mxu0 0.0
        %1094 = vmatprep.subr.mxu0 0.0
        %1095 = vmatpush2.msra.mxu0 0.0
        %1096 = vmatprep.subr.mxu0 0.0
        %1097 = vmatpush2.msra.mxu0 0.0
        %1098 = vmatprep.subr.mxu0 0.0
        %1099 = vmatpush2.msra.mxu0 0.0
        %1100 = vmatprep.subr.mxu0 0.0
        %1101 = vmatpush2.msra.mxu0 0.0
        %1102 = vmatprep.subr.mxu0 0.0
        %1103 = vmatpush2.msra.mxu0 0.0
        %1104 = vmatprep.subr.mxu0 0.0
        %1105 = vmatpush2.msra.mxu0 0.0
        %1106 = vmatprep.subr.mxu0 0.0
        %1107 = vmatpush2.msra.mxu0 0.0
        %1108 = vmatprep.subr.mxu0 0.0
        %1109 = vmatpush2.msra.mxu0 0.0
        %1110 = vmatprep.subr.mxu0 0.0
        %1111 = vmatpush2.msra.mxu0 0.0
        %1112 = vmatprep.subr.mxu0 0.0
        %1113 = vmatpush2.msra.mxu0 0.0
        %1114 = vmatprep.subr.mxu0 0.0
        %1115 = vmatpush2.msra.mxu0 0.0
        %1116 = vmatprep.subr.mxu0 0.0
        %1117 = vmatpush2.msra.mxu0 0.0
        %1118 = vmatprep.subr.mxu0 0.0
        %1119 = vmatpush2.msra.mxu0 0.0
        %1120 = vmatprep.subr.mxu0 0.0
        %1121 = vmatpush2.msra.mxu0 0.0
        %1122 = vmatprep.subr.mxu0 0.0
        %1123 = vmatpush2.msra.mxu0 0.0
        %1124 = vmatprep.mubr.f32.mxu0 0.0
        %1125 = vmatmul.mubr.f32.gmra.mxu0 %v1049
        %v1126 = vpop.f32.mrf.mxu0
        %v1127 = vadd.f32 %v1045, %v1126
        %v1128 = vpop.f32.mrf.mxu0
        %1129 = vmatprep.mubr.f32.mxu0 0.0
        %1130 = vmatmul.mubr.f32.gmra.mxu0 %v1052
        %v1131 = vpop.f32.mrf.mxu0
        %v1132 = vadd.f32 %v1045, %v1131
        %v1133 = vpop.f32.mrf.mxu0
        %1134 = vmatprep.mubr.f32.mxu0 0.0
        %1135 = vmatmul.mubr.f32.gmra.mxu0 %v1055
        %v1136 = vpop.f32.mrf.mxu0
        %v1137 = vadd.f32 %v1045, %v1136
        %v1138 = vpop.f32.mrf.mxu0
        %1139 = vmatprep.mubr.f32.mxu0 0.0
        %1140 = vmatmul.mubr.f32.gmra.mxu0 %v1058
        %v1141 = vpop.f32.mrf.mxu0
        %v1142 = vadd.f32 %v1045, %v1141
        %v1143 = vpop.f32.mrf.mxu0
        %1144 = vdwg.mxu0
        %v1146 = vlaneseq
        %v1147 = vshrl.u32 %v1146, 7
        %v1148 = vsub.s32 0, %v1147
        %v1149 = vrot.slane %v1030, %v1148
        %1151 = vmatprep.subr.mxu0 0.0
        %1152 = vmatpush1.msra.mxu0 0.0
        %1153 = vmatprep.subr.mxu0 0.0
        %1154 = vmatpush1.msra.mxu0 0.0
        %1155 = vmatprep.subr.mxu0 0.0
        %1156 = vmatpush1.msra.mxu0 0.0
        %1157 = vmatprep.subr.mxu0 0.0
        %1158 = vmatpush1.msra.mxu0 0.0
        %1159 = vmatprep.subr.mxu0 0.0
        %1160 = vmatpush1.msra.mxu0 0.0
        %1161 = vmatprep.subr.mxu0 0.0
        %1162 = vmatpush1.msra.mxu0 0.0
        %1163 = vmatprep.subr.mxu0 0.0
        %1164 = vmatpush1.msra.mxu0 0.0
        %1165 = vmatprep.subr.mxu0 0.0
        %1166 = vmatpush1.msra.mxu0 0.0
        %1167 = vmatprep.subr.mxu0 0.0
        %1168 = vmatpush1.msra.mxu0 0.0
        %1169 = vmatprep.subr.mxu0 0.0
        %1170 = vmatpush1.msra.mxu0 0.0
        %1171 = vmatprep.subr.mxu0 0.0
        %1172 = vmatpush1.msra.mxu0 0.0
        %1173 = vmatprep.subr.mxu0 0.0
        %1174 = vmatpush1.msra.mxu0 0.0
        %1175 = vmatprep.subr.mxu0 0.0
        %1176 = vmatpush1.msra.mxu0 %v1029
        %1177 = vmatprep.subr.mxu0 0.0
        %1178 = vmatpush1.msra.mxu0 %v1028
        %1179 = vmatprep.subr.mxu0 0.0
        %1180 = vmatpush1.msra.mxu0 %v1027
        %1181 = vmatprep.subr.mxu0 0.0
        %1182 = vmatpush1.msra.mxu0 %v1026
        %1183 = vmatprep.subr.mxu0 0.0
        %1184 = vmatpush2.msra.mxu0 0.0
        %1185 = vmatprep.subr.mxu0 0.0
        %1186 = vmatpush2.msra.mxu0 0.0
        %1187 = vmatprep.subr.mxu0 0.0
        %1188 = vmatpush2.msra.mxu0 0.0
        %1189 = vmatprep.subr.mxu0 0.0
        %1190 = vmatpush2.msra.mxu0 0.0
        %1191 = vmatprep.subr.mxu0 0.0
        %1192 = vmatpush2.msra.mxu0 0.0
        %1193 = vmatprep.subr.mxu0 0.0
        %1194 = vmatpush2.msra.mxu0 0.0
        %1195 = vmatprep.subr.mxu0 0.0
        %1196 = vmatpush2.msra.mxu0 0.0
        %1197 = vmatprep.subr.mxu0 0.0
        %1198 = vmatpush2.msra.mxu0 0.0
        %1199 = vmatprep.subr.mxu0 0.0
        %1200 = vmatpush2.msra.mxu0 0.0
        %1201 = vmatprep.subr.mxu0 0.0
        %1202 = vmatpush2.msra.mxu0 0.0
        %1203 = vmatprep.subr.mxu0 0.0
        %1204 = vmatpush2.msra.mxu0 0.0
        %1205 = vmatprep.subr.mxu0 0.0
        %1206 = vmatpush2.msra.mxu0 0.0
        %1207 = vmatprep.subr.mxu0 0.0
        %1208 = vmatpush2.msra.mxu0 0.0
        %1209 = vmatprep.subr.mxu0 0.0
        %1210 = vmatpush2.msra.mxu0 0.0
        %1211 = vmatprep.subr.mxu0 0.0
        %1212 = vmatpush2.msra.mxu0 0.0
        %1213 = vmatprep.subr.mxu0 0.0
        %1214 = vmatpush2.msra.mxu0 0.0
        %1215 = vmatprep.mubr.f32.mxu0 0.0
        %1216 = vmatmul.mubr.f32.gmra.mxu0 %v1049
        %v1217 = vpop.f32.mrf.mxu0
        %v1218 = vadd.f32 %v1149, %v1217
        %v1219 = vpop.f32.mrf.mxu0
        %1220 = vmatprep.mubr.f32.mxu0 0.0
        %1221 = vmatmul.mubr.f32.gmra.mxu0 %v1052
        %v1222 = vpop.f32.mrf.mxu0
        %v1223 = vadd.f32 %v1149, %v1222
        %v1224 = vpop.f32.mrf.mxu0
        %1225 = vmatprep.mubr.f32.mxu0 0.0
        %1226 = vmatmul.mubr.f32.gmra.mxu0 %v1055
        %v1227 = vpop.f32.mrf.mxu0
        %v1228 = vadd.f32 %v1149, %v1227
        %v1229 = vpop.f32.mrf.mxu0
        %1230 = vmatprep.mubr.f32.mxu0 0.0
        %1231 = vmatmul.mubr.f32.gmra.mxu0 %v1058
        %v1232 = vpop.f32.mrf.mxu0
        %v1233 = vadd.f32 %v1149, %v1232
        %v1234 = vpop.f32.mrf.mxu0
        %1235 = vdwg.mxu0
        %v1237 = vlaneseq
        %v1238 = vshrl.u32 %v1237, 7
        %v1239 = vsub.s32 0, %v1238
        %v1240 = vrot.slane %v1035, %v1239
        %1242 = vmatprep.subr.mxu0 0.0
        %1243 = vmatpush1.msra.mxu0 0.0
        %1244 = vmatprep.subr.mxu0 0.0
        %1245 = vmatpush1.msra.mxu0 0.0
        %1246 = vmatprep.subr.mxu0 0.0
        %1247 = vmatpush1.msra.mxu0 0.0
        %1248 = vmatprep.subr.mxu0 0.0
        %1249 = vmatpush1.msra.mxu0 0.0
        %1250 = vmatprep.subr.mxu0 0.0
        %1251 = vmatpush1.msra.mxu0 0.0
        %1252 = vmatprep.subr.mxu0 0.0
        %1253 = vmatpush1.msra.mxu0 0.0
        %1254 = vmatprep.subr.mxu0 0.0
        %1255 = vmatpush1.msra.mxu0 0.0
        %1256 = vmatprep.subr.mxu0 0.0
        %1257 = vmatpush1.msra.mxu0 0.0
        %1258 = vmatprep.subr.mxu0 0.0
        %1259 = vmatpush1.msra.mxu0 0.0
        %1260 = vmatprep.subr.mxu0 0.0
        %1261 = vmatpush1.msra.mxu0 0.0
        %1262 = vmatprep.subr.mxu0 0.0
        %1263 = vmatpush1.msra.mxu0 0.0
        %1264 = vmatprep.subr.mxu0 0.0
        %1265 = vmatpush1.msra.mxu0 0.0
        %1266 = vmatprep.subr.mxu0 0.0
        %1267 = vmatpush1.msra.mxu0 %v1034
        %1268 = vmatprep.subr.mxu0 0.0
        %1269 = vmatpush1.msra.mxu0 %v1033
        %1270 = vmatprep.subr.mxu0 0.0
        %1271 = vmatpush1.msra.mxu0 %v1032
        %1272 = vmatprep.subr.mxu0 0.0
        %1273 = vmatpush1.msra.mxu0 %v1031
        %1274 = vmatprep.subr.mxu0 0.0
        %1275 = vmatpush2.msra.mxu0 0.0
        %1276 = vmatprep.subr.mxu0 0.0
        %1277 = vmatpush2.msra.mxu0 0.0
        %1278 = vmatprep.subr.mxu0 0.0
        %1279 = vmatpush2.msra.mxu0 0.0
        %1280 = vmatprep.subr.mxu0 0.0
        %1281 = vmatpush2.msra.mxu0 0.0
        %1282 = vmatprep.subr.mxu0 0.0
        %1283 = vmatpush2.msra.mxu0 0.0
        %1284 = vmatprep.subr.mxu0 0.0
        %1285 = vmatpush2.msra.mxu0 0.0
        %1286 = vmatprep.subr.mxu0 0.0
        %1287 = vmatpush2.msra.mxu0 0.0
        %1288 = vmatprep.subr.mxu0 0.0
        %1289 = vmatpush2.msra.mxu0 0.0
        %1290 = vmatprep.subr.mxu0 0.0
        %1291 = vmatpush2.msra.mxu0 0.0
        %1292 = vmatprep.subr.mxu0 0.0
        %1293 = vmatpush2.msra.mxu0 0.0
        %1294 = vmatprep.subr.mxu0 0.0
        %1295 = vmatpush2.msra.mxu0 0.0
        %1296 = vmatprep.subr.mxu0 0.0
        %1297 = vmatpush2.msra.mxu0 0.0
        %1298 = vmatprep.subr.mxu0 0.0
        %1299 = vmatpush2.msra.mxu0 0.0
        %1300 = vmatprep.subr.mxu0 0.0
        %1301 = vmatpush2.msra.mxu0 0.0
        %1302 = vmatprep.subr.mxu0 0.0
        %1303 = vmatpush2.msra.mxu0 0.0
        %1304 = vmatprep.subr.mxu0 0.0
        %1305 = vmatpush2.msra.mxu0 0.0
        %1306 = vmatprep.mubr.f32.mxu0 0.0
        %1307 = vmatmul.mubr.f32.gmra.mxu0 %v1049
        %v1308 = vpop.f32.mrf.mxu0
        %v1309 = vadd.f32 %v1240, %v1308
        %v1310 = vpop.f32.mrf.mxu0
        %1311 = vmatprep.mubr.f32.mxu0 0.0
        %1312 = vmatmul.mubr.f32.gmra.mxu0 %v1052
        %v1313 = vpop.f32.mrf.mxu0
        %v1314 = vadd.f32 %v1240, %v1313
        %v1315 = vpop.f32.mrf.mxu0
        %1316 = vmatprep.mubr.f32.mxu0 0.0
        %1317 = vmatmul.mubr.f32.gmra.mxu0 %v1055
        %v1318 = vpop.f32.mrf.mxu0
        %v1319 = vadd.f32 %v1240, %v1318
        %v1320 = vpop.f32.mrf.mxu0
        %1321 = vmatprep.mubr.f32.mxu0 0.0
        %1322 = vmatmul.mubr.f32.gmra.mxu0 %v1058
        %v1323 = vpop.f32.mrf.mxu0
        %v1324 = vadd.f32 %v1240, %v1323
        %v1325 = vpop.f32.mrf.mxu0
        %1326 = vdwg.mxu0
        %v1327 = vmul.f32 %v1000, 0.35355338
        %v1328 = vmul.f32 %v1127, %v1327
        %v1329 = vmul.f32 %v1132, %v1327
        %v1330 = vmul.f32 %v1137, %v1327
        %v1331 = vmul.f32 %v1142, %v1327
        %v1333 = vsel %vm1047, %v1328, 0
        %v1336 = vsel %vm1047, %v1329, 0
        %v1339 = vsel %vm1047, %v1330, 0
        %v1342 = vsel %vm1047, %v1331, 0
        %v1345 = vsel %vm1047, %v1218, 0
        %v1348 = vsel %vm1047, %v1223, 0
        %v1351 = vsel %vm1047, %v1228, 0
        %v1354 = vsel %vm1047, %v1233, 0
        %1356 = vmatprep.subr.mxu0 0.0
        %1357 = vmatpush1.xpose.msra.mxu0 0.0
        %1358 = vmatprep.subr.mxu0 0.0
        %1359 = vmatpush1.xpose.msra.mxu0 0.0
        %1360 = vmatprep.subr.mxu0 0.0
        %1361 = vmatpush1.xpose.msra.mxu0 0.0
        %1362 = vmatprep.subr.mxu0 0.0
        %1363 = vmatpush1.xpose.msra.mxu0 0.0
        %1364 = vmatprep.subr.mxu0 0.0
        %1365 = vmatpush1.xpose.msra.mxu0 0.0
        %1366 = vmatprep.subr.mxu0 0.0
        %1367 = vmatpush1.xpose.msra.mxu0 0.0
        %1368 = vmatprep.subr.mxu0 0.0
        %1369 = vmatpush1.xpose.msra.mxu0 0.0
        %1370 = vmatprep.subr.mxu0 0.0
        %1371 = vmatpush1.xpose.msra.mxu0 0.0
        %1372 = vmatprep.subr.mxu0 0.0
        %1373 = vmatpush1.xpose.msra.mxu0 0.0
        %1374 = vmatprep.subr.mxu0 0.0
        %1375 = vmatpush1.xpose.msra.mxu0 0.0
        %1376 = vmatprep.subr.mxu0 0.0
        %1377 = vmatpush1.xpose.msra.mxu0 0.0
        %1378 = vmatprep.subr.mxu0 0.0
        %1379 = vmatpush1.xpose.msra.mxu0 0.0
        %1380 = vmatprep.subr.mxu0 0.0
        %1381 = vmatpush1.xpose.msra.mxu0 %v1354
        %1382 = vmatprep.subr.mxu0 0.0
        %1383 = vmatpush1.xpose.msra.mxu0 %v1351
        %1384 = vmatprep.subr.mxu0 0.0
        %1385 = vmatpush1.xpose.msra.mxu0 %v1348
        %1386 = vmatprep.subr.mxu0 0.0
        %1387 = vmatpush1.xpose.msra.mxu0 %v1345
        %1388 = vmatprep.subr.mxu0 0.0
        %1389 = vmatpush2.xpose.msra.mxu0 0.0
        %1390 = vmatprep.subr.mxu0 0.0
        %1391 = vmatpush2.xpose.msra.mxu0 0.0
        %1392 = vmatprep.subr.mxu0 0.0
        %1393 = vmatpush2.xpose.msra.mxu0 0.0
        %1394 = vmatprep.subr.mxu0 0.0
        %1395 = vmatpush2.xpose.msra.mxu0 0.0
        %1396 = vmatprep.subr.mxu0 0.0
        %1397 = vmatpush2.xpose.msra.mxu0 0.0
        %1398 = vmatprep.subr.mxu0 0.0
        %1399 = vmatpush2.xpose.msra.mxu0 0.0
        %1400 = vmatprep.subr.mxu0 0.0
        %1401 = vmatpush2.xpose.msra.mxu0 0.0
        %1402 = vmatprep.subr.mxu0 0.0
        %1403 = vmatpush2.xpose.msra.mxu0 0.0
        %1404 = vmatprep.subr.mxu0 0.0
        %1405 = vmatpush2.xpose.msra.mxu0 0.0
        %1406 = vmatprep.subr.mxu0 0.0
        %1407 = vmatpush2.xpose.msra.mxu0 0.0
        %1408 = vmatprep.subr.mxu0 0.0
        %1409 = vmatpush2.xpose.msra.mxu0 0.0
        %1410 = vmatprep.subr.mxu0 0.0
        %1411 = vmatpush2.xpose.msra.mxu0 0.0
        %1412 = vmatprep.subr.mxu0 0.0
        %1413 = vmatpush2.xpose.msra.mxu0 0.0
        %1414 = vmatprep.subr.mxu0 0.0
        %1415 = vmatpush2.xpose.msra.mxu0 0.0
        %1416 = vmatprep.subr.mxu0 0.0
        %1417 = vmatpush2.xpose.msra.mxu0 0.0
        %1418 = vmatprep.subr.mxu0 0.0
        %1419 = vmatpush2.xpose.msra.mxu0 0.0
        %1420 = vmatprep.mubr.f32.mxu0 0.0
        %1421 = vmatmul.mubr.f32.gmra.mxu0 %v1333
        %v1422 = vpop.f32.mrf.mxu0
        %v1423 = vadd.f32 %v1013, %v1422
        %v1424 = vpop.f32.mrf.mxu0
        %1425 = vmatprep.mubr.f32.mxu0 0.0
        %1426 = vmatmul.mubr.f32.gmra.mxu0 %v1336
        %v1427 = vpop.f32.mrf.mxu0
        %v1428 = vadd.f32 %v1014, %v1427
        %v1429 = vpop.f32.mrf.mxu0
        %1430 = vmatprep.mubr.f32.mxu0 0.0
        %1431 = vmatmul.mubr.f32.gmra.mxu0 %v1339
        %v1432 = vpop.f32.mrf.mxu0
        %v1433 = vadd.f32 %v1015, %v1432
        %v1434 = vpop.f32.mrf.mxu0
        %1435 = vmatprep.mubr.f32.mxu0 0.0
        %1436 = vmatmul.mubr.f32.gmra.mxu0 %v1342
        %v1437 = vpop.f32.mrf.mxu0
        %v1438 = vadd.f32 %v1016, %v1437
        %v1439 = vpop.f32.mrf.mxu0
        %1440 = vdwg.mxu0
        %vm1441 = vcmask 244736
        %v1442 = vsel %vm1441, %v1423, -inf
        %1443 = vmax.xlane.f32.xlu0 %v1442
        %v1444 = vpop.xlane.xlu0 %1443
        %v1445 = vsel %vm1441, %v1428, -inf
        %1446 = vmax.xlane.f32.xlu0 %v1445
        %v1447 = vpop.xlane.xlu0 %1446
        %v1448 = vsel %vm1441, %v1433, -inf
        %1449 = vmax.xlane.f32.xlu0 %v1448
        %v1450 = vpop.xlane.xlu0 %1449
        %vm1451 = vcmask 242688
        %v1452 = vsel %vm1451, %v1438, -inf
        %1453 = vmax.xlane.f32.xlu0 %v1452
        %v1454 = vpop.xlane.xlu0 %1453
        %v1455 = vsub.f32 %v1423, %v1444
        %v1456 = vsub.f32 %v1428, %v1447
        %v1457 = vsub.f32 %v1433, %v1450
        %v1458 = vsub.f32 %v1438, %v1454
        %v1459 = vmul.f32 %v1455, 1.442695
        %v1460 = vpow.pop %v1459
        %v1461 = vmul.f32 %v1456, 1.442695
        %v1462 = vpow.pop %v1461
        %v1463 = vmul.f32 %v1457, 1.442695
        %v1464 = vpow.pop %v1463
        %v1465 = vmul.f32 %v1458, 1.442695
        %v1466 = vpow.pop %v1465
        %v1467 = vsel %vm1441, %v1460, 0.0
        %1468 = vadd.xlane.f32.xlu0 %v1467
        %v1469 = vpop.xlane.xlu0 %1468
        %v1470 = vsel %vm1441, %v1462, 0.0
        %1471 = vadd.xlane.f32.xlu0 %v1470
        %v1472 = vpop.xlane.xlu0 %1471
        %v1473 = vsel %vm1441, %v1464, 0.0
        %1474 = vadd.xlane.f32.xlu0 %v1473
        %v1475 = vpop.xlane.xlu0 %1474
        %v1476 = vsel %vm1451, %v1466, 0.0
        %1477 = vadd.xlane.f32.xlu0 %v1476
        %v1478 = vpop.xlane.xlu0 %1477
        %v1479 = vrcp.pop %v1469
        %v1480 = vmul.f32 %v1460, %v1479
        %v1481 = vrcp.pop %v1472
        %v1482 = vmul.f32 %v1462, %v1481
        %v1483 = vrcp.pop %v1475
        %v1484 = vmul.f32 %v1464, %v1483
        %v1485 = vrcp.pop %v1478
        %v1486 = vmul.f32 %v1466, %v1485
        %v1487 = vmul.f32 %v1309, %v1000
        %v1488 = vmul.f32 %v1314, %v1000
        %v1489 = vmul.f32 %v1319, %v1000
        %v1490 = vmul.f32 %v1324, %v1000
        %v1491 = vmul.f32 %v1004, 0.35355338
        %v1492 = vmul.f32 %v1127, %v1491
        %v1493 = vmul.f32 %v1132, %v1491
        %v1494 = vmul.f32 %v1137, %v1491
        %v1495 = vmul.f32 %v1142, %v1491
        %v1497 = vsel %vm1047, %v1492, 0
        %v1500 = vsel %vm1047, %v1493, 0
        %v1503 = vsel %vm1047, %v1494, 0
        %v1506 = vsel %vm1047, %v1495, 0
        %1508 = vmatprep.subr.mxu0 0.0
        %1509 = vmatpush1.xpose.msra.mxu0 0.0
        %1510 = vmatprep.subr.mxu0 0.0
        %1511 = vmatpush1.xpose.msra.mxu0 0.0
        %1512 = vmatprep.subr.mxu0 0.0
        %1513 = vmatpush1.xpose.msra.mxu0 0.0
        %1514 = vmatprep.subr.mxu0 0.0
        %1515 = vmatpush1.xpose.msra.mxu0 0.0
        %1516 = vmatprep.subr.mxu0 0.0
        %1517 = vmatpush1.xpose.msra.mxu0 0.0
        %1518 = vmatprep.subr.mxu0 0.0
        %1519 = vmatpush1.xpose.msra.mxu0 0.0
        %1520 = vmatprep.subr.mxu0 0.0
        %1521 = vmatpush1.xpose.msra.mxu0 0.0
        %1522 = vmatprep.subr.mxu0 0.0
        %1523 = vmatpush1.xpose.msra.mxu0 0.0
        %1524 = vmatprep.subr.mxu0 0.0
        %1525 = vmatpush1.xpose.msra.mxu0 0.0
        %1526 = vmatprep.subr.mxu0 0.0
        %1527 = vmatpush1.xpose.msra.mxu0 0.0
        %1528 = vmatprep.subr.mxu0 0.0
        %1529 = vmatpush1.xpose.msra.mxu0 0.0
        %1530 = vmatprep.subr.mxu0 0.0
        %1531 = vmatpush1.xpose.msra.mxu0 0.0
        %1532 = vmatprep.subr.mxu0 0.0
        %1533 = vmatpush1.xpose.msra.mxu0 %v1354
        %1534 = vmatprep.subr.mxu0 0.0
        %1535 = vmatpush1.xpose.msra.mxu0 %v1351
        %1536 = vmatprep.subr.mxu0 0.0
        %1537 = vmatpush1.xpose.msra.mxu0 %v1348
        %1538 = vmatprep.subr.mxu0 0.0
        %1539 = vmatpush1.xpose.msra.mxu0 %v1345
        %1540 = vmatprep.subr.mxu0 0.0
        %1541 = vmatpush2.xpose.msra.mxu0 0.0
        %1542 = vmatprep.subr.mxu0 0.0
        %1543 = vmatpush2.xpose.msra.mxu0 0.0
        %1544 = vmatprep.subr.mxu0 0.0
        %1545 = vmatpush2.xpose.msra.mxu0 0.0
        %1546 = vmatprep.subr.mxu0 0.0
        %1547 = vmatpush2.xpose.msra.mxu0 0.0
        %1548 = vmatprep.subr.mxu0 0.0
        %1549 = vmatpush2.xpose.msra.mxu0 0.0
        %1550 = vmatprep.subr.mxu0 0.0
        %1551 = vmatpush2.xpose.msra.mxu0 0.0
        %1552 = vmatprep.subr.mxu0 0.0
        %1553 = vmatpush2.xpose.msra.mxu0 0.0
        %1554 = vmatprep.subr.mxu0 0.0
        %1555 = vmatpush2.xpose.msra.mxu0 0.0
        %1556 = vmatprep.subr.mxu0 0.0
        %1557 = vmatpush2.xpose.msra.mxu0 0.0
        %1558 = vmatprep.subr.mxu0 0.0
        %1559 = vmatpush2.xpose.msra.mxu0 0.0
        %1560 = vmatprep.subr.mxu0 0.0
        %1561 = vmatpush2.xpose.msra.mxu0 0.0
        %1562 = vmatprep.subr.mxu0 0.0
        %1563 = vmatpush2.xpose.msra.mxu0 0.0
        %1564 = vmatprep.subr.mxu0 0.0
        %1565 = vmatpush2.xpose.msra.mxu0 0.0
        %1566 = vmatprep.subr.mxu0 0.0
        %1567 = vmatpush2.xpose.msra.mxu0 0.0
        %1568 = vmatprep.subr.mxu0 0.0
        %1569 = vmatpush2.xpose.msra.mxu0 0.0
        %1570 = vmatprep.subr.mxu0 0.0
        %1571 = vmatpush2.xpose.msra.mxu0 0.0
        %1572 = vmatprep.mubr.f32.mxu0 0.0
        %1573 = vmatmul.mubr.f32.gmra.mxu0 %v1497
        %v1574 = vpop.f32.mrf.mxu0
        %v1575 = vadd.f32 %v1013, %v1574
        %v1576 = vpop.f32.mrf.mxu0
        %1577 = vmatprep.mubr.f32.mxu0 0.0
        %1578 = vmatmul.mubr.f32.gmra.mxu0 %v1500
        %v1579 = vpop.f32.mrf.mxu0
        %v1580 = vadd.f32 %v1014, %v1579
        %v1581 = vpop.f32.mrf.mxu0
        %1582 = vmatprep.mubr.f32.mxu0 0.0
        %1583 = vmatmul.mubr.f32.gmra.mxu0 %v1503
        %v1584 = vpop.f32.mrf.mxu0
        %v1585 = vadd.f32 %v1015, %v1584
        %v1586 = vpop.f32.mrf.mxu0
        %1587 = vmatprep.mubr.f32.mxu0 0.0
        %1588 = vmatmul.mubr.f32.gmra.mxu0 %v1506
        %v1589 = vpop.f32.mrf.mxu0
        %v1590 = vadd.f32 %v1016, %v1589
        %v1591 = vpop.f32.mrf.mxu0
        %1592 = vdwg.mxu0
        %v1593 = vsel %vm1441, %v1575, -inf
        %1594 = vmax.xlane.f32.xlu0 %v1593
        %v1595 = vpop.xlane.xlu0 %1594
        %v1596 = vsel %vm1441, %v1580, -inf
        %1597 = vmax.xlane.f32.xlu0 %v1596
        %v1598 = vpop.xlane.xlu0 %1597
        %v1599 = vsel %vm1441, %v1585, -inf
        %1600 = vmax.xlane.f32.xlu0 %v1599
        %v1601 = vpop.xlane.xlu0 %1600
        %v1602 = vsel %vm1451, %v1590, -inf
        %1603 = vmax.xlane.f32.xlu0 %v1602
        %v1604 = vpop.xlane.xlu0 %1603
        %v1605 = vsub.f32 %v1575, %v1595
        %v1606 = vsub.f32 %v1580, %v1598
        %v1607 = vsub.f32 %v1585, %v1601
        %v1608 = vsub.f32 %v1590, %v1604
        %v1609 = vmul.f32 %v1605, 1.442695
        %v1610 = vpow.pop %v1609
        %v1611 = vmul.f32 %v1606, 1.442695
        %v1612 = vpow.pop %v1611
        %v1613 = vmul.f32 %v1607, 1.442695
        %v1614 = vpow.pop %v1613
        %v1615 = vmul.f32 %v1608, 1.442695
        %v1616 = vpow.pop %v1615
        %v1617 = vsel %vm1441, %v1610, 0.0
        %1618 = vadd.xlane.f32.xlu0 %v1617
        %v1619 = vpop.xlane.xlu0 %1618
        %v1620 = vsel %vm1441, %v1612, 0.0
        %1621 = vadd.xlane.f32.xlu0 %v1620
        %v1622 = vpop.xlane.xlu0 %1621
        %v1623 = vsel %vm1441, %v1614, 0.0
        %1624 = vadd.xlane.f32.xlu0 %v1623
        %v1625 = vpop.xlane.xlu0 %1624
        %v1626 = vsel %vm1451, %v1616, 0.0
        %1627 = vadd.xlane.f32.xlu0 %v1626
        %v1628 = vpop.xlane.xlu0 %1627
        %v1629 = vrcp.pop %v1619
        %v1630 = vmul.f32 %v1610, %v1629
        %v1631 = vrcp.pop %v1622
        %v1632 = vmul.f32 %v1612, %v1631
        %v1633 = vrcp.pop %v1625
        %v1634 = vmul.f32 %v1614, %v1633
        %v1635 = vrcp.pop %v1628
        %v1636 = vmul.f32 %v1616, %v1635
        %v1637 = vmul.f32 %v1309, %v1004
        %v1638 = vmul.f32 %v1314, %v1004
        %v1639 = vmul.f32 %v1319, %v1004
        %v1640 = vmul.f32 %v1324, %v1004
        %v1642 = vsel %vm1441, %v1630, 0
        %v1645 = vsel %vm1441, %v1632, 0
        %v1648 = vsel %vm1441, %v1634, 0
        %v1651 = vsel %vm1441, %v1636, 0
        %vm1653 = vcmask 1045504
        %v1655 = vsel %vm1653, %v1640, 0
        %1657 = vmatprep.subr.mxu0 0.0
        %1658 = vmatpush1.msra.mxu0 0.0
        %1659 = vmatprep.subr.mxu0 0.0
        %1660 = vmatpush1.msra.mxu0 0.0
        %1661 = vmatprep.subr.mxu0 0.0
        %1662 = vmatpush1.msra.mxu0 0.0
        %1663 = vmatprep.subr.mxu0 0.0
        %1664 = vmatpush1.msra.mxu0 0.0
        %1665 = vmatprep.subr.mxu0 0.0
        %1666 = vmatpush1.msra.mxu0 0.0
        %1667 = vmatprep.subr.mxu0 0.0
        %1668 = vmatpush1.msra.mxu0 0.0
        %1669 = vmatprep.subr.mxu0 0.0
        %1670 = vmatpush1.msra.mxu0 0.0
        %1671 = vmatprep.subr.mxu0 0.0
        %1672 = vmatpush1.msra.mxu0 0.0
        %1673 = vmatprep.subr.mxu0 0.0
        %1674 = vmatpush1.msra.mxu0 0.0
        %1675 = vmatprep.subr.mxu0 0.0
        %1676 = vmatpush1.msra.mxu0 0.0
        %1677 = vmatprep.subr.mxu0 0.0
        %1678 = vmatpush1.msra.mxu0 0.0
        %1679 = vmatprep.subr.mxu0 0.0
        %1680 = vmatpush1.msra.mxu0 0.0
        %1681 = vmatprep.subr.mxu0 0.0
        %1682 = vmatpush1.msra.mxu0 %v1655
        %1683 = vmatprep.subr.mxu0 0.0
        %1684 = vmatpush1.msra.mxu0 %v1639
        %1685 = vmatprep.subr.mxu0 0.0
        %1686 = vmatpush1.msra.mxu0 %v1638
        %1687 = vmatprep.subr.mxu0 0.0
        %1688 = vmatpush1.msra.mxu0 %v1637
        %1689 = vmatprep.subr.mxu0 0.0
        %1690 = vmatpush2.msra.mxu0 0.0
        %1691 = vmatprep.subr.mxu0 0.0
        %1692 = vmatpush2.msra.mxu0 0.0
        %1693 = vmatprep.subr.mxu0 0.0
        %1694 = vmatpush2.msra.mxu0 0.0
        %1695 = vmatprep.subr.mxu0 0.0
        %1696 = vmatpush2.msra.mxu0 0.0
        %1697 = vmatprep.subr.mxu0 0.0
        %1698 = vmatpush2.msra.mxu0 0.0
        %1699 = vmatprep.subr.mxu0 0.0
        %1700 = vmatpush2.msra.mxu0 0.0
        %1701 = vmatprep.subr.mxu0 0.0
        %1702 = vmatpush2.msra.mxu0 0.0
        %1703 = vmatprep.subr.mxu0 0.0
        %1704 = vmatpush2.msra.mxu0 0.0
        %1705 = vmatprep.subr.mxu0 0.0
        %1706 = vmatpush2.msra.mxu0 0.0
        %1707 = vmatprep.subr.mxu0 0.0
        %1708 = vmatpush2.msra.mxu0 0.0
        %1709 = vmatprep.subr.mxu0 0.0
        %1710 = vmatpush2.msra.mxu0 0.0
        %1711 = vmatprep.subr.mxu0 0.0
        %1712 = vmatpush2.msra.mxu0 0.0
        %1713 = vmatprep.subr.mxu0 0.0
        %1714 = vmatpush2.msra.mxu0 0.0
        %1715 = vmatprep.subr.mxu0 0.0
        %1716 = vmatpush2.msra.mxu0 0.0
        %1717 = vmatprep.subr.mxu0 0.0
        %1718 = vmatpush2.msra.mxu0 0.0
        %1719 = vmatprep.subr.mxu0 0.0
        %1720 = vmatpush2.msra.mxu0 0.0
        %1721 = vmatprep.mubr.f32.mxu0 0.0
        %1722 = vmatmul.mubr.f32.gmra.mxu0 %v1642
        %v1723 = vpop.f32.mrf.mxu0
        %v1724 = vadd.f32 0.0, %v1723
        %v1725 = vpop.f32.mrf.mxu0
        %1726 = vmatprep.mubr.f32.mxu0 0.0
        %1727 = vmatmul.mubr.f32.gmra.mxu0 %v1645
        %v1728 = vpop.f32.mrf.mxu0
        %v1729 = vadd.f32 0.0, %v1728
        %v1730 = vpop.f32.mrf.mxu0
        %1731 = vmatprep.mubr.f32.mxu0 0.0
        %1732 = vmatmul.mubr.f32.gmra.mxu0 %v1648
        %v1733 = vpop.f32.mrf.mxu0
        %v1734 = vadd.f32 0.0, %v1733
        %v1735 = vpop.f32.mrf.mxu0
        %1736 = vmatprep.mubr.f32.mxu0 0.0
        %1737 = vmatmul.mubr.f32.gmra.mxu0 %v1651
        %v1738 = vpop.f32.mrf.mxu0
        %v1739 = vadd.f32 0.0, %v1738
        %v1740 = vpop.f32.mrf.mxu0
        %1741 = vdwg.mxu0
        %v1743 = vsel %vm1441, %v1480, 0
        %v1746 = vsel %vm1441, %v1482, 0
        %v1749 = vsel %vm1441, %v1484, 0
        %v1752 = vsel %vm1441, %v1486, 0
        %v1755 = vsel %vm1653, %v1490, 0
        %1757 = vmatprep.subr.mxu0 0.0
        %1758 = vmatpush1.msra.mxu0 0.0
        %1759 = vmatprep.subr.mxu0 0.0
        %1760 = vmatpush1.msra.mxu0 0.0
        %1761 = vmatprep.subr.mxu0 0.0
        %1762 = vmatpush1.msra.mxu0 0.0
        %1763 = vmatprep.subr.mxu0 0.0
        %1764 = vmatpush1.msra.mxu0 0.0
        %1765 = vmatprep.subr.mxu0 0.0
        %1766 = vmatpush1.msra.mxu0 0.0
        %1767 = vmatprep.subr.mxu0 0.0
        %1768 = vmatpush1.msra.mxu0 0.0
        %1769 = vmatprep.subr.mxu0 0.0
        %1770 = vmatpush1.msra.mxu0 0.0
        %1771 = vmatprep.subr.mxu0 0.0
        %1772 = vmatpush1.msra.mxu0 0.0
        %1773 = vmatprep.subr.mxu0 0.0
        %1774 = vmatpush1.msra.mxu0 0.0
        %1775 = vmatprep.subr.mxu0 0.0
        %1776 = vmatpush1.msra.mxu0 0.0
        %1777 = vmatprep.subr.mxu0 0.0
        %1778 = vmatpush1.msra.mxu0 0.0
        %1779 = vmatprep.subr.mxu0 0.0
        %1780 = vmatpush1.msra.mxu0 0.0
        %1781 = vmatprep.subr.mxu0 0.0
        %1782 = vmatpush1.msra.mxu0 %v1755
        %1783 = vmatprep.subr.mxu0 0.0
        %1784 = vmatpush1.msra.mxu0 %v1489
        %1785 = vmatprep.subr.mxu0 0.0
        %1786 = vmatpush1.msra.mxu0 %v1488
        %1787 = vmatprep.subr.mxu0 0.0
        %1788 = vmatpush1.msra.mxu0 %v1487
        %1789 = vmatprep.subr.mxu0 0.0
        %1790 = vmatpush2.msra.mxu0 0.0
        %1791 = vmatprep.subr.mxu0 0.0
        %1792 = vmatpush2.msra.mxu0 0.0
        %1793 = vmatprep.subr.mxu0 0.0
        %1794 = vmatpush2.msra.mxu0 0.0
        %1795 = vmatprep.subr.mxu0 0.0
        %1796 = vmatpush2.msra.mxu0 0.0
        %1797 = vmatprep.subr.mxu0 0.0
        %1798 = vmatpush2.msra.mxu0 0.0
        %1799 = vmatprep.subr.mxu0 0.0
        %1800 = vmatpush2.msra.mxu0 0.0
        %1801 = vmatprep.subr.mxu0 0.0
        %1802 = vmatpush2.msra.mxu0 0.0
        %1803 = vmatprep.subr.mxu0 0.0
        %1804 = vmatpush2.msra.mxu0 0.0
        %1805 = vmatprep.subr.mxu0 0.0
        %1806 = vmatpush2.msra.mxu0 0.0
        %1807 = vmatprep.subr.mxu0 0.0
        %1808 = vmatpush2.msra.mxu0 0.0
        %1809 = vmatprep.subr.mxu0 0.0
        %1810 = vmatpush2.msra.mxu0 0.0
        %1811 = vmatprep.subr.mxu0 0.0
        %1812 = vmatpush2.msra.mxu0 0.0
        %1813 = vmatprep.subr.mxu0 0.0
        %1814 = vmatpush2.msra.mxu0 0.0
        %1815 = vmatprep.subr.mxu0 0.0
        %1816 = vmatpush2.msra.mxu0 0.0
        %1817 = vmatprep.subr.mxu0 0.0
        %1818 = vmatpush2.msra.mxu0 0.0
        %1819 = vmatprep.subr.mxu0 0.0
        %1820 = vmatpush2.msra.mxu0 0.0
        %1821 = vmatprep.mubr.f32.mxu0 0.0
        %1822 = vmatmul.mubr.f32.gmra.mxu0 %v1743
        %v1823 = vpop.f32.mrf.mxu0
        %v1824 = vadd.f32 %v1724, %v1823
        %v1825 = vpop.f32.mrf.mxu0
        %1826 = vmatprep.mubr.f32.mxu0 0.0
        %1827 = vmatmul.mubr.f32.gmra.mxu0 %v1746
        %v1828 = vpop.f32.mrf.mxu0
        %v1829 = vadd.f32 %v1729, %v1828
        %v1830 = vpop.f32.mrf.mxu0
        %1831 = vmatprep.mubr.f32.mxu0 0.0
        %1832 = vmatmul.mubr.f32.gmra.mxu0 %v1749
        %v1833 = vpop.f32.mrf.mxu0
        %v1834 = vadd.f32 %v1734, %v1833
        %v1835 = vpop.f32.mrf.mxu0
        %1836 = vmatprep.mubr.f32.mxu0 0.0
        %1837 = vmatmul.mubr.f32.gmra.mxu0 %v1752
        %v1838 = vpop.f32.mrf.mxu0
        %v1839 = vadd.f32 %v1739, %v1838
        %v1840 = vpop.f32.mrf.mxu0
        %1841 = vdwg.mxu0
        %v1842 = vmul.f32 %v1008, 0.35355338
        %v1843 = vmul.f32 %v1127, %v1842
        %v1844 = vmul.f32 %v1132, %v1842
        %v1845 = vmul.f32 %v1137, %v1842
        %v1846 = vmul.f32 %v1142, %v1842
        %v1848 = vsel %vm1047, %v1843, 0
        %v1851 = vsel %vm1047, %v1844, 0
        %v1854 = vsel %vm1047, %v1845, 0
        %v1857 = vsel %vm1047, %v1846, 0
        %1859 = vmatprep.subr.mxu0 0.0
        %1860 = vmatpush1.xpose.msra.mxu0 0.0
        %1861 = vmatprep.subr.mxu0 0.0
        %1862 = vmatpush1.xpose.msra.mxu0 0.0
        %1863 = vmatprep.subr.mxu0 0.0
        %1864 = vmatpush1.xpose.msra.mxu0 0.0
        %1865 = vmatprep.subr.mxu0 0.0
        %1866 = vmatpush1.xpose.msra.mxu0 0.0
        %1867 = vmatprep.subr.mxu0 0.0
        %1868 = vmatpush1.xpose.msra.mxu0 0.0
        %1869 = vmatprep.subr.mxu0 0.0
        %1870 = vmatpush1.xpose.msra.mxu0 0.0
        %1871 = vmatprep.subr.mxu0 0.0
        %1872 = vmatpush1.xpose.msra.mxu0 0.0
        %1873 = vmatprep.subr.mxu0 0.0
        %1874 = vmatpush1.xpose.msra.mxu0 0.0
        %1875 = vmatprep.subr.mxu0 0.0
        %1876 = vmatpush1.xpose.msra.mxu0 0.0
        %1877 = vmatprep.subr.mxu0 0.0
        %1878 = vmatpush1.xpose.msra.mxu0 0.0
        %1879 = vmatprep.subr.mxu0 0.0
        %1880 = vmatpush1.xpose.msra.mxu0 0.0
        %1881 = vmatprep.subr.mxu0 0.0
        %1882 = vmatpush1.xpose.msra.mxu0 0.0
        %1883 = vmatprep.subr.mxu0 0.0
        %1884 = vmatpush1.xpose.msra.mxu0 %v1354
        %1885 = vmatprep.subr.mxu0 0.0
        %1886 = vmatpush1.xpose.msra.mxu0 %v1351
        %1887 = vmatprep.subr.mxu0 0.0
        %1888 = vmatpush1.xpose.msra.mxu0 %v1348
        %1889 = vmatprep.subr.mxu0 0.0
        %1890 = vmatpush1.xpose.msra.mxu0 %v1345
        %1891 = vmatprep.subr.mxu0 0.0
        %1892 = vmatpush2.xpose.msra.mxu0 0.0
        %1893 = vmatprep.subr.mxu0 0.0
        %1894 = vmatpush2.xpose.msra.mxu0 0.0
        %1895 = vmatprep.subr.mxu0 0.0
        %1896 = vmatpush2.xpose.msra.mxu0 0.0
        %1897 = vmatprep.subr.mxu0 0.0
        %1898 = vmatpush2.xpose.msra.mxu0 0.0
        %1899 = vmatprep.subr.mxu0 0.0
        %1900 = vmatpush2.xpose.msra.mxu0 0.0
        %1901 = vmatprep.subr.mxu0 0.0
        %1902 = vmatpush2.xpose.msra.mxu0 0.0
        %1903 = vmatprep.subr.mxu0 0.0
        %1904 = vmatpush2.xpose.msra.mxu0 0.0
        %1905 = vmatprep.subr.mxu0 0.0
        %1906 = vmatpush2.xpose.msra.mxu0 0.0
        %1907 = vmatprep.subr.mxu0 0.0
        %1908 = vmatpush2.xpose.msra.mxu0 0.0
        %1909 = vmatprep.subr.mxu0 0.0
        %1910 = vmatpush2.xpose.msra.mxu0 0.0
        %1911 = vmatprep.subr.mxu0 0.0
        %1912 = vmatpush2.xpose.msra.mxu0 0.0
        %1913 = vmatprep.subr.mxu0 0.0
        %1914 = vmatpush2.xpose.msra.mxu0 0.0
        %1915 = vmatprep.subr.mxu0 0.0
        %1916 = vmatpush2.xpose.msra.mxu0 0.0
        %1917 = vmatprep.subr.mxu0 0.0
        %1918 = vmatpush2.xpose.msra.mxu0 0.0
        %1919 = vmatprep.subr.mxu0 0.0
        %1920 = vmatpush2.xpose.msra.mxu0 0.0
        %1921 = vmatprep.subr.mxu0 0.0
        %1922 = vmatpush2.xpose.msra.mxu0 0.0
        %1923 = vmatprep.mubr.f32.mxu0 0.0
        %1924 = vmatmul.mubr.f32.gmra.mxu0 %v1848
        %v1925 = vpop.f32.mrf.mxu0
        %v1926 = vadd.f32 %v1013, %v1925
        %v1927 = vpop.f32.mrf.mxu0
        %1928 = vmatprep.mubr.f32.mxu0 0.0
        %1929 = vmatmul.mubr.f32.gmra.mxu0 %v1851
        %v1930 = vpop.f32.mrf.mxu0
        %v1931 = vadd.f32 %v1014, %v1930
        %v1932 = vpop.f32.mrf.mxu0
        %1933 = vmatprep.mubr.f32.mxu0 0.0
        %1934 = vmatmul.mubr.f32.gmra.mxu0 %v1854
        %v1935 = vpop.f32.mrf.mxu0
        %v1936 = vadd.f32 %v1015, %v1935
        %v1937 = vpop.f32.mrf.mxu0
        %1938 = vmatprep.mubr.f32.mxu0 0.0
        %1939 = vmatmul.mubr.f32.gmra.mxu0 %v1857
        %v1940 = vpop.f32.mrf.mxu0
        %v1941 = vadd.f32 %v1016, %v1940
        %v1942 = vpop.f32.mrf.mxu0
        %1943 = vdwg.mxu0
        %v1944 = vsel %vm1441, %v1926, -inf
        %1945 = vmax.xlane.f32.xlu0 %v1944
        %v1946 = vpop.xlane.xlu0 %1945
        %v1947 = vsel %vm1441, %v1931, -inf
        %1948 = vmax.xlane.f32.xlu0 %v1947
        %v1949 = vpop.xlane.xlu0 %1948
        %v1950 = vsel %vm1441, %v1936, -inf
        %1951 = vmax.xlane.f32.xlu0 %v1950
        %v1952 = vpop.xlane.xlu0 %1951
        %v1953 = vsel %vm1451, %v1941, -inf
        %1954 = vmax.xlane.f32.xlu0 %v1953
        %v1955 = vpop.xlane.xlu0 %1954
        %v1956 = vsub.f32 %v1926, %v1946
        %v1957 = vsub.f32 %v1931, %v1949
        %v1958 = vsub.f32 %v1936, %v1952
        %v1959 = vsub.f32 %v1941, %v1955
        %v1960 = vmul.f32 %v1956, 1.442695
        %v1961 = vpow.pop %v1960
        %v1962 = vmul.f32 %v1957, 1.442695
        %v1963 = vpow.pop %v1962
        %v1964 = vmul.f32 %v1958, 1.442695
        %v1965 = vpow.pop %v1964
        %v1966 = vmul.f32 %v1959, 1.442695
        %v1967 = vpow.pop %v1966
        %v1968 = vsel %vm1441, %v1961, 0.0
        %1969 = vadd.xlane.f32.xlu0 %v1968
        %v1970 = vpop.xlane.xlu0 %1969
        %v1971 = vsel %vm1441, %v1963, 0.0
        %1972 = vadd.xlane.f32.xlu0 %v1971
        %v1973 = vpop.xlane.xlu0 %1972
        %v1974 = vsel %vm1441, %v1965, 0.0
        %1975 = vadd.xlane.f32.xlu0 %v1974
        %v1976 = vpop.xlane.xlu0 %1975
        %v1977 = vsel %vm1451, %v1967, 0.0
        %1978 = vadd.xlane.f32.xlu0 %v1977
        %v1979 = vpop.xlane.xlu0 %1978
        %v1980 = vrcp.pop %v1970
        %v1981 = vmul.f32 %v1961, %v1980
        %v1982 = vrcp.pop %v1973
        %v1983 = vmul.f32 %v1963, %v1982
        %v1984 = vrcp.pop %v1976
        %v1985 = vmul.f32 %v1965, %v1984
        %v1986 = vrcp.pop %v1979
        %v1987 = vmul.f32 %v1967, %v1986
        %v1988 = vmul.f32 %v1309, %v1008
        %v1989 = vmul.f32 %v1314, %v1008
        %v1990 = vmul.f32 %v1319, %v1008
        %v1991 = vmul.f32 %v1324, %v1008
        %v1993 = vsel %vm1441, %v1981, 0
        %v1996 = vsel %vm1441, %v1983, 0
        %v1999 = vsel %vm1441, %v1985, 0
        %v2002 = vsel %vm1441, %v1987, 0
        %v2005 = vsel %vm1653, %v1991, 0
        %2007 = vmatprep.subr.mxu0 0.0
        %2008 = vmatpush1.msra.mxu0 0.0
        %2009 = vmatprep.subr.mxu0 0.0
        %2010 = vmatpush1.msra.mxu0 0.0
        %2011 = vmatprep.subr.mxu0 0.0
        %2012 = vmatpush1.msra.mxu0 0.0
        %2013 = vmatprep.subr.mxu0 0.0
        %2014 = vmatpush1.msra.mxu0 0.0
        %2015 = vmatprep.subr.mxu0 0.0
        %2016 = vmatpush1.msra.mxu0 0.0
        %2017 = vmatprep.subr.mxu0 0.0
        %2018 = vmatpush1.msra.mxu0 0.0
        %2019 = vmatprep.subr.mxu0 0.0
        %2020 = vmatpush1.msra.mxu0 0.0
        %2021 = vmatprep.subr.mxu0 0.0
        %2022 = vmatpush1.msra.mxu0 0.0
        %2023 = vmatprep.subr.mxu0 0.0
        %2024 = vmatpush1.msra.mxu0 0.0
        %2025 = vmatprep.subr.mxu0 0.0
        %2026 = vmatpush1.msra.mxu0 0.0
        %2027 = vmatprep.subr.mxu0 0.0
        %2028 = vmatpush1.msra.mxu0 0.0
        %2029 = vmatprep.subr.mxu0 0.0
        %2030 = vmatpush1.msra.mxu0 0.0
        %2031 = vmatprep.subr.mxu0 0.0
        %2032 = vmatpush1.msra.mxu0 %v2005
        %2033 = vmatprep.subr.mxu0 0.0
        %2034 = vmatpush1.msra.mxu0 %v1990
        %2035 = vmatprep.subr.mxu0 0.0
        %2036 = vmatpush1.msra.mxu0 %v1989
        %2037 = vmatprep.subr.mxu0 0.0
        %2038 = vmatpush1.msra.mxu0 %v1988
        %2039 = vmatprep.subr.mxu0 0.0
        %2040 = vmatpush2.msra.mxu0 0.0
        %2041 = vmatprep.subr.mxu0 0.0
        %2042 = vmatpush2.msra.mxu0 0.0
        %2043 = vmatprep.subr.mxu0 0.0
        %2044 = vmatpush2.msra.mxu0 0.0
        %2045 = vmatprep.subr.mxu0 0.0
        %2046 = vmatpush2.msra.mxu0 0.0
        %2047 = vmatprep.subr.mxu0 0.0
        %2048 = vmatpush2.msra.mxu0 0.0
        %2049 = vmatprep.subr.mxu0 0.0
        %2050 = vmatpush2.msra.mxu0 0.0
        %2051 = vmatprep.subr.mxu0 0.0
        %2052 = vmatpush2.msra.mxu0 0.0
        %2053 = vmatprep.subr.mxu0 0.0
        %2054 = vmatpush2.msra.mxu0 0.0
        %2055 = vmatprep.subr.mxu0 0.0
        %2056 = vmatpush2.msra.mxu0 0.0
        %2057 = vmatprep.subr.mxu0 0.0
        %2058 = vmatpush2.msra.mxu0 0.0
        %2059 = vmatprep.subr.mxu0 0.0
        %2060 = vmatpush2.msra.mxu0 0.0
        %2061 = vmatprep.subr.mxu0 0.0
        %2062 = vmatpush2.msra.mxu0 0.0
        %2063 = vmatprep.subr.mxu0 0.0
        %2064 = vmatpush2.msra.mxu0 0.0
        %2065 = vmatprep.subr.mxu0 0.0
        %2066 = vmatpush2.msra.mxu0 0.0
        %2067 = vmatprep.subr.mxu0 0.0
        %2068 = vmatpush2.msra.mxu0 0.0
        %2069 = vmatprep.subr.mxu0 0.0
        %2070 = vmatpush2.msra.mxu0 0.0
        %2071 = vmatprep.mubr.f32.mxu0 0.0
        %2072 = vmatmul.mubr.f32.gmra.mxu0 %v1993
        %v2073 = vpop.f32.mrf.mxu0
        %v2074 = vadd.f32 0.0, %v2073
        %v2075 = vpop.f32.mrf.mxu0
        %2076 = vmatprep.mubr.f32.mxu0 0.0
        %2077 = vmatmul.mubr.f32.gmra.mxu0 %v1996
        %v2078 = vpop.f32.mrf.mxu0
        %v2079 = vadd.f32 0.0, %v2078
        %v2080 = vpop.f32.mrf.mxu0
        %2081 = vmatprep.mubr.f32.mxu0 0.0
        %2082 = vmatmul.mubr.f32.gmra.mxu0 %v1999
        %v2083 = vpop.f32.mrf.mxu0
        %v2084 = vadd.f32 0.0, %v2083
        %v2085 = vpop.f32.mrf.mxu0
        %2086 = vmatprep.mubr.f32.mxu0 0.0
        %2087 = vmatmul.mubr.f32.gmra.mxu0 %v2002
        %v2088 = vpop.f32.mrf.mxu0
        %v2089 = vadd.f32 0.0, %v2088
        %v2090 = vpop.f32.mrf.mxu0
        %2091 = vdwg.mxu0
        %v2092 = vadd.f32 %v1824, %v2074
        %v2093 = vadd.f32 %v1829, %v2079
        %v2094 = vadd.f32 %v1834, %v2084
        %v2095 = vadd.f32 %v1839, %v2089
        %v2096 = vmul.f32 %v1012, 0.35355338
        %v2097 = vmul.f32 %v1127, %v2096
        %v2098 = vmul.f32 %v1132, %v2096
        %v2099 = vmul.f32 %v1137, %v2096
        %v2100 = vmul.f32 %v1142, %v2096
        %v2102 = vsel %vm1047, %v2097, 0
        %v2105 = vsel %vm1047, %v2098, 0
        %v2108 = vsel %vm1047, %v2099, 0
        %v2111 = vsel %vm1047, %v2100, 0
        %2113 = vmatprep.subr.mxu0 0.0
        %2114 = vmatpush1.xpose.msra.mxu0 0.0
        %2115 = vmatprep.subr.mxu0 0.0
        %2116 = vmatpush1.xpose.msra.mxu0 0.0
        %2117 = vmatprep.subr.mxu0 0.0
        %2118 = vmatpush1.xpose.msra.mxu0 0.0
        %2119 = vmatprep.subr.mxu0 0.0
        %2120 = vmatpush1.xpose.msra.mxu0 0.0
        %2121 = vmatprep.subr.mxu0 0.0
        %2122 = vmatpush1.xpose.msra.mxu0 0.0
        %2123 = vmatprep.subr.mxu0 0.0
        %2124 = vmatpush1.xpose.msra.mxu0 0.0
        %2125 = vmatprep.subr.mxu0 0.0
        %2126 = vmatpush1.xpose.msra.mxu0 0.0
        %2127 = vmatprep.subr.mxu0 0.0
        %2128 = vmatpush1.xpose.msra.mxu0 0.0
        %2129 = vmatprep.subr.mxu0 0.0
        %2130 = vmatpush1.xpose.msra.mxu0 0.0
        %2131 = vmatprep.subr.mxu0 0.0
        %2132 = vmatpush1.xpose.msra.mxu0 0.0
        %2133 = vmatprep.subr.mxu0 0.0
        %2134 = vmatpush1.xpose.msra.mxu0 0.0
        %2135 = vmatprep.subr.mxu0 0.0
        %2136 = vmatpush1.xpose.msra.mxu0 0.0
        %2137 = vmatprep.subr.mxu0 0.0
        %2138 = vmatpush1.xpose.msra.mxu0 %v1354
        %2139 = vmatprep.subr.mxu0 0.0
        %2140 = vmatpush1.xpose.msra.mxu0 %v1351
        %2141 = vmatprep.subr.mxu0 0.0
        %2142 = vmatpush1.xpose.msra.mxu0 %v1348
        %2143 = vmatprep.subr.mxu0 0.0
        %2144 = vmatpush1.xpose.msra.mxu0 %v1345
        %2145 = vmatprep.subr.mxu0 0.0
        %2146 = vmatpush2.xpose.msra.mxu0 0.0
        %2147 = vmatprep.subr.mxu0 0.0
        %2148 = vmatpush2.xpose.msra.mxu0 0.0
        %2149 = vmatprep.subr.mxu0 0.0
        %2150 = vmatpush2.xpose.msra.mxu0 0.0
        %2151 = vmatprep.subr.mxu0 0.0
        %2152 = vmatpush2.xpose.msra.mxu0 0.0
        %2153 = vmatprep.subr.mxu0 0.0
        %2154 = vmatpush2.xpose.msra.mxu0 0.0
        %2155 = vmatprep.subr.mxu0 0.0
        %2156 = vmatpush2.xpose.msra.mxu0 0.0
        %2157 = vmatprep.subr.mxu0 0.0
        %2158 = vmatpush2.xpose.msra.mxu0 0.0
        %2159 = vmatprep.subr.mxu0 0.0
        %2160 = vmatpush2.xpose.msra.mxu0 0.0
        %2161 = vmatprep.subr.mxu0 0.0
        %2162 = vmatpush2.xpose.msra.mxu0 0.0
        %2163 = vmatprep.subr.mxu0 0.0
        %2164 = vmatpush2.xpose.msra.mxu0 0.0
        %2165 = vmatprep.subr.mxu0 0.0
        %2166 = vmatpush2.xpose.msra.mxu0 0.0
        %2167 = vmatprep.subr.mxu0 0.0
        %2168 = vmatpush2.xpose.msra.mxu0 0.0
        %2169 = vmatprep.subr.mxu0 0.0
        %2170 = vmatpush2.xpose.msra.mxu0 0.0
        %2171 = vmatprep.subr.mxu0 0.0
        %2172 = vmatpush2.xpose.msra.mxu0 0.0
        %2173 = vmatprep.subr.mxu0 0.0
        %2174 = vmatpush2.xpose.msra.mxu0 0.0
        %2175 = vmatprep.subr.mxu0 0.0
        %2176 = vmatpush2.xpose.msra.mxu0 0.0
        %2177 = vmatprep.mubr.f32.mxu0 0.0
        %2178 = vmatmul.mubr.f32.gmra.mxu0 %v2102
        %v2179 = vpop.f32.mrf.mxu0
        %v2180 = vadd.f32 %v1013, %v2179
        %v2181 = vpop.f32.mrf.mxu0
        %2182 = vmatprep.mubr.f32.mxu0 0.0
        %2183 = vmatmul.mubr.f32.gmra.mxu0 %v2105
        %v2184 = vpop.f32.mrf.mxu0
        %v2185 = vadd.f32 %v1014, %v2184
        %v2186 = vpop.f32.mrf.mxu0
        %2187 = vmatprep.mubr.f32.mxu0 0.0
        %2188 = vmatmul.mubr.f32.gmra.mxu0 %v2108
        %v2189 = vpop.f32.mrf.mxu0
        %v2190 = vadd.f32 %v1015, %v2189
        %v2191 = vpop.f32.mrf.mxu0
        %2192 = vmatprep.mubr.f32.mxu0 0.0
        %2193 = vmatmul.mubr.f32.gmra.mxu0 %v2111
        %v2194 = vpop.f32.mrf.mxu0
        %v2195 = vadd.f32 %v1016, %v2194
        %v2196 = vpop.f32.mrf.mxu0
        %2197 = vdwg.mxu0
        %v2198 = vsel %vm1441, %v2180, -inf
        %2199 = vmax.xlane.f32.xlu0 %v2198
        %v2200 = vpop.xlane.xlu0 %2199
        %v2201 = vsel %vm1441, %v2185, -inf
        %2202 = vmax.xlane.f32.xlu0 %v2201
        %v2203 = vpop.xlane.xlu0 %2202
        %v2204 = vsel %vm1441, %v2190, -inf
        %2205 = vmax.xlane.f32.xlu0 %v2204
        %v2206 = vpop.xlane.xlu0 %2205
        %v2207 = vsel %vm1451, %v2195, -inf
        %2208 = vmax.xlane.f32.xlu0 %v2207
        %v2209 = vpop.xlane.xlu0 %2208
        %v2210 = vsub.f32 %v2180, %v2200
        %v2211 = vsub.f32 %v2185, %v2203
        %v2212 = vsub.f32 %v2190, %v2206
        %v2213 = vsub.f32 %v2195, %v2209
        %v2214 = vmul.f32 %v2210, 1.442695
        %v2215 = vpow.pop %v2214
        %v2216 = vmul.f32 %v2211, 1.442695
        %v2217 = vpow.pop %v2216
        %v2218 = vmul.f32 %v2212, 1.442695
        %v2219 = vpow.pop %v2218
        %v2220 = vmul.f32 %v2213, 1.442695
        %v2221 = vpow.pop %v2220
        %v2222 = vsel %vm1441, %v2215, 0.0
        %2223 = vadd.xlane.f32.xlu0 %v2222
        %v2224 = vpop.xlane.xlu0 %2223
        %v2225 = vsel %vm1441, %v2217, 0.0
        %2226 = vadd.xlane.f32.xlu0 %v2225
        %v2227 = vpop.xlane.xlu0 %2226
        %v2228 = vsel %vm1441, %v2219, 0.0
        %2229 = vadd.xlane.f32.xlu0 %v2228
        %v2230 = vpop.xlane.xlu0 %2229
        %v2231 = vsel %vm1451, %v2221, 0.0
        %2232 = vadd.xlane.f32.xlu0 %v2231
        %v2233 = vpop.xlane.xlu0 %2232
        %v2234 = vrcp.pop %v2224
        %v2235 = vmul.f32 %v2215, %v2234
        %v2236 = vrcp.pop %v2227
        %v2237 = vmul.f32 %v2217, %v2236
        %v2238 = vrcp.pop %v2230
        %v2239 = vmul.f32 %v2219, %v2238
        %v2240 = vrcp.pop %v2233
        %v2241 = vmul.f32 %v2221, %v2240
        %v2242 = vmul.f32 %v1309, %v1012
        %v2243 = vmul.f32 %v1314, %v1012
        %v2244 = vmul.f32 %v1319, %v1012
        %v2245 = vmul.f32 %v1324, %v1012
        %v2247 = vsel %vm1441, %v2235, 0
        %v2250 = vsel %vm1441, %v2237, 0
        %v2253 = vsel %vm1441, %v2239, 0
        %v2256 = vsel %vm1441, %v2241, 0
        %v2259 = vsel %vm1653, %v2245, 0
        %2261 = vmatprep.subr.mxu0 0.0
        %2262 = vmatpush1.msra.mxu0 0.0
        %2263 = vmatprep.subr.mxu0 0.0
        %2264 = vmatpush1.msra.mxu0 0.0
        %2265 = vmatprep.subr.mxu0 0.0
        %2266 = vmatpush1.msra.mxu0 0.0
        %2267 = vmatprep.subr.mxu0 0.0
        %2268 = vmatpush1.msra.mxu0 0.0
        %2269 = vmatprep.subr.mxu0 0.0
        %2270 = vmatpush1.msra.mxu0 0.0
        %2271 = vmatprep.subr.mxu0 0.0
        %2272 = vmatpush1.msra.mxu0 0.0
        %2273 = vmatprep.subr.mxu0 0.0
        %2274 = vmatpush1.msra.mxu0 0.0
        %2275 = vmatprep.subr.mxu0 0.0
        %2276 = vmatpush1.msra.mxu0 0.0
        %2277 = vmatprep.subr.mxu0 0.0
        %2278 = vmatpush1.msra.mxu0 0.0
        %2279 = vmatprep.subr.mxu0 0.0
        %2280 = vmatpush1.msra.mxu0 0.0
        %2281 = vmatprep.subr.mxu0 0.0
        %2282 = vmatpush1.msra.mxu0 0.0
        %2283 = vmatprep.subr.mxu0 0.0
        %2284 = vmatpush1.msra.mxu0 0.0
        %2285 = vmatprep.subr.mxu0 0.0
        %2286 = vmatpush1.msra.mxu0 %v2259
        %2287 = vmatprep.subr.mxu0 0.0
        %2288 = vmatpush1.msra.mxu0 %v2244
        %2289 = vmatprep.subr.mxu0 0.0
        %2290 = vmatpush1.msra.mxu0 %v2243
        %2291 = vmatprep.subr.mxu0 0.0
        %2292 = vmatpush1.msra.mxu0 %v2242
        %2293 = vmatprep.subr.mxu0 0.0
        %2294 = vmatpush2.msra.mxu0 0.0
        %2295 = vmatprep.subr.mxu0 0.0
        %2296 = vmatpush2.msra.mxu0 0.0
        %2297 = vmatprep.subr.mxu0 0.0
        %2298 = vmatpush2.msra.mxu0 0.0
        %2299 = vmatprep.subr.mxu0 0.0
        %2300 = vmatpush2.msra.mxu0 0.0
        %2301 = vmatprep.subr.mxu0 0.0
        %2302 = vmatpush2.msra.mxu0 0.0
        %2303 = vmatprep.subr.mxu0 0.0
        %2304 = vmatpush2.msra.mxu0 0.0
        %2305 = vmatprep.subr.mxu0 0.0
        %2306 = vmatpush2.msra.mxu0 0.0
        %2307 = vmatprep.subr.mxu0 0.0
        %2308 = vmatpush2.msra.mxu0 0.0
        %2309 = vmatprep.subr.mxu0 0.0
        %2310 = vmatpush2.msra.mxu0 0.0
        %2311 = vmatprep.subr.mxu0 0.0
        %2312 = vmatpush2.msra.mxu0 0.0
        %2313 = vmatprep.subr.mxu0 0.0
        %2314 = vmatpush2.msra.mxu0 0.0
        %2315 = vmatprep.subr.mxu0 0.0
        %2316 = vmatpush2.msra.mxu0 0.0
        %2317 = vmatprep.subr.mxu0 0.0
        %2318 = vmatpush2.msra.mxu0 0.0
        %2319 = vmatprep.subr.mxu0 0.0
        %2320 = vmatpush2.msra.mxu0 0.0
        %2321 = vmatprep.subr.mxu0 0.0
        %2322 = vmatpush2.msra.mxu0 0.0
        %2323 = vmatprep.subr.mxu0 0.0
        %2324 = vmatpush2.msra.mxu0 0.0
        %2325 = vmatprep.mubr.f32.mxu0 0.0
        %2326 = vmatmul.mubr.f32.gmra.mxu0 %v2247
        %v2327 = vpop.f32.mrf.mxu0
        %v2328 = vadd.f32 0.0, %v2327
        %v2329 = vpop.f32.mrf.mxu0
        %2330 = vmatprep.mubr.f32.mxu0 0.0
        %2331 = vmatmul.mubr.f32.gmra.mxu0 %v2250
        %v2332 = vpop.f32.mrf.mxu0
        %v2333 = vadd.f32 0.0, %v2332
        %v2334 = vpop.f32.mrf.mxu0
        %2335 = vmatprep.mubr.f32.mxu0 0.0
        %2336 = vmatmul.mubr.f32.gmra.mxu0 %v2253
        %v2337 = vpop.f32.mrf.mxu0
        %v2338 = vadd.f32 0.0, %v2337
        %v2339 = vpop.f32.mrf.mxu0
        %2340 = vmatprep.mubr.f32.mxu0 0.0
        %2341 = vmatmul.mubr.f32.gmra.mxu0 %v2256
        %v2342 = vpop.f32.mrf.mxu0
        %v2343 = vadd.f32 0.0, %v2342
        %v2344 = vpop.f32.mrf.mxu0
        %2345 = vdwg.mxu0
        %v2346 = vadd.f32 %v2092, %v2328
        %v2347 = vadd.f32 %v2093, %v2333
        %v2348 = vadd.f32 %v2094, %v2338
        %v2349 = vadd.f32 %v2095, %v2343
        %v2351 = vlaneseq
        %v2352 = vshrl.u32 %v2351, 7
        %v2353 = vsub.s32 0, %v2352
        %v2354 = vrot.slane %v1040, %v2353
        %v2357 = vsel %vm1047, %v2346, 0
        %v2360 = vsel %vm1047, %v2347, 0
        %v2363 = vsel %vm1047, %v2348, 0
        %v2366 = vsel %vm1047, %v2349, 0
        %2368 = vmatprep.subr.mxu0 0.0
        %2369 = vmatpush1.msra.mxu0 0.0
        %2370 = vmatprep.subr.mxu0 0.0
        %2371 = vmatpush1.msra.mxu0 0.0
        %2372 = vmatprep.subr.mxu0 0.0
        %2373 = vmatpush1.msra.mxu0 0.0
        %2374 = vmatprep.subr.mxu0 0.0
        %2375 = vmatpush1.msra.mxu0 0.0
        %2376 = vmatprep.subr.mxu0 0.0
        %2377 = vmatpush1.msra.mxu0 0.0
        %2378 = vmatprep.subr.mxu0 0.0
        %2379 = vmatpush1.msra.mxu0 0.0
        %2380 = vmatprep.subr.mxu0 0.0
        %2381 = vmatpush1.msra.mxu0 0.0
        %2382 = vmatprep.subr.mxu0 0.0
        %2383 = vmatpush1.msra.mxu0 0.0
        %2384 = vmatprep.subr.mxu0 0.0
        %2385 = vmatpush1.msra.mxu0 0.0
        %2386 = vmatprep.subr.mxu0 0.0
        %2387 = vmatpush1.msra.mxu0 0.0
        %2388 = vmatprep.subr.mxu0 0.0
        %2389 = vmatpush1.msra.mxu0 0.0
        %2390 = vmatprep.subr.mxu0 0.0
        %2391 = vmatpush1.msra.mxu0 0.0
        %2392 = vmatprep.subr.mxu0 0.0
        %2393 = vmatpush1.msra.mxu0 %v1039
        %2394 = vmatprep.subr.mxu0 0.0
        %2395 = vmatpush1.msra.mxu0 %v1038
        %2396 = vmatprep.subr.mxu0 0.0
        %2397 = vmatpush1.msra.mxu0 %v1037
        %2398 = vmatprep.subr.mxu0 0.0
        %2399 = vmatpush1.msra.mxu0 %v1036
        %2400 = vmatprep.subr.mxu0 0.0
        %2401 = vmatpush2.msra.mxu0 0.0
        %2402 = vmatprep.subr.mxu0 0.0
        %2403 = vmatpush2.msra.mxu0 0.0
        %2404 = vmatprep.subr.mxu0 0.0
        %2405 = vmatpush2.msra.mxu0 0.0
        %2406 = vmatprep.subr.mxu0 0.0
        %2407 = vmatpush2.msra.mxu0 0.0
        %2408 = vmatprep.subr.mxu0 0.0
        %2409 = vmatpush2.msra.mxu0 0.0
        %2410 = vmatprep.subr.mxu0 0.0
        %2411 = vmatpush2.msra.mxu0 0.0
        %2412 = vmatprep.subr.mxu0 0.0
        %2413 = vmatpush2.msra.mxu0 0.0
        %2414 = vmatprep.subr.mxu0 0.0
        %2415 = vmatpush2.msra.mxu0 0.0
        %2416 = vmatprep.subr.mxu0 0.0
        %2417 = vmatpush2.msra.mxu0 0.0
        %2418 = vmatprep.subr.mxu0 0.0
        %2419 = vmatpush2.msra.mxu0 0.0
        %2420 = vmatprep.subr.mxu0 0.0
        %2421 = vmatpush2.msra.mxu0 0.0
        %2422 = vmatprep.subr.mxu0 0.0
        %2423 = vmatpush2.msra.mxu0 0.0
        %2424 = vmatprep.subr.mxu0 0.0
        %2425 = vmatpush2.msra.mxu0 0.0
        %2426 = vmatprep.subr.mxu0 0.0
        %2427 = vmatpush2.msra.mxu0 0.0
        %2428 = vmatprep.subr.mxu0 0.0
        %2429 = vmatpush2.msra.mxu0 0.0
        %2430 = vmatprep.subr.mxu0 0.0
        %2431 = vmatpush2.msra.mxu0 0.0
        %2432 = vmatprep.mubr.f32.mxu0 0.0
        %2433 = vmatmul.mubr.f32.gmra.mxu0 %v2357
        %v2434 = vpop.f32.mrf.mxu0
        %v2435 = vadd.f32 %v2354, %v2434
        %v2436 = vpop.f32.mrf.mxu0
        %2437 = vmatprep.mubr.f32.mxu0 0.0
        %2438 = vmatmul.mubr.f32.gmra.mxu0 %v2360
        %v2439 = vpop.f32.mrf.mxu0
        %v2440 = vadd.f32 %v2354, %v2439
        %v2441 = vpop.f32.mrf.mxu0
        %2442 = vmatprep.mubr.f32.mxu0 0.0
        %2443 = vmatmul.mubr.f32.gmra.mxu0 %v2363
        %v2444 = vpop.f32.mrf.mxu0
        %v2445 = vadd.f32 %v2354, %v2444
        %v2446 = vpop.f32.mrf.mxu0
        %2447 = vmatprep.mubr.f32.mxu0 0.0
        %2448 = vmatmul.mubr.f32.gmra.mxu0 %v2366
        %v2449 = vpop.f32.mrf.mxu0
        %v2450 = vadd.f32 %v2354, %v2449
        %v2451 = vpop.f32.mrf.mxu0
        %2452 = vdwg.mxu0
        %v2453 = vadd.f32 %v1017, %v2435
        %v2454 = vadd.f32 %v1018, %v2440
        %v2455 = vadd.f32 %v1019, %v2445
        %v2456 = vadd.f32 %v1020, %v2450
        %v2457 = vld [vmem:[%s964] sm:$0x1]
        %v2458 = vld [vmem:[%s967] sm:$0x1]
        %v2459 = vsel %vm1047, %v2453, 0.0
        %2460 = vadd.xlane.f32.xlu0 %v2459
        %v2461 = vpop.xlane.xlu0 %2460
        %v2462 = vsel %vm1047, %v2454, 0.0
        %2463 = vadd.xlane.f32.xlu0 %v2462
        %v2464 = vpop.xlane.xlu0 %2463
        %v2465 = vsel %vm1047, %v2455, 0.0
        %2466 = vadd.xlane.f32.xlu0 %v2465
        %v2467 = vpop.xlane.xlu0 %2466
        %vm2468 = vcmask 259072
        %v2469 = vsel %vm2468, %v2456, 0.0
        %2470 = vadd.xlane.f32.xlu0 %v2469
        %v2471 = vpop.xlane.xlu0 %2470
        %v2472 = vrcp.pop 32.0
        %v2473 = vmul.f32 %v2461, %v2472
        %v2474 = vmul.f32 %v2464, %v2472
        %v2475 = vmul.f32 %v2467, %v2472
        %v2476 = vmul.f32 %v2471, %v2472
        %v2477 = vsub.f32 %v2453, %v2473
        %v2478 = vsub.f32 %v2454, %v2474
        %v2479 = vsub.f32 %v2455, %v2475
        %v2480 = vsub.f32 %v2456, %v2476
        %v2481 = vmul.f32 %v2477, %v2477
        %v2482 = vmul.f32 %v2478, %v2478
        %v2483 = vmul.f32 %v2479, %v2479
        %v2484 = vmul.f32 %v2480, %v2480
        %v2485 = vsel %vm1047, %v2481, 0.0
        %2486 = vadd.xlane.f32.xlu0 %v2485
        %v2487 = vpop.xlane.xlu0 %2486
        %v2488 = vsel %vm1047, %v2482, 0.0
        %2489 = vadd.xlane.f32.xlu0 %v2488
        %v2490 = vpop.xlane.xlu0 %2489
        %v2491 = vsel %vm1047, %v2483, 0.0
        %2492 = vadd.xlane.f32.xlu0 %v2491
        %v2493 = vpop.xlane.xlu0 %2492
        %v2494 = vsel %vm2468, %v2484, 0.0
        %2495 = vadd.xlane.f32.xlu0 %v2494
        %v2496 = vpop.xlane.xlu0 %2495
        %v2497 = vmul.f32 %v2487, %v2472
        %v2498 = vmul.f32 %v2490, %v2472
        %v2499 = vmul.f32 %v2493, %v2472
        %v2500 = vmul.f32 %v2496, %v2472
        %v2501 = vadd.f32 %v2497, 1e-05
        %v2502 = vadd.f32 %v2498, 1e-05
        %v2503 = vadd.f32 %v2499, 1e-05
        %v2504 = vadd.f32 %v2500, 1e-05
        %v2505 = vrsqrt.pop %v2501
        %v2506 = vrsqrt.pop %v2502
        %v2507 = vrsqrt.pop %v2503
        %v2508 = vrsqrt.pop %v2504
        %v2509 = vmul.f32 %v2477, %v2505
        %v2510 = vmul.f32 %v2478, %v2506
        %v2511 = vmul.f32 %v2479, %v2507
        %v2512 = vmul.f32 %v2480, %v2508
        %v2514 = vlaneseq
        %v2515 = vshrl.u32 %v2514, 7
        %v2516 = vsub.s32 0, %v2515
        %v2517 = vrot.slane %v2457, %v2516
        %v2519 = vmul.f32 %v2509, %v2517
        %v2520 = vmul.f32 %v2510, %v2517
        %v2521 = vmul.f32 %v2511, %v2517
        %v2522 = vmul.f32 %v2512, %v2517
        %v2524 = vlaneseq
        %v2525 = vshrl.u32 %v2524, 7
        %v2526 = vsub.s32 0, %v2525
        %v2527 = vrot.slane %v2458, %v2526
        %v2529 = vadd.f32 %v2519, %v2527
        %v2530 = vadd.f32 %v2520, %v2527
        %v2531 = vadd.f32 %v2521, %v2527
        %v2532 = vadd.f32 %v2522, %v2527
        %v2533 = vld [vmem:[%s975] sm:$0xff]
        %v2534 = vld [vmem:[%s975 + $0x8] sm:$0xff]
        %v2535 = vld [vmem:[%s975 + $0x10] sm:$0xff]
        %v2536 = vld [vmem:[%s975 + $0x18] sm:$0xff]
        %v2537 = vld [vmem:[%s814] sm:$0x1]
        %v2539 = vlaneseq
        %v2540 = vshrl.u32 %v2539, 7
        %v2541 = vsub.s32 0, %v2540
        %v2542 = vrot.slane %v2537, %v2541
        %v2545 = vsel %vm1047, %v2529, 0
        %v2548 = vsel %vm1047, %v2530, 0
        %v2551 = vsel %vm1047, %v2531, 0
        %v2554 = vsel %vm1047, %v2532, 0
        %2556 = vmatprep.subr.mxu0 0.0
        %2557 = vmatpush1.msra.mxu0 0.0
        %2558 = vmatprep.subr.mxu0 0.0
        %2559 = vmatpush1.msra.mxu0 0.0
        %2560 = vmatprep.subr.mxu0 0.0
        %2561 = vmatpush1.msra.mxu0 0.0
        %2562 = vmatprep.subr.mxu0 0.0
        %2563 = vmatpush1.msra.mxu0 0.0
        %2564 = vmatprep.subr.mxu0 0.0
        %2565 = vmatpush1.msra.mxu0 0.0
        %2566 = vmatprep.subr.mxu0 0.0
        %2567 = vmatpush1.msra.mxu0 0.0
        %2568 = vmatprep.subr.mxu0 0.0
        %2569 = vmatpush1.msra.mxu0 0.0
        %2570 = vmatprep.subr.mxu0 0.0
        %2571 = vmatpush1.msra.mxu0 0.0
        %2572 = vmatprep.subr.mxu0 0.0
        %2573 = vmatpush1.msra.mxu0 0.0
        %2574 = vmatprep.subr.mxu0 0.0
        %2575 = vmatpush1.msra.mxu0 0.0
        %2576 = vmatprep.subr.mxu0 0.0
        %2577 = vmatpush1.msra.mxu0 0.0
        %2578 = vmatprep.subr.mxu0 0.0
        %2579 = vmatpush1.msra.mxu0 0.0
        %2580 = vmatprep.subr.mxu0 0.0
        %2581 = vmatpush1.msra.mxu0 %v2536
        %2582 = vmatprep.subr.mxu0 0.0
        %2583 = vmatpush1.msra.mxu0 %v2535
        %2584 = vmatprep.subr.mxu0 0.0
        %2585 = vmatpush1.msra.mxu0 %v2534
        %2586 = vmatprep.subr.mxu0 0.0
        %2587 = vmatpush1.msra.mxu0 %v2533
        %2588 = vmatprep.subr.mxu0 0.0
        %2589 = vmatpush2.msra.mxu0 0.0
        %2590 = vmatprep.subr.mxu0 0.0
        %2591 = vmatpush2.msra.mxu0 0.0
        %2592 = vmatprep.subr.mxu0 0.0
        %2593 = vmatpush2.msra.mxu0 0.0
        %2594 = vmatprep.subr.mxu0 0.0
        %2595 = vmatpush2.msra.mxu0 0.0
        %2596 = vmatprep.subr.mxu0 0.0
        %2597 = vmatpush2.msra.mxu0 0.0
        %2598 = vmatprep.subr.mxu0 0.0
        %2599 = vmatpush2.msra.mxu0 0.0
        %2600 = vmatprep.subr.mxu0 0.0
        %2601 = vmatpush2.msra.mxu0 0.0
        %2602 = vmatprep.subr.mxu0 0.0
        %2603 = vmatpush2.msra.mxu0 0.0
        %2604 = vmatprep.subr.mxu0 0.0
        %2605 = vmatpush2.msra.mxu0 0.0
        %2606 = vmatprep.subr.mxu0 0.0
        %2607 = vmatpush2.msra.mxu0 0.0
        %2608 = vmatprep.subr.mxu0 0.0
        %2609 = vmatpush2.msra.mxu0 0.0
        %2610 = vmatprep.subr.mxu0 0.0
        %2611 = vmatpush2.msra.mxu0 0.0
        %2612 = vmatprep.subr.mxu0 0.0
        %2613 = vmatpush2.msra.mxu0 0.0
        %2614 = vmatprep.subr.mxu0 0.0
        %2615 = vmatpush2.msra.mxu0 0.0
        %2616 = vmatprep.subr.mxu0 0.0
        %2617 = vmatpush2.msra.mxu0 0.0
        %2618 = vmatprep.subr.mxu0 0.0
        %2619 = vmatpush2.msra.mxu0 0.0
        %2620 = vmatprep.mubr.f32.mxu0 0.0
        %2621 = vmatmul.mubr.f32.gmra.mxu0 %v2545
        %v2622 = vpop.f32.mrf.mxu0
        %v2623 = vadd.f32 %v2542, %v2622
        %v2624 = vpop.f32.mrf.mxu0
        %2625 = vmatprep.mubr.f32.mxu0 0.0
        %2626 = vmatmul.mubr.f32.gmra.mxu0 %v2548
        %v2627 = vpop.f32.mrf.mxu0
        %v2628 = vadd.f32 %v2542, %v2627
        %v2629 = vpop.f32.mrf.mxu0
        %2630 = vmatprep.mubr.f32.mxu0 0.0
        %2631 = vmatmul.mubr.f32.gmra.mxu0 %v2551
        %v2632 = vpop.f32.mrf.mxu0
        %v2633 = vadd.f32 %v2542, %v2632
        %v2634 = vpop.f32.mrf.mxu0
        %2635 = vmatprep.mubr.f32.mxu0 0.0
        %2636 = vmatmul.mubr.f32.gmra.mxu0 %v2554
        %v2637 = vpop.f32.mrf.mxu0
        %v2638 = vadd.f32 %v2542, %v2637
        %v2639 = vpop.f32.mrf.mxu0
        %2640 = vdwg.mxu0
        %v2641 = vmax.f32 %v2623, 0.0
        %v2642 = vmax.f32 %v2628, 0.0
        %v2643 = vmax.f32 %v2633, 0.0
        %v2644 = vmax.f32 %v2638, 0.0
        %v2645 = vld [vmem:[%s980] sm:$0xff]
        %v2646 = vld [vmem:[%s980 + $0x8] sm:$0xff]
        %v2647 = vld [vmem:[%s980 + $0x10] sm:$0xff]
        %v2648 = vld [vmem:[%s980 + $0x18] sm:$0xff]
        %v2649 = vld [vmem:[%s980 + $0x20] sm:$0xff]
        %v2650 = vld [vmem:[%s980 + $0x28] sm:$0xff]
        %v2651 = vld [vmem:[%s980 + $0x30] sm:$0xff]
        %v2652 = vld [vmem:[%s980 + $0x38] sm:$0xff]
        %v2653 = vld [vmem:[%s822] sm:$0x1]
        %v2655 = vlaneseq
        %v2656 = vshrl.u32 %v2655, 7
        %v2657 = vsub.s32 0, %v2656
        %v2658 = vrot.slane %v2653, %v2657
        %vm2660 = vcmask 523264
        %v2662 = vsel %vm2660, %v2641, 0
        %v2665 = vsel %vm2660, %v2642, 0
        %v2668 = vsel %vm2660, %v2643, 0
        %v2671 = vsel %vm2660, %v2644, 0
        %2673 = vmatprep.subr.mxu0 0.0
        %2674 = vmatpush1.msra.mxu0 0.0
        %2675 = vmatprep.subr.mxu0 0.0
        %2676 = vmatpush1.msra.mxu0 0.0
        %2677 = vmatprep.subr.mxu0 0.0
        %2678 = vmatpush1.msra.mxu0 0.0
        %2679 = vmatprep.subr.mxu0 0.0
        %2680 = vmatpush1.msra.mxu0 0.0
        %2681 = vmatprep.subr.mxu0 0.0
        %2682 = vmatpush1.msra.mxu0 0.0
        %2683 = vmatprep.subr.mxu0 0.0
        %2684 = vmatpush1.msra.mxu0 0.0
        %2685 = vmatprep.subr.mxu0 0.0
        %2686 = vmatpush1.msra.mxu0 0.0
        %2687 = vmatprep.subr.mxu0 0.0
        %2688 = vmatpush1.msra.mxu0 0.0
        %2689 = vmatprep.subr.mxu0 0.0
        %2690 = vmatpush1.msra.mxu0 %v2652
        %2691 = vmatprep.subr.mxu0 0.0
        %2692 = vmatpush1.msra.mxu0 %v2651
        %2693 = vmatprep.subr.mxu0 0.0
        %2694 = vmatpush1.msra.mxu0 %v2650
        %2695 = vmatprep.subr.mxu0 0.0
        %2696 = vmatpush1.msra.mxu0 %v2649
        %2697 = vmatprep.subr.mxu0 0.0
        %2698 = vmatpush1.msra.mxu0 %v2648
        %2699 = vmatprep.subr.mxu0 0.0
        %2700 = vmatpush1.msra.mxu0 %v2647
        %2701 = vmatprep.subr.mxu0 0.0
        %2702 = vmatpush1.msra.mxu0 %v2646
        %2703 = vmatprep.subr.mxu0 0.0
        %2704 = vmatpush1.msra.mxu0 %v2645
        %2705 = vmatprep.subr.mxu0 0.0
        %2706 = vmatpush2.msra.mxu0 0.0
        %2707 = vmatprep.subr.mxu0 0.0
        %2708 = vmatpush2.msra.mxu0 0.0
        %2709 = vmatprep.subr.mxu0 0.0
        %2710 = vmatpush2.msra.mxu0 0.0
        %2711 = vmatprep.subr.mxu0 0.0
        %2712 = vmatpush2.msra.mxu0 0.0
        %2713 = vmatprep.subr.mxu0 0.0
        %2714 = vmatpush2.msra.mxu0 0.0
        %2715 = vmatprep.subr.mxu0 0.0
        %2716 = vmatpush2.msra.mxu0 0.0
        %2717 = vmatprep.subr.mxu0 0.0
        %2718 = vmatpush2.msra.mxu0 0.0
        %2719 = vmatprep.subr.mxu0 0.0
        %2720 = vmatpush2.msra.mxu0 0.0
        %2721 = vmatprep.subr.mxu0 0.0
        %2722 = vmatpush2.msra.mxu0 0.0
        %2723 = vmatprep.subr.mxu0 0.0
        %2724 = vmatpush2.msra.mxu0 0.0
        %2725 = vmatprep.subr.mxu0 0.0
        %2726 = vmatpush2.msra.mxu0 0.0
        %2727 = vmatprep.subr.mxu0 0.0
        %2728 = vmatpush2.msra.mxu0 0.0
        %2729 = vmatprep.subr.mxu0 0.0
        %2730 = vmatpush2.msra.mxu0 0.0
        %2731 = vmatprep.subr.mxu0 0.0
        %2732 = vmatpush2.msra.mxu0 0.0
        %2733 = vmatprep.subr.mxu0 0.0
        %2734 = vmatpush2.msra.mxu0 0.0
        %2735 = vmatprep.subr.mxu0 0.0
        %2736 = vmatpush2.msra.mxu0 0.0
        %2737 = vmatprep.mubr.f32.mxu0 0.0
        %2738 = vmatmul.mubr.f32.gmra.mxu0 %v2662
        %v2739 = vpop.f32.mrf.mxu0
        %v2740 = vadd.f32 %v2658, %v2739
        %v2741 = vpop.f32.mrf.mxu0
        %2742 = vmatprep.mubr.f32.mxu0 0.0
        %2743 = vmatmul.mubr.f32.gmra.mxu0 %v2665
        %v2744 = vpop.f32.mrf.mxu0
        %v2745 = vadd.f32 %v2658, %v2744
        %v2746 = vpop.f32.mrf.mxu0
        %2747 = vmatprep.mubr.f32.mxu0 0.0
        %2748 = vmatmul.mubr.f32.gmra.mxu0 %v2668
        %v2749 = vpop.f32.mrf.mxu0
        %v2750 = vadd.f32 %v2658, %v2749
        %v2751 = vpop.f32.mrf.mxu0
        %2752 = vmatprep.mubr.f32.mxu0 0.0
        %2753 = vmatmul.mubr.f32.gmra.mxu0 %v2671
        %v2754 = vpop.f32.mrf.mxu0
        %v2755 = vadd.f32 %v2658, %v2754
        %v2756 = vpop.f32.mrf.mxu0
        %2757 = vdwg.mxu0
        %v2758 = vadd.f32 %v2529, %v2740
        %v2759 = vadd.f32 %v2530, %v2745
        %v2760 = vadd.f32 %v2531, %v2750
        %v2761 = vadd.f32 %v2532, %v2755
        %v2762 = vld [vmem:[%s970] sm:$0x1]
        %v2763 = vld [vmem:[%s806] sm:$0x1]
        %v2764 = vsel %vm1047, %v2758, 0.0
        %2765 = vadd.xlane.f32.xlu0 %v2764
        %v2766 = vpop.xlane.xlu0 %2765
        %v2767 = vsel %vm1047, %v2759, 0.0
        %2768 = vadd.xlane.f32.xlu0 %v2767
        %v2769 = vpop.xlane.xlu0 %2768
        %v2770 = vsel %vm1047, %v2760, 0.0
        %2771 = vadd.xlane.f32.xlu0 %v2770
        %v2772 = vpop.xlane.xlu0 %2771
        %v2773 = vsel %vm2468, %v2761, 0.0
        %2774 = vadd.xlane.f32.xlu0 %v2773
        %v2775 = vpop.xlane.xlu0 %2774
        %v2776 = vmul.f32 %v2766, %v2472
        %v2777 = vmul.f32 %v2769, %v2472
        %v2778 = vmul.f32 %v2772, %v2472
        %v2779 = vmul.f32 %v2775, %v2472
        %v2780 = vsub.f32 %v2758, %v2776
        %v2781 = vsub.f32 %v2759, %v2777
        %v2782 = vsub.f32 %v2760, %v2778
        %v2783 = vsub.f32 %v2761, %v2779
        %v2784 = vmul.f32 %v2780, %v2780
        %v2785 = vmul.f32 %v2781, %v2781
        %v2786 = vmul.f32 %v2782, %v2782
        %v2787 = vmul.f32 %v2783, %v2783
        %v2788 = vsel %vm1047, %v2784, 0.0
        %2789 = vadd.xlane.f32.xlu0 %v2788
        %v2790 = vpop.xlane.xlu0 %2789
        %v2791 = vsel %vm1047, %v2785, 0.0
        %2792 = vadd.xlane.f32.xlu0 %v2791
        %v2793 = vpop.xlane.xlu0 %2792
        %v2794 = vsel %vm1047, %v2786, 0.0
        %2795 = vadd.xlane.f32.xlu0 %v2794
        %v2796 = vpop.xlane.xlu0 %2795
        %v2797 = vsel %vm2468, %v2787, 0.0
        %2798 = vadd.xlane.f32.xlu0 %v2797
        %v2799 = vpop.xlane.xlu0 %2798
        %v2800 = vmul.f32 %v2790, %v2472
        %v2801 = vmul.f32 %v2793, %v2472
        %v2802 = vmul.f32 %v2796, %v2472
        %v2803 = vmul.f32 %v2799, %v2472
        %v2804 = vadd.f32 %v2800, 1e-05
        %v2805 = vadd.f32 %v2801, 1e-05
        %v2806 = vadd.f32 %v2802, 1e-05
        %v2807 = vadd.f32 %v2803, 1e-05
        %v2808 = vrsqrt.pop %v2804
        %v2809 = vrsqrt.pop %v2805
        %v2810 = vrsqrt.pop %v2806
        %v2811 = vrsqrt.pop %v2807
        %v2812 = vmul.f32 %v2780, %v2808
        %v2813 = vmul.f32 %v2781, %v2809
        %v2814 = vmul.f32 %v2782, %v2810
        %v2815 = vmul.f32 %v2783, %v2811
        %v2817 = vlaneseq
        %v2818 = vshrl.u32 %v2817, 7
        %v2819 = vsub.s32 0, %v2818
        %v2820 = vrot.slane %v2762, %v2819
        %v2822 = vmul.f32 %v2812, %v2820
        %v2823 = vmul.f32 %v2813, %v2820
        %v2824 = vmul.f32 %v2814, %v2820
        %v2825 = vmul.f32 %v2815, %v2820
        %v2827 = vlaneseq
        %v2828 = vshrl.u32 %v2827, 7
        %v2829 = vsub.s32 0, %v2828
        %v2830 = vrot.slane %v2763, %v2829
        %v2832 = vadd.f32 %v2822, %v2830
        %v2833 = vadd.f32 %v2823, %v2830
        %v2834 = vadd.f32 %v2824, %v2830
        %v2835 = vadd.f32 %v2825, %v2830
        %2836 = vst.msk [vmem:[#allocation2] sm:$0xff] %vm1047, %v2832
        %2837 = vst.msk [vmem:[#allocation2 + $0x8] sm:$0xff] %vm1047, %v2833
        %2838 = vst.msk [vmem:[#allocation2 + $0x10] sm:$0xff] %vm1047, %v2834
        %2839 = vst.msk [vmem:[#allocation2 + $0x18] sm:$0x3f] %vm2468, %v2835
        %2840 = vst.msk [vmem:[%s20] sm:$0xff] %vm1047, %v2832
        %2841 = vst.msk [vmem:[%s20 + $0x8] sm:$0xff] %vm1047, %v2833
        %2842 = vst.msk [vmem:[%s20 + $0x10] sm:$0xff] %vm1047, %v2834
        %2843 = vst.msk [vmem:[%s20 + $0x18] sm:$0x3f] %vm2468, %v2835
        %p2844 = scmp.eq.s32.totalorder %s43, 3
        // Predicated region
        $region133: #{transformer_forward.3} parent=99 // pred_check
          %p2845 = pneg %p2844
        $region134: #{transformer_forward.3} parent=99 // pred_check_branch
          %2847 = sbr.rel (%p2845) target = $region136
        $region135: #{transformer_forward.3} parent=99 // pred_region
          %v2848 = vld [vmem:[#allocation13] sm:$0x1]
          %v2849 = vld [vmem:[%s19] sm:$0x1]
          %v2850 = vsel %vm1047, %v2832, 0.0
          %2851 = vadd.xlane.f32.xlu0 %v2850
          %v2852 = vpop.xlane.xlu0 %2851
          %v2853 = vsel %vm1047, %v2833, 0.0
          %2854 = vadd.xlane.f32.xlu0 %v2853
          %v2855 = vpop.xlane.xlu0 %2854
          %v2856 = vsel %vm1047, %v2834, 0.0
          %2857 = vadd.xlane.f32.xlu0 %v2856
          %v2858 = vpop.xlane.xlu0 %2857
          %v2859 = vsel %vm2468, %v2835, 0.0
          %2860 = vadd.xlane.f32.xlu0 %v2859
          %v2861 = vpop.xlane.xlu0 %2860
          %v2862 = vmul.f32 %v2852, %v2472
          %v2863 = vmul.f32 %v2855, %v2472
          %v2864 = vmul.f32 %v2858, %v2472
          %v2865 = vmul.f32 %v2861, %v2472
          %v2866 = vsub.f32 %v2832, %v2862
          %v2867 = vsub.f32 %v2833, %v2863
          %v2868 = vsub.f32 %v2834, %v2864
          %v2869 = vsub.f32 %v2835, %v2865
          %v2870 = vmul.f32 %v2866, %v2866
          %v2871 = vmul.f32 %v2867, %v2867
          %v2872 = vmul.f32 %v2868, %v2868
          %v2873 = vmul.f32 %v2869, %v2869
          %v2874 = vsel %vm1047, %v2870, 0.0
          %2875 = vadd.xlane.f32.xlu0 %v2874
          %v2876 = vpop.xlane.xlu0 %2875
          %v2877 = vsel %vm1047, %v2871, 0.0
          %2878 = vadd.xlane.f32.xlu0 %v2877
          %v2879 = vpop.xlane.xlu0 %2878
          %v2880 = vsel %vm1047, %v2872, 0.0
          %2881 = vadd.xlane.f32.xlu0 %v2880
          %v2882 = vpop.xlane.xlu0 %2881
          %v2883 = vsel %vm2468, %v2873, 0.0
          %2884 = vadd.xlane.f32.xlu0 %v2883
          %v2885 = vpop.xlane.xlu0 %2884
          %v2886 = vmul.f32 %v2876, %v2472
          %v2887 = vmul.f32 %v2879, %v2472
          %v2888 = vmul.f32 %v2882, %v2472
          %v2889 = vmul.f32 %v2885, %v2472
          %v2890 = vadd.f32 %v2886, 1e-05
          %v2891 = vadd.f32 %v2887, 1e-05
          %v2892 = vadd.f32 %v2888, 1e-05
          %v2893 = vadd.f32 %v2889, 1e-05
          %v2894 = vrsqrt.pop %v2890
          %v2895 = vrsqrt.pop %v2891
          %v2896 = vrsqrt.pop %v2892
          %v2897 = vrsqrt.pop %v2893
          %v2898 = vmul.f32 %v2866, %v2894
          %v2899 = vmul.f32 %v2867, %v2895
          %v2900 = vmul.f32 %v2868, %v2896
          %v2901 = vmul.f32 %v2869, %v2897
          %v2903 = vlaneseq
          %v2904 = vshrl.u32 %v2903, 7
          %v2905 = vsub.s32 0, %v2904
          %v2906 = vrot.slane %v2848, %v2905
          %v2908 = vmul.f32 %v2898, %v2906
          %v2909 = vmul.f32 %v2899, %v2906
          %v2910 = vmul.f32 %v2900, %v2906
          %v2911 = vmul.f32 %v2901, %v2906
          %v2913 = vlaneseq
          %v2914 = vshrl.u32 %v2913, 7
          %v2915 = vsub.s32 0, %v2914
          %v2916 = vrot.slane %v2849, %v2915
          %v2918 = vadd.f32 %v2908, %v2916
          %v2919 = vadd.f32 %v2909, %v2916
          %v2920 = vadd.f32 %v2910, %v2916
          %v2921 = vadd.f32 %v2911, %v2916
          %2922 = vst.msk [vmem:[%s20] sm:$0xff] %vm1047, %v2918
          %2923 = vst.msk [vmem:[%s20 + $0x8] sm:$0xff] %vm1047, %v2919
          %2924 = vst.msk [vmem:[%s20 + $0x10] sm:$0xff] %vm1047, %v2920
          %2925 = vst.msk [vmem:[%s20 + $0x18] sm:$0x3f] %vm2468, %v2921
        $region136: #{transformer_forward.3} parent=99 // pred_fallthru
          _
        // Predicated region
        $region137: #{transformer_forward.3} parent=99 // pred_check
          %p2926 = pneg %p556
        $region138: #{transformer_forward.3} parent=99 // pred_check_branch
          %2928 = sbr.rel (%p2926) target = $region140
        $region139: #{transformer_forward.3} parent=99 // pred_region
          _
        $region140: #{transformer_forward.3} parent=99 // pred_fallthru
          _
        // Predicated region
        $region141: #{transformer_forward.3} parent=99 // pred_check
          %p2929 = pneg %p556
        $region142: #{transformer_forward.3} parent=99 // pred_check_branch
          %2931 = sbr.rel (%p2929) target = $region144
        $region143: #{transformer_forward.3} parent=99 // pred_region
          _
        $region144: #{transformer_forward.3} parent=99 // pred_fallthru
          _
      $region100: #{transformer_forward.3} parent=5 // pred_fallthru
        _
      %p2932 = scmp.le.s32.totalorder 2, %s38
      // Predicated region
      $region145: #{transformer_forward.3} parent=5 // pred_check
        %p2933 = pneg %p2932
      $region146: #{transformer_forward.3} parent=5 // pred_check_branch
        %2935 = sbr.rel (%p2933) target = $region148
      $region147: #{transformer_forward.3} parent=5 // pred_region
        %s2936 = ssub.s32 %s38, 2
      $region148: #{transformer_forward.3} parent=5 // pred_fallthru
        _
    $region6: #{transformer_forward.3} parent=1 // loop_footer
      %s42 = sadd.s32 1, %s38
    $region7: #{transformer_forward.3} parent=1 // loop_footer_branch
      %37 = sbr.rel target = $region3
    $region8: #{transformer_forward.3} parent=1 // loop_exit
      _
    %2937 = vsyncpa [#allocation4], 1
    %s2938 = scalar_lea.sflag [#allocation4], 1
    %2939 = vsyncpa %s2938, 1
    %2940 = vsyncpa [#allocation6], 1
    %s2941 = scalar_lea.sflag [#allocation6], 1
    %2942 = vsyncpa %s2941, 1
    %2943 = vsyncpa [#allocation9], 1
    %s2944 = scalar_lea.sflag [#allocation9], 1
    %2945 = vsyncpa %s2944, 1
    %2946 = vsyncpa [#allocation12], 1
    %s2947 = scalar_lea.sflag [#allocation12], 1
    %2948 = vsyncpa %s2947, 1

// kernel: transformer_forward.4
$region0: #{transformer_forward.4}
  #allocation0 [shape = 'u32[]', space=smem, size = 0x4, offset = 0x4, fixed_abs, tag = 'smem constant byte address 0x4 - core index']
  #allocation1 [shape = 'u32[144,128]{1,0:T(1,128)}', space=vmem, size = 0x12000, scoped, tag = 'internal scratch']
  #allocation2 [shape = 'f32[30,32]{1,0:T(8,128)}', space=vmem, size = 0x4000, scoped, tag = 'scratch operand']
  %s0 = inlined_call_operand.smem [shape: u32[32], index: -1, kind: input, shape index: {}]
  %s1 = sld [smem:[%s0]]
  %s2 = scalar_lea.smem %s0, 1
  %s3 = sld [smem:[%s2]]
  %s4 = scalar_lea.smem %s0, 2
  %s5 = sld [smem:[%s4]]
  %s6 = scalar_lea.smem %s0, 3
  %s7 = sld [smem:[%s6]]
  %s8 = scalar_lea.smem %s0, 4
  %s9 = sld [smem:[%s8]]
  %s10 = scalar_lea.smem %s0, 5
  %s11 = sld [smem:[%s10]]
  %s12 = scalar_lea.smem %s0, 6
  %s13 = sld [smem:[%s12]]
  %s14 = scalar_lea.smem %s0, 7
  %s15 = sld [smem:[%s14]]
  %s16 = scalar_lea.smem %s0, 8
  %s17 = sld [smem:[%s16]]
  %s18 = scalar_lea.smem %s0, 9
  %s19 = sld [smem:[%s18]]
  %s20 = scalar_lea.smem %s0, 10
  %s21 = sld [smem:[%s20]]
  %s22 = scalar_lea.smem %s0, 11
  %s23 = sld [smem:[%s22]]
  %s24 = scalar_lea.smem %s0, 12
  %s25 = sld [smem:[%s24]]
  %s26 = scalar_lea.smem %s0, 13
  %s27 = sld [smem:[%s26]]
  %s28 = scalar_lea.smem %s0, 14
  %s29 = sld [smem:[%s28]]
  %s30 = scalar_lea.smem %s0, 15
  %s31 = sld [smem:[%s30]]
  %s32 = scalar_lea.smem %s0, 16
  %s33 = sld [smem:[%s32]]
  %s34 = scalar_lea.smem %s0, 17
  %s35 = sld [smem:[%s34]]
  %s36 = scalar_lea.smem %s0, 18
  %s37 = sld [smem:[%s36]]
  %s38 = scalar_lea.smem %s0, 19
  %s39 = sld [smem:[%s38]]
  %s40 = scalar_lea.smem %s0, 20
  %s41 = sld [smem:[%s40]]
  %s42 = scalar_lea.smem %s0, 21
  %s43 = sld [smem:[%s42]]
  %s44 = scalar_lea.smem %s0, 22
  %s45 = sld [smem:[%s44]]
  %s46 = scalar_lea.smem %s0, 23
  %s47 = sld [smem:[%s46]]
  %s48 = scalar_lea.smem %s0, 24
  %s49 = sld [smem:[%s48]]
  %s50 = scalar_lea.smem %s0, 25
  %s51 = sld [smem:[%s50]]
  %s52 = scalar_lea.smem %s0, 26
  %s53 = sld [smem:[%s52]]
  %s54 = scalar_lea.smem %s0, 27
  %s55 = sld [smem:[%s54]]
  %s56 = scalar_lea.smem %s0, 28
  %s57 = sld [smem:[%s56]]
  %s58 = scalar_lea.smem %s0, 29
  %s59 = sld [smem:[%s58]]
  %s60 = scalar_lea.smem %s0, 30
  %s61 = sld [smem:[%s60]]
  %s62 = scalar_lea.smem %s0, 31
  %s63 = sld [smem:[%s62]]
  %s64 = sld [smem:[#allocation0]]
  $region213: #{transformer_forward.4} parent=0
    _
  %s66 = ssub.s32 1, %s64
  %s67 = scalar_select 0, %s66, %s64
  $region1: #{transformer_forward.4} parent=0
    #allocation3 [shape = 'u8[1024]{0}', space=vmem, size = 0x400, scoped, tag = 'input window, operand 6']
    #allocation4 [shape = 's32[2]{0}', space=sflag, size = 0x8, scoped, tag = 'scoped memory for transformer_forward.4']
    #allocation5 [shape = 'u8[1024]{0}', space=vmem, size = 0x400, scoped, tag = 'input window, operand 8']
    #allocation6 [shape = 's32[2]{0}', space=sflag, size = 0x8, scoped, tag = 'scoped memory for transformer_forward.4']
    #allocation7 [shape = 'u8[1024]{0}', space=vmem, size = 0x400, scoped, tag = 'input window, operand 10']
    #allocation8 [shape = 'u8[1024]{0}', space=vmem, size = 0x400, scoped, tag = 'input window, operand 20']
    #allocation9 [shape = 's32[2]{0}', space=sflag, size = 0x8, scoped, tag = 'scoped memory for transformer_forward.4']
    #allocation10 [shape = 'u8[1024]{0}', space=vmem, size = 0x400, scoped, tag = 'input window, operand 21']
    #allocation11 [shape = 'u8[1024]{0}', space=vmem, size = 0x400, scoped, tag = 'input window, operand 22']
    #allocation12 [shape = 's32[2]{0}', space=sflag, size = 0x8, scoped, tag = 'scoped memory for transformer_forward.4']
    #allocation13 [shape = 'u8[1024]{0}', space=vmem, size = 0x400, scoped, tag = 'input window, operand 23']
    #allocation14 [shape = 'u8[1024]{0}', space=vmem, size = 0x400, scoped, tag = 'input window, operand 24']
    #allocation15 [shape = 's32[2]{0}', space=sflag, size = 0x8, scoped, tag = 'scoped memory for transformer_forward.4']
    #allocation16 [shape = 'u8[1024]{0}', space=vmem, size = 0x400, scoped, tag = 'input window, operand 26']
    #allocation17 [shape = 'u8[1024]{0}', space=vmem, size = 0x400, scoped, tag = 'input window, operand 28']
    #allocation18 [shape = 's32[2]{0}', space=sflag, size = 0x8, scoped, tag = 'scoped memory for transformer_forward.4']
    #allocation19 [shape = 'u8[512]{0}', space=vmem, size = 0x400, scoped, tag = 'input window, operand 29, single buffered']
    #allocation20 [shape = 'u8[512]{0}', space=vmem, size = 0x400, scoped, tag = 'input window, operand 30, single buffered']
    #allocation21 [shape = 's32[1]{0}', space=sflag, size = 0x4, scoped, tag = 'scoped memory for transformer_forward.4']
    %68 = vsyncpa [#allocation4], 0
    %s69 = scalar_lea.sflag [#allocation4], 1
    %70 = vsyncpa %s69, 0
    %71 = vsyncpa [#allocation6], 0
    %s72 = scalar_lea.sflag [#allocation6], 1
    %73 = vsyncpa %s72, 0
    %74 = vsyncpa [#allocation9], 0
    %s75 = scalar_lea.sflag [#allocation9], 1
    %76 = vsyncpa %s75, 0
    %77 = vsyncpa [#allocation12], 0
    %s78 = scalar_lea.sflag [#allocation12], 1
    %79 = vsyncpa %s78, 0
    %80 = vsyncpa [#allocation15], 0
    %s81 = scalar_lea.sflag [#allocation15], 1
    %82 = vsyncpa %s81, 0
    %83 = vsyncpa [#allocation18], 0
    %s84 = scalar_lea.sflag [#allocation18], 1
    %85 = vsyncpa %s84, 0
    %86 = vsyncpa [#allocation21], 0
    loop: start=0, step=1, limit=8
    $region2: #{transformer_forward.4} parent=1 // loop_pre_header
      _
    $region3: #{transformer_forward.4} parent=1 // loop_header
      %s88 = sphi 0, %s92
      %p89 = scmp.ge.s32.totalorder %s88, 8
      %s96 = sphi 0, %s96
      %s98 = sphi 0, %s96
      %s99 = sphi 0, %s98
      %s113 = sphi 0, %s99
      %s117 = sphi 0, %s117
      %s119 = sphi 0, %s117
      %s120 = sphi 0, %s119
      %s134 = sphi 0, %s120
      %s138 = sphi 0, %s138
      %s140 = sphi 0, %s138
      %s141 = sphi 0, %s140
      %s155 = sphi 0, %s141
      %s161 = sphi 0, %s163
      %s164 = sphi 0, %s161
      %s165 = sphi 0, %s164
      %s181 = sphi 0, %s165
      %s187 = sphi 0, %s189
      %s190 = sphi 0, %s187
      %s191 = sphi 0, %s190
      %s207 = sphi 0, %s191
      %s213 = sphi 0, %s215
      %s216 = sphi 0, %s213
      %s217 = sphi 0, %s216
      %s233 = sphi 0, %s217
      %s239 = sphi 0, %s241
      %s242 = sphi 0, %s239
      %s243 = sphi 0, %s242
      %s259 = sphi 0, %s243
      %s265 = sphi 0, %s267
      %s268 = sphi 0, %s265
      %s269 = sphi 0, %s268
      %s285 = sphi 0, %s269
      %s291 = sphi 0, %s293
      %s294 = sphi 0, %s291
      %s295 = sphi 0, %s294
      %s311 = sphi 0, %s295
      %s317 = sphi 0, %s319
      %s320 = sphi 0, %s317
      %s321 = sphi 0, %s320
      %s337 = sphi 0, %s321
      %s343 = sphi 0, %s345
      %s346 = sphi 0, %s343
      %s347 = sphi 0, %s346
      %s363 = sphi 0, %s347
      %s369 = sphi 0, %s371
      %s372 = sphi 0, %s369
      %s373 = sphi 0, %s372
      %s389 = sphi 0, %s373
      %s395 = sphi 0, %s397
      %s398 = sphi 0, %s395
      %s399 = sphi 0, %s398
      %s415 = sphi 0, %s399
      %s421 = sphi 0, %s423
      %s424 = sphi 0, %s421
      %s425 = sphi 0, %s424
      %s441 = sphi 0, %s425
      %s447 = sphi 0, %s449
      %s450 = sphi 0, %s447
      %s451 = sphi 0, %s450
      %s467 = sphi 0, %s451
      %s473 = sphi 0, %s475
      %s476 = sphi 0, %s473
      %s477 = sphi 0, %s476
      %s493 = sphi 0, %s477
      %s499 = sphi 0, %s501
      %s502 = sphi 0, %s499
      %s503 = sphi 0, %s502
      %s519 = sphi 0, %s503
      %s525 = sphi 0, %s527
      %s528 = sphi 0, %s525
      %s529 = sphi 0, %s528
      %s545 = sphi 0, %s529
      %s551 = sphi 0, %s553
      %s554 = sphi 0, %s551
      %s555 = sphi 0, %s554
      %s571 = sphi 0, %s555
      %s577 = sphi 0, %s579
      %s580 = sphi 0, %s577
      %s581 = sphi 0, %s580
      %s597 = sphi 0, %s581
      %s603 = sphi 0, %s605
      %s606 = sphi 0, %s603
      %s607 = sphi 0, %s606
      %s623 = sphi 0, %s607
      %s629 = sphi 0, %s631
      %s632 = sphi 0, %s629
      %s633 = sphi 0, %s632
      %s649 = sphi 0, %s633
      %s655 = sphi 0, %s657
      %s658 = sphi 0, %s655
      %s659 = sphi 0, %s658
      %s675 = sphi 0, %s659
      %s681 = sphi 0, %s683
      %s684 = sphi 0, %s681
      %s685 = sphi 0, %s684
      %s701 = sphi 0, %s685
      %s707 = sphi 0, %s709
      %s710 = sphi 0, %s707
      %s711 = sphi 0, %s710
      %s727 = sphi 0, %s711
      %s733 = sphi 0, %s735
      %s736 = sphi 0, %s733
      %s737 = sphi 0, %s736
      %s753 = sphi 0, %s737
      %s759 = sphi 0, %s761
      %s762 = sphi 0, %s759
      %s763 = sphi 0, %s762
      %s779 = sphi 0, %s763
      %s785 = sphi 0, %s787
      %s788 = sphi 0, %s785
      %s789 = sphi 0, %s788
      %s805 = sphi 0, %s789
      %s811 = sphi 0, %s813
      %s814 = sphi 0, %s811
      %s815 = sphi 0, %s814
      %s831 = sphi 0, %s815
      %s835 = sphi 0, %s835
      %s837 = sphi 0, %s835
      %s838 = sphi 0, %s837
      %s852 = sphi 0, %s838
      %s856 = sphi 0, %s856
      %s858 = sphi 0, %s856
      %s859 = sphi 0, %s858
      %s873 = sphi 0, %s859
      %s877 = sphi 0, %s877
      %s879 = sphi 0, %s877
      %s880 = sphi 0, %s879
      %s894 = sphi 0, %s880
    $region4: #{transformer_forward.4} parent=1 // loop_header_branch
      %91 = sbr.rel (%p89) target = $region8
    $region5: #{transformer_forward.4} parent=1 // loop_body
      %s93 = ssub.s32 %s88, 1
      %s94 = ssub.s32 %s88, 2
      %s95 = sadd.s32 %s88, 1
      %s97 = sadd.s32 %s96, 1
      %p100 = scmp.eq.s32.totalorder %s88, 5
      %p101 = scmp.ne.s32.totalorder %s96, %s98
      %p102 = scmp.eq.s32.totalorder %s88, 0
      %p103 = por %p101, %p102
      %p104 = scmp.ne.s32.totalorder %s96, %s98
      %p105 = scmp.eq.s32.totalorder %s93, 5
      %p106 = por %p104, %p105
      %p107 = scmp.ne.s32.totalorder %s98, %s99
      %p108 = scmp.eq.s32.totalorder %s93, 0
      %p109 = por %p107, %p108
      %p110 = scmp.ne.s32.totalorder %s98, %s99
      %p111 = scmp.eq.s32.totalorder %s94, 5
      %p112 = por %p110, %p111
      %p114 = scmp.ne.s32.totalorder %s99, %s113
      %p115 = scmp.eq.s32.totalorder %s94, 0
      %p116 = por %p114, %p115
      %s118 = sadd.s32 %s117, 1
      %p121 = scmp.eq.s32.totalorder %s88, 5
      %p122 = scmp.ne.s32.totalorder %s117, %s119
      %p123 = scmp.eq.s32.totalorder %s88, 0
      %p124 = por %p122, %p123
      %p125 = scmp.ne.s32.totalorder %s117, %s119
      %p126 = scmp.eq.s32.totalorder %s93, 5
      %p127 = por %p125, %p126
      %p128 = scmp.ne.s32.totalorder %s119, %s120
      %p129 = scmp.eq.s32.totalorder %s93, 0
      %p130 = por %p128, %p129
      %p131 = scmp.ne.s32.totalorder %s119, %s120
      %p132 = scmp.eq.s32.totalorder %s94, 5
      %p133 = por %p131, %p132
      %p135 = scmp.ne.s32.totalorder %s120, %s134
      %p136 = scmp.eq.s32.totalorder %s94, 0
      %p137 = por %p135, %p136
      %s139 = sadd.s32 %s138, 1
      %p142 = scmp.eq.s32.totalorder %s88, 5
      %p143 = scmp.ne.s32.totalorder %s138, %s140
      %p144 = scmp.eq.s32.totalorder %s88, 0
      %p145 = por %p143, %p144
      %p146 = scmp.ne.s32.totalorder %s138, %s140
      %p147 = scmp.eq.s32.totalorder %s93, 5
      %p148 = por %p146, %p147
      %p149 = scmp.ne.s32.totalorder %s140, %s141
      %p150 = scmp.eq.s32.totalorder %s93, 0
      %p151 = por %p149, %p150
      %p152 = scmp.ne.s32.totalorder %s140, %s141
      %p153 = scmp.eq.s32.totalorder %s94, 5
      %p154 = por %p152, %p153
      %p156 = scmp.ne.s32.totalorder %s141, %s155
      %p157 = scmp.eq.s32.totalorder %s94, 0
      %p158 = por %p156, %p157
      %s159 = ssub.s32 %s88, %s95
      %p160 = scmp.eq.s32.totalorder %s159, 0
      %s162 = sadd.s32 %s161, 1
      %s163 = scalar_select %p160, %s161, %s162
      %p166 = pneg %p160
      %p167 = scmp.eq.s32.totalorder %s88, 5
      %p168 = por %p166, %p167
      %p169 = scmp.ne.s32.totalorder %s161, %s164
      %p170 = scmp.eq.s32.totalorder %s88, 0
      %p171 = por %p169, %p170
      %p172 = scmp.ne.s32.totalorder %s161, %s164
      %p173 = scmp.eq.s32.totalorder %s93, 5
      %p174 = por %p172, %p173
      %p175 = scmp.ne.s32.totalorder %s164, %s165
      %p176 = scmp.eq.s32.totalorder %s93, 0
      %p177 = por %p175, %p176
      %p178 = scmp.ne.s32.totalorder %s164, %s165
      %p179 = scmp.eq.s32.totalorder %s94, 5
      %p180 = por %p178, %p179
      %p182 = scmp.ne.s32.totalorder %s165, %s181
      %p183 = scmp.eq.s32.totalorder %s94, 0
      %p184 = por %p182, %p183
      %s185 = ssub.s32 %s88, %s95
      %p186 = scmp.eq.s32.totalorder %s185, 0
      %s188 = sadd.s32 %s187, 1
      %s189 = scalar_select %p186, %s187, %s188
      %p192 = pneg %p186
      %p193 = scmp.eq.s32.totalorder %s88, 5
      %p194 = por %p192, %p193
      %p195 = scmp.ne.s32.totalorder %s187, %s190
      %p196 = scmp.eq.s32.totalorder %s88, 0
      %p197 = por %p195, %p196
      %p198 = scmp.ne.s32.totalorder %s187, %s190
      %p199 = scmp.eq.s32.totalorder %s93, 5
      %p200 = por %p198, %p199
      %p201 = scmp.ne.s32.totalorder %s190, %s191
      %p202 = scmp.eq.s32.totalorder %s93, 0
      %p203 = por %p201, %p202
      %p204 = scmp.ne.s32.totalorder %s190, %s191
      %p205 = scmp.eq.s32.totalorder %s94, 5
      %p206 = por %p204, %p205
      %p208 = scmp.ne.s32.totalorder %s191, %s207
      %p209 = scmp.eq.s32.totalorder %s94, 0
      %p210 = por %p208, %p209
      %s211 = ssub.s32 %s88, %s95
      %p212 = scmp.eq.s32.totalorder %s211, 0
      %s214 = sadd.s32 %s213, 1
      %s215 = scalar_select %p212, %s213, %s214
      %p218 = pneg %p212
      %p219 = scmp.eq.s32.totalorder %s88, 5
      %p220 = por %p218, %p219
      %p221 = scmp.ne.s32.totalorder %s213, %s216
      %p222 = scmp.eq.s32.totalorder %s88, 0
      %p223 = por %p221, %p222
      %p224 = scmp.ne.s32.totalorder %s213, %s216
      %p225 = scmp.eq.s32.totalorder %s93, 5
      %p226 = por %p224, %p225
      %p227 = scmp.ne.s32.totalorder %s216, %s217
      %p228 = scmp.eq.s32.totalorder %s93, 0
      %p229 = por %p227, %p228
      %p230 = scmp.ne.s32.totalorder %s216, %s217
      %p231 = scmp.eq.s32.totalorder %s94, 5
      %p232 = por %p230, %p231
      %p234 = scmp.ne.s32.totalorder %s217, %s233
      %p235 = scmp.eq.s32.totalorder %s94, 0
      %p236 = por %p234, %p235
      %s237 = ssub.s32 %s88, %s95
      %p238 = scmp.eq.s32.totalorder %s237, 0
      %s240 = sadd.s32 %s239, 1
      %s241 = scalar_select %p238, %s239, %s240
      %p244 = pneg %p238
      %p245 = scmp.eq.s32.totalorder %s88, 5
      %p246 = por %p244, %p245
      %p247 = scmp.ne.s32.totalorder %s239, %s242
      %p248 = scmp.eq.s32.totalorder %s88, 0
      %p249 = por %p247, %p248
      %p250 = scmp.ne.s32.totalorder %s239, %s242
      %p251 = scmp.eq.s32.totalorder %s93, 5
      %p252 = por %p250, %p251
      %p253 = scmp.ne.s32.totalorder %s242, %s243
      %p254 = scmp.eq.s32.totalorder %s93, 0
      %p255 = por %p253, %p254
      %p256 = scmp.ne.s32.totalorder %s242, %s243
      %p257 = scmp.eq.s32.totalorder %s94, 5
      %p258 = por %p256, %p257
      %p260 = scmp.ne.s32.totalorder %s243, %s259
      %p261 = scmp.eq.s32.totalorder %s94, 0
      %p262 = por %p260, %p261
      %s263 = ssub.s32 %s88, %s95
      %p264 = scmp.eq.s32.totalorder %s263, 0
      %s266 = sadd.s32 %s265, 1
      %s267 = scalar_select %p264, %s265, %s266
      %p270 = pneg %p264
      %p271 = scmp.eq.s32.totalorder %s88, 5
      %p272 = por %p270, %p271
      %p273 = scmp.ne.s32.totalorder %s265, %s268
      %p274 = scmp.eq.s32.totalorder %s88, 0
      %p275 = por %p273, %p274
      %p276 = scmp.ne.s32.totalorder %s265, %s268
      %p277 = scmp.eq.s32.totalorder %s93, 5
      %p278 = por %p276, %p277
      %p279 = scmp.ne.s32.totalorder %s268, %s269
      %p280 = scmp.eq.s32.totalorder %s93, 0
      %p281 = por %p279, %p280
      %p282 = scmp.ne.s32.totalorder %s268, %s269
      %p283 = scmp.eq.s32.totalorder %s94, 5
      %p284 = por %p282, %p283
      %p286 = scmp.ne.s32.totalorder %s269, %s285
      %p287 = scmp.eq.s32.totalorder %s94, 0
      %p288 = por %p286, %p287
      %s289 = ssub.s32 %s88, %s95
      %p290 = scmp.eq.s32.totalorder %s289, 0
      %s292 = sadd.s32 %s291, 1
      %s293 = scalar_select %p290, %s291, %s292
      %p296 = pneg %p290
      %p297 = scmp.eq.s32.totalorder %s88, 5
      %p298 = por %p296, %p297
      %p299 = scmp.ne.s32.totalorder %s291, %s294
      %p300 = scmp.eq.s32.totalorder %s88, 0
      %p301 = por %p299, %p300
      %p302 = scmp.ne.s32.totalorder %s291, %s294
      %p303 = scmp.eq.s32.totalorder %s93, 5
      %p304 = por %p302, %p303
      %p305 = scmp.ne.s32.totalorder %s294, %s295
      %p306 = scmp.eq.s32.totalorder %s93, 0
      %p307 = por %p305, %p306
      %p308 = scmp.ne.s32.totalorder %s294, %s295
      %p309 = scmp.eq.s32.totalorder %s94, 5
      %p310 = por %p308, %p309
      %p312 = scmp.ne.s32.totalorder %s295, %s311
      %p313 = scmp.eq.s32.totalorder %s94, 0
      %p314 = por %p312, %p313
      %s315 = ssub.s32 %s88, %s95
      %p316 = scmp.eq.s32.totalorder %s315, 0
      %s318 = sadd.s32 %s317, 1
      %s319 = scalar_select %p316, %s317, %s318
      %p322 = pneg %p316
      %p323 = scmp.eq.s32.totalorder %s88, 5
      %p324 = por %p322, %p323
      %p325 = scmp.ne.s32.totalorder %s317, %s320
      %p326 = scmp.eq.s32.totalorder %s88, 0
      %p327 = por %p325, %p326
      %p328 = scmp.ne.s32.totalorder %s317, %s320
      %p329 = scmp.eq.s32.totalorder %s93, 5
      %p330 = por %p328, %p329
      %p331 = scmp.ne.s32.totalorder %s320, %s321
      %p332 = scmp.eq.s32.totalorder %s93, 0
      %p333 = por %p331, %p332
      %p334 = scmp.ne.s32.totalorder %s320, %s321
      %p335 = scmp.eq.s32.totalorder %s94, 5
      %p336 = por %p334, %p335
      %p338 = scmp.ne.s32.totalorder %s321, %s337
      %p339 = scmp.eq.s32.totalorder %s94, 0
      %p340 = por %p338, %p339
      %s341 = ssub.s32 %s88, %s95
      %p342 = scmp.eq.s32.totalorder %s341, 0
      %s344 = sadd.s32 %s343, 1
      %s345 = scalar_select %p342, %s343, %s344
      %p348 = pneg %p342
      %p349 = scmp.eq.s32.totalorder %s88, 5
      %p350 = por %p348, %p349
      %p351 = scmp.ne.s32.totalorder %s343, %s346
      %p352 = scmp.eq.s32.totalorder %s88, 0
      %p353 = por %p351, %p352
      %p354 = scmp.ne.s32.totalorder %s343, %s346
      %p355 = scmp.eq.s32.totalorder %s93, 5
      %p356 = por %p354, %p355
      %p357 = scmp.ne.s32.totalorder %s346, %s347
      %p358 = scmp.eq.s32.totalorder %s93, 0
      %p359 = por %p357, %p358
      %p360 = scmp.ne.s32.totalorder %s346, %s347
      %p361 = scmp.eq.s32.totalorder %s94, 5
      %p362 = por %p360, %p361
      %p364 = scmp.ne.s32.totalorder %s347, %s363
      %p365 = scmp.eq.s32.totalorder %s94, 0
      %p366 = por %p364, %p365
      %s367 = ssub.s32 %s88, %s95
      %p368 = scmp.eq.s32.totalorder %s367, 0
      %s370 = sadd.s32 %s369, 1
      %s371 = scalar_select %p368, %s369, %s370
      %p374 = pneg %p368
      %p375 = scmp.eq.s32.totalorder %s88, 5
      %p376 = por %p374, %p375
      %p377 = scmp.ne.s32.totalorder %s369, %s372
      %p378 = scmp.eq.s32.totalorder %s88, 0
      %p379 = por %p377, %p378
      %p380 = scmp.ne.s32.totalorder %s369, %s372
      %p381 = scmp.eq.s32.totalorder %s93, 5
      %p382 = por %p380, %p381
      %p383 = scmp.ne.s32.totalorder %s372, %s373
      %p384 = scmp.eq.s32.totalorder %s93, 0
      %p385 = por %p383, %p384
      %p386 = scmp.ne.s32.totalorder %s372, %s373
      %p387 = scmp.eq.s32.totalorder %s94, 5
      %p388 = por %p386, %p387
      %p390 = scmp.ne.s32.totalorder %s373, %s389
      %p391 = scmp.eq.s32.totalorder %s94, 0
      %p392 = por %p390, %p391
      %s393 = ssub.s32 %s88, %s95
      %p394 = scmp.eq.s32.totalorder %s393, 0
      %s396 = sadd.s32 %s395, 1
      %s397 = scalar_select %p394, %s395, %s396
      %p400 = pneg %p394
      %p401 = scmp.eq.s32.totalorder %s88, 5
      %p402 = por %p400, %p401
      %p403 = scmp.ne.s32.totalorder %s395, %s398
      %p404 = scmp.eq.s32.totalorder %s88, 0
      %p405 = por %p403, %p404
      %p406 = scmp.ne.s32.totalorder %s395, %s398
      %p407 = scmp.eq.s32.totalorder %s93, 5
      %p408 = por %p406, %p407
      %p409 = scmp.ne.s32.totalorder %s398, %s399
      %p410 = scmp.eq.s32.totalorder %s93, 0
      %p411 = por %p409, %p410
      %p412 = scmp.ne.s32.totalorder %s398, %s399
      %p413 = scmp.eq.s32.totalorder %s94, 5
      %p414 = por %p412, %p413
      %p416 = scmp.ne.s32.totalorder %s399, %s415
      %p417 = scmp.eq.s32.totalorder %s94, 0
      %p418 = por %p416, %p417
      %s419 = ssub.s32 %s88, %s95
      %p420 = scmp.eq.s32.totalorder %s419, 0
      %s422 = sadd.s32 %s421, 1
      %s423 = scalar_select %p420, %s421, %s422
      %p426 = pneg %p420
      %p427 = scmp.eq.s32.totalorder %s88, 5
      %p428 = por %p426, %p427
      %p429 = scmp.ne.s32.totalorder %s421, %s424
      %p430 = scmp.eq.s32.totalorder %s88, 0
      %p431 = por %p429, %p430
      %p432 = scmp.ne.s32.totalorder %s421, %s424
      %p433 = scmp.eq.s32.totalorder %s93, 5
      %p434 = por %p432, %p433
      %p435 = scmp.ne.s32.totalorder %s424, %s425
      %p436 = scmp.eq.s32.totalorder %s93, 0
      %p437 = por %p435, %p436
      %p438 = scmp.ne.s32.totalorder %s424, %s425
      %p439 = scmp.eq.s32.totalorder %s94, 5
      %p440 = por %p438, %p439
      %p442 = scmp.ne.s32.totalorder %s425, %s441
      %p443 = scmp.eq.s32.totalorder %s94, 0
      %p444 = por %p442, %p443
      %s445 = ssub.s32 %s88, %s95
      %p446 = scmp.eq.s32.totalorder %s445, 0
      %s448 = sadd.s32 %s447, 1
      %s449 = scalar_select %p446, %s447, %s448
      %p452 = pneg %p446
      %p453 = scmp.eq.s32.totalorder %s88, 5
      %p454 = por %p452, %p453
      %p455 = scmp.ne.s32.totalorder %s447, %s450
      %p456 = scmp.eq.s32.totalorder %s88, 0
      %p457 = por %p455, %p456
      %p458 = scmp.ne.s32.totalorder %s447, %s450
      %p459 = scmp.eq.s32.totalorder %s93, 5
      %p460 = por %p458, %p459
      %p461 = scmp.ne.s32.totalorder %s450, %s451
      %p462 = scmp.eq.s32.totalorder %s93, 0
      %p463 = por %p461, %p462
      %p464 = scmp.ne.s32.totalorder %s450, %s451
      %p465 = scmp.eq.s32.totalorder %s94, 5
      %p466 = por %p464, %p465
      %p468 = scmp.ne.s32.totalorder %s451, %s467
      %p469 = scmp.eq.s32.totalorder %s94, 0
      %p470 = por %p468, %p469
      %s471 = ssub.s32 %s88, %s95
      %p472 = scmp.eq.s32.totalorder %s471, 0
      %s474 = sadd.s32 %s473, 1
      %s475 = scalar_select %p472, %s473, %s474
      %p478 = pneg %p472
      %p479 = scmp.eq.s32.totalorder %s88, 5
      %p480 = por %p478, %p479
      %p481 = scmp.ne.s32.totalorder %s473, %s476
      %p482 = scmp.eq.s32.totalorder %s88, 0
      %p483 = por %p481, %p482
      %p484 = scmp.ne.s32.totalorder %s473, %s476
      %p485 = scmp.eq.s32.totalorder %s93, 5
      %p486 = por %p484, %p485
      %p487 = scmp.ne.s32.totalorder %s476, %s477
      %p488 = scmp.eq.s32.totalorder %s93, 0
      %p489 = por %p487, %p488
      %p490 = scmp.ne.s32.totalorder %s476, %s477
      %p491 = scmp.eq.s32.totalorder %s94, 5
      %p492 = por %p490, %p491
      %p494 = scmp.ne.s32.totalorder %s477, %s493
      %p495 = scmp.eq.s32.totalorder %s94, 0
      %p496 = por %p494, %p495
      %s497 = ssub.s32 %s88, %s95
      %p498 = scmp.eq.s32.totalorder %s497, 0
      %s500 = sadd.s32 %s499, 1
      %s501 = scalar_select %p498, %s499, %s500
      %p504 = pneg %p498
      %p505 = scmp.eq.s32.totalorder %s88, 5
      %p506 = por %p504, %p505
      %p507 = scmp.ne.s32.totalorder %s499, %s502
      %p508 = scmp.eq.s32.totalorder %s88, 0
      %p509 = por %p507, %p508
      %p510 = scmp.ne.s32.totalorder %s499, %s502
      %p511 = scmp.eq.s32.totalorder %s93, 5
      %p512 = por %p510, %p511
      %p513 = scmp.ne.s32.totalorder %s502, %s503
      %p514 = scmp.eq.s32.totalorder %s93, 0
      %p515 = por %p513, %p514
      %p516 = scmp.ne.s32.totalorder %s502, %s503
      %p517 = scmp.eq.s32.totalorder %s94, 5
      %p518 = por %p516, %p517
      %p520 = scmp.ne.s32.totalorder %s503, %s519
      %p521 = scmp.eq.s32.totalorder %s94, 0
      %p522 = por %p520, %p521
      %s523 = ssub.s32 %s88, %s95
      %p524 = scmp.eq.s32.totalorder %s523, 0
      %s526 = sadd.s32 %s525, 1
      %s527 = scalar_select %p524, %s525, %s526
      %p530 = pneg %p524
      %p531 = scmp.eq.s32.totalorder %s88, 5
      %p532 = por %p530, %p531
      %p533 = scmp.ne.s32.totalorder %s525, %s528
      %p534 = scmp.eq.s32.totalorder %s88, 0
      %p535 = por %p533, %p534
      %p536 = scmp.ne.s32.totalorder %s525, %s528
      %p537 = scmp.eq.s32.totalorder %s93, 5
      %p538 = por %p536, %p537
      %p539 = scmp.ne.s32.totalorder %s528, %s529
      %p540 = scmp.eq.s32.totalorder %s93, 0
      %p541 = por %p539, %p540
      %p542 = scmp.ne.s32.totalorder %s528, %s529
      %p543 = scmp.eq.s32.totalorder %s94, 5
      %p544 = por %p542, %p543
      %p546 = scmp.ne.s32.totalorder %s529, %s545
      %p547 = scmp.eq.s32.totalorder %s94, 0
      %p548 = por %p546, %p547
      %s549 = ssub.s32 %s88, %s95
      %p550 = scmp.eq.s32.totalorder %s549, 0
      %s552 = sadd.s32 %s551, 1
      %s553 = scalar_select %p550, %s551, %s552
      %p556 = pneg %p550
      %p557 = scmp.eq.s32.totalorder %s88, 5
      %p558 = por %p556, %p557
      %p559 = scmp.ne.s32.totalorder %s551, %s554
      %p560 = scmp.eq.s32.totalorder %s88, 0
      %p561 = por %p559, %p560
      %p562 = scmp.ne.s32.totalorder %s551, %s554
      %p563 = scmp.eq.s32.totalorder %s93, 5
      %p564 = por %p562, %p563
      %p565 = scmp.ne.s32.totalorder %s554, %s555
      %p566 = scmp.eq.s32.totalorder %s93, 0
      %p567 = por %p565, %p566
      %p568 = scmp.ne.s32.totalorder %s554, %s555
      %p569 = scmp.eq.s32.totalorder %s94, 5
      %p570 = por %p568, %p569
      %p572 = scmp.ne.s32.totalorder %s555, %s571
      %p573 = scmp.eq.s32.totalorder %s94, 0
      %p574 = por %p572, %p573
      %s575 = ssub.s32 %s88, %s95
      %p576 = scmp.eq.s32.totalorder %s575, 0
      %s578 = sadd.s32 %s577, 1
      %s579 = scalar_select %p576, %s577, %s578
      %p582 = pneg %p576
      %p583 = scmp.eq.s32.totalorder %s88, 5
      %p584 = por %p582, %p583
      %p585 = scmp.ne.s32.totalorder %s577, %s580
      %p586 = scmp.eq.s32.totalorder %s88, 0
      %p587 = por %p585, %p586
      %p588 = scmp.ne.s32.totalorder %s577, %s580
      %p589 = scmp.eq.s32.totalorder %s93, 5
      %p590 = por %p588, %p589
      %p591 = scmp.ne.s32.totalorder %s580, %s581
      %p592 = scmp.eq.s32.totalorder %s93, 0
      %p593 = por %p591, %p592
      %p594 = scmp.ne.s32.totalorder %s580, %s581
      %p595 = scmp.eq.s32.totalorder %s94, 5
      %p596 = por %p594, %p595
      %p598 = scmp.ne.s32.totalorder %s581, %s597
      %p599 = scmp.eq.s32.totalorder %s94, 0
      %p600 = por %p598, %p599
      %s601 = ssub.s32 %s88, %s95
      %p602 = scmp.eq.s32.totalorder %s601, 0
      %s604 = sadd.s32 %s603, 1
      %s605 = scalar_select %p602, %s603, %s604
      %p608 = pneg %p602
      %p609 = scmp.eq.s32.totalorder %s88, 5
      %p610 = por %p608, %p609
      %p611 = scmp.ne.s32.totalorder %s603, %s606
      %p612 = scmp.eq.s32.totalorder %s88, 0
      %p613 = por %p611, %p612
      %p614 = scmp.ne.s32.totalorder %s603, %s606
      %p615 = scmp.eq.s32.totalorder %s93, 5
      %p616 = por %p614, %p615
      %p617 = scmp.ne.s32.totalorder %s606, %s607
      %p618 = scmp.eq.s32.totalorder %s93, 0
      %p619 = por %p617, %p618
      %p620 = scmp.ne.s32.totalorder %s606, %s607
      %p621 = scmp.eq.s32.totalorder %s94, 5
      %p622 = por %p620, %p621
      %p624 = scmp.ne.s32.totalorder %s607, %s623
      %p625 = scmp.eq.s32.totalorder %s94, 0
      %p626 = por %p624, %p625
      %s627 = ssub.s32 %s88, %s95
      %p628 = scmp.eq.s32.totalorder %s627, 0
      %s630 = sadd.s32 %s629, 1
      %s631 = scalar_select %p628, %s629, %s630
      %p634 = pneg %p628
      %p635 = scmp.eq.s32.totalorder %s88, 5
      %p636 = por %p634, %p635
      %p637 = scmp.ne.s32.totalorder %s629, %s632
      %p638 = scmp.eq.s32.totalorder %s88, 0
      %p639 = por %p637, %p638
      %p640 = scmp.ne.s32.totalorder %s629, %s632
      %p641 = scmp.eq.s32.totalorder %s93, 5
      %p642 = por %p640, %p641
      %p643 = scmp.ne.s32.totalorder %s632, %s633
      %p644 = scmp.eq.s32.totalorder %s93, 0
      %p645 = por %p643, %p644
      %p646 = scmp.ne.s32.totalorder %s632, %s633
      %p647 = scmp.eq.s32.totalorder %s94, 5
      %p648 = por %p646, %p647
      %p650 = scmp.ne.s32.totalorder %s633, %s649
      %p651 = scmp.eq.s32.totalorder %s94, 0
      %p652 = por %p650, %p651
      %s653 = ssub.s32 %s88, %s95
      %p654 = scmp.eq.s32.totalorder %s653, 0
      %s656 = sadd.s32 %s655, 1
      %s657 = scalar_select %p654, %s655, %s656
      %p660 = pneg %p654
      %p661 = scmp.eq.s32.totalorder %s88, 5
      %p662 = por %p660, %p661
      %p663 = scmp.ne.s32.totalorder %s655, %s658
      %p664 = scmp.eq.s32.totalorder %s88, 0
      %p665 = por %p663, %p664
      %p666 = scmp.ne.s32.totalorder %s655, %s658
      %p667 = scmp.eq.s32.totalorder %s93, 5
      %p668 = por %p666, %p667
      %p669 = scmp.ne.s32.totalorder %s658, %s659
      %p670 = scmp.eq.s32.totalorder %s93, 0
      %p671 = por %p669, %p670
      %p672 = scmp.ne.s32.totalorder %s658, %s659
      %p673 = scmp.eq.s32.totalorder %s94, 5
      %p674 = por %p672, %p673
      %p676 = scmp.ne.s32.totalorder %s659, %s675
      %p677 = scmp.eq.s32.totalorder %s94, 0
      %p678 = por %p676, %p677
      %s679 = ssub.s32 %s88, %s95
      %p680 = scmp.eq.s32.totalorder %s679, 0
      %s682 = sadd.s32 %s681, 1
      %s683 = scalar_select %p680, %s681, %s682
      %p686 = pneg %p680
      %p687 = scmp.eq.s32.totalorder %s88, 5
      %p688 = por %p686, %p687
      %p689 = scmp.ne.s32.totalorder %s681, %s684
      %p690 = scmp.eq.s32.totalorder %s88, 0
      %p691 = por %p689, %p690
      %p692 = scmp.ne.s32.totalorder %s681, %s684
      %p693 = scmp.eq.s32.totalorder %s93, 5
      %p694 = por %p692, %p693
      %p695 = scmp.ne.s32.totalorder %s684, %s685
      %p696 = scmp.eq.s32.totalorder %s93, 0
      %p697 = por %p695, %p696
      %p698 = scmp.ne.s32.totalorder %s684, %s685
      %p699 = scmp.eq.s32.totalorder %s94, 5
      %p700 = por %p698, %p699
      %p702 = scmp.ne.s32.totalorder %s685, %s701
      %p703 = scmp.eq.s32.totalorder %s94, 0
      %p704 = por %p702, %p703
      %s705 = ssub.s32 %s88, %s95
      %p706 = scmp.eq.s32.totalorder %s705, 0
      %s708 = sadd.s32 %s707, 1
      %s709 = scalar_select %p706, %s707, %s708
      %p712 = pneg %p706
      %p713 = scmp.eq.s32.totalorder %s88, 5
      %p714 = por %p712, %p713
      %p715 = scmp.ne.s32.totalorder %s707, %s710
      %p716 = scmp.eq.s32.totalorder %s88, 0
      %p717 = por %p715, %p716
      %p718 = scmp.ne.s32.totalorder %s707, %s710
      %p719 = scmp.eq.s32.totalorder %s93, 5
      %p720 = por %p718, %p719
      %p721 = scmp.ne.s32.totalorder %s710, %s711
      %p722 = scmp.eq.s32.totalorder %s93, 0
      %p723 = por %p721, %p722
      %p724 = scmp.ne.s32.totalorder %s710, %s711
      %p725 = scmp.eq.s32.totalorder %s94, 5
      %p726 = por %p724, %p725
      %p728 = scmp.ne.s32.totalorder %s711, %s727
      %p729 = scmp.eq.s32.totalorder %s94, 0
      %p730 = por %p728, %p729
      %s731 = ssub.s32 %s88, %s95
      %p732 = scmp.eq.s32.totalorder %s731, 0
      %s734 = sadd.s32 %s733, 1
      %s735 = scalar_select %p732, %s733, %s734
      %p738 = pneg %p732
      %p739 = scmp.eq.s32.totalorder %s88, 5
      %p740 = por %p738, %p739
      %p741 = scmp.ne.s32.totalorder %s733, %s736
      %p742 = scmp.eq.s32.totalorder %s88, 0
      %p743 = por %p741, %p742
      %p744 = scmp.ne.s32.totalorder %s733, %s736
      %p745 = scmp.eq.s32.totalorder %s93, 5
      %p746 = por %p744, %p745
      %p747 = scmp.ne.s32.totalorder %s736, %s737
      %p748 = scmp.eq.s32.totalorder %s93, 0
      %p749 = por %p747, %p748
      %p750 = scmp.ne.s32.totalorder %s736, %s737
      %p751 = scmp.eq.s32.totalorder %s94, 5
      %p752 = por %p750, %p751
      %p754 = scmp.ne.s32.totalorder %s737, %s753
      %p755 = scmp.eq.s32.totalorder %s94, 0
      %p756 = por %p754, %p755
      %s757 = ssub.s32 %s88, %s95
      %p758 = scmp.eq.s32.totalorder %s757, 0
      %s760 = sadd.s32 %s759, 1
      %s761 = scalar_select %p758, %s759, %s760
      %p764 = pneg %p758
      %p765 = scmp.eq.s32.totalorder %s88, 5
      %p766 = por %p764, %p765
      %p767 = scmp.ne.s32.totalorder %s759, %s762
      %p768 = scmp.eq.s32.totalorder %s88, 0
      %p769 = por %p767, %p768
      %p770 = scmp.ne.s32.totalorder %s759, %s762
      %p771 = scmp.eq.s32.totalorder %s93, 5
      %p772 = por %p770, %p771
      %p773 = scmp.ne.s32.totalorder %s762, %s763
      %p774 = scmp.eq.s32.totalorder %s93, 0
      %p775 = por %p773, %p774
      %p776 = scmp.ne.s32.totalorder %s762, %s763
      %p777 = scmp.eq.s32.totalorder %s94, 5
      %p778 = por %p776, %p777
      %p780 = scmp.ne.s32.totalorder %s763, %s779
      %p781 = scmp.eq.s32.totalorder %s94, 0
      %p782 = por %p780, %p781
      %s783 = ssub.s32 %s88, %s95
      %p784 = scmp.eq.s32.totalorder %s783, 0
      %s786 = sadd.s32 %s785, 1
      %s787 = scalar_select %p784, %s785, %s786
      %p790 = pneg %p784
      %p791 = scmp.eq.s32.totalorder %s88, 5
      %p792 = por %p790, %p791
      %p793 = scmp.ne.s32.totalorder %s785, %s788
      %p794 = scmp.eq.s32.totalorder %s88, 0
      %p795 = por %p793, %p794
      %p796 = scmp.ne.s32.totalorder %s785, %s788
      %p797 = scmp.eq.s32.totalorder %s93, 5
      %p798 = por %p796, %p797
      %p799 = scmp.ne.s32.totalorder %s788, %s789
      %p800 = scmp.eq.s32.totalorder %s93, 0
      %p801 = por %p799, %p800
      %p802 = scmp.ne.s32.totalorder %s788, %s789
      %p803 = scmp.eq.s32.totalorder %s94, 5
      %p804 = por %p802, %p803
      %p806 = scmp.ne.s32.totalorder %s789, %s805
      %p807 = scmp.eq.s32.totalorder %s94, 0
      %p808 = por %p806, %p807
      %s809 = ssub.s32 %s88, %s95
      %p810 = scmp.eq.s32.totalorder %s809, 0
      %s812 = sadd.s32 %s811, 1
      %s813 = scalar_select %p810, %s811, %s812
      %p816 = pneg %p810
      %p817 = scmp.eq.s32.totalorder %s88, 5
      %p818 = por %p816, %p817
      %p819 = scmp.ne.s32.totalorder %s811, %s814
      %p820 = scmp.eq.s32.totalorder %s88, 0
      %p821 = por %p819, %p820
      %p822 = scmp.ne.s32.totalorder %s811, %s814
      %p823 = scmp.eq.s32.totalorder %s93, 5
      %p824 = por %p822, %p823
      %p825 = scmp.ne.s32.totalorder %s814, %s815
      %p826 = scmp.eq.s32.totalorder %s93, 0
      %p827 = por %p825, %p826
      %p828 = scmp.ne.s32.totalorder %s814, %s815
      %p829 = scmp.eq.s32.totalorder %s94, 5
      %p830 = por %p828, %p829
      %p832 = scmp.ne.s32.totalorder %s815, %s831
      %p833 = scmp.eq.s32.totalorder %s94, 0
      %p834 = por %p832, %p833
      %s836 = sadd.s32 %s835, 1
      %p839 = scmp.eq.s32.totalorder %s88, 5
      %p840 = scmp.ne.s32.totalorder %s835, %s837
      %p841 = scmp.eq.s32.totalorder %s88, 0
      %p842 = por %p840, %p841
      %p843 = scmp.ne.s32.totalorder %s835, %s837
      %p844 = scmp.eq.s32.totalorder %s93, 5
      %p845 = por %p843, %p844
      %p846 = scmp.ne.s32.totalorder %s837, %s838
      %p847 = scmp.eq.s32.totalorder %s93, 0
      %p848 = por %p846, %p847
      %p849 = scmp.ne.s32.totalorder %s837, %s838
      %p850 = scmp.eq.s32.totalorder %s94, 5
      %p851 = por %p849, %p850
      %p853 = scmp.ne.s32.totalorder %s838, %s852
      %p854 = scmp.eq.s32.totalorder %s94, 0
      %p855 = por %p853, %p854
      %s857 = sadd.s32 %s856, 1
      %p860 = scmp.eq.s32.totalorder %s88, 5
      %p861 = scmp.ne.s32.totalorder %s856, %s858
      %p862 = scmp.eq.s32.totalorder %s88, 0
      %p863 = por %p861, %p862
      %p864 = scmp.ne.s32.totalorder %s856, %s858
      %p865 = scmp.eq.s32.totalorder %s93, 5
      %p866 = por %p864, %p865
      %p867 = scmp.ne.s32.totalorder %s858, %s859
      %p868 = scmp.eq.s32.totalorder %s93, 0
      %p869 = por %p867, %p868
      %p870 = scmp.ne.s32.totalorder %s858, %s859
      %p871 = scmp.eq.s32.totalorder %s94, 5
      %p872 = por %p870, %p871
      %p874 = scmp.ne.s32.totalorder %s859, %s873
      %p875 = scmp.eq.s32.totalorder %s94, 0
      %p876 = por %p874, %p875
      %s878 = sadd.s32 %s877, 1
      %p881 = scmp.eq.s32.totalorder %s88, 5
      %p882 = scmp.ne.s32.totalorder %s877, %s879
      %p883 = scmp.eq.s32.totalorder %s88, 0
      %p884 = por %p882, %p883
      %p885 = scmp.ne.s32.totalorder %s877, %s879
      %p886 = scmp.eq.s32.totalorder %s93, 5
      %p887 = por %p885, %p886
      %p888 = scmp.ne.s32.totalorder %s879, %s880
      %p889 = scmp.eq.s32.totalorder %s93, 0
      %p890 = por %p888, %p889
      %p891 = scmp.ne.s32.totalorder %s879, %s880
      %p892 = scmp.eq.s32.totalorder %s94, 5
      %p893 = por %p891, %p892
      %p895 = scmp.ne.s32.totalorder %s880, %s894
      %p896 = scmp.eq.s32.totalorder %s94, 0
      %p897 = por %p895, %p896
      %p898 = scmp.le.s32.totalorder 1, %s88
      %p899 = scmp.lt.s32.totalorder %s88, 7
      %p900 = pnand %p898, %p899
      %p901 = pneg %p900
      // Predicated region
      $region9: #{transformer_forward.4} parent=5 // pred_check
        _
      $region10: #{transformer_forward.4} parent=5 // pred_check_branch
        %903 = sbr.rel (%p900) target = $region12
      $region11: #{transformer_forward.4} parent=5 // pred_region
        %s904 = ssub.s32 %s88, 1
        // Predicated region
        $region13: #{transformer_forward.4} parent=11 // pred_check
          %p905 = pneg %p109
        $region14: #{transformer_forward.4} parent=11 // pred_check_branch
          %907 = sbr.rel (%p905) target = $region16
        $region15: #{transformer_forward.4} parent=11 // pred_region
          _
        $region16: #{transformer_forward.4} parent=11 // pred_fallthru
          _
        // Predicated region
        $region17: #{transformer_forward.4} parent=11 // pred_check
          %p908 = pneg %p130
        $region18: #{transformer_forward.4} parent=11 // pred_check_branch
          %910 = sbr.rel (%p908) target = $region20
        $region19: #{transformer_forward.4} parent=11 // pred_region
          _
        $region20: #{transformer_forward.4} parent=11 // pred_fallthru
          _
        // Predicated region
        $region21: #{transformer_forward.4} parent=11 // pred_check
          %p911 = pneg %p151
        $region22: #{transformer_forward.4} parent=11 // pred_check_branch
          %913 = sbr.rel (%p911) target = $region24
        $region23: #{transformer_forward.4} parent=11 // pred_region
          _
        $region24: #{transformer_forward.4} parent=11 // pred_fallthru
          _
        // Predicated region
        $region25: #{transformer_forward.4} parent=11 // pred_check
          %p914 = pneg %p848
        $region26: #{transformer_forward.4} parent=11 // pred_check_branch
          %916 = sbr.rel (%p914) target = $region28
        $region27: #{transformer_forward.4} parent=11 // pred_region
          %s918 = ssub.s32 16, 16
          %919 = vsyncadd [#allocation18], %s918
          %s921 = sshll.u32 [#allocation19], 4
          %s922 = int_to_ptr.vmem [resolvable:$true] %s921
          %924 = dma.hbm_to_vmem [thread:$0]  %s59, 16, %s922, [#allocation18]
        $region28: #{transformer_forward.4} parent=11 // pred_fallthru
          _
        // Predicated region
        $region29: #{transformer_forward.4} parent=11 // pred_check
          %p925 = pneg %p869
        $region30: #{transformer_forward.4} parent=11 // pred_check_branch
          %927 = sbr.rel (%p925) target = $region32
        $region31: #{transformer_forward.4} parent=11 // pred_region
          %s929 = ssub.s32 16, 16
          %930 = vsyncadd [#allocation21], %s929
          %s932 = sshll.u32 [#allocation20], 4
          %s933 = int_to_ptr.vmem [resolvable:$true] %s932
          %935 = dma.hbm_to_vmem [thread:$0]  %s61, 16, %s933, [#allocation21]
        $region32: #{transformer_forward.4} parent=11 // pred_fallthru
          _
      $region12: #{transformer_forward.4} parent=5 // pred_fallthru
        _
      %p936 = scmp.lt.s32.totalorder %s88, 6
      // Predicated region
      $region33: #{transformer_forward.4} parent=5 // pred_check
        %p937 = pneg %p936
      $region34: #{transformer_forward.4} parent=5 // pred_check_branch
        %939 = sbr.rel (%p937) target = $region36
      $region35: #{transformer_forward.4} parent=5 // pred_region
        // Predicated region
        $region37: #{transformer_forward.4} parent=35 // pred_check
          %p940 = pneg %p171
        $region38: #{transformer_forward.4} parent=35 // pred_check_branch
          %942 = sbr.rel (%p940) target = $region40
        $region39: #{transformer_forward.4} parent=35 // pred_region
          %p943 = scmp.lt.s32.totalorder %s88, 5
          %s944 = scalar_select %p943, %s88, 5
          %s945 = smul.addr %s944, 4
          %s946 = smul.addr %s945, 8
          %s947 = scalar_lea.vmem %s7, %s946
        $region40: #{transformer_forward.4} parent=35 // pred_fallthru
          _
        // Predicated region
        $region41: #{transformer_forward.4} parent=35 // pred_check
          %p948 = pneg %p197
        $region42: #{transformer_forward.4} parent=35 // pred_check_branch
          %950 = sbr.rel (%p948) target = $region44
        $region43: #{transformer_forward.4} parent=35 // pred_region
          %p951 = scmp.lt.s32.totalorder %s88, 5
          %s952 = scalar_select %p951, %s88, 5
          %s953 = scalar_lea.vmem %s9, %s952
        $region44: #{transformer_forward.4} parent=35 // pred_fallthru
          _
        // Predicated region
        $region45: #{transformer_forward.4} parent=35 // pred_check
          %p954 = pneg %p223
        $region46: #{transformer_forward.4} parent=35 // pred_check_branch
          %956 = sbr.rel (%p954) target = $region48
        $region47: #{transformer_forward.4} parent=35 // pred_region
          %p957 = scmp.lt.s32.totalorder %s88, 5
          %s958 = scalar_select %p957, %s88, 5
          %s959 = smul.addr %s958, 4
          %s960 = smul.addr %s959, 8
          %s961 = scalar_lea.vmem %s11, %s960
        $region48: #{transformer_forward.4} parent=35 // pred_fallthru
          _
        // Predicated region
        $region49: #{transformer_forward.4} parent=35 // pred_check
          %p962 = pneg %p249
        $region50: #{transformer_forward.4} parent=35 // pred_check_branch
          %964 = sbr.rel (%p962) target = $region52
        $region51: #{transformer_forward.4} parent=35 // pred_region
          %s965 = sand.u32 %s239, 1
          %s966 = scalar_lea.sflag [#allocation4], %s965
          %s967 = sand.u32 %s239, 1
          %s968 = scalar_lea.vmem [#allocation3], %s967
          %s970 = ssub.s32 16, 16
          %971 = vsyncadd %s966, %s970
          %s972 = smul.addr %s88, 16
          %s973 = scalar_lea.hbm %s13, %s972
          %s975 = sshll.u32 %s968, 4
          %s976 = int_to_ptr.vmem [resolvable:$true] %s975
          %978 = dma.hbm_to_vmem [thread:$0]  %s973, 16, %s976, %s966
        $region52: #{transformer_forward.4} parent=35 // pred_fallthru
          _
        // Predicated region
        $region53: #{transformer_forward.4} parent=35 // pred_check
          %p979 = pneg %p275
        $region54: #{transformer_forward.4} parent=35 // pred_check_branch
          %981 = sbr.rel (%p979) target = $region56
        $region55: #{transformer_forward.4} parent=35 // pred_region
          %p982 = scmp.lt.s32.totalorder %s88, 5
          %s983 = scalar_select %p982, %s88, 5
          %s984 = smul.addr %s983, 4
          %s985 = smul.addr %s984, 8
          %s986 = scalar_lea.vmem %s15, %s985
        $region56: #{transformer_forward.4} parent=35 // pred_fallthru
          _
        // Predicated region
        $region57: #{transformer_forward.4} parent=35 // pred_check
          %p987 = pneg %p301
        $region58: #{transformer_forward.4} parent=35 // pred_check_branch
          %989 = sbr.rel (%p987) target = $region60
        $region59: #{transformer_forward.4} parent=35 // pred_region
          %s990 = sand.u32 %s88, 1
          %s991 = scalar_lea.sflag [#allocation6], %s990
          %s992 = sand.u32 %s291, 1
          %s993 = scalar_lea.vmem [#allocation5], %s992
          %s995 = ssub.s32 16, 16
          %996 = vsyncadd %s991, %s995
          %s997 = smul.addr %s88, 16
          %s998 = scalar_lea.hbm %s17, %s997
          %s1000 = sshll.u32 %s993, 4
          %s1001 = int_to_ptr.vmem [resolvable:$true] %s1000
          %1003 = dma.hbm_to_vmem [thread:$0]  %s998, 16, %s1001, %s991
        $region60: #{transformer_forward.4} parent=35 // pred_fallthru
          _
        // Predicated region
        $region61: #{transformer_forward.4} parent=35 // pred_check
          %p1004 = pneg %p327
        $region62: #{transformer_forward.4} parent=35 // pred_check_branch
          %1006 = sbr.rel (%p1004) target = $region64
        $region63: #{transformer_forward.4} parent=35 // pred_region
          %p1007 = scmp.lt.s32.totalorder %s88, 5
          %s1008 = scalar_select %p1007, %s88, 5
          %s1009 = smul.addr %s1008, 4
          %s1010 = smul.addr %s1009, 8
          %s1011 = scalar_lea.vmem %s19, %s1010
        $region64: #{transformer_forward.4} parent=35 // pred_fallthru
          _
        // Predicated region
        $region65: #{transformer_forward.4} parent=35 // pred_check
          %p1012 = pneg %p353
        $region66: #{transformer_forward.4} parent=35 // pred_check_branch
          %1014 = sbr.rel (%p1012) target = $region68
        $region67: #{transformer_forward.4} parent=35 // pred_region
          %s1015 = sand.u32 %s88, 1
          %s1016 = scalar_lea.sflag [#allocation6], %s1015
          %s1017 = sand.u32 %s343, 1
          %s1018 = scalar_lea.vmem [#allocation7], %s1017
          %s1020 = ssub.s32 16, 16
          %1021 = vsyncadd %s1016, %s1020
          %s1022 = smul.addr %s88, 16
          %s1023 = scalar_lea.hbm %s21, %s1022
          %s1025 = sshll.u32 %s1018, 4
          %s1026 = int_to_ptr.vmem [resolvable:$true] %s1025
          %1028 = dma.hbm_to_vmem [thread:$0]  %s1023, 16, %s1026, %s1016
        $region68: #{transformer_forward.4} parent=35 // pred_fallthru
          _
        // Predicated region
        $region69: #{transformer_forward.4} parent=35 // pred_check
          %p1029 = pneg %p379
        $region70: #{transformer_forward.4} parent=35 // pred_check_branch
          %1031 = sbr.rel (%p1029) target = $region72
        $region71: #{transformer_forward.4} parent=35 // pred_region
          %p1032 = scmp.lt.s32.totalorder %s88, 5
          %s1033 = scalar_select %p1032, %s88, 5
          %s1034 = smul.addr %s1033, 4
          %s1035 = smul.addr %s1034, 8
          %s1036 = scalar_lea.vmem %s23, %s1035
        $region72: #{transformer_forward.4} parent=35 // pred_fallthru
          _
        // Predicated region
        $region73: #{transformer_forward.4} parent=35 // pred_check
          %p1037 = pneg %p405
        $region74: #{transformer_forward.4} parent=35 // pred_check_branch
          %1039 = sbr.rel (%p1037) target = $region76
        $region75: #{transformer_forward.4} parent=35 // pred_region
          %p1040 = scmp.lt.s32.totalorder %s88, 5
          %s1041 = scalar_select %p1040, %s88, 5
          %s1042 = scalar_lea.vmem %s25, %s1041
        $region76: #{transformer_forward.4} parent=35 // pred_fallthru
          _
        // Predicated region
        $region77: #{transformer_forward.4} parent=35 // pred_check
          %p1043 = pneg %p431
        $region78: #{transformer_forward.4} parent=35 // pred_check_branch
          %1045 = sbr.rel (%p1043) target = $region80
        $region79: #{transformer_forward.4} parent=35 // pred_region
          %p1046 = scmp.lt.s32.totalorder %s88, 5
          %s1047 = scalar_select %p1046, %s88, 5
          %s1048 = smul.addr %s1047, 4
          %s1049 = smul.addr %s1048, 8
          %s1050 = scalar_lea.vmem %s27, %s1049
        $region80: #{transformer_forward.4} parent=35 // pred_fallthru
          _
        // Predicated region
        $region81: #{transformer_forward.4} parent=35 // pred_check
          %p1051 = pneg %p457
        $region82: #{transformer_forward.4} parent=35 // pred_check_branch
          %1053 = sbr.rel (%p1051) target = $region84
        $region83: #{transformer_forward.4} parent=35 // pred_region
          %p1054 = scmp.lt.s32.totalorder %s88, 5
          %s1055 = scalar_select %p1054, %s88, 5
          %s1056 = scalar_lea.vmem %s29, %s1055
        $region84: #{transformer_forward.4} parent=35 // pred_fallthru
          _
        // Predicated region
        $region85: #{transformer_forward.4} parent=35 // pred_check
          %p1057 = pneg %p483
        $region86: #{transformer_forward.4} parent=35 // pred_check_branch
          %1059 = sbr.rel (%p1057) target = $region88
        $region87: #{transformer_forward.4} parent=35 // pred_region
          %p1060 = scmp.lt.s32.totalorder %s88, 5
          %s1061 = scalar_select %p1060, %s88, 5
          %s1062 = smul.addr %s1061, 4
          %s1063 = smul.addr %s1062, 8
          %s1064 = scalar_lea.vmem %s31, %s1063
        $region88: #{transformer_forward.4} parent=35 // pred_fallthru
          _
        // Predicated region
        $region89: #{transformer_forward.4} parent=35 // pred_check
          %p1065 = pneg %p509
        $region90: #{transformer_forward.4} parent=35 // pred_check_branch
          %1067 = sbr.rel (%p1065) target = $region92
        $region91: #{transformer_forward.4} parent=35 // pred_region
          %p1068 = scmp.lt.s32.totalorder %s88, 5
          %s1069 = scalar_select %p1068, %s88, 5
          %s1070 = scalar_lea.vmem %s33, %s1069
        $region92: #{transformer_forward.4} parent=35 // pred_fallthru
          _
        // Predicated region
        $region93: #{transformer_forward.4} parent=35 // pred_check
          %p1071 = pneg %p535
        $region94: #{transformer_forward.4} parent=35 // pred_check_branch
          %1073 = sbr.rel (%p1071) target = $region96
        $region95: #{transformer_forward.4} parent=35 // pred_region
          %p1074 = scmp.lt.s32.totalorder %s88, 5
          %s1075 = scalar_select %p1074, %s88, 5
          %s1076 = smul.addr %s1075, 4
          %s1077 = smul.addr %s1076, 8
          %s1078 = scalar_lea.vmem %s35, %s1077
        $region96: #{transformer_forward.4} parent=35 // pred_fallthru
          _
        // Predicated region
        $region97: #{transformer_forward.4} parent=35 // pred_check
          %p1079 = pneg %p561
        $region98: #{transformer_forward.4} parent=35 // pred_check_branch
          %1081 = sbr.rel (%p1079) target = $region100
        $region99: #{transformer_forward.4} parent=35 // pred_region
          %p1082 = scmp.lt.s32.totalorder %s88, 5
          %s1083 = scalar_select %p1082, %s88, 5
          %s1084 = scalar_lea.vmem %s37, %s1083
        $region100: #{transformer_forward.4} parent=35 // pred_fallthru
          _
        // Predicated region
        $region101: #{transformer_forward.4} parent=35 // pred_check
          %p1085 = pneg %p587
        $region102: #{transformer_forward.4} parent=35 // pred_check_branch
          %1087 = sbr.rel (%p1085) target = $region104
        $region103: #{transformer_forward.4} parent=35 // pred_region
          %p1088 = scmp.lt.s32.totalorder %s88, 5
          %s1089 = scalar_select %p1088, %s88, 5
          %s1090 = scalar_lea.vmem %s39, %s1089
        $region104: #{transformer_forward.4} parent=35 // pred_fallthru
          _
        // Predicated region
        $region105: #{transformer_forward.4} parent=35 // pred_check
          %p1091 = pneg %p613
        $region106: #{transformer_forward.4} parent=35 // pred_check_branch
          %1093 = sbr.rel (%p1091) target = $region108
        $region107: #{transformer_forward.4} parent=35 // pred_region
          %s1094 = sand.u32 %s88, 1
          %s1095 = scalar_lea.sflag [#allocation9], %s1094
          %s1096 = sand.u32 %s603, 1
          %s1097 = scalar_lea.vmem [#allocation8], %s1096
          %s1099 = ssub.s32 16, 16
          %1100 = vsyncadd %s1095, %s1099
          %s1101 = smul.addr %s88, 16
          %s1102 = scalar_lea.hbm %s41, %s1101
          %s1104 = sshll.u32 %s1097, 4
          %s1105 = int_to_ptr.vmem [resolvable:$true] %s1104
          %1107 = dma.hbm_to_vmem [thread:$0]  %s1102, 16, %s1105, %s1095
        $region108: #{transformer_forward.4} parent=35 // pred_fallthru
          _
        // Predicated region
        $region109: #{transformer_forward.4} parent=35 // pred_check
          %p1108 = pneg %p639
        $region110: #{transformer_forward.4} parent=35 // pred_check_branch
          %1110 = sbr.rel (%p1108) target = $region112
        $region111: #{transformer_forward.4} parent=35 // pred_region
          %s1111 = sand.u32 %s88, 1
          %s1112 = scalar_lea.sflag [#allocation9], %s1111
          %s1113 = sand.u32 %s629, 1
          %s1114 = scalar_lea.vmem [#allocation10], %s1113
          %s1116 = ssub.s32 16, 16
          %1117 = vsyncadd %s1112, %s1116
          %s1118 = smul.addr %s88, 16
          %s1119 = scalar_lea.hbm %s43, %s1118
          %s1121 = sshll.u32 %s1114, 4
          %s1122 = int_to_ptr.vmem [resolvable:$true] %s1121
          %1124 = dma.hbm_to_vmem [thread:$0]  %s1119, 16, %s1122, %s1112
        $region112: #{transformer_forward.4} parent=35 // pred_fallthru
          _
        // Predicated region
        $region113: #{transformer_forward.4} parent=35 // pred_check
          %p1125 = pneg %p665
        $region114: #{transformer_forward.4} parent=35 // pred_check_branch
          %1127 = sbr.rel (%p1125) target = $region116
        $region115: #{transformer_forward.4} parent=35 // pred_region
          %s1128 = sand.u32 %s88, 1
          %s1129 = scalar_lea.sflag [#allocation12], %s1128
          %s1130 = sand.u32 %s655, 1
          %s1131 = scalar_lea.vmem [#allocation11], %s1130
          %s1133 = ssub.s32 16, 16
          %1134 = vsyncadd %s1129, %s1133
          %s1135 = smul.addr %s88, 16
          %s1136 = scalar_lea.hbm %s45, %s1135
          %s1138 = sshll.u32 %s1131, 4
          %s1139 = int_to_ptr.vmem [resolvable:$true] %s1138
          %1141 = dma.hbm_to_vmem [thread:$0]  %s1136, 16, %s1139, %s1129
        $region116: #{transformer_forward.4} parent=35 // pred_fallthru
          _
        // Predicated region
        $region117: #{transformer_forward.4} parent=35 // pred_check
          %p1142 = pneg %p691
        $region118: #{transformer_forward.4} parent=35 // pred_check_branch
          %1144 = sbr.rel (%p1142) target = $region120
        $region119: #{transformer_forward.4} parent=35 // pred_region
          %s1145 = sand.u32 %s88, 1
          %s1146 = scalar_lea.sflag [#allocation12], %s1145
          %s1147 = sand.u32 %s681, 1
          %s1148 = scalar_lea.vmem [#allocation13], %s1147
          %s1150 = ssub.s32 16, 16
          %1151 = vsyncadd %s1146, %s1150
          %s1152 = smul.addr %s88, 16
          %s1153 = scalar_lea.hbm %s47, %s1152
          %s1155 = sshll.u32 %s1148, 4
          %s1156 = int_to_ptr.vmem [resolvable:$true] %s1155
          %1158 = dma.hbm_to_vmem [thread:$0]  %s1153, 16, %s1156, %s1146
        $region120: #{transformer_forward.4} parent=35 // pred_fallthru
          _
        // Predicated region
        $region121: #{transformer_forward.4} parent=35 // pred_check
          %p1159 = pneg %p717
        $region122: #{transformer_forward.4} parent=35 // pred_check_branch
          %1161 = sbr.rel (%p1159) target = $region124
        $region123: #{transformer_forward.4} parent=35 // pred_region
          %s1162 = sand.u32 %s88, 1
          %s1163 = scalar_lea.sflag [#allocation15], %s1162
          %s1164 = sand.u32 %s707, 1
          %s1165 = scalar_lea.vmem [#allocation14], %s1164
          %s1167 = ssub.s32 16, 16
          %1168 = vsyncadd %s1163, %s1167
          %s1169 = smul.addr %s88, 16
          %s1170 = scalar_lea.hbm %s49, %s1169
          %s1172 = sshll.u32 %s1165, 4
          %s1173 = int_to_ptr.vmem [resolvable:$true] %s1172
          %1175 = dma.hbm_to_vmem [thread:$0]  %s1170, 16, %s1173, %s1163
        $region124: #{transformer_forward.4} parent=35 // pred_fallthru
          _
        // Predicated region
        $region125: #{transformer_forward.4} parent=35 // pred_check
          %p1176 = pneg %p743
        $region126: #{transformer_forward.4} parent=35 // pred_check_branch
          %1178 = sbr.rel (%p1176) target = $region128
        $region127: #{transformer_forward.4} parent=35 // pred_region
          %p1179 = scmp.lt.s32.totalorder %s88, 5
          %s1180 = scalar_select %p1179, %s88, 5
          %s1181 = smul.addr %s1180, 4
          %s1182 = smul.addr %s1181, 8
          %s1183 = scalar_lea.vmem %s51, %s1182
        $region128: #{transformer_forward.4} parent=35 // pred_fallthru
          _
        // Predicated region
        $region129: #{transformer_forward.4} parent=35 // pred_check
          %p1184 = pneg %p769
        $region130: #{transformer_forward.4} parent=35 // pred_check_branch
          %1186 = sbr.rel (%p1184) target = $region132
        $region131: #{transformer_forward.4} parent=35 // pred_region
          %s1187 = sand.u32 %s88, 1
          %s1188 = scalar_lea.sflag [#allocation15], %s1187
          %s1189 = sand.u32 %s759, 1
          %s1190 = scalar_lea.vmem [#allocation16], %s1189
          %s1192 = ssub.s32 16, 16
          %1193 = vsyncadd %s1188, %s1192
          %s1194 = smul.addr %s88, 16
          %s1195 = scalar_lea.hbm %s53, %s1194
          %s1197 = sshll.u32 %s1190, 4
          %s1198 = int_to_ptr.vmem [resolvable:$true] %s1197
          %1200 = dma.hbm_to_vmem [thread:$0]  %s1195, 16, %s1198, %s1188
        $region132: #{transformer_forward.4} parent=35 // pred_fallthru
          _
        // Predicated region
        $region133: #{transformer_forward.4} parent=35 // pred_check
          %p1201 = pneg %p795
        $region134: #{transformer_forward.4} parent=35 // pred_check_branch
          %1203 = sbr.rel (%p1201) target = $region136
        $region135: #{transformer_forward.4} parent=35 // pred_region
          %p1204 = scmp.lt.s32.totalorder %s88, 5
          %s1205 = scalar_select %p1204, %s88, 5
          %s1206 = smul.addr %s1205, 8
          %s1207 = smul.addr %s1206, 8
          %s1208 = scalar_lea.vmem %s55, %s1207
        $region136: #{transformer_forward.4} parent=35 // pred_fallthru
          _
        // Predicated region
        $region137: #{transformer_forward.4} parent=35 // pred_check
          %p1209 = pneg %p821
        $region138: #{transformer_forward.4} parent=35 // pred_check_branch
          %1211 = sbr.rel (%p1209) target = $region140
        $region139: #{transformer_forward.4} parent=35 // pred_region
          %s1212 = sand.u32 %s88, 1
          %s1213 = scalar_lea.sflag [#allocation18], %s1212
          %s1214 = sand.u32 %s811, 1
          %s1215 = scalar_lea.vmem [#allocation17], %s1214
          %s1217 = ssub.s32 16, 16
          %1218 = vsyncadd %s1213, %s1217
          %s1219 = smul.addr %s88, 16
          %s1220 = scalar_lea.hbm %s57, %s1219
          %s1222 = sshll.u32 %s1215, 4
          %s1223 = int_to_ptr.vmem [resolvable:$true] %s1222
          %1225 = dma.hbm_to_vmem [thread:$0]  %s1220, 16, %s1223, %s1213
        $region140: #{transformer_forward.4} parent=35 // pred_fallthru
          _
      $region36: #{transformer_forward.4} parent=5 // pred_fallthru
        _
      %p1226 = scmp.le.s32.totalorder 1, %s88
      %p1227 = scmp.lt.s32.totalorder %s88, 7
      %p1228 = pnand %p1226, %p1227
      %p1229 = pneg %p1228
      // Predicated region
      $region141: #{transformer_forward.4} parent=5 // pred_check
        _
      $region142: #{transformer_forward.4} parent=5 // pred_check_branch
        %1231 = sbr.rel (%p1228) target = $region144
      $region143: #{transformer_forward.4} parent=5 // pred_region
        %s1232 = ssub.s32 %s88, 1
        %s1233 = sand.u32 %s242, 1
        %s1234 = scalar_lea.sflag [#allocation4], %s1233
        %s1235 = sand.u32 %s242, 1
        %s1236 = scalar_lea.vmem [#allocation3], %s1235
        // Predicated region
        $region145: #{transformer_forward.4} parent=143 // pred_check
          %p1237 = pneg %p255
        $region146: #{transformer_forward.4} parent=143 // pred_check_branch
          %1239 = sbr.rel (%p1237) target = $region148
        $region147: #{transformer_forward.4} parent=143 // pred_region
          %1240 = dma.done %s1234, 16
        $region148: #{transformer_forward.4} parent=143 // pred_fallthru
          _
        %s1241 = sand.u32 %s93, 1
        %s1242 = scalar_lea.sflag [#allocation6], %s1241
        %s1243 = sand.u32 %s294, 1
        %s1244 = scalar_lea.vmem [#allocation5], %s1243
        // Predicated region
        $region149: #{transformer_forward.4} parent=143 // pred_check
          %p1245 = pneg %p307
        $region150: #{transformer_forward.4} parent=143 // pred_check_branch
          %1247 = sbr.rel (%p1245) target = $region152
        $region151: #{transformer_forward.4} parent=143 // pred_region
          %1248 = dma.done %s1242, 16
        $region152: #{transformer_forward.4} parent=143 // pred_fallthru
          _
        %s1249 = sand.u32 %s93, 1
        %s1250 = scalar_lea.sflag [#allocation6], %s1249
        %s1251 = sand.u32 %s346, 1
        %s1252 = scalar_lea.vmem [#allocation7], %s1251
        // Predicated region
        $region153: #{transformer_forward.4} parent=143 // pred_check
          %p1253 = pneg %p359
        $region154: #{transformer_forward.4} parent=143 // pred_check_branch
          %1255 = sbr.rel (%p1253) target = $region156
        $region155: #{transformer_forward.4} parent=143 // pred_region
          %1256 = dma.done %s1250, 16
        $region156: #{transformer_forward.4} parent=143 // pred_fallthru
          _
        %s1257 = sand.u32 %s93, 1
        %s1258 = scalar_lea.sflag [#allocation9], %s1257
        %s1259 = sand.u32 %s606, 1
        %s1260 = scalar_lea.vmem [#allocation8], %s1259
        // Predicated region
        $region157: #{transformer_forward.4} parent=143 // pred_check
          %p1261 = pneg %p619
        $region158: #{transformer_forward.4} parent=143 // pred_check_branch
          %1263 = sbr.rel (%p1261) target = $region160
        $region159: #{transformer_forward.4} parent=143 // pred_region
          %1264 = dma.done %s1258, 16
        $region160: #{transformer_forward.4} parent=143 // pred_fallthru
          _
        %s1265 = sand.u32 %s93, 1
        %s1266 = scalar_lea.sflag [#allocation9], %s1265
        %s1267 = sand.u32 %s632, 1
        %s1268 = scalar_lea.vmem [#allocation10], %s1267
        // Predicated region
        $region161: #{transformer_forward.4} parent=143 // pred_check
          %p1269 = pneg %p645
        $region162: #{transformer_forward.4} parent=143 // pred_check_branch
          %1271 = sbr.rel (%p1269) target = $region164
        $region163: #{transformer_forward.4} parent=143 // pred_region
          %1272 = dma.done %s1266, 16
        $region164: #{transformer_forward.4} parent=143 // pred_fallthru
          _
        %s1273 = sand.u32 %s93, 1
        %s1274 = scalar_lea.sflag [#allocation12], %s1273
        %s1275 = sand.u32 %s658, 1
        %s1276 = scalar_lea.vmem [#allocation11], %s1275
        // Predicated region
        $region165: #{transformer_forward.4} parent=143 // pred_check
          %p1277 = pneg %p671
        $region166: #{transformer_forward.4} parent=143 // pred_check_branch
          %1279 = sbr.rel (%p1277) target = $region168
        $region167: #{transformer_forward.4} parent=143 // pred_region
          %1280 = dma.done %s1274, 16
        $region168: #{transformer_forward.4} parent=143 // pred_fallthru
          _
        %s1281 = sand.u32 %s93, 1
        %s1282 = scalar_lea.sflag [#allocation12], %s1281
        %s1283 = sand.u32 %s684, 1
        %s1284 = scalar_lea.vmem [#allocation13], %s1283
        // Predicated region
        $region169: #{transformer_forward.4} parent=143 // pred_check
          %p1285 = pneg %p697
        $region170: #{transformer_forward.4} parent=143 // pred_check_branch
          %1287 = sbr.rel (%p1285) target = $region172
        $region171: #{transformer_forward.4} parent=143 // pred_region
          %1288 = dma.done %s1282, 16
        $region172: #{transformer_forward.4} parent=143 // pred_fallthru
          _
        %s1289 = sand.u32 %s93, 1
        %s1290 = scalar_lea.sflag [#allocation15], %s1289
        %s1291 = sand.u32 %s710, 1
        %s1292 = scalar_lea.vmem [#allocation14], %s1291
        // Predicated region
        $region173: #{transformer_forward.4} parent=143 // pred_check
          %p1293 = pneg %p723
        $region174: #{transformer_forward.4} parent=143 // pred_check_branch
          %1295 = sbr.rel (%p1293) target = $region176
        $region175: #{transformer_forward.4} parent=143 // pred_region
          %1296 = dma.done %s1290, 16
        $region176: #{transformer_forward.4} parent=143 // pred_fallthru
          _
        %s1297 = sand.u32 %s93, 1
        %s1298 = scalar_lea.sflag [#allocation15], %s1297
        %s1299 = sand.u32 %s762, 1
        %s1300 = scalar_lea.vmem [#allocation16], %s1299
        // Predicated region
        $region177: #{transformer_forward.4} parent=143 // pred_check
          %p1301 = pneg %p775
        $region178: #{transformer_forward.4} parent=143 // pred_check_branch
          %1303 = sbr.rel (%p1301) target = $region180
        $region179: #{transformer_forward.4} parent=143 // pred_region
          %1304 = dma.done %s1298, 16
        $region180: #{transformer_forward.4} parent=143 // pred_fallthru
          _
        %s1305 = sand.u32 %s93, 1
        %s1306 = scalar_lea.sflag [#allocation18], %s1305
        %s1307 = sand.u32 %s814, 1
        %s1308 = scalar_lea.vmem [#allocation17], %s1307
        // Predicated region
        $region181: #{transformer_forward.4} parent=143 // pred_check
          %p1309 = pneg %p827
        $region182: #{transformer_forward.4} parent=143 // pred_check_branch
          %1311 = sbr.rel (%p1309) target = $region184
        $region183: #{transformer_forward.4} parent=143 // pred_region
          %1312 = dma.done %s1306, 16
        $region184: #{transformer_forward.4} parent=143 // pred_fallthru
          _
        // Predicated region
        $region185: #{transformer_forward.4} parent=143 // pred_check
          %p1313 = pneg %p848
        $region186: #{transformer_forward.4} parent=143 // pred_check_branch
          %1315 = sbr.rel (%p1313) target = $region188
        $region187: #{transformer_forward.4} parent=143 // pred_region
          %1316 = dma.done [#allocation18], 16
        $region188: #{transformer_forward.4} parent=143 // pred_fallthru
          _
        // Predicated region
        $region189: #{transformer_forward.4} parent=143 // pred_check
          %p1317 = pneg %p869
        $region190: #{transformer_forward.4} parent=143 // pred_check_branch
          %1319 = sbr.rel (%p1317) target = $region192
        $region191: #{transformer_forward.4} parent=143 // pred_region
          %1320 = dma.done [#allocation21], 16
        $region192: #{transformer_forward.4} parent=143 // pred_fallthru
          _
        %p1321 = pneg %p109
        %p1322 = pneg %p106
        %p1323 = pneg %p130
        %p1324 = pneg %p127
        %p1325 = pneg %p151
        %p1326 = pneg %p148
        %p1327 = scmp.lt.s32.totalorder %s93, 5
        %s1328 = scalar_select %p1327, %s93, 5
        %s1329 = smul.addr %s1328, 4
        %s1330 = smul.addr %s1329, 8
        %s1331 = scalar_lea.vmem %s7, %s1330
        %p1332 = pneg %p177
        %p1333 = pneg %p174
        %p1334 = scmp.lt.s32.totalorder %s93, 5
        %s1335 = scalar_select %p1334, %s93, 5
        %s1336 = scalar_lea.vmem %s9, %s1335
        %p1337 = pneg %p203
        %p1338 = pneg %p200
        %p1339 = scmp.lt.s32.totalorder %s93, 5
        %s1340 = scalar_select %p1339, %s93, 5
        %s1341 = smul.addr %s1340, 4
        %s1342 = smul.addr %s1341, 8
        %s1343 = scalar_lea.vmem %s11, %s1342
        %p1344 = pneg %p229
        %p1345 = pneg %p226
        %s1346 = sand.u32 %s242, 1
        %s1347 = scalar_lea.sflag [#allocation4], %s1346
        %s1348 = sand.u32 %s242, 1
        %s1349 = scalar_lea.vmem [#allocation3], %s1348
        %p1350 = pneg %p255
        %p1351 = pneg %p252
        %p1352 = scmp.lt.s32.totalorder %s93, 5
        %s1353 = scalar_select %p1352, %s93, 5
        %s1354 = smul.addr %s1353, 4
        %s1355 = smul.addr %s1354, 8
        %s1356 = scalar_lea.vmem %s15, %s1355
        %p1357 = pneg %p281
        %p1358 = pneg %p278
        %s1359 = sand.u32 %s93, 1
        %s1360 = scalar_lea.sflag [#allocation6], %s1359
        %s1361 = sand.u32 %s294, 1
        %s1362 = scalar_lea.vmem [#allocation5], %s1361
        %p1363 = pneg %p307
        %p1364 = pneg %p304
        %p1365 = scmp.lt.s32.totalorder %s93, 5
        %s1366 = scalar_select %p1365, %s93, 5
        %s1367 = smul.addr %s1366, 4
        %s1368 = smul.addr %s1367, 8
        %s1369 = scalar_lea.vmem %s19, %s1368
        %p1370 = pneg %p333
        %p1371 = pneg %p330
        %s1372 = sand.u32 %s93, 1
        %s1373 = scalar_lea.sflag [#allocation6], %s1372
        %s1374 = sand.u32 %s346, 1
        %s1375 = scalar_lea.vmem [#allocation7], %s1374
        %p1376 = pneg %p359
        %p1377 = pneg %p356
        %p1378 = scmp.lt.s32.totalorder %s93, 5
        %s1379 = scalar_select %p1378, %s93, 5
        %s1380 = smul.addr %s1379, 4
        %s1381 = smul.addr %s1380, 8
        %s1382 = scalar_lea.vmem %s23, %s1381
        %p1383 = pneg %p385
        %p1384 = pneg %p382
        %p1385 = scmp.lt.s32.totalorder %s93, 5
        %s1386 = scalar_select %p1385, %s93, 5
        %s1387 = scalar_lea.vmem %s25, %s1386
        %p1388 = pneg %p411
        %p1389 = pneg %p408
        %p1390 = scmp.lt.s32.totalorder %s93, 5
        %s1391 = scalar_select %p1390, %s93, 5
        %s1392 = smul.addr %s1391, 4
        %s1393 = smul.addr %s1392, 8
        %s1394 = scalar_lea.vmem %s27, %s1393
        %p1395 = pneg %p437
        %p1396 = pneg %p434
        %p1397 = scmp.lt.s32.totalorder %s93, 5
        %s1398 = scalar_select %p1397, %s93, 5
        %s1399 = scalar_lea.vmem %s29, %s1398
        %p1400 = pneg %p463
        %p1401 = pneg %p460
        %p1402 = scmp.lt.s32.totalorder %s93, 5
        %s1403 = scalar_select %p1402, %s93, 5
        %s1404 = smul.addr %s1403, 4
        %s1405 = smul.addr %s1404, 8
        %s1406 = scalar_lea.vmem %s31, %s1405
        %p1407 = pneg %p489
        %p1408 = pneg %p486
        %p1409 = scmp.lt.s32.totalorder %s93, 5
        %s1410 = scalar_select %p1409, %s93, 5
        %s1411 = scalar_lea.vmem %s33, %s1410
        %p1412 = pneg %p515
        %p1413 = pneg %p512
        %p1414 = scmp.lt.s32.totalorder %s93, 5
        %s1415 = scalar_select %p1414, %s93, 5
        %s1416 = smul.addr %s1415, 4
        %s1417 = smul.addr %s1416, 8
        %s1418 = scalar_lea.vmem %s35, %s1417
        %p1419 = pneg %p541
        %p1420 = pneg %p538
        %p1421 = scmp.lt.s32.totalorder %s93, 5
        %s1422 = scalar_select %p1421, %s93, 5
        %s1423 = scalar_lea.vmem %s37, %s1422
        %p1424 = pneg %p567
        %p1425 = pneg %p564
        %p1426 = scmp.lt.s32.totalorder %s93, 5
        %s1427 = scalar_select %p1426, %s93, 5
        %s1428 = scalar_lea.vmem %s39, %s1427
        %p1429 = pneg %p593
        %p1430 = pneg %p590
        %s1431 = sand.u32 %s93, 1
        %s1432 = scalar_lea.sflag [#allocation9], %s1431
        %s1433 = sand.u32 %s606, 1
        %s1434 = scalar_lea.vmem [#allocation8], %s1433
        %p1435 = pneg %p619
        %p1436 = pneg %p616
        %s1437 = sand.u32 %s93, 1
        %s1438 = scalar_lea.sflag [#allocation9], %s1437
        %s1439 = sand.u32 %s632, 1
        %s1440 = scalar_lea.vmem [#allocation10], %s1439
        %p1441 = pneg %p645
        %p1442 = pneg %p642
        %s1443 = sand.u32 %s93, 1
        %s1444 = scalar_lea.sflag [#allocation12], %s1443
        %s1445 = sand.u32 %s658, 1
        %s1446 = scalar_lea.vmem [#allocation11], %s1445
        %p1447 = pneg %p671
        %p1448 = pneg %p668
        %s1449 = sand.u32 %s93, 1
        %s1450 = scalar_lea.sflag [#allocation12], %s1449
        %s1451 = sand.u32 %s684, 1
        %s1452 = scalar_lea.vmem [#allocation13], %s1451
        %p1453 = pneg %p697
        %p1454 = pneg %p694
        %s1455 = sand.u32 %s93, 1
        %s1456 = scalar_lea.sflag [#allocation15], %s1455
        %s1457 = sand.u32 %s710, 1
        %s1458 = scalar_lea.vmem [#allocation14], %s1457
        %p1459 = pneg %p723
        %p1460 = pneg %p720
        %p1461 = scmp.lt.s32.totalorder %s93, 5
        %s1462 = scalar_select %p1461, %s93, 5
        %s1463 = smul.addr %s1462, 4
        %s1464 = smul.addr %s1463, 8
        %s1465 = scalar_lea.vmem %s51, %s1464
        %p1466 = pneg %p749
        %p1467 = pneg %p746
        %s1468 = sand.u32 %s93, 1
        %s1469 = scalar_lea.sflag [#allocation15], %s1468
        %s1470 = sand.u32 %s762, 1
        %s1471 = scalar_lea.vmem [#allocation16], %s1470
        %p1472 = pneg %p775
        %p1473 = pneg %p772
        %p1474 = scmp.lt.s32.totalorder %s93, 5
        %s1475 = scalar_select %p1474, %s93, 5
        %s1476 = smul.addr %s1475, 8
        %s1477 = smul.addr %s1476, 8
        %s1478 = scalar_lea.vmem %s55, %s1477
        %p1479 = pneg %p801
        %p1480 = pneg %p798
        %s1481 = sand.u32 %s93, 1
        %s1482 = scalar_lea.sflag [#allocation18], %s1481
        %s1483 = sand.u32 %s814, 1
        %s1484 = scalar_lea.vmem [#allocation17], %s1483
        %p1485 = pneg %p827
        %p1486 = pneg %p824
        %p1487 = pneg %p848
        %p1488 = pneg %p845
        %p1489 = pneg %p869
        %p1490 = pneg %p866
        %p1491 = pneg %p890
        %p1492 = pneg %p887
        %p1493 = scmp.lt.s32.totalorder %s93, 5
        %s1494 = scalar_select %p1493, %s93, 5
        %s1495 = smul.addr %s1494, 4
        %s1496 = smul.addr %s1495, 8
        %s1497 = scalar_lea.vmem %s7, %s1496
        %p1498 = scmp.lt.s32.totalorder %s93, 5
        %s1499 = scalar_select %p1498, %s93, 5
        %s1500 = scalar_lea.vmem %s9, %s1499
        %p1501 = scmp.lt.s32.totalorder %s93, 5
        %s1502 = scalar_select %p1501, %s93, 5
        %s1503 = smul.addr %s1502, 4
        %s1504 = smul.addr %s1503, 8
        %s1505 = scalar_lea.vmem %s11, %s1504
        %p1506 = scmp.lt.s32.totalorder %s93, 5
        %s1507 = scalar_select %p1506, %s93, 5
        %s1508 = smul.addr %s1507, 4
        %s1509 = smul.addr %s1508, 8
        %s1510 = scalar_lea.vmem %s15, %s1509
        %p1511 = scmp.lt.s32.totalorder %s93, 5
        %s1512 = scalar_select %p1511, %s93, 5
        %s1513 = smul.addr %s1512, 4
        %s1514 = smul.addr %s1513, 8
        %s1515 = scalar_lea.vmem %s19, %s1514
        %p1516 = scmp.lt.s32.totalorder %s93, 5
        %s1517 = scalar_select %p1516, %s93, 5
        %s1518 = smul.addr %s1517, 4
        %s1519 = smul.addr %s1518, 8
        %s1520 = scalar_lea.vmem %s23, %s1519
        %p1521 = scmp.lt.s32.totalorder %s93, 5
        %s1522 = scalar_select %p1521, %s93, 5
        %s1523 = scalar_lea.vmem %s25, %s1522
        %p1524 = scmp.lt.s32.totalorder %s93, 5
        %s1525 = scalar_select %p1524, %s93, 5
        %s1526 = smul.addr %s1525, 4
        %s1527 = smul.addr %s1526, 8
        %s1528 = scalar_lea.vmem %s27, %s1527
        %p1529 = scmp.lt.s32.totalorder %s93, 5
        %s1530 = scalar_select %p1529, %s93, 5
        %s1531 = scalar_lea.vmem %s29, %s1530
        %p1532 = scmp.lt.s32.totalorder %s93, 5
        %s1533 = scalar_select %p1532, %s93, 5
        %s1534 = smul.addr %s1533, 4
        %s1535 = smul.addr %s1534, 8
        %s1536 = scalar_lea.vmem %s31, %s1535
        %p1537 = scmp.lt.s32.totalorder %s93, 5
        %s1538 = scalar_select %p1537, %s93, 5
        %s1539 = scalar_lea.vmem %s33, %s1538
        %p1540 = scmp.lt.s32.totalorder %s93, 5
        %s1541 = scalar_select %p1540, %s93, 5
        %s1542 = smul.addr %s1541, 4
        %s1543 = smul.addr %s1542, 8
        %s1544 = scalar_lea.vmem %s35, %s1543
        %p1545 = scmp.lt.s32.totalorder %s93, 5
        %s1546 = scalar_select %p1545, %s93, 5
        %s1547 = scalar_lea.vmem %s37, %s1546
        %p1548 = scmp.lt.s32.totalorder %s93, 5
        %s1549 = scalar_select %p1548, %s93, 5
        %s1550 = scalar_lea.vmem %s39, %s1549
        %p1551 = scmp.lt.s32.totalorder %s93, 5
        %s1552 = scalar_select %p1551, %s93, 5
        %s1553 = smul.addr %s1552, 4
        %s1554 = smul.addr %s1553, 8
        %s1555 = scalar_lea.vmem %s51, %s1554
        %p1556 = scmp.lt.s32.totalorder %s93, 5
        %s1557 = scalar_select %p1556, %s93, 5
        %s1558 = smul.addr %s1557, 8
        %s1559 = smul.addr %s1558, 8
        %s1560 = scalar_lea.vmem %s55, %s1559
        %p1561 = scmp.eq.s32.totalorder %s93, 0
        // Predicated region
        $region193: #{transformer_forward.4} parent=143 // pred_check
          %p1562 = pneg %p1561
        $region194: #{transformer_forward.4} parent=143 // pred_check_branch
          %1564 = sbr.rel (%p1562) target = $region196
        $region195: #{transformer_forward.4} parent=143 // pred_region
          %v1565 = vld [vmem:[%s1] sm:$0xff]
          %v1566 = vld [vmem:[%s1 + $0x8] sm:$0xff]
          %v1567 = vld [vmem:[%s1 + $0x10] sm:$0xff]
          %v1568 = vld [vmem:[%s1 + $0x18] sm:$0x3f]
          %vm1569 = vcmask 261120
          %1570 = vst.msk [vmem:[#allocation2] sm:$0xff] %vm1569, %v1565
          %1571 = vst.msk [vmem:[#allocation2 + $0x8] sm:$0xff] %vm1569, %v1566
          %1572 = vst.msk [vmem:[#allocation2 + $0x10] sm:$0xff] %vm1569, %v1567
          %vm1573 = vcmask 259072
          %1574 = vst.msk [vmem:[#allocation2 + $0x18] sm:$0x3f] %vm1573, %v1568
        $region196: #{transformer_forward.4} parent=143 // pred_fallthru
          _
        %v1575 = vlaneseq
        %v1576 = vand.u32 %v1575, 127
        %vm1577 = vcmp.ge.s32.totalorder %v1576, 0
        %vm1578 = vcmp.lt.s32.totalorder %v1576, 8
        %vm1579 = vmand %vm1577, %vm1578
        %v1580 = vsel %vm1579, 1.0, 0.0
        %vm1581 = vcmp.ge.s32.totalorder %v1576, 8
        %vm1582 = vcmp.lt.s32.totalorder %v1576, 16
        %vm1583 = vmand %vm1581, %vm1582
        %v1584 = vsel %vm1583, 1.0, 0.0
        %vm1585 = vcmp.ge.s32.totalorder %v1576, 16
        %vm1586 = vcmp.lt.s32.totalorder %v1576, 24
        %vm1587 = vmand %vm1585, %vm1586
        %v1588 = vsel %vm1587, 1.0, 0.0
        %vm1589 = vcmp.ge.s32.totalorder %v1576, 24
        %vm1590 = vcmp.lt.s32.totalorder %v1576, 32
        %vm1591 = vmand %vm1589, %vm1590
        %v1592 = vsel %vm1591, 1.0, 0.0
        %v1593 = vld [vmem:[%s5] sm:$0xff]
        %v1594 = vld [vmem:[%s5 + $0x8] sm:$0xff]
        %v1595 = vld [vmem:[%s5 + $0x10] sm:$0xff]
        %v1596 = vld [vmem:[%s5 + $0x18] sm:$0x3f]
        %v1597 = vld [vmem:[#allocation2] sm:$0xff]
        %v1598 = vld [vmem:[#allocation2 + $0x8] sm:$0xff]
        %v1599 = vld [vmem:[#allocation2 + $0x10] sm:$0xff]
        %v1600 = vld [vmem:[#allocation2 + $0x18] sm:$0x3f]
        %v1601 = vld [vmem:[%s1497] sm:$0xff]
        %v1602 = vld [vmem:[%s1497 + $0x8] sm:$0xff]
        %v1603 = vld [vmem:[%s1497 + $0x10] sm:$0xff]
        %v1604 = vld [vmem:[%s1497 + $0x18] sm:$0xff]
        %v1605 = vld [vmem:[%s1500] sm:$0x1]
        %v1606 = vld [vmem:[%s1505] sm:$0xff]
        %v1607 = vld [vmem:[%s1505 + $0x8] sm:$0xff]
        %v1608 = vld [vmem:[%s1505 + $0x10] sm:$0xff]
        %v1609 = vld [vmem:[%s1505 + $0x18] sm:$0xff]
        %v1610 = vld [vmem:[%s1236] sm:$0x1]
        %v1611 = vld [vmem:[%s1510] sm:$0xff]
        %v1612 = vld [vmem:[%s1510 + $0x8] sm:$0xff]
        %v1613 = vld [vmem:[%s1510 + $0x10] sm:$0xff]
        %v1614 = vld [vmem:[%s1510 + $0x18] sm:$0xff]
        %v1615 = vld [vmem:[%s1244] sm:$0x1]
        %v1616 = vld [vmem:[%s1515] sm:$0xff]
        %v1617 = vld [vmem:[%s1515 + $0x8] sm:$0xff]
        %v1618 = vld [vmem:[%s1515 + $0x10] sm:$0xff]
        %v1619 = vld [vmem:[%s1515 + $0x18] sm:$0xff]
        %v1620 = vld [vmem:[%s1252] sm:$0x1]
        %v1622 = vlaneseq
        %v1623 = vshrl.u32 %v1622, 7
        %v1624 = vsub.s32 0, %v1623
        %v1625 = vrot.slane %v1605, %v1624
        %vm1627 = vcmask 261120
        %v1629 = vsel %vm1627, %v1597, 0
        %v1632 = vsel %vm1627, %v1598, 0
        %v1635 = vsel %vm1627, %v1599, 0
        %v1638 = vsel %vm1627, %v1600, 0
        %1640 = vmatprep.subr.mxu0 0.0
        %1641 = vmatpush1.msra.mxu0 0.0
        %1642 = vmatprep.subr.mxu0 0.0
        %1643 = vmatpush1.msra.mxu0 0.0
        %1644 = vmatprep.subr.mxu0 0.0
        %1645 = vmatpush1.msra.mxu0 0.0
        %1646 = vmatprep.subr.mxu0 0.0
        %1647 = vmatpush1.msra.mxu0 0.0
        %1648 = vmatprep.subr.mxu0 0.0
        %1649 = vmatpush1.msra.mxu0 0.0
        %1650 = vmatprep.subr.mxu0 0.0
        %1651 = vmatpush1.msra.mxu0 0.0
        %1652 = vmatprep.subr.mxu0 0.0
        %1653 = vmatpush1.msra.mxu0 0.0
        %1654 = vmatprep.subr.mxu0 0.0
        %1655 = vmatpush1.msra.mxu0 0.0
        %1656 = vmatprep.subr.mxu0 0.0
        %1657 = vmatpush1.msra.mxu0 0.0
        %1658 = vmatprep.subr.mxu0 0.0
        %1659 = vmatpush1.msra.mxu0 0.0
        %1660 = vmatprep.subr.mxu0 0.0
        %1661 = vmatpush1.msra.mxu0 0.0
        %1662 = vmatprep.subr.mxu0 0.0
        %1663 = vmatpush1.msra.mxu0 0.0
        %1664 = vmatprep.subr.mxu0 0.0
        %1665 = vmatpush1.msra.mxu0 %v1604
        %1666 = vmatprep.subr.mxu0 0.0
        %1667 = vmatpush1.msra.mxu0 %v1603
        %1668 = vmatprep.subr.mxu0 0.0
        %1669 = vmatpush1.msra.mxu0 %v1602
        %1670 = vmatprep.subr.mxu0 0.0
        %1671 = vmatpush1.msra.mxu0 %v1601
        %1672 = vmatprep.subr.mxu0 0.0
        %1673 = vmatpush2.msra.mxu0 0.0
        %1674 = vmatprep.subr.mxu0 0.0
        %1675 = vmatpush2.msra.mxu0 0.0
        %1676 = vmatprep.subr.mxu0 0.0
        %1677 = vmatpush2.msra.mxu0 0.0
        %1678 = vmatprep.subr.mxu0 0.0
        %1679 = vmatpush2.msra.mxu0 0.0
        %1680 = vmatprep.subr.mxu0 0.0
        %1681 = vmatpush2.msra.mxu0 0.0
        %1682 = vmatprep.subr.mxu0 0.0
        %1683 = vmatpush2.msra.mxu0 0.0
        %1684 = vmatprep.subr.mxu0 0.0
        %1685 = vmatpush2.msra.mxu0 0.0
        %1686 = vmatprep.subr.mxu0 0.0
        %1687 = vmatpush2.msra.mxu0 0.0
        %1688 = vmatprep.subr.mxu0 0.0
        %1689 = vmatpush2.msra.mxu0 0.0
        %1690 = vmatprep.subr.mxu0 0.0
        %1691 = vmatpush2.msra.mxu0 0.0
        %1692 = vmatprep.subr.mxu0 0.0
        %1693 = vmatpush2.msra.mxu0 0.0
        %1694 = vmatprep.subr.mxu0 0.0
        %1695 = vmatpush2.msra.mxu0 0.0
        %1696 = vmatprep.subr.mxu0 0.0
        %1697 = vmatpush2.msra.mxu0 0.0
        %1698 = vmatprep.subr.mxu0 0.0
        %1699 = vmatpush2.msra.mxu0 0.0
        %1700 = vmatprep.subr.mxu0 0.0
        %1701 = vmatpush2.msra.mxu0 0.0
        %1702 = vmatprep.subr.mxu0 0.0
        %1703 = vmatpush2.msra.mxu0 0.0
        %1704 = vmatprep.mubr.f32.mxu0 0.0
        %1705 = vmatmul.mubr.f32.gmra.mxu0 %v1629
        %v1706 = vpop.f32.mrf.mxu0
        %v1707 = vadd.f32 %v1625, %v1706
        %v1708 = vpop.f32.mrf.mxu0
        %1709 = vmatprep.mubr.f32.mxu0 0.0
        %1710 = vmatmul.mubr.f32.gmra.mxu0 %v1632
        %v1711 = vpop.f32.mrf.mxu0
        %v1712 = vadd.f32 %v1625, %v1711
        %v1713 = vpop.f32.mrf.mxu0
        %1714 = vmatprep.mubr.f32.mxu0 0.0
        %1715 = vmatmul.mubr.f32.gmra.mxu0 %v1635
        %v1716 = vpop.f32.mrf.mxu0
        %v1717 = vadd.f32 %v1625, %v1716
        %v1718 = vpop.f32.mrf.mxu0
        %1719 = vmatprep.mubr.f32.mxu0 0.0
        %1720 = vmatmul.mubr.f32.gmra.mxu0 %v1638
        %v1721 = vpop.f32.mrf.mxu0
        %v1722 = vadd.f32 %v1625, %v1721
        %v1723 = vpop.f32.mrf.mxu0
        %1724 = vdwg.mxu0
        %v1726 = vlaneseq
        %v1727 = vshrl.u32 %v1726, 7
        %v1728 = vsub.s32 0, %v1727
        %v1729 = vrot.slane %v1610, %v1728
        %1731 = vmatprep.subr.mxu0 0.0
        %1732 = vmatpush1.msra.mxu0 0.0
        %1733 = vmatprep.subr.mxu0 0.0
        %1734 = vmatpush1.msra.mxu0 0.0
        %1735 = vmatprep.subr.mxu0 0.0
        %1736 = vmatpush1.msra.mxu0 0.0
        %1737 = vmatprep.subr.mxu0 0.0
        %1738 = vmatpush1.msra.mxu0 0.0
        %1739 = vmatprep.subr.mxu0 0.0
        %1740 = vmatpush1.msra.mxu0 0.0
        %1741 = vmatprep.subr.mxu0 0.0
        %1742 = vmatpush1.msra.mxu0 0.0
        %1743 = vmatprep.subr.mxu0 0.0
        %1744 = vmatpush1.msra.mxu0 0.0
        %1745 = vmatprep.subr.mxu0 0.0
        %1746 = vmatpush1.msra.mxu0 0.0
        %1747 = vmatprep.subr.mxu0 0.0
        %1748 = vmatpush1.msra.mxu0 0.0
        %1749 = vmatprep.subr.mxu0 0.0
        %1750 = vmatpush1.msra.mxu0 0.0
        %1751 = vmatprep.subr.mxu0 0.0
        %1752 = vmatpush1.msra.mxu0 0.0
        %1753 = vmatprep.subr.mxu0 0.0
        %1754 = vmatpush1.msra.mxu0 0.0
        %1755 = vmatprep.subr.mxu0 0.0
        %1756 = vmatpush1.msra.mxu0 %v1609
        %1757 = vmatprep.subr.mxu0 0.0
        %1758 = vmatpush1.msra.mxu0 %v1608
        %1759 = vmatprep.subr.mxu0 0.0
        %1760 = vmatpush1.msra.mxu0 %v1607
        %1761 = vmatprep.subr.mxu0 0.0
        %1762 = vmatpush1.msra.mxu0 %v1606
        %1763 = vmatprep.subr.mxu0 0.0
        %1764 = vmatpush2.msra.mxu0 0.0
        %1765 = vmatprep.subr.mxu0 0.0
        %1766 = vmatpush2.msra.mxu0 0.0
        %1767 = vmatprep.subr.mxu0 0.0
        %1768 = vmatpush2.msra.mxu0 0.0
        %1769 = vmatprep.subr.mxu0 0.0
        %1770 = vmatpush2.msra.mxu0 0.0
        %1771 = vmatprep.subr.mxu0 0.0
        %1772 = vmatpush2.msra.mxu0 0.0
        %1773 = vmatprep.subr.mxu0 0.0
        %1774 = vmatpush2.msra.mxu0 0.0
        %1775 = vmatprep.subr.mxu0 0.0
        %1776 = vmatpush2.msra.mxu0 0.0
        %1777 = vmatprep.subr.mxu0 0.0
        %1778 = vmatpush2.msra.mxu0 0.0
        %1779 = vmatprep.subr.mxu0 0.0
        %1780 = vmatpush2.msra.mxu0 0.0
        %1781 = vmatprep.subr.mxu0 0.0
        %1782 = vmatpush2.msra.mxu0 0.0
        %1783 = vmatprep.subr.mxu0 0.0
        %1784 = vmatpush2.msra.mxu0 0.0
        %1785 = vmatprep.subr.mxu0 0.0
        %1786 = vmatpush2.msra.mxu0 0.0
        %1787 = vmatprep.subr.mxu0 0.0
        %1788 = vmatpush2.msra.mxu0 0.0
        %1789 = vmatprep.subr.mxu0 0.0
        %1790 = vmatpush2.msra.mxu0 0.0
        %1791 = vmatprep.subr.mxu0 0.0
        %1792 = vmatpush2.msra.mxu0 0.0
        %1793 = vmatprep.subr.mxu0 0.0
        %1794 = vmatpush2.msra.mxu0 0.0
        %1795 = vmatprep.mubr.f32.mxu0 0.0
        %1796 = vmatmul.mubr.f32.gmra.mxu0 %v1629
        %v1797 = vpop.f32.mrf.mxu0
        %v1798 = vadd.f32 %v1729, %v1797
        %v1799 = vpop.f32.mrf.mxu0
        %1800 = vmatprep.mubr.f32.mxu0 0.0
        %1801 = vmatmul.mubr.f32.gmra.mxu0 %v1632
        %v1802 = vpop.f32.mrf.mxu0
        %v1803 = vadd.f32 %v1729, %v1802
        %v1804 = vpop.f32.mrf.mxu0
        %1805 = vmatprep.mubr.f32.mxu0 0.0
        %1806 = vmatmul.mubr.f32.gmra.mxu0 %v1635
        %v1807 = vpop.f32.mrf.mxu0
        %v1808 = vadd.f32 %v1729, %v1807
        %v1809 = vpop.f32.mrf.mxu0
        %1810 = vmatprep.mubr.f32.mxu0 0.0
        %1811 = vmatmul.mubr.f32.gmra.mxu0 %v1638
        %v1812 = vpop.f32.mrf.mxu0
        %v1813 = vadd.f32 %v1729, %v1812
        %v1814 = vpop.f32.mrf.mxu0
        %1815 = vdwg.mxu0
        %v1817 = vlaneseq
        %v1818 = vshrl.u32 %v1817, 7
        %v1819 = vsub.s32 0, %v1818
        %v1820 = vrot.slane %v1615, %v1819
        %1822 = vmatprep.subr.mxu0 0.0
        %1823 = vmatpush1.msra.mxu0 0.0
        %1824 = vmatprep.subr.mxu0 0.0
        %1825 = vmatpush1.msra.mxu0 0.0
        %1826 = vmatprep.subr.mxu0 0.0
        %1827 = vmatpush1.msra.mxu0 0.0
        %1828 = vmatprep.subr.mxu0 0.0
        %1829 = vmatpush1.msra.mxu0 0.0
        %1830 = vmatprep.subr.mxu0 0.0
        %1831 = vmatpush1.msra.mxu0 0.0
        %1832 = vmatprep.subr.mxu0 0.0
        %1833 = vmatpush1.msra.mxu0 0.0
        %1834 = vmatprep.subr.mxu0 0.0
        %1835 = vmatpush1.msra.mxu0 0.0
        %1836 = vmatprep.subr.mxu0 0.0
        %1837 = vmatpush1.msra.mxu0 0.0
        %1838 = vmatprep.subr.mxu0 0.0
        %1839 = vmatpush1.msra.mxu0 0.0
        %1840 = vmatprep.subr.mxu0 0.0
        %1841 = vmatpush1.msra.mxu0 0.0
        %1842 = vmatprep.subr.mxu0 0.0
        %1843 = vmatpush1.msra.mxu0 0.0
        %1844 = vmatprep.subr.mxu0 0.0
        %1845 = vmatpush1.msra.mxu0 0.0
        %1846 = vmatprep.subr.mxu0 0.0
        %1847 = vmatpush1.msra.mxu0 %v1614
        %1848 = vmatprep.subr.mxu0 0.0
        %1849 = vmatpush1.msra.mxu0 %v1613
        %1850 = vmatprep.subr.mxu0 0.0
        %1851 = vmatpush1.msra.mxu0 %v1612
        %1852 = vmatprep.subr.mxu0 0.0
        %1853 = vmatpush1.msra.mxu0 %v1611
        %1854 = vmatprep.subr.mxu0 0.0
        %1855 = vmatpush2.msra.mxu0 0.0
        %1856 = vmatprep.subr.mxu0 0.0
        %1857 = vmatpush2.msra.mxu0 0.0
        %1858 = vmatprep.subr.mxu0 0.0
        %1859 = vmatpush2.msra.mxu0 0.0
        %1860 = vmatprep.subr.mxu0 0.0
        %1861 = vmatpush2.msra.mxu0 0.0
        %1862 = vmatprep.subr.mxu0 0.0
        %1863 = vmatpush2.msra.mxu0 0.0
        %1864 = vmatprep.subr.mxu0 0.0
        %1865 = vmatpush2.msra.mxu0 0.0
        %1866 = vmatprep.subr.mxu0 0.0
        %1867 = vmatpush2.msra.mxu0 0.0
        %1868 = vmatprep.subr.mxu0 0.0
        %1869 = vmatpush2.msra.mxu0 0.0
        %1870 = vmatprep.subr.mxu0 0.0
        %1871 = vmatpush2.msra.mxu0 0.0
        %1872 = vmatprep.subr.mxu0 0.0
        %1873 = vmatpush2.msra.mxu0 0.0
        %1874 = vmatprep.subr.mxu0 0.0
        %1875 = vmatpush2.msra.mxu0 0.0
        %1876 = vmatprep.subr.mxu0 0.0
        %1877 = vmatpush2.msra.mxu0 0.0
        %1878 = vmatprep.subr.mxu0 0.0
        %1879 = vmatpush2.msra.mxu0 0.0
        %1880 = vmatprep.subr.mxu0 0.0
        %1881 = vmatpush2.msra.mxu0 0.0
        %1882 = vmatprep.subr.mxu0 0.0
        %1883 = vmatpush2.msra.mxu0 0.0
        %1884 = vmatprep.subr.mxu0 0.0
        %1885 = vmatpush2.msra.mxu0 0.0
        %1886 = vmatprep.mubr.f32.mxu0 0.0
        %1887 = vmatmul.mubr.f32.gmra.mxu0 %v1629
        %v1888 = vpop.f32.mrf.mxu0
        %v1889 = vadd.f32 %v1820, %v1888
        %v1890 = vpop.f32.mrf.mxu0
        %1891 = vmatprep.mubr.f32.mxu0 0.0
        %1892 = vmatmul.mubr.f32.gmra.mxu0 %v1632
        %v1893 = vpop.f32.mrf.mxu0
        %v1894 = vadd.f32 %v1820, %v1893
        %v1895 = vpop.f32.mrf.mxu0
        %1896 = vmatprep.mubr.f32.mxu0 0.0
        %1897 = vmatmul.mubr.f32.gmra.mxu0 %v1635
        %v1898 = vpop.f32.mrf.mxu0
        %v1899 = vadd.f32 %v1820, %v1898
        %v1900 = vpop.f32.mrf.mxu0
        %1901 = vmatprep.mubr.f32.mxu0 0.0
        %1902 = vmatmul.mubr.f32.gmra.mxu0 %v1638
        %v1903 = vpop.f32.mrf.mxu0
        %v1904 = vadd.f32 %v1820, %v1903
        %v1905 = vpop.f32.mrf.mxu0
        %1906 = vdwg.mxu0
        %v1907 = vmul.f32 %v1580, 0.35355338
        %v1908 = vmul.f32 %v1707, %v1907
        %v1909 = vmul.f32 %v1712, %v1907
        %v1910 = vmul.f32 %v1717, %v1907
        %v1911 = vmul.f32 %v1722, %v1907
        %v1913 = vsel %vm1627, %v1908, 0
        %v1916 = vsel %vm1627, %v1909, 0
        %v1919 = vsel %vm1627, %v1910, 0
        %v1922 = vsel %vm1627, %v1911, 0
        %v1925 = vsel %vm1627, %v1798, 0
        %v1928 = vsel %vm1627, %v1803, 0
        %v1931 = vsel %vm1627, %v1808, 0
        %v1934 = vsel %vm1627, %v1813, 0
        %1936 = vmatprep.subr.mxu0 0.0
        %1937 = vmatpush1.xpose.msra.mxu0 0.0
        %1938 = vmatprep.subr.mxu0 0.0
        %1939 = vmatpush1.xpose.msra.mxu0 0.0
        %1940 = vmatprep.subr.mxu0 0.0
        %1941 = vmatpush1.xpose.msra.mxu0 0.0
        %1942 = vmatprep.subr.mxu0 0.0
        %1943 = vmatpush1.xpose.msra.mxu0 0.0
        %1944 = vmatprep.subr.mxu0 0.0
        %1945 = vmatpush1.xpose.msra.mxu0 0.0
        %1946 = vmatprep.subr.mxu0 0.0
        %1947 = vmatpush1.xpose.msra.mxu0 0.0
        %1948 = vmatprep.subr.mxu0 0.0
        %1949 = vmatpush1.xpose.msra.mxu0 0.0
        %1950 = vmatprep.subr.mxu0 0.0
        %1951 = vmatpush1.xpose.msra.mxu0 0.0
        %1952 = vmatprep.subr.mxu0 0.0
        %1953 = vmatpush1.xpose.msra.mxu0 0.0
        %1954 = vmatprep.subr.mxu0 0.0
        %1955 = vmatpush1.xpose.msra.mxu0 0.0
        %1956 = vmatprep.subr.mxu0 0.0
        %1957 = vmatpush1.xpose.msra.mxu0 0.0
        %1958 = vmatprep.subr.mxu0 0.0
        %1959 = vmatpush1.xpose.msra.mxu0 0.0
        %1960 = vmatprep.subr.mxu0 0.0
        %1961 = vmatpush1.xpose.msra.mxu0 %v1934
        %1962 = vmatprep.subr.mxu0 0.0
        %1963 = vmatpush1.xpose.msra.mxu0 %v1931
        %1964 = vmatprep.subr.mxu0 0.0
        %1965 = vmatpush1.xpose.msra.mxu0 %v1928
        %1966 = vmatprep.subr.mxu0 0.0
        %1967 = vmatpush1.xpose.msra.mxu0 %v1925
        %1968 = vmatprep.subr.mxu0 0.0
        %1969 = vmatpush2.xpose.msra.mxu0 0.0
        %1970 = vmatprep.subr.mxu0 0.0
        %1971 = vmatpush2.xpose.msra.mxu0 0.0
        %1972 = vmatprep.subr.mxu0 0.0
        %1973 = vmatpush2.xpose.msra.mxu0 0.0
        %1974 = vmatprep.subr.mxu0 0.0
        %1975 = vmatpush2.xpose.msra.mxu0 0.0
        %1976 = vmatprep.subr.mxu0 0.0
        %1977 = vmatpush2.xpose.msra.mxu0 0.0
        %1978 = vmatprep.subr.mxu0 0.0
        %1979 = vmatpush2.xpose.msra.mxu0 0.0
        %1980 = vmatprep.subr.mxu0 0.0
        %1981 = vmatpush2.xpose.msra.mxu0 0.0
        %1982 = vmatprep.subr.mxu0 0.0
        %1983 = vmatpush2.xpose.msra.mxu0 0.0
        %1984 = vmatprep.subr.mxu0 0.0
        %1985 = vmatpush2.xpose.msra.mxu0 0.0
        %1986 = vmatprep.subr.mxu0 0.0
        %1987 = vmatpush2.xpose.msra.mxu0 0.0
        %1988 = vmatprep.subr.mxu0 0.0
        %1989 = vmatpush2.xpose.msra.mxu0 0.0
        %1990 = vmatprep.subr.mxu0 0.0
        %1991 = vmatpush2.xpose.msra.mxu0 0.0
        %1992 = vmatprep.subr.mxu0 0.0
        %1993 = vmatpush2.xpose.msra.mxu0 0.0
        %1994 = vmatprep.subr.mxu0 0.0
        %1995 = vmatpush2.xpose.msra.mxu0 0.0
        %1996 = vmatprep.subr.mxu0 0.0
        %1997 = vmatpush2.xpose.msra.mxu0 0.0
        %1998 = vmatprep.subr.mxu0 0.0
        %1999 = vmatpush2.xpose.msra.mxu0 0.0
        %2000 = vmatprep.mubr.f32.mxu0 0.0
        %2001 = vmatmul.mubr.f32.gmra.mxu0 %v1913
        %v2002 = vpop.f32.mrf.mxu0
        %v2003 = vadd.f32 %v1593, %v2002
        %v2004 = vpop.f32.mrf.mxu0
        %2005 = vmatprep.mubr.f32.mxu0 0.0
        %2006 = vmatmul.mubr.f32.gmra.mxu0 %v1916
        %v2007 = vpop.f32.mrf.mxu0
        %v2008 = vadd.f32 %v1594, %v2007
        %v2009 = vpop.f32.mrf.mxu0
        %2010 = vmatprep.mubr.f32.mxu0 0.0
        %2011 = vmatmul.mubr.f32.gmra.mxu0 %v1919
        %v2012 = vpop.f32.mrf.mxu0
        %v2013 = vadd.f32 %v1595, %v2012
        %v2014 = vpop.f32.mrf.mxu0
        %2015 = vmatprep.mubr.f32.mxu0 0.0
        %2016 = vmatmul.mubr.f32.gmra.mxu0 %v1922
        %v2017 = vpop.f32.mrf.mxu0
        %v2018 = vadd.f32 %v1596, %v2017
        %v2019 = vpop.f32.mrf.mxu0
        %2020 = vdwg.mxu0
        %vm2021 = vcmask 244736
        %v2022 = vsel %vm2021, %v2003, -inf
        %2023 = vmax.xlane.f32.xlu0 %v2022
        %v2024 = vpop.xlane.xlu0 %2023
        %v2025 = vsel %vm2021, %v2008, -inf
        %2026 = vmax.xlane.f32.xlu0 %v2025
        %v2027 = vpop.xlane.xlu0 %2026
        %v2028 = vsel %vm2021, %v2013, -inf
        %2029 = vmax.xlane.f32.xlu0 %v2028
        %v2030 = vpop.xlane.xlu0 %2029
        %vm2031 = vcmask 242688
        %v2032 = vsel %vm2031, %v2018, -inf
        %2033 = vmax.xlane.f32.xlu0 %v2032
        %v2034 = vpop.xlane.xlu0 %2033
        %v2035 = vsub.f32 %v2003, %v2024
        %v2036 = vsub.f32 %v2008, %v2027
        %v2037 = vsub.f32 %v2013, %v2030
        %v2038 = vsub.f32 %v2018, %v2034
        %v2039 = vmul.f32 %v2035, 1.442695
        %v2040 = vpow.pop %v2039
        %v2041 = vmul.f32 %v2036, 1.442695
        %v2042 = vpow.pop %v2041
        %v2043 = vmul.f32 %v2037, 1.442695
        %v2044 = vpow.pop %v2043
        %v2045 = vmul.f32 %v2038, 1.442695
        %v2046 = vpow.pop %v2045
        %v2047 = vsel %vm2021, %v2040, 0.0
        %2048 = vadd.xlane.f32.xlu0 %v2047
        %v2049 = vpop.xlane.xlu0 %2048
        %v2050 = vsel %vm2021, %v2042, 0.0
        %2051 = vadd.xlane.f32.xlu0 %v2050
        %v2052 = vpop.xlane.xlu0 %2051
        %v2053 = vsel %vm2021, %v2044, 0.0
        %2054 = vadd.xlane.f32.xlu0 %v2053
        %v2055 = vpop.xlane.xlu0 %2054
        %v2056 = vsel %vm2031, %v2046, 0.0
        %2057 = vadd.xlane.f32.xlu0 %v2056
        %v2058 = vpop.xlane.xlu0 %2057
        %v2059 = vrcp.pop %v2049
        %v2060 = vmul.f32 %v2040, %v2059
        %v2061 = vrcp.pop %v2052
        %v2062 = vmul.f32 %v2042, %v2061
        %v2063 = vrcp.pop %v2055
        %v2064 = vmul.f32 %v2044, %v2063
        %v2065 = vrcp.pop %v2058
        %v2066 = vmul.f32 %v2046, %v2065
        %v2067 = vmul.f32 %v1889, %v1580
        %v2068 = vmul.f32 %v1894, %v1580
        %v2069 = vmul.f32 %v1899, %v1580
        %v2070 = vmul.f32 %v1904, %v1580
        %v2071 = vmul.f32 %v1584, 0.35355338
        %v2072 = vmul.f32 %v1707, %v2071
        %v2073 = vmul.f32 %v1712, %v2071
        %v2074 = vmul.f32 %v1717, %v2071
        %v2075 = vmul.f32 %v1722, %v2071
        %v2077 = vsel %vm1627, %v2072, 0
        %v2080 = vsel %vm1627, %v2073, 0
        %v2083 = vsel %vm1627, %v2074, 0
        %v2086 = vsel %vm1627, %v2075, 0
        %2088 = vmatprep.subr.mxu0 0.0
        %2089 = vmatpush1.xpose.msra.mxu0 0.0
        %2090 = vmatprep.subr.mxu0 0.0
        %2091 = vmatpush1.xpose.msra.mxu0 0.0
        %2092 = vmatprep.subr.mxu0 0.0
        %2093 = vmatpush1.xpose.msra.mxu0 0.0
        %2094 = vmatprep.subr.mxu0 0.0
        %2095 = vmatpush1.xpose.msra.mxu0 0.0
        %2096 = vmatprep.subr.mxu0 0.0
        %2097 = vmatpush1.xpose.msra.mxu0 0.0
        %2098 = vmatprep.subr.mxu0 0.0
        %2099 = vmatpush1.xpose.msra.mxu0 0.0
        %2100 = vmatprep.subr.mxu0 0.0
        %2101 = vmatpush1.xpose.msra.mxu0 0.0
        %2102 = vmatprep.subr.mxu0 0.0
        %2103 = vmatpush1.xpose.msra.mxu0 0.0
        %2104 = vmatprep.subr.mxu0 0.0
        %2105 = vmatpush1.xpose.msra.mxu0 0.0
        %2106 = vmatprep.subr.mxu0 0.0
        %2107 = vmatpush1.xpose.msra.mxu0 0.0
        %2108 = vmatprep.subr.mxu0 0.0
        %2109 = vmatpush1.xpose.msra.mxu0 0.0
        %2110 = vmatprep.subr.mxu0 0.0
        %2111 = vmatpush1.xpose.msra.mxu0 0.0
        %2112 = vmatprep.subr.mxu0 0.0
        %2113 = vmatpush1.xpose.msra.mxu0 %v1934
        %2114 = vmatprep.subr.mxu0 0.0
        %2115 = vmatpush1.xpose.msra.mxu0 %v1931
        %2116 = vmatprep.subr.mxu0 0.0
        %2117 = vmatpush1.xpose.msra.mxu0 %v1928
        %2118 = vmatprep.subr.mxu0 0.0
        %2119 = vmatpush1.xpose.msra.mxu0 %v1925
        %2120 = vmatprep.subr.mxu0 0.0
        %2121 = vmatpush2.xpose.msra.mxu0 0.0
        %2122 = vmatprep.subr.mxu0 0.0
        %2123 = vmatpush2.xpose.msra.mxu0 0.0
        %2124 = vmatprep.subr.mxu0 0.0
        %2125 = vmatpush2.xpose.msra.mxu0 0.0
        %2126 = vmatprep.subr.mxu0 0.0
        %2127 = vmatpush2.xpose.msra.mxu0 0.0
        %2128 = vmatprep.subr.mxu0 0.0
        %2129 = vmatpush2.xpose.msra.mxu0 0.0
        %2130 = vmatprep.subr.mxu0 0.0
        %2131 = vmatpush2.xpose.msra.mxu0 0.0
        %2132 = vmatprep.subr.mxu0 0.0
        %2133 = vmatpush2.xpose.msra.mxu0 0.0
        %2134 = vmatprep.subr.mxu0 0.0
        %2135 = vmatpush2.xpose.msra.mxu0 0.0
        %2136 = vmatprep.subr.mxu0 0.0
        %2137 = vmatpush2.xpose.msra.mxu0 0.0
        %2138 = vmatprep.subr.mxu0 0.0
        %2139 = vmatpush2.xpose.msra.mxu0 0.0
        %2140 = vmatprep.subr.mxu0 0.0
        %2141 = vmatpush2.xpose.msra.mxu0 0.0
        %2142 = vmatprep.subr.mxu0 0.0
        %2143 = vmatpush2.xpose.msra.mxu0 0.0
        %2144 = vmatprep.subr.mxu0 0.0
        %2145 = vmatpush2.xpose.msra.mxu0 0.0
        %2146 = vmatprep.subr.mxu0 0.0
        %2147 = vmatpush2.xpose.msra.mxu0 0.0
        %2148 = vmatprep.subr.mxu0 0.0
        %2149 = vmatpush2.xpose.msra.mxu0 0.0
        %2150 = vmatprep.subr.mxu0 0.0
        %2151 = vmatpush2.xpose.msra.mxu0 0.0
        %2152 = vmatprep.mubr.f32.mxu0 0.0
        %2153 = vmatmul.mubr.f32.gmra.mxu0 %v2077
        %v2154 = vpop.f32.mrf.mxu0
        %v2155 = vadd.f32 %v1593, %v2154
        %v2156 = vpop.f32.mrf.mxu0
        %2157 = vmatprep.mubr.f32.mxu0 0.0
        %2158 = vmatmul.mubr.f32.gmra.mxu0 %v2080
        %v2159 = vpop.f32.mrf.mxu0
        %v2160 = vadd.f32 %v1594, %v2159
        %v2161 = vpop.f32.mrf.mxu0
        %2162 = vmatprep.mubr.f32.mxu0 0.0
        %2163 = vmatmul.mubr.f32.gmra.mxu0 %v2083
        %v2164 = vpop.f32.mrf.mxu0
        %v2165 = vadd.f32 %v1595, %v2164
        %v2166 = vpop.f32.mrf.mxu0
        %2167 = vmatprep.mubr.f32.mxu0 0.0
        %2168 = vmatmul.mubr.f32.gmra.mxu0 %v2086
        %v2169 = vpop.f32.mrf.mxu0
        %v2170 = vadd.f32 %v1596, %v2169
        %v2171 = vpop.f32.mrf.mxu0
        %2172 = vdwg.mxu0
        %v2173 = vsel %vm2021, %v2155, -inf
        %2174 = vmax.xlane.f32.xlu0 %v2173
        %v2175 = vpop.xlane.xlu0 %2174
        %v2176 = vsel %vm2021, %v2160, -inf
        %2177 = vmax.xlane.f32.xlu0 %v2176
        %v2178 = vpop.xlane.xlu0 %2177
        %v2179 = vsel %vm2021, %v2165, -inf
        %2180 = vmax.xlane.f32.xlu0 %v2179
        %v2181 = vpop.xlane.xlu0 %2180
        %v2182 = vsel %vm2031, %v2170, -inf
        %2183 = vmax.xlane.f32.xlu0 %v2182
        %v2184 = vpop.xlane.xlu0 %2183
        %v2185 = vsub.f32 %v2155, %v2175
        %v2186 = vsub.f32 %v2160, %v2178
        %v2187 = vsub.f32 %v2165, %v2181
        %v2188 = vsub.f32 %v2170, %v2184
        %v2189 = vmul.f32 %v2185, 1.442695
        %v2190 = vpow.pop %v2189
        %v2191 = vmul.f32 %v2186, 1.442695
        %v2192 = vpow.pop %v2191
        %v2193 = vmul.f32 %v2187, 1.442695
        %v2194 = vpow.pop %v2193
        %v2195 = vmul.f32 %v2188, 1.442695
        %v2196 = vpow.pop %v2195
        %v2197 = vsel %vm2021, %v2190, 0.0
        %2198 = vadd.xlane.f32.xlu0 %v2197
        %v2199 = vpop.xlane.xlu0 %2198
        %v2200 = vsel %vm2021, %v2192, 0.0
        %2201 = vadd.xlane.f32.xlu0 %v2200
        %v2202 = vpop.xlane.xlu0 %2201
        %v2203 = vsel %vm2021, %v2194, 0.0
        %2204 = vadd.xlane.f32.xlu0 %v2203
        %v2205 = vpop.xlane.xlu0 %2204
        %v2206 = vsel %vm2031, %v2196, 0.0
        %2207 = vadd.xlane.f32.xlu0 %v2206
        %v2208 = vpop.xlane.xlu0 %2207
        %v2209 = vrcp.pop %v2199
        %v2210 = vmul.f32 %v2190, %v2209
        %v2211 = vrcp.pop %v2202
        %v2212 = vmul.f32 %v2192, %v2211
        %v2213 = vrcp.pop %v2205
        %v2214 = vmul.f32 %v2194, %v2213
        %v2215 = vrcp.pop %v2208
        %v2216 = vmul.f32 %v2196, %v2215
        %v2217 = vmul.f32 %v1889, %v1584
        %v2218 = vmul.f32 %v1894, %v1584
        %v2219 = vmul.f32 %v1899, %v1584
        %v2220 = vmul.f32 %v1904, %v1584
        %v2222 = vsel %vm2021, %v2210, 0
        %v2225 = vsel %vm2021, %v2212, 0
        %v2228 = vsel %vm2021, %v2214, 0
        %v2231 = vsel %vm2021, %v2216, 0
        %vm2233 = vcmask 1045504
        %v2235 = vsel %vm2233, %v2220, 0
        %2237 = vmatprep.subr.mxu0 0.0
        %2238 = vmatpush1.msra.mxu0 0.0
        %2239 = vmatprep.subr.mxu0 0.0
        %2240 = vmatpush1.msra.mxu0 0.0
        %2241 = vmatprep.subr.mxu0 0.0
        %2242 = vmatpush1.msra.mxu0 0.0
        %2243 = vmatprep.subr.mxu0 0.0
        %2244 = vmatpush1.msra.mxu0 0.0
        %2245 = vmatprep.subr.mxu0 0.0
        %2246 = vmatpush1.msra.mxu0 0.0
        %2247 = vmatprep.subr.mxu0 0.0
        %2248 = vmatpush1.msra.mxu0 0.0
        %2249 = vmatprep.subr.mxu0 0.0
        %2250 = vmatpush1.msra.mxu0 0.0
        %2251 = vmatprep.subr.mxu0 0.0
        %2252 = vmatpush1.msra.mxu0 0.0
        %2253 = vmatprep.subr.mxu0 0.0
        %2254 = vmatpush1.msra.mxu0 0.0
        %2255 = vmatprep.subr.mxu0 0.0
        %2256 = vmatpush1.msra.mxu0 0.0
        %2257 = vmatprep.subr.mxu0 0.0
        %2258 = vmatpush1.msra.mxu0 0.0
        %2259 = vmatprep.subr.mxu0 0.0
        %2260 = vmatpush1.msra.mxu0 0.0
        %2261 = vmatprep.subr.mxu0 0.0
        %2262 = vmatpush1.msra.mxu0 %v2235
        %2263 = vmatprep.subr.mxu0 0.0
        %2264 = vmatpush1.msra.mxu0 %v2219
        %2265 = vmatprep.subr.mxu0 0.0
        %2266 = vmatpush1.msra.mxu0 %v2218
        %2267 = vmatprep.subr.mxu0 0.0
        %2268 = vmatpush1.msra.mxu0 %v2217
        %2269 = vmatprep.subr.mxu0 0.0
        %2270 = vmatpush2.msra.mxu0 0.0
        %2271 = vmatprep.subr.mxu0 0.0
        %2272 = vmatpush2.msra.mxu0 0.0
        %2273 = vmatprep.subr.mxu0 0.0
        %2274 = vmatpush2.msra.mxu0 0.0
        %2275 = vmatprep.subr.mxu0 0.0
        %2276 = vmatpush2.msra.mxu0 0.0
        %2277 = vmatprep.subr.mxu0 0.0
        %2278 = vmatpush2.msra.mxu0 0.0
        %2279 = vmatprep.subr.mxu0 0.0
        %2280 = vmatpush2.msra.mxu0 0.0
        %2281 = vmatprep.subr.mxu0 0.0
        %2282 = vmatpush2.msra.mxu0 0.0
        %2283 = vmatprep.subr.mxu0 0.0
        %2284 = vmatpush2.msra.mxu0 0.0
        %2285 = vmatprep.subr.mxu0 0.0
        %2286 = vmatpush2.msra.mxu0 0.0
        %2287 = vmatprep.subr.mxu0 0.0
        %2288 = vmatpush2.msra.mxu0 0.0
        %2289 = vmatprep.subr.mxu0 0.0
        %2290 = vmatpush2.msra.mxu0 0.0
        %2291 = vmatprep.subr.mxu0 0.0
        %2292 = vmatpush2.msra.mxu0 0.0
        %2293 = vmatprep.subr.mxu0 0.0
        %2294 = vmatpush2.msra.mxu0 0.0
        %2295 = vmatprep.subr.mxu0 0.0
        %2296 = vmatpush2.msra.mxu0 0.0
        %2297 = vmatprep.subr.mxu0 0.0
        %2298 = vmatpush2.msra.mxu0 0.0
        %2299 = vmatprep.subr.mxu0 0.0
        %2300 = vmatpush2.msra.mxu0 0.0
        %2301 = vmatprep.mubr.f32.mxu0 0.0
        %2302 = vmatmul.mubr.f32.gmra.mxu0 %v2222
        %v2303 = vpop.f32.mrf.mxu0
        %v2304 = vadd.f32 0.0, %v2303
        %v2305 = vpop.f32.mrf.mxu0
        %2306 = vmatprep.mubr.f32.mxu0 0.0
        %2307 = vmatmul.mubr.f32.gmra.mxu0 %v2225
        %v2308 = vpop.f32.mrf.mxu0
        %v2309 = vadd.f32 0.0, %v2308
        %v2310 = vpop.f32.mrf.mxu0
        %2311 = vmatprep.mubr.f32.mxu0 0.0
        %2312 = vmatmul.mubr.f32.gmra.mxu0 %v2228
        %v2313 = vpop.f32.mrf.mxu0
        %v2314 = vadd.f32 0.0, %v2313
        %v2315 = vpop.f32.mrf.mxu0
        %2316 = vmatprep.mubr.f32.mxu0 0.0
        %2317 = vmatmul.mubr.f32.gmra.mxu0 %v2231
        %v2318 = vpop.f32.mrf.mxu0
        %v2319 = vadd.f32 0.0, %v2318
        %v2320 = vpop.f32.mrf.mxu0
        %2321 = vdwg.mxu0
        %v2323 = vsel %vm2021, %v2060, 0
        %v2326 = vsel %vm2021, %v2062, 0
        %v2329 = vsel %vm2021, %v2064, 0
        %v2332 = vsel %vm2021, %v2066, 0
        %v2335 = vsel %vm2233, %v2070, 0
        %2337 = vmatprep.subr.mxu0 0.0
        %2338 = vmatpush1.msra.mxu0 0.0
        %2339 = vmatprep.subr.mxu0 0.0
        %2340 = vmatpush1.msra.mxu0 0.0
        %2341 = vmatprep.subr.mxu0 0.0
        %2342 = vmatpush1.msra.mxu0 0.0
        %2343 = vmatprep.subr.mxu0 0.0
        %2344 = vmatpush1.msra.mxu0 0.0
        %2345 = vmatprep.subr.mxu0 0.0
        %2346 = vmatpush1.msra.mxu0 0.0
        %2347 = vmatprep.subr.mxu0 0.0
        %2348 = vmatpush1.msra.mxu0 0.0
        %2349 = vmatprep.subr.mxu0 0.0
        %2350 = vmatpush1.msra.mxu0 0.0
        %2351 = vmatprep.subr.mxu0 0.0
        %2352 = vmatpush1.msra.mxu0 0.0
        %2353 = vmatprep.subr.mxu0 0.0
        %2354 = vmatpush1.msra.mxu0 0.0
        %2355 = vmatprep.subr.mxu0 0.0
        %2356 = vmatpush1.msra.mxu0 0.0
        %2357 = vmatprep.subr.mxu0 0.0
        %2358 = vmatpush1.msra.mxu0 0.0
        %2359 = vmatprep.subr.mxu0 0.0
        %2360 = vmatpush1.msra.mxu0 0.0
        %2361 = vmatprep.subr.mxu0 0.0
        %2362 = vmatpush1.msra.mxu0 %v2335
        %2363 = vmatprep.subr.mxu0 0.0
        %2364 = vmatpush1.msra.mxu0 %v2069
        %2365 = vmatprep.subr.mxu0 0.0
        %2366 = vmatpush1.msra.mxu0 %v2068
        %2367 = vmatprep.subr.mxu0 0.0
        %2368 = vmatpush1.msra.mxu0 %v2067
        %2369 = vmatprep.subr.mxu0 0.0
        %2370 = vmatpush2.msra.mxu0 0.0
        %2371 = vmatprep.subr.mxu0 0.0
        %2372 = vmatpush2.msra.mxu0 0.0
        %2373 = vmatprep.subr.mxu0 0.0
        %2374 = vmatpush2.msra.mxu0 0.0
        %2375 = vmatprep.subr.mxu0 0.0
        %2376 = vmatpush2.msra.mxu0 0.0
        %2377 = vmatprep.subr.mxu0 0.0
        %2378 = vmatpush2.msra.mxu0 0.0
        %2379 = vmatprep.subr.mxu0 0.0
        %2380 = vmatpush2.msra.mxu0 0.0
        %2381 = vmatprep.subr.mxu0 0.0
        %2382 = vmatpush2.msra.mxu0 0.0
        %2383 = vmatprep.subr.mxu0 0.0
        %2384 = vmatpush2.msra.mxu0 0.0
        %2385 = vmatprep.subr.mxu0 0.0
        %2386 = vmatpush2.msra.mxu0 0.0
        %2387 = vmatprep.subr.mxu0 0.0
        %2388 = vmatpush2.msra.mxu0 0.0
        %2389 = vmatprep.subr.mxu0 0.0
        %2390 = vmatpush2.msra.mxu0 0.0
        %2391 = vmatprep.subr.mxu0 0.0
        %2392 = vmatpush2.msra.mxu0 0.0
        %2393 = vmatprep.subr.mxu0 0.0
        %2394 = vmatpush2.msra.mxu0 0.0
        %2395 = vmatprep.subr.mxu0 0.0
        %2396 = vmatpush2.msra.mxu0 0.0
        %2397 = vmatprep.subr.mxu0 0.0
        %2398 = vmatpush2.msra.mxu0 0.0
        %2399 = vmatprep.subr.mxu0 0.0
        %2400 = vmatpush2.msra.mxu0 0.0
        %2401 = vmatprep.mubr.f32.mxu0 0.0
        %2402 = vmatmul.mubr.f32.gmra.mxu0 %v2323
        %v2403 = vpop.f32.mrf.mxu0
        %v2404 = vadd.f32 %v2304, %v2403
        %v2405 = vpop.f32.mrf.mxu0
        %2406 = vmatprep.mubr.f32.mxu0 0.0
        %2407 = vmatmul.mubr.f32.gmra.mxu0 %v2326
        %v2408 = vpop.f32.mrf.mxu0
        %v2409 = vadd.f32 %v2309, %v2408
        %v2410 = vpop.f32.mrf.mxu0
        %2411 = vmatprep.mubr.f32.mxu0 0.0
        %2412 = vmatmul.mubr.f32.gmra.mxu0 %v2329
        %v2413 = vpop.f32.mrf.mxu0
        %v2414 = vadd.f32 %v2314, %v2413
        %v2415 = vpop.f32.mrf.mxu0
        %2416 = vmatprep.mubr.f32.mxu0 0.0
        %2417 = vmatmul.mubr.f32.gmra.mxu0 %v2332
        %v2418 = vpop.f32.mrf.mxu0
        %v2419 = vadd.f32 %v2319, %v2418
        %v2420 = vpop.f32.mrf.mxu0
        %2421 = vdwg.mxu0
        %v2422 = vmul.f32 %v1588, 0.35355338
        %v2423 = vmul.f32 %v1707, %v2422
        %v2424 = vmul.f32 %v1712, %v2422
        %v2425 = vmul.f32 %v1717, %v2422
        %v2426 = vmul.f32 %v1722, %v2422
        %v2428 = vsel %vm1627, %v2423, 0
        %v2431 = vsel %vm1627, %v2424, 0
        %v2434 = vsel %vm1627, %v2425, 0
        %v2437 = vsel %vm1627, %v2426, 0
        %2439 = vmatprep.subr.mxu0 0.0
        %2440 = vmatpush1.xpose.msra.mxu0 0.0
        %2441 = vmatprep.subr.mxu0 0.0
        %2442 = vmatpush1.xpose.msra.mxu0 0.0
        %2443 = vmatprep.subr.mxu0 0.0
        %2444 = vmatpush1.xpose.msra.mxu0 0.0
        %2445 = vmatprep.subr.mxu0 0.0
        %2446 = vmatpush1.xpose.msra.mxu0 0.0
        %2447 = vmatprep.subr.mxu0 0.0
        %2448 = vmatpush1.xpose.msra.mxu0 0.0
        %2449 = vmatprep.subr.mxu0 0.0
        %2450 = vmatpush1.xpose.msra.mxu0 0.0
        %2451 = vmatprep.subr.mxu0 0.0
        %2452 = vmatpush1.xpose.msra.mxu0 0.0
        %2453 = vmatprep.subr.mxu0 0.0
        %2454 = vmatpush1.xpose.msra.mxu0 0.0
        %2455 = vmatprep.subr.mxu0 0.0
        %2456 = vmatpush1.xpose.msra.mxu0 0.0
        %2457 = vmatprep.subr.mxu0 0.0
        %2458 = vmatpush1.xpose.msra.mxu0 0.0
        %2459 = vmatprep.subr.mxu0 0.0
        %2460 = vmatpush1.xpose.msra.mxu0 0.0
        %2461 = vmatprep.subr.mxu0 0.0
        %2462 = vmatpush1.xpose.msra.mxu0 0.0
        %2463 = vmatprep.subr.mxu0 0.0
        %2464 = vmatpush1.xpose.msra.mxu0 %v1934
        %2465 = vmatprep.subr.mxu0 0.0
        %2466 = vmatpush1.xpose.msra.mxu0 %v1931
        %2467 = vmatprep.subr.mxu0 0.0
        %2468 = vmatpush1.xpose.msra.mxu0 %v1928
        %2469 = vmatprep.subr.mxu0 0.0
        %2470 = vmatpush1.xpose.msra.mxu0 %v1925
        %2471 = vmatprep.subr.mxu0 0.0
        %2472 = vmatpush2.xpose.msra.mxu0 0.0
        %2473 = vmatprep.subr.mxu0 0.0
        %2474 = vmatpush2.xpose.msra.mxu0 0.0
        %2475 = vmatprep.subr.mxu0 0.0
        %2476 = vmatpush2.xpose.msra.mxu0 0.0
        %2477 = vmatprep.subr.mxu0 0.0
        %2478 = vmatpush2.xpose.msra.mxu0 0.0
        %2479 = vmatprep.subr.mxu0 0.0
        %2480 = vmatpush2.xpose.msra.mxu0 0.0
        %2481 = vmatprep.subr.mxu0 0.0
        %2482 = vmatpush2.xpose.msra.mxu0 0.0
        %2483 = vmatprep.subr.mxu0 0.0
        %2484 = vmatpush2.xpose.msra.mxu0 0.0
        %2485 = vmatprep.subr.mxu0 0.0
        %2486 = vmatpush2.xpose.msra.mxu0 0.0
        %2487 = vmatprep.subr.mxu0 0.0
        %2488 = vmatpush2.xpose.msra.mxu0 0.0
        %2489 = vmatprep.subr.mxu0 0.0
        %2490 = vmatpush2.xpose.msra.mxu0 0.0
        %2491 = vmatprep.subr.mxu0 0.0
        %2492 = vmatpush2.xpose.msra.mxu0 0.0
        %2493 = vmatprep.subr.mxu0 0.0
        %2494 = vmatpush2.xpose.msra.mxu0 0.0
        %2495 = vmatprep.subr.mxu0 0.0
        %2496 = vmatpush2.xpose.msra.mxu0 0.0
        %2497 = vmatprep.subr.mxu0 0.0
        %2498 = vmatpush2.xpose.msra.mxu0 0.0
        %2499 = vmatprep.subr.mxu0 0.0
        %2500 = vmatpush2.xpose.msra.mxu0 0.0
        %2501 = vmatprep.subr.mxu0 0.0
        %2502 = vmatpush2.xpose.msra.mxu0 0.0
        %2503 = vmatprep.mubr.f32.mxu0 0.0
        %2504 = vmatmul.mubr.f32.gmra.mxu0 %v2428
        %v2505 = vpop.f32.mrf.mxu0
        %v2506 = vadd.f32 %v1593, %v2505
        %v2507 = vpop.f32.mrf.mxu0
        %2508 = vmatprep.mubr.f32.mxu0 0.0
        %2509 = vmatmul.mubr.f32.gmra.mxu0 %v2431
        %v2510 = vpop.f32.mrf.mxu0
        %v2511 = vadd.f32 %v1594, %v2510
        %v2512 = vpop.f32.mrf.mxu0
        %2513 = vmatprep.mubr.f32.mxu0 0.0
        %2514 = vmatmul.mubr.f32.gmra.mxu0 %v2434
        %v2515 = vpop.f32.mrf.mxu0
        %v2516 = vadd.f32 %v1595, %v2515
        %v2517 = vpop.f32.mrf.mxu0
        %2518 = vmatprep.mubr.f32.mxu0 0.0
        %2519 = vmatmul.mubr.f32.gmra.mxu0 %v2437
        %v2520 = vpop.f32.mrf.mxu0
        %v2521 = vadd.f32 %v1596, %v2520
        %v2522 = vpop.f32.mrf.mxu0
        %2523 = vdwg.mxu0
        %v2524 = vsel %vm2021, %v2506, -inf
        %2525 = vmax.xlane.f32.xlu0 %v2524
        %v2526 = vpop.xlane.xlu0 %2525
        %v2527 = vsel %vm2021, %v2511, -inf
        %2528 = vmax.xlane.f32.xlu0 %v2527
        %v2529 = vpop.xlane.xlu0 %2528
        %v2530 = vsel %vm2021, %v2516, -inf
        %2531 = vmax.xlane.f32.xlu0 %v2530
        %v2532 = vpop.xlane.xlu0 %2531
        %v2533 = vsel %vm2031, %v2521, -inf
        %2534 = vmax.xlane.f32.xlu0 %v2533
        %v2535 = vpop.xlane.xlu0 %2534
        %v2536 = vsub.f32 %v2506, %v2526
        %v2537 = vsub.f32 %v2511, %v2529
        %v2538 = vsub.f32 %v2516, %v2532
        %v2539 = vsub.f32 %v2521, %v2535
        %v2540 = vmul.f32 %v2536, 1.442695
        %v2541 = vpow.pop %v2540
        %v2542 = vmul.f32 %v2537, 1.442695
        %v2543 = vpow.pop %v2542
        %v2544 = vmul.f32 %v2538, 1.442695
        %v2545 = vpow.pop %v2544
        %v2546 = vmul.f32 %v2539, 1.442695
        %v2547 = vpow.pop %v2546
        %v2548 = vsel %vm2021, %v2541, 0.0
        %2549 = vadd.xlane.f32.xlu0 %v2548
        %v2550 = vpop.xlane.xlu0 %2549
        %v2551 = vsel %vm2021, %v2543, 0.0
        %2552 = vadd.xlane.f32.xlu0 %v2551
        %v2553 = vpop.xlane.xlu0 %2552
        %v2554 = vsel %vm2021, %v2545, 0.0
        %2555 = vadd.xlane.f32.xlu0 %v2554
        %v2556 = vpop.xlane.xlu0 %2555
        %v2557 = vsel %vm2031, %v2547, 0.0
        %2558 = vadd.xlane.f32.xlu0 %v2557
        %v2559 = vpop.xlane.xlu0 %2558
        %v2560 = vrcp.pop %v2550
        %v2561 = vmul.f32 %v2541, %v2560
        %v2562 = vrcp.pop %v2553
        %v2563 = vmul.f32 %v2543, %v2562
        %v2564 = vrcp.pop %v2556
        %v2565 = vmul.f32 %v2545, %v2564
        %v2566 = vrcp.pop %v2559
        %v2567 = vmul.f32 %v2547, %v2566
        %v2568 = vmul.f32 %v1889, %v1588
        %v2569 = vmul.f32 %v1894, %v1588
        %v2570 = vmul.f32 %v1899, %v1588
        %v2571 = vmul.f32 %v1904, %v1588
        %v2573 = vsel %vm2021, %v2561, 0
        %v2576 = vsel %vm2021, %v2563, 0
        %v2579 = vsel %vm2021, %v2565, 0
        %v2582 = vsel %vm2021, %v2567, 0
        %v2585 = vsel %vm2233, %v2571, 0
        %2587 = vmatprep.subr.mxu0 0.0
        %2588 = vmatpush1.msra.mxu0 0.0
        %2589 = vmatprep.subr.mxu0 0.0
        %2590 = vmatpush1.msra.mxu0 0.0
        %2591 = vmatprep.subr.mxu0 0.0
        %2592 = vmatpush1.msra.mxu0 0.0
        %2593 = vmatprep.subr.mxu0 0.0
        %2594 = vmatpush1.msra.mxu0 0.0
        %2595 = vmatprep.subr.mxu0 0.0
        %2596 = vmatpush1.msra.mxu0 0.0
        %2597 = vmatprep.subr.mxu0 0.0
        %2598 = vmatpush1.msra.mxu0 0.0
        %2599 = vmatprep.subr.mxu0 0.0
        %2600 = vmatpush1.msra.mxu0 0.0
        %2601 = vmatprep.subr.mxu0 0.0
        %2602 = vmatpush1.msra.mxu0 0.0
        %2603 = vmatprep.subr.mxu0 0.0
        %2604 = vmatpush1.msra.mxu0 0.0
        %2605 = vmatprep.subr.mxu0 0.0
        %2606 = vmatpush1.msra.mxu0 0.0
        %2607 = vmatprep.subr.mxu0 0.0
        %2608 = vmatpush1.msra.mxu0 0.0
        %2609 = vmatprep.subr.mxu0 0.0
        %2610 = vmatpush1.msra.mxu0 0.0
        %2611 = vmatprep.subr.mxu0 0.0
        %2612 = vmatpush1.msra.mxu0 %v2585
        %2613 = vmatprep.subr.mxu0 0.0
        %2614 = vmatpush1.msra.mxu0 %v2570
        %2615 = vmatprep.subr.mxu0 0.0
        %2616 = vmatpush1.msra.mxu0 %v2569
        %2617 = vmatprep.subr.mxu0 0.0
        %2618 = vmatpush1.msra.mxu0 %v2568
        %2619 = vmatprep.subr.mxu0 0.0
        %2620 = vmatpush2.msra.mxu0 0.0
        %2621 = vmatprep.subr.mxu0 0.0
        %2622 = vmatpush2.msra.mxu0 0.0
        %2623 = vmatprep.subr.mxu0 0.0
        %2624 = vmatpush2.msra.mxu0 0.0
        %2625 = vmatprep.subr.mxu0 0.0
        %2626 = vmatpush2.msra.mxu0 0.0
        %2627 = vmatprep.subr.mxu0 0.0
        %2628 = vmatpush2.msra.mxu0 0.0
        %2629 = vmatprep.subr.mxu0 0.0
        %2630 = vmatpush2.msra.mxu0 0.0
        %2631 = vmatprep.subr.mxu0 0.0
        %2632 = vmatpush2.msra.mxu0 0.0
        %2633 = vmatprep.subr.mxu0 0.0
        %2634 = vmatpush2.msra.mxu0 0.0
        %2635 = vmatprep.subr.mxu0 0.0
        %2636 = vmatpush2.msra.mxu0 0.0
        %2637 = vmatprep.subr.mxu0 0.0
        %2638 = vmatpush2.msra.mxu0 0.0
        %2639 = vmatprep.subr.mxu0 0.0
        %2640 = vmatpush2.msra.mxu0 0.0
        %2641 = vmatprep.subr.mxu0 0.0
        %2642 = vmatpush2.msra.mxu0 0.0
        %2643 = vmatprep.subr.mxu0 0.0
        %2644 = vmatpush2.msra.mxu0 0.0
        %2645 = vmatprep.subr.mxu0 0.0
        %2646 = vmatpush2.msra.mxu0 0.0
        %2647 = vmatprep.subr.mxu0 0.0
        %2648 = vmatpush2.msra.mxu0 0.0
        %2649 = vmatprep.subr.mxu0 0.0
        %2650 = vmatpush2.msra.mxu0 0.0
        %2651 = vmatprep.mubr.f32.mxu0 0.0
        %2652 = vmatmul.mubr.f32.gmra.mxu0 %v2573
        %v2653 = vpop.f32.mrf.mxu0
        %v2654 = vadd.f32 0.0, %v2653
        %v2655 = vpop.f32.mrf.mxu0
        %2656 = vmatprep.mubr.f32.mxu0 0.0
        %2657 = vmatmul.mubr.f32.gmra.mxu0 %v2576
        %v2658 = vpop.f32.mrf.mxu0
        %v2659 = vadd.f32 0.0, %v2658
        %v2660 = vpop.f32.mrf.mxu0
        %2661 = vmatprep.mubr.f32.mxu0 0.0
        %2662 = vmatmul.mubr.f32.gmra.mxu0 %v2579
        %v2663 = vpop.f32.mrf.mxu0
        %v2664 = vadd.f32 0.0, %v2663
        %v2665 = vpop.f32.mrf.mxu0
        %2666 = vmatprep.mubr.f32.mxu0 0.0
        %2667 = vmatmul.mubr.f32.gmra.mxu0 %v2582
        %v2668 = vpop.f32.mrf.mxu0
        %v2669 = vadd.f32 0.0, %v2668
        %v2670 = vpop.f32.mrf.mxu0
        %2671 = vdwg.mxu0
        %v2672 = vadd.f32 %v2404, %v2654
        %v2673 = vadd.f32 %v2409, %v2659
        %v2674 = vadd.f32 %v2414, %v2664
        %v2675 = vadd.f32 %v2419, %v2669
        %v2676 = vmul.f32 %v1592, 0.35355338
        %v2677 = vmul.f32 %v1707, %v2676
        %v2678 = vmul.f32 %v1712, %v2676
        %v2679 = vmul.f32 %v1717, %v2676
        %v2680 = vmul.f32 %v1722, %v2676
        %v2682 = vsel %vm1627, %v2677, 0
        %v2685 = vsel %vm1627, %v2678, 0
        %v2688 = vsel %vm1627, %v2679, 0
        %v2691 = vsel %vm1627, %v2680, 0
        %2693 = vmatprep.subr.mxu0 0.0
        %2694 = vmatpush1.xpose.msra.mxu0 0.0
        %2695 = vmatprep.subr.mxu0 0.0
        %2696 = vmatpush1.xpose.msra.mxu0 0.0
        %2697 = vmatprep.subr.mxu0 0.0
        %2698 = vmatpush1.xpose.msra.mxu0 0.0
        %2699 = vmatprep.subr.mxu0 0.0
        %2700 = vmatpush1.xpose.msra.mxu0 0.0
        %2701 = vmatprep.subr.mxu0 0.0
        %2702 = vmatpush1.xpose.msra.mxu0 0.0
        %2703 = vmatprep.subr.mxu0 0.0
        %2704 = vmatpush1.xpose.msra.mxu0 0.0
        %2705 = vmatprep.subr.mxu0 0.0
        %2706 = vmatpush1.xpose.msra.mxu0 0.0
        %2707 = vmatprep.subr.mxu0 0.0
        %2708 = vmatpush1.xpose.msra.mxu0 0.0
        %2709 = vmatprep.subr.mxu0 0.0
        %2710 = vmatpush1.xpose.msra.mxu0 0.0
        %2711 = vmatprep.subr.mxu0 0.0
        %2712 = vmatpush1.xpose.msra.mxu0 0.0
        %2713 = vmatprep.subr.mxu0 0.0
        %2714 = vmatpush1.xpose.msra.mxu0 0.0
        %2715 = vmatprep.subr.mxu0 0.0
        %2716 = vmatpush1.xpose.msra.mxu0 0.0
        %2717 = vmatprep.subr.mxu0 0.0
        %2718 = vmatpush1.xpose.msra.mxu0 %v1934
        %2719 = vmatprep.subr.mxu0 0.0
        %2720 = vmatpush1.xpose.msra.mxu0 %v1931
        %2721 = vmatprep.subr.mxu0 0.0
        %2722 = vmatpush1.xpose.msra.mxu0 %v1928
        %2723 = vmatprep.subr.mxu0 0.0
        %2724 = vmatpush1.xpose.msra.mxu0 %v1925
        %2725 = vmatprep.subr.mxu0 0.0
        %2726 = vmatpush2.xpose.msra.mxu0 0.0
        %2727 = vmatprep.subr.mxu0 0.0
        %2728 = vmatpush2.xpose.msra.mxu0 0.0
        %2729 = vmatprep.subr.mxu0 0.0
        %2730 = vmatpush2.xpose.msra.mxu0 0.0
        %2731 = vmatprep.subr.mxu0 0.0
        %2732 = vmatpush2.xpose.msra.mxu0 0.0
        %2733 = vmatprep.subr.mxu0 0.0
        %2734 = vmatpush2.xpose.msra.mxu0 0.0
        %2735 = vmatprep.subr.mxu0 0.0
        %2736 = vmatpush2.xpose.msra.mxu0 0.0
        %2737 = vmatprep.subr.mxu0 0.0
        %2738 = vmatpush2.xpose.msra.mxu0 0.0
        %2739 = vmatprep.subr.mxu0 0.0
        %2740 = vmatpush2.xpose.msra.mxu0 0.0
        %2741 = vmatprep.subr.mxu0 0.0
        %2742 = vmatpush2.xpose.msra.mxu0 0.0
        %2743 = vmatprep.subr.mxu0 0.0
        %2744 = vmatpush2.xpose.msra.mxu0 0.0
        %2745 = vmatprep.subr.mxu0 0.0
        %2746 = vmatpush2.xpose.msra.mxu0 0.0
        %2747 = vmatprep.subr.mxu0 0.0
        %2748 = vmatpush2.xpose.msra.mxu0 0.0
        %2749 = vmatprep.subr.mxu0 0.0
        %2750 = vmatpush2.xpose.msra.mxu0 0.0
        %2751 = vmatprep.subr.mxu0 0.0
        %2752 = vmatpush2.xpose.msra.mxu0 0.0
        %2753 = vmatprep.subr.mxu0 0.0
        %2754 = vmatpush2.xpose.msra.mxu0 0.0
        %2755 = vmatprep.subr.mxu0 0.0
        %2756 = vmatpush2.xpose.msra.mxu0 0.0
        %2757 = vmatprep.mubr.f32.mxu0 0.0
        %2758 = vmatmul.mubr.f32.gmra.mxu0 %v2682
        %v2759 = vpop.f32.mrf.mxu0
        %v2760 = vadd.f32 %v1593, %v2759
        %v2761 = vpop.f32.mrf.mxu0
        %2762 = vmatprep.mubr.f32.mxu0 0.0
        %2763 = vmatmul.mubr.f32.gmra.mxu0 %v2685
        %v2764 = vpop.f32.mrf.mxu0
        %v2765 = vadd.f32 %v1594, %v2764
        %v2766 = vpop.f32.mrf.mxu0
        %2767 = vmatprep.mubr.f32.mxu0 0.0
        %2768 = vmatmul.mubr.f32.gmra.mxu0 %v2688
        %v2769 = vpop.f32.mrf.mxu0
        %v2770 = vadd.f32 %v1595, %v2769
        %v2771 = vpop.f32.mrf.mxu0
        %2772 = vmatprep.mubr.f32.mxu0 0.0
        %2773 = vmatmul.mubr.f32.gmra.mxu0 %v2691
        %v2774 = vpop.f32.mrf.mxu0
        %v2775 = vadd.f32 %v1596, %v2774
        %v2776 = vpop.f32.mrf.mxu0
        %2777 = vdwg.mxu0
        %v2778 = vsel %vm2021, %v2760, -inf
        %2779 = vmax.xlane.f32.xlu0 %v2778
        %v2780 = vpop.xlane.xlu0 %2779
        %v2781 = vsel %vm2021, %v2765, -inf
        %2782 = vmax.xlane.f32.xlu0 %v2781
        %v2783 = vpop.xlane.xlu0 %2782
        %v2784 = vsel %vm2021, %v2770, -inf
        %2785 = vmax.xlane.f32.xlu0 %v2784
        %v2786 = vpop.xlane.xlu0 %2785
        %v2787 = vsel %vm2031, %v2775, -inf
        %2788 = vmax.xlane.f32.xlu0 %v2787
        %v2789 = vpop.xlane.xlu0 %2788
        %v2790 = vsub.f32 %v2760, %v2780
        %v2791 = vsub.f32 %v2765, %v2783
        %v2792 = vsub.f32 %v2770, %v2786
        %v2793 = vsub.f32 %v2775, %v2789
        %v2794 = vmul.f32 %v2790, 1.442695
        %v2795 = vpow.pop %v2794
        %v2796 = vmul.f32 %v2791, 1.442695
        %v2797 = vpow.pop %v2796
        %v2798 = vmul.f32 %v2792, 1.442695
        %v2799 = vpow.pop %v2798
        %v2800 = vmul.f32 %v2793, 1.442695
        %v2801 = vpow.pop %v2800
        %v2802 = vsel %vm2021, %v2795, 0.0
        %2803 = vadd.xlane.f32.xlu0 %v2802
        %v2804 = vpop.xlane.xlu0 %2803
        %v2805 = vsel %vm2021, %v2797, 0.0
        %2806 = vadd.xlane.f32.xlu0 %v2805
        %v2807 = vpop.xlane.xlu0 %2806
        %v2808 = vsel %vm2021, %v2799, 0.0
        %2809 = vadd.xlane.f32.xlu0 %v2808
        %v2810 = vpop.xlane.xlu0 %2809
        %v2811 = vsel %vm2031, %v2801, 0.0
        %2812 = vadd.xlane.f32.xlu0 %v2811
        %v2813 = vpop.xlane.xlu0 %2812
        %v2814 = vrcp.pop %v2804
        %v2815 = vmul.f32 %v2795, %v2814
        %v2816 = vrcp.pop %v2807
        %v2817 = vmul.f32 %v2797, %v2816
        %v2818 = vrcp.pop %v2810
        %v2819 = vmul.f32 %v2799, %v2818
        %v2820 = vrcp.pop %v2813
        %v2821 = vmul.f32 %v2801, %v2820
        %v2822 = vmul.f32 %v1889, %v1592
        %v2823 = vmul.f32 %v1894, %v1592
        %v2824 = vmul.f32 %v1899, %v1592
        %v2825 = vmul.f32 %v1904, %v1592
        %v2827 = vsel %vm2021, %v2815, 0
        %v2830 = vsel %vm2021, %v2817, 0
        %v2833 = vsel %vm2021, %v2819, 0
        %v2836 = vsel %vm2021, %v2821, 0
        %v2839 = vsel %vm2233, %v2825, 0
        %2841 = vmatprep.subr.mxu0 0.0
        %2842 = vmatpush1.msra.mxu0 0.0
        %2843 = vmatprep.subr.mxu0 0.0
        %2844 = vmatpush1.msra.mxu0 0.0
        %2845 = vmatprep.subr.mxu0 0.0
        %2846 = vmatpush1.msra.mxu0 0.0
        %2847 = vmatprep.subr.mxu0 0.0
        %2848 = vmatpush1.msra.mxu0 0.0
        %2849 = vmatprep.subr.mxu0 0.0
        %2850 = vmatpush1.msra.mxu0 0.0
        %2851 = vmatprep.subr.mxu0 0.0
        %2852 = vmatpush1.msra.mxu0 0.0
        %2853 = vmatprep.subr.mxu0 0.0
        %2854 = vmatpush1.msra.mxu0 0.0
        %2855 = vmatprep.subr.mxu0 0.0
        %2856 = vmatpush1.msra.mxu0 0.0
        %2857 = vmatprep.subr.mxu0 0.0
        %2858 = vmatpush1.msra.mxu0 0.0
        %2859 = vmatprep.subr.mxu0 0.0
        %2860 = vmatpush1.msra.mxu0 0.0
        %2861 = vmatprep.subr.mxu0 0.0
        %2862 = vmatpush1.msra.mxu0 0.0
        %2863 = vmatprep.subr.mxu0 0.0
        %2864 = vmatpush1.msra.mxu0 0.0
        %2865 = vmatprep.subr.mxu0 0.0
        %2866 = vmatpush1.msra.mxu0 %v2839
        %2867 = vmatprep.subr.mxu0 0.0
        %2868 = vmatpush1.msra.mxu0 %v2824
        %2869 = vmatprep.subr.mxu0 0.0
        %2870 = vmatpush1.msra.mxu0 %v2823
        %2871 = vmatprep.subr.mxu0 0.0
        %2872 = vmatpush1.msra.mxu0 %v2822
        %2873 = vmatprep.subr.mxu0 0.0
        %2874 = vmatpush2.msra.mxu0 0.0
        %2875 = vmatprep.subr.mxu0 0.0
        %2876 = vmatpush2.msra.mxu0 0.0
        %2877 = vmatprep.subr.mxu0 0.0
        %2878 = vmatpush2.msra.mxu0 0.0
        %2879 = vmatprep.subr.mxu0 0.0
        %2880 = vmatpush2.msra.mxu0 0.0
        %2881 = vmatprep.subr.mxu0 0.0
        %2882 = vmatpush2.msra.mxu0 0.0
        %2883 = vmatprep.subr.mxu0 0.0
        %2884 = vmatpush2.msra.mxu0 0.0
        %2885 = vmatprep.subr.mxu0 0.0
        %2886 = vmatpush2.msra.mxu0 0.0
        %2887 = vmatprep.subr.mxu0 0.0
        %2888 = vmatpush2.msra.mxu0 0.0
        %2889 = vmatprep.subr.mxu0 0.0
        %2890 = vmatpush2.msra.mxu0 0.0
        %2891 = vmatprep.subr.mxu0 0.0
        %2892 = vmatpush2.msra.mxu0 0.0
        %2893 = vmatprep.subr.mxu0 0.0
        %2894 = vmatpush2.msra.mxu0 0.0
        %2895 = vmatprep.subr.mxu0 0.0
        %2896 = vmatpush2.msra.mxu0 0.0
        %2897 = vmatprep.subr.mxu0 0.0
        %2898 = vmatpush2.msra.mxu0 0.0
        %2899 = vmatprep.subr.mxu0 0.0
        %2900 = vmatpush2.msra.mxu0 0.0
        %2901 = vmatprep.subr.mxu0 0.0
        %2902 = vmatpush2.msra.mxu0 0.0
        %2903 = vmatprep.subr.mxu0 0.0
        %2904 = vmatpush2.msra.mxu0 0.0
        %2905 = vmatprep.mubr.f32.mxu0 0.0
        %2906 = vmatmul.mubr.f32.gmra.mxu0 %v2827
        %v2907 = vpop.f32.mrf.mxu0
        %v2908 = vadd.f32 0.0, %v2907
        %v2909 = vpop.f32.mrf.mxu0
        %2910 = vmatprep.mubr.f32.mxu0 0.0
        %2911 = vmatmul.mubr.f32.gmra.mxu0 %v2830
        %v2912 = vpop.f32.mrf.mxu0
        %v2913 = vadd.f32 0.0, %v2912
        %v2914 = vpop.f32.mrf.mxu0
        %2915 = vmatprep.mubr.f32.mxu0 0.0
        %2916 = vmatmul.mubr.f32.gmra.mxu0 %v2833
        %v2917 = vpop.f32.mrf.mxu0
        %v2918 = vadd.f32 0.0, %v2917
        %v2919 = vpop.f32.mrf.mxu0
        %2920 = vmatprep.mubr.f32.mxu0 0.0
        %2921 = vmatmul.mubr.f32.gmra.mxu0 %v2836
        %v2922 = vpop.f32.mrf.mxu0
        %v2923 = vadd.f32 0.0, %v2922
        %v2924 = vpop.f32.mrf.mxu0
        %2925 = vdwg.mxu0
        %v2926 = vadd.f32 %v2672, %v2908
        %v2927 = vadd.f32 %v2673, %v2913
        %v2928 = vadd.f32 %v2674, %v2918
        %v2929 = vadd.f32 %v2675, %v2923
        %v2931 = vlaneseq
        %v2932 = vshrl.u32 %v2931, 7
        %v2933 = vsub.s32 0, %v2932
        %v2934 = vrot.slane %v1620, %v2933
        %v2937 = vsel %vm1627, %v2926, 0
        %v2940 = vsel %vm1627, %v2927, 0
        %v2943 = vsel %vm1627, %v2928, 0
        %v2946 = vsel %vm1627, %v2929, 0
        %2948 = vmatprep.subr.mxu0 0.0
        %2949 = vmatpush1.msra.mxu0 0.0
        %2950 = vmatprep.subr.mxu0 0.0
        %2951 = vmatpush1.msra.mxu0 0.0
        %2952 = vmatprep.subr.mxu0 0.0
        %2953 = vmatpush1.msra.mxu0 0.0
        %2954 = vmatprep.subr.mxu0 0.0
        %2955 = vmatpush1.msra.mxu0 0.0
        %2956 = vmatprep.subr.mxu0 0.0
        %2957 = vmatpush1.msra.mxu0 0.0
        %2958 = vmatprep.subr.mxu0 0.0
        %2959 = vmatpush1.msra.mxu0 0.0
        %2960 = vmatprep.subr.mxu0 0.0
        %2961 = vmatpush1.msra.mxu0 0.0
        %2962 = vmatprep.subr.mxu0 0.0
        %2963 = vmatpush1.msra.mxu0 0.0
        %2964 = vmatprep.subr.mxu0 0.0
        %2965 = vmatpush1.msra.mxu0 0.0
        %2966 = vmatprep.subr.mxu0 0.0
        %2967 = vmatpush1.msra.mxu0 0.0
        %2968 = vmatprep.subr.mxu0 0.0
        %2969 = vmatpush1.msra.mxu0 0.0
        %2970 = vmatprep.subr.mxu0 0.0
        %2971 = vmatpush1.msra.mxu0 0.0
        %2972 = vmatprep.subr.mxu0 0.0
        %2973 = vmatpush1.msra.mxu0 %v1619
        %2974 = vmatprep.subr.mxu0 0.0
        %2975 = vmatpush1.msra.mxu0 %v1618
        %2976 = vmatprep.subr.mxu0 0.0
        %2977 = vmatpush1.msra.mxu0 %v1617
        %2978 = vmatprep.subr.mxu0 0.0
        %2979 = vmatpush1.msra.mxu0 %v1616
        %2980 = vmatprep.subr.mxu0 0.0
        %2981 = vmatpush2.msra.mxu0 0.0
        %2982 = vmatprep.subr.mxu0 0.0
        %2983 = vmatpush2.msra.mxu0 0.0
        %2984 = vmatprep.subr.mxu0 0.0
        %2985 = vmatpush2.msra.mxu0 0.0
        %2986 = vmatprep.subr.mxu0 0.0
        %2987 = vmatpush2.msra.mxu0 0.0
        %2988 = vmatprep.subr.mxu0 0.0
        %2989 = vmatpush2.msra.mxu0 0.0
        %2990 = vmatprep.subr.mxu0 0.0
        %2991 = vmatpush2.msra.mxu0 0.0
        %2992 = vmatprep.subr.mxu0 0.0
        %2993 = vmatpush2.msra.mxu0 0.0
        %2994 = vmatprep.subr.mxu0 0.0
        %2995 = vmatpush2.msra.mxu0 0.0
        %2996 = vmatprep.subr.mxu0 0.0
        %2997 = vmatpush2.msra.mxu0 0.0
        %2998 = vmatprep.subr.mxu0 0.0
        %2999 = vmatpush2.msra.mxu0 0.0
        %3000 = vmatprep.subr.mxu0 0.0
        %3001 = vmatpush2.msra.mxu0 0.0
        %3002 = vmatprep.subr.mxu0 0.0
        %3003 = vmatpush2.msra.mxu0 0.0
        %3004 = vmatprep.subr.mxu0 0.0
        %3005 = vmatpush2.msra.mxu0 0.0
        %3006 = vmatprep.subr.mxu0 0.0
        %3007 = vmatpush2.msra.mxu0 0.0
        %3008 = vmatprep.subr.mxu0 0.0
        %3009 = vmatpush2.msra.mxu0 0.0
        %3010 = vmatprep.subr.mxu0 0.0
        %3011 = vmatpush2.msra.mxu0 0.0
        %3012 = vmatprep.mubr.f32.mxu0 0.0
        %3013 = vmatmul.mubr.f32.gmra.mxu0 %v2937
        %v3014 = vpop.f32.mrf.mxu0
        %v3015 = vadd.f32 %v2934, %v3014
        %v3016 = vpop.f32.mrf.mxu0
        %3017 = vmatprep.mubr.f32.mxu0 0.0
        %3018 = vmatmul.mubr.f32.gmra.mxu0 %v2940
        %v3019 = vpop.f32.mrf.mxu0
        %v3020 = vadd.f32 %v2934, %v3019
        %v3021 = vpop.f32.mrf.mxu0
        %3022 = vmatprep.mubr.f32.mxu0 0.0
        %3023 = vmatmul.mubr.f32.gmra.mxu0 %v2943
        %v3024 = vpop.f32.mrf.mxu0
        %v3025 = vadd.f32 %v2934, %v3024
        %v3026 = vpop.f32.mrf.mxu0
        %3027 = vmatprep.mubr.f32.mxu0 0.0
        %3028 = vmatmul.mubr.f32.gmra.mxu0 %v2946
        %v3029 = vpop.f32.mrf.mxu0
        %v3030 = vadd.f32 %v2934, %v3029
        %v3031 = vpop.f32.mrf.mxu0
        %3032 = vdwg.mxu0
        %v3033 = vadd.f32 %v1597, %v3015
        %v3034 = vadd.f32 %v1598, %v3020
        %v3035 = vadd.f32 %v1599, %v3025
        %v3036 = vadd.f32 %v1600, %v3030
        %v3037 = vld [vmem:[%s1550] sm:$0x1]
        %v3038 = vld [vmem:[%s1260] sm:$0x1]
        %v3039 = vsel %vm1627, %v3033, 0.0
        %3040 = vadd.xlane.f32.xlu0 %v3039
        %v3041 = vpop.xlane.xlu0 %3040
        %v3042 = vsel %vm1627, %v3034, 0.0
        %3043 = vadd.xlane.f32.xlu0 %v3042
        %v3044 = vpop.xlane.xlu0 %3043
        %v3045 = vsel %vm1627, %v3035, 0.0
        %3046 = vadd.xlane.f32.xlu0 %v3045
        %v3047 = vpop.xlane.xlu0 %3046
        %vm3048 = vcmask 259072
        %v3049 = vsel %vm3048, %v3036, 0.0
        %3050 = vadd.xlane.f32.xlu0 %v3049
        %v3051 = vpop.xlane.xlu0 %3050
        %v3052 = vrcp.pop 32.0
        %v3053 = vmul.f32 %v3041, %v3052
        %v3054 = vmul.f32 %v3044, %v3052
        %v3055 = vmul.f32 %v3047, %v3052
        %v3056 = vmul.f32 %v3051, %v3052
        %v3057 = vsub.f32 %v3033, %v3053
        %v3058 = vsub.f32 %v3034, %v3054
        %v3059 = vsub.f32 %v3035, %v3055
        %v3060 = vsub.f32 %v3036, %v3056
        %v3061 = vmul.f32 %v3057, %v3057
        %v3062 = vmul.f32 %v3058, %v3058
        %v3063 = vmul.f32 %v3059, %v3059
        %v3064 = vmul.f32 %v3060, %v3060
        %v3065 = vsel %vm1627, %v3061, 0.0
        %3066 = vadd.xlane.f32.xlu0 %v3065
        %v3067 = vpop.xlane.xlu0 %3066
        %v3068 = vsel %vm1627, %v3062, 0.0
        %3069 = vadd.xlane.f32.xlu0 %v3068
        %v3070 = vpop.xlane.xlu0 %3069
        %v3071 = vsel %vm1627, %v3063, 0.0
        %3072 = vadd.xlane.f32.xlu0 %v3071
        %v3073 = vpop.xlane.xlu0 %3072
        %v3074 = vsel %vm3048, %v3064, 0.0
        %3075 = vadd.xlane.f32.xlu0 %v3074
        %v3076 = vpop.xlane.xlu0 %3075
        %v3077 = vmul.f32 %v3067, %v3052
        %v3078 = vmul.f32 %v3070, %v3052
        %v3079 = vmul.f32 %v3073, %v3052
        %v3080 = vmul.f32 %v3076, %v3052
        %v3081 = vadd.f32 %v3077, 1e-05
        %v3082 = vadd.f32 %v3078, 1e-05
        %v3083 = vadd.f32 %v3079, 1e-05
        %v3084 = vadd.f32 %v3080, 1e-05
        %v3085 = vrsqrt.pop %v3081
        %v3086 = vrsqrt.pop %v3082
        %v3087 = vrsqrt.pop %v3083
        %v3088 = vrsqrt.pop %v3084
        %v3089 = vmul.f32 %v3057, %v3085
        %v3090 = vmul.f32 %v3058, %v3086
        %v3091 = vmul.f32 %v3059, %v3087
        %v3092 = vmul.f32 %v3060, %v3088
        %v3094 = vlaneseq
        %v3095 = vshrl.u32 %v3094, 7
        %v3096 = vsub.s32 0, %v3095
        %v3097 = vrot.slane %v3037, %v3096
        %v3099 = vmul.f32 %v3089, %v3097
        %v3100 = vmul.f32 %v3090, %v3097
        %v3101 = vmul.f32 %v3091, %v3097
        %v3102 = vmul.f32 %v3092, %v3097
        %v3104 = vlaneseq
        %v3105 = vshrl.u32 %v3104, 7
        %v3106 = vsub.s32 0, %v3105
        %v3107 = vrot.slane %v3038, %v3106
        %v3109 = vadd.f32 %v3099, %v3107
        %v3110 = vadd.f32 %v3100, %v3107
        %v3111 = vadd.f32 %v3101, %v3107
        %v3112 = vadd.f32 %v3102, %v3107
        %v3113 = vld [vmem:[%s3] sm:$0xff]
        %v3114 = vld [vmem:[%s3 + $0x8] sm:$0xff]
        %v3115 = vld [vmem:[%s3 + $0x10] sm:$0xff]
        %v3116 = vld [vmem:[%s3 + $0x18] sm:$0x3f]
        %v3117 = vld [vmem:[%s1520] sm:$0xff]
        %v3118 = vld [vmem:[%s1520 + $0x8] sm:$0xff]
        %v3119 = vld [vmem:[%s1520 + $0x10] sm:$0xff]
        %v3120 = vld [vmem:[%s1520 + $0x18] sm:$0xff]
        %v3121 = vld [vmem:[%s1523] sm:$0x1]
        %v3122 = vld [vmem:[%s1528] sm:$0xff]
        %v3123 = vld [vmem:[%s1528 + $0x8] sm:$0xff]
        %v3124 = vld [vmem:[%s1528 + $0x10] sm:$0xff]
        %v3125 = vld [vmem:[%s1528 + $0x18] sm:$0xff]
        %v3126 = vld [vmem:[%s1531] sm:$0x1]
        %v3127 = vld [vmem:[%s1536] sm:$0xff]
        %v3128 = vld [vmem:[%s1536 + $0x8] sm:$0xff]
        %v3129 = vld [vmem:[%s1536 + $0x10] sm:$0xff]
        %v3130 = vld [vmem:[%s1536 + $0x18] sm:$0xff]
        %v3131 = vld [vmem:[%s1539] sm:$0x1]
        %v3132 = vld [vmem:[%s1544] sm:$0xff]
        %v3133 = vld [vmem:[%s1544 + $0x8] sm:$0xff]
        %v3134 = vld [vmem:[%s1544 + $0x10] sm:$0xff]
        %v3135 = vld [vmem:[%s1544 + $0x18] sm:$0xff]
        %v3136 = vld [vmem:[%s1547] sm:$0x1]
        %v3138 = vlaneseq
        %v3139 = vshrl.u32 %v3138, 7
        %v3140 = vsub.s32 0, %v3139
        %v3141 = vrot.slane %v3121, %v3140
        %v3144 = vsel %vm1627, %v3109, 0
        %v3147 = vsel %vm1627, %v3110, 0
        %v3150 = vsel %vm1627, %v3111, 0
        %v3153 = vsel %vm1627, %v3112, 0
        %3155 = vmatprep.subr.mxu0 0.0
        %3156 = vmatpush1.msra.mxu0 0.0
        %3157 = vmatprep.subr.mxu0 0.0
        %3158 = vmatpush1.msra.mxu0 0.0
        %3159 = vmatprep.subr.mxu0 0.0
        %3160 = vmatpush1.msra.mxu0 0.0
        %3161 = vmatprep.subr.mxu0 0.0
        %3162 = vmatpush1.msra.mxu0 0.0
        %3163 = vmatprep.subr.mxu0 0.0
        %3164 = vmatpush1.msra.mxu0 0.0
        %3165 = vmatprep.subr.mxu0 0.0
        %3166 = vmatpush1.msra.mxu0 0.0
        %3167 = vmatprep.subr.mxu0 0.0
        %3168 = vmatpush1.msra.mxu0 0.0
        %3169 = vmatprep.subr.mxu0 0.0
        %3170 = vmatpush1.msra.mxu0 0.0
        %3171 = vmatprep.subr.mxu0 0.0
        %3172 = vmatpush1.msra.mxu0 0.0
        %3173 = vmatprep.subr.mxu0 0.0
        %3174 = vmatpush1.msra.mxu0 0.0
        %3175 = vmatprep.subr.mxu0 0.0
        %3176 = vmatpush1.msra.mxu0 0.0
        %3177 = vmatprep.subr.mxu0 0.0
        %3178 = vmatpush1.msra.mxu0 0.0
        %3179 = vmatprep.subr.mxu0 0.0
        %3180 = vmatpush1.msra.mxu0 %v3120
        %3181 = vmatprep.subr.mxu0 0.0
        %3182 = vmatpush1.msra.mxu0 %v3119
        %3183 = vmatprep.subr.mxu0 0.0
        %3184 = vmatpush1.msra.mxu0 %v3118
        %3185 = vmatprep.subr.mxu0 0.0
        %3186 = vmatpush1.msra.mxu0 %v3117
        %3187 = vmatprep.subr.mxu0 0.0
        %3188 = vmatpush2.msra.mxu0 0.0
        %3189 = vmatprep.subr.mxu0 0.0
        %3190 = vmatpush2.msra.mxu0 0.0
        %3191 = vmatprep.subr.mxu0 0.0
        %3192 = vmatpush2.msra.mxu0 0.0
        %3193 = vmatprep.subr.mxu0 0.0
        %3194 = vmatpush2.msra.mxu0 0.0
        %3195 = vmatprep.subr.mxu0 0.0
        %3196 = vmatpush2.msra.mxu0 0.0
        %3197 = vmatprep.subr.mxu0 0.0
        %3198 = vmatpush2.msra.mxu0 0.0
        %3199 = vmatprep.subr.mxu0 0.0
        %3200 = vmatpush2.msra.mxu0 0.0
        %3201 = vmatprep.subr.mxu0 0.0
        %3202 = vmatpush2.msra.mxu0 0.0
        %3203 = vmatprep.subr.mxu0 0.0
        %3204 = vmatpush2.msra.mxu0 0.0
        %3205 = vmatprep.subr.mxu0 0.0
        %3206 = vmatpush2.msra.mxu0 0.0
        %3207 = vmatprep.subr.mxu0 0.0
        %3208 = vmatpush2.msra.mxu0 0.0
        %3209 = vmatprep.subr.mxu0 0.0
        %3210 = vmatpush2.msra.mxu0 0.0
        %3211 = vmatprep.subr.mxu0 0.0
        %3212 = vmatpush2.msra.mxu0 0.0
        %3213 = vmatprep.subr.mxu0 0.0
        %3214 = vmatpush2.msra.mxu0 0.0
        %3215 = vmatprep.subr.mxu0 0.0
        %3216 = vmatpush2.msra.mxu0 0.0
        %3217 = vmatprep.subr.mxu0 0.0
        %3218 = vmatpush2.msra.mxu0 0.0
        %3219 = vmatprep.mubr.f32.mxu0 0.0
        %3220 = vmatmul.mubr.f32.gmra.mxu0 %v3144
        %v3221 = vpop.f32.mrf.mxu0
        %v3222 = vadd.f32 %v3141, %v3221
        %v3223 = vpop.f32.mrf.mxu0
        %3224 = vmatprep.mubr.f32.mxu0 0.0
        %3225 = vmatmul.mubr.f32.gmra.mxu0 %v3147
        %v3226 = vpop.f32.mrf.mxu0
        %v3227 = vadd.f32 %v3141, %v3226
        %v3228 = vpop.f32.mrf.mxu0
        %3229 = vmatprep.mubr.f32.mxu0 0.0
        %3230 = vmatmul.mubr.f32.gmra.mxu0 %v3150
        %v3231 = vpop.f32.mrf.mxu0
        %v3232 = vadd.f32 %v3141, %v3231
        %v3233 = vpop.f32.mrf.mxu0
        %3234 = vmatprep.mubr.f32.mxu0 0.0
        %3235 = vmatmul.mubr.f32.gmra.mxu0 %v3153
        %v3236 = vpop.f32.mrf.mxu0
        %v3237 = vadd.f32 %v3141, %v3236
        %v3238 = vpop.f32.mrf.mxu0
        %3239 = vdwg.mxu0
        %v3241 = vlaneseq
        %v3242 = vshrl.u32 %v3241, 7
        %v3243 = vsub.s32 0, %v3242
        %v3244 = vrot.slane %v3126, %v3243
        %v3247 = vsel %vm1627, %v3113, 0
        %v3250 = vsel %vm1627, %v3114, 0
        %v3253 = vsel %vm1627, %v3115, 0
        %v3256 = vsel %vm1627, %v3116, 0
        %3258 = vmatprep.subr.mxu0 0.0
        %3259 = vmatpush1.msra.mxu0 0.0
        %3260 = vmatprep.subr.mxu0 0.0
        %3261 = vmatpush1.msra.mxu0 0.0
        %3262 = vmatprep.subr.mxu0 0.0
        %3263 = vmatpush1.msra.mxu0 0.0
        %3264 = vmatprep.subr.mxu0 0.0
        %3265 = vmatpush1.msra.mxu0 0.0
        %3266 = vmatprep.subr.mxu0 0.0
        %3267 = vmatpush1.msra.mxu0 0.0
        %3268 = vmatprep.subr.mxu0 0.0
        %3269 = vmatpush1.msra.mxu0 0.0
        %3270 = vmatprep.subr.mxu0 0.0
        %3271 = vmatpush1.msra.mxu0 0.0
        %3272 = vmatprep.subr.mxu0 0.0
        %3273 = vmatpush1.msra.mxu0 0.0
        %3274 = vmatprep.subr.mxu0 0.0
        %3275 = vmatpush1.msra.mxu0 0.0
        %3276 = vmatprep.subr.mxu0 0.0
        %3277 = vmatpush1.msra.mxu0 0.0
        %3278 = vmatprep.subr.mxu0 0.0
        %3279 = vmatpush1.msra.mxu0 0.0
        %3280 = vmatprep.subr.mxu0 0.0
        %3281 = vmatpush1.msra.mxu0 0.0
        %3282 = vmatprep.subr.mxu0 0.0
        %3283 = vmatpush1.msra.mxu0 %v3125
        %3284 = vmatprep.subr.mxu0 0.0
        %3285 = vmatpush1.msra.mxu0 %v3124
        %3286 = vmatprep.subr.mxu0 0.0
        %3287 = vmatpush1.msra.mxu0 %v3123
        %3288 = vmatprep.subr.mxu0 0.0
        %3289 = vmatpush1.msra.mxu0 %v3122
        %3290 = vmatprep.subr.mxu0 0.0
        %3291 = vmatpush2.msra.mxu0 0.0
        %3292 = vmatprep.subr.mxu0 0.0
        %3293 = vmatpush2.msra.mxu0 0.0
        %3294 = vmatprep.subr.mxu0 0.0
        %3295 = vmatpush2.msra.mxu0 0.0
        %3296 = vmatprep.subr.mxu0 0.0
        %3297 = vmatpush2.msra.mxu0 0.0
        %3298 = vmatprep.subr.mxu0 0.0
        %3299 = vmatpush2.msra.mxu0 0.0
        %3300 = vmatprep.subr.mxu0 0.0
        %3301 = vmatpush2.msra.mxu0 0.0
        %3302 = vmatprep.subr.mxu0 0.0
        %3303 = vmatpush2.msra.mxu0 0.0
        %3304 = vmatprep.subr.mxu0 0.0
        %3305 = vmatpush2.msra.mxu0 0.0
        %3306 = vmatprep.subr.mxu0 0.0
        %3307 = vmatpush2.msra.mxu0 0.0
        %3308 = vmatprep.subr.mxu0 0.0
        %3309 = vmatpush2.msra.mxu0 0.0
        %3310 = vmatprep.subr.mxu0 0.0
        %3311 = vmatpush2.msra.mxu0 0.0
        %3312 = vmatprep.subr.mxu0 0.0
        %3313 = vmatpush2.msra.mxu0 0.0
        %3314 = vmatprep.subr.mxu0 0.0
        %3315 = vmatpush2.msra.mxu0 0.0
        %3316 = vmatprep.subr.mxu0 0.0
        %3317 = vmatpush2.msra.mxu0 0.0
        %3318 = vmatprep.subr.mxu0 0.0
        %3319 = vmatpush2.msra.mxu0 0.0
        %3320 = vmatprep.subr.mxu0 0.0
        %3321 = vmatpush2.msra.mxu0 0.0
        %3322 = vmatprep.mubr.f32.mxu0 0.0
        %3323 = vmatmul.mubr.f32.gmra.mxu0 %v3247
        %v3324 = vpop.f32.mrf.mxu0
        %v3325 = vadd.f32 %v3244, %v3324
        %v3326 = vpop.f32.mrf.mxu0
        %3327 = vmatprep.mubr.f32.mxu0 0.0
        %3328 = vmatmul.mubr.f32.gmra.mxu0 %v3250
        %v3329 = vpop.f32.mrf.mxu0
        %v3330 = vadd.f32 %v3244, %v3329
        %v3331 = vpop.f32.mrf.mxu0
        %3332 = vmatprep.mubr.f32.mxu0 0.0
        %3333 = vmatmul.mubr.f32.gmra.mxu0 %v3253
        %v3334 = vpop.f32.mrf.mxu0
        %v3335 = vadd.f32 %v3244, %v3334
        %v3336 = vpop.f32.mrf.mxu0
        %3337 = vmatprep.mubr.f32.mxu0 0.0
        %3338 = vmatmul.mubr.f32.gmra.mxu0 %v3256
        %v3339 = vpop.f32.mrf.mxu0
        %v3340 = vadd.f32 %v3244, %v3339
        %v3341 = vpop.f32.mrf.mxu0
        %3342 = vdwg.mxu0
        %v3344 = vlaneseq
        %v3345 = vshrl.u32 %v3344, 7
        %v3346 = vsub.s32 0, %v3345
        %v3347 = vrot.slane %v3131, %v3346
        %3349 = vmatprep.subr.mxu0 0.0
        %3350 = vmatpush1.msra.mxu0 0.0
        %3351 = vmatprep.subr.mxu0 0.0
        %3352 = vmatpush1.msra.mxu0 0.0
        %3353 = vmatprep.subr.mxu0 0.0
        %3354 = vmatpush1.msra.mxu0 0.0
        %3355 = vmatprep.subr.mxu0 0.0
        %3356 = vmatpush1.msra.mxu0 0.0
        %3357 = vmatprep.subr.mxu0 0.0
        %3358 = vmatpush1.msra.mxu0 0.0
        %3359 = vmatprep.subr.mxu0 0.0
        %3360 = vmatpush1.msra.mxu0 0.0
        %3361 = vmatprep.subr.mxu0 0.0
        %3362 = vmatpush1.msra.mxu0 0.0
        %3363 = vmatprep.subr.mxu0 0.0
        %3364 = vmatpush1.msra.mxu0 0.0
        %3365 = vmatprep.subr.mxu0 0.0
        %3366 = vmatpush1.msra.mxu0 0.0
        %3367 = vmatprep.subr.mxu0 0.0
        %3368 = vmatpush1.msra.mxu0 0.0
        %3369 = vmatprep.subr.mxu0 0.0
        %3370 = vmatpush1.msra.mxu0 0.0
        %3371 = vmatprep.subr.mxu0 0.0
        %3372 = vmatpush1.msra.mxu0 0.0
        %3373 = vmatprep.subr.mxu0 0.0
        %3374 = vmatpush1.msra.mxu0 %v3130
        %3375 = vmatprep.subr.mxu0 0.0
        %3376 = vmatpush1.msra.mxu0 %v3129
        %3377 = vmatprep.subr.mxu0 0.0
        %3378 = vmatpush1.msra.mxu0 %v3128
        %3379 = vmatprep.subr.mxu0 0.0
        %3380 = vmatpush1.msra.mxu0 %v3127
        %3381 = vmatprep.subr.mxu0 0.0
        %3382 = vmatpush2.msra.mxu0 0.0
        %3383 = vmatprep.subr.mxu0 0.0
        %3384 = vmatpush2.msra.mxu0 0.0
        %3385 = vmatprep.subr.mxu0 0.0
        %3386 = vmatpush2.msra.mxu0 0.0
        %3387 = vmatprep.subr.mxu0 0.0
        %3388 = vmatpush2.msra.mxu0 0.0
        %3389 = vmatprep.subr.mxu0 0.0
        %3390 = vmatpush2.msra.mxu0 0.0
        %3391 = vmatprep.subr.mxu0 0.0
        %3392 = vmatpush2.msra.mxu0 0.0
        %3393 = vmatprep.subr.mxu0 0.0
        %3394 = vmatpush2.msra.mxu0 0.0
        %3395 = vmatprep.subr.mxu0 0.0
        %3396 = vmatpush2.msra.mxu0 0.0
        %3397 = vmatprep.subr.mxu0 0.0
        %3398 = vmatpush2.msra.mxu0 0.0
        %3399 = vmatprep.subr.mxu0 0.0
        %3400 = vmatpush2.msra.mxu0 0.0
        %3401 = vmatprep.subr.mxu0 0.0
        %3402 = vmatpush2.msra.mxu0 0.0
        %3403 = vmatprep.subr.mxu0 0.0
        %3404 = vmatpush2.msra.mxu0 0.0
        %3405 = vmatprep.subr.mxu0 0.0
        %3406 = vmatpush2.msra.mxu0 0.0
        %3407 = vmatprep.subr.mxu0 0.0
        %3408 = vmatpush2.msra.mxu0 0.0
        %3409 = vmatprep.subr.mxu0 0.0
        %3410 = vmatpush2.msra.mxu0 0.0
        %3411 = vmatprep.subr.mxu0 0.0
        %3412 = vmatpush2.msra.mxu0 0.0
        %3413 = vmatprep.mubr.f32.mxu0 0.0
        %3414 = vmatmul.mubr.f32.gmra.mxu0 %v3247
        %v3415 = vpop.f32.mrf.mxu0
        %v3416 = vadd.f32 %v3347, %v3415
        %v3417 = vpop.f32.mrf.mxu0
        %3418 = vmatprep.mubr.f32.mxu0 0.0
        %3419 = vmatmul.mubr.f32.gmra.mxu0 %v3250
        %v3420 = vpop.f32.mrf.mxu0
        %v3421 = vadd.f32 %v3347, %v3420
        %v3422 = vpop.f32.mrf.mxu0
        %3423 = vmatprep.mubr.f32.mxu0 0.0
        %3424 = vmatmul.mubr.f32.gmra.mxu0 %v3253
        %v3425 = vpop.f32.mrf.mxu0
        %v3426 = vadd.f32 %v3347, %v3425
        %v3427 = vpop.f32.mrf.mxu0
        %3428 = vmatprep.mubr.f32.mxu0 0.0
        %3429 = vmatmul.mubr.f32.gmra.mxu0 %v3256
        %v3430 = vpop.f32.mrf.mxu0
        %v3431 = vadd.f32 %v3347, %v3430
        %v3432 = vpop.f32.mrf.mxu0
        %3433 = vdwg.mxu0
        %v3434 = vmul.f32 %v3222, %v1907
        %v3435 = vmul.f32 %v3227, %v1907
        %v3436 = vmul.f32 %v3232, %v1907
        %v3437 = vmul.f32 %v3237, %v1907
        %v3439 = vsel %vm1627, %v3434, 0
        %v3442 = vsel %vm1627, %v3435, 0
        %v3445 = vsel %vm1627, %v3436, 0
        %v3448 = vsel %vm1627, %v3437, 0
        %v3451 = vsel %vm1627, %v3325, 0
        %v3454 = vsel %vm1627, %v3330, 0
        %v3457 = vsel %vm1627, %v3335, 0
        %v3460 = vsel %vm1627, %v3340, 0
        %3462 = vmatprep.subr.mxu0 0.0
        %3463 = vmatpush1.xpose.msra.mxu0 0.0
        %3464 = vmatprep.subr.mxu0 0.0
        %3465 = vmatpush1.xpose.msra.mxu0 0.0
        %3466 = vmatprep.subr.mxu0 0.0
        %3467 = vmatpush1.xpose.msra.mxu0 0.0
        %3468 = vmatprep.subr.mxu0 0.0
        %3469 = vmatpush1.xpose.msra.mxu0 0.0
        %3470 = vmatprep.subr.mxu0 0.0
        %3471 = vmatpush1.xpose.msra.mxu0 0.0
        %3472 = vmatprep.subr.mxu0 0.0
        %3473 = vmatpush1.xpose.msra.mxu0 0.0
        %3474 = vmatprep.subr.mxu0 0.0
        %3475 = vmatpush1.xpose.msra.mxu0 0.0
        %3476 = vmatprep.subr.mxu0 0.0
        %3477 = vmatpush1.xpose.msra.mxu0 0.0
        %3478 = vmatprep.subr.mxu0 0.0
        %3479 = vmatpush1.xpose.msra.mxu0 0.0
        %3480 = vmatprep.subr.mxu0 0.0
        %3481 = vmatpush1.xpose.msra.mxu0 0.0
        %3482 = vmatprep.subr.mxu0 0.0
        %3483 = vmatpush1.xpose.msra.mxu0 0.0
        %3484 = vmatprep.subr.mxu0 0.0
        %3485 = vmatpush1.xpose.msra.mxu0 0.0
        %3486 = vmatprep.subr.mxu0 0.0
        %3487 = vmatpush1.xpose.msra.mxu0 %v3460
        %3488 = vmatprep.subr.mxu0 0.0
        %3489 = vmatpush1.xpose.msra.mxu0 %v3457
        %3490 = vmatprep.subr.mxu0 0.0
        %3491 = vmatpush1.xpose.msra.mxu0 %v3454
        %3492 = vmatprep.subr.mxu0 0.0
        %3493 = vmatpush1.xpose.msra.mxu0 %v3451
        %3494 = vmatprep.subr.mxu0 0.0
        %3495 = vmatpush2.xpose.msra.mxu0 0.0
        %3496 = vmatprep.subr.mxu0 0.0
        %3497 = vmatpush2.xpose.msra.mxu0 0.0
        %3498 = vmatprep.subr.mxu0 0.0
        %3499 = vmatpush2.xpose.msra.mxu0 0.0
        %3500 = vmatprep.subr.mxu0 0.0
        %3501 = vmatpush2.xpose.msra.mxu0 0.0
        %3502 = vmatprep.subr.mxu0 0.0
        %3503 = vmatpush2.xpose.msra.mxu0 0.0
        %3504 = vmatprep.subr.mxu0 0.0
        %3505 = vmatpush2.xpose.msra.mxu0 0.0
        %3506 = vmatprep.subr.mxu0 0.0
        %3507 = vmatpush2.xpose.msra.mxu0 0.0
        %3508 = vmatprep.subr.mxu0 0.0
        %3509 = vmatpush2.xpose.msra.mxu0 0.0
        %3510 = vmatprep.subr.mxu0 0.0
        %3511 = vmatpush2.xpose.msra.mxu0 0.0
        %3512 = vmatprep.subr.mxu0 0.0
        %3513 = vmatpush2.xpose.msra.mxu0 0.0
        %3514 = vmatprep.subr.mxu0 0.0
        %3515 = vmatpush2.xpose.msra.mxu0 0.0
        %3516 = vmatprep.subr.mxu0 0.0
        %3517 = vmatpush2.xpose.msra.mxu0 0.0
        %3518 = vmatprep.subr.mxu0 0.0
        %3519 = vmatpush2.xpose.msra.mxu0 0.0
        %3520 = vmatprep.subr.mxu0 0.0
        %3521 = vmatpush2.xpose.msra.mxu0 0.0
        %3522 = vmatprep.subr.mxu0 0.0
        %3523 = vmatpush2.xpose.msra.mxu0 0.0
        %3524 = vmatprep.subr.mxu0 0.0
        %3525 = vmatpush2.xpose.msra.mxu0 0.0
        %3526 = vmatprep.mubr.f32.mxu0 0.0
        %3527 = vmatmul.mubr.f32.gmra.mxu0 %v3439
        %v3528 = vpop.f32.mrf.mxu0
        %v3529 = vadd.f32 %v1593, %v3528
        %v3530 = vpop.f32.mrf.mxu0
        %3531 = vmatprep.mubr.f32.mxu0 0.0
        %3532 = vmatmul.mubr.f32.gmra.mxu0 %v3442
        %v3533 = vpop.f32.mrf.mxu0
        %v3534 = vadd.f32 %v1594, %v3533
        %v3535 = vpop.f32.mrf.mxu0
        %3536 = vmatprep.mubr.f32.mxu0 0.0
        %3537 = vmatmul.mubr.f32.gmra.mxu0 %v3445
        %v3538 = vpop.f32.mrf.mxu0
        %v3539 = vadd.f32 %v1595, %v3538
        %v3540 = vpop.f32.mrf.mxu0
        %3541 = vmatprep.mubr.f32.mxu0 0.0
        %3542 = vmatmul.mubr.f32.gmra.mxu0 %v3448
        %v3543 = vpop.f32.mrf.mxu0
        %v3544 = vadd.f32 %v1596, %v3543
        %v3545 = vpop.f32.mrf.mxu0
        %3546 = vdwg.mxu0
        %v3547 = vsel %vm2021, %v3529, -inf
        %3548 = vmax.xlane.f32.xlu0 %v3547
        %v3549 = vpop.xlane.xlu0 %3548
        %v3550 = vsel %vm2021, %v3534, -inf
        %3551 = vmax.xlane.f32.xlu0 %v3550
        %v3552 = vpop.xlane.xlu0 %3551
        %v3553 = vsel %vm2021, %v3539, -inf
        %3554 = vmax.xlane.f32.xlu0 %v3553
        %v3555 = vpop.xlane.xlu0 %3554
        %v3556 = vsel %vm2031, %v3544, -inf
        %3557 = vmax.xlane.f32.xlu0 %v3556
        %v3558 = vpop.xlane.xlu0 %3557
        %v3559 = vsub.f32 %v3529, %v3549
        %v3560 = vsub.f32 %v3534, %v3552
        %v3561 = vsub.f32 %v3539, %v3555
        %v3562 = vsub.f32 %v3544, %v3558
        %v3563 = vmul.f32 %v3559, 1.442695
        %v3564 = vpow.pop %v3563
        %v3565 = vmul.f32 %v3560, 1.442695
        %v3566 = vpow.pop %v3565
        %v3567 = vmul.f32 %v3561, 1.442695
        %v3568 = vpow.pop %v3567
        %v3569 = vmul.f32 %v3562, 1.442695
        %v3570 = vpow.pop %v3569
        %v3571 = vsel %vm2021, %v3564, 0.0
        %3572 = vadd.xlane.f32.xlu0 %v3571
        %v3573 = vpop.xlane.xlu0 %3572
        %v3574 = vsel %vm2021, %v3566, 0.0
        %3575 = vadd.xlane.f32.xlu0 %v3574
        %v3576 = vpop.xlane.xlu0 %3575
        %v3577 = vsel %vm2021, %v3568, 0.0
        %3578 = vadd.xlane.f32.xlu0 %v3577
        %v3579 = vpop.xlane.xlu0 %3578
        %v3580 = vsel %vm2031, %v3570, 0.0
        %3581 = vadd.xlane.f32.xlu0 %v3580
        %v3582 = vpop.xlane.xlu0 %3581
        %v3583 = vrcp.pop %v3573
        %v3584 = vmul.f32 %v3564, %v3583
        %v3585 = vrcp.pop %v3576
        %v3586 = vmul.f32 %v3566, %v3585
        %v3587 = vrcp.pop %v3579
        %v3588 = vmul.f32 %v3568, %v3587
        %v3589 = vrcp.pop %v3582
        %v3590 = vmul.f32 %v3570, %v3589
        %v3591 = vmul.f32 %v3416, %v1580
        %v3592 = vmul.f32 %v3421, %v1580
        %v3593 = vmul.f32 %v3426, %v1580
        %v3594 = vmul.f32 %v3431, %v1580
        %v3595 = vmul.f32 %v3222, %v2071
        %v3596 = vmul.f32 %v3227, %v2071
        %v3597 = vmul.f32 %v3232, %v2071
        %v3598 = vmul.f32 %v3237, %v2071
        %v3600 = vsel %vm1627, %v3595, 0
        %v3603 = vsel %vm1627, %v3596, 0
        %v3606 = vsel %vm1627, %v3597, 0
        %v3609 = vsel %vm1627, %v3598, 0
        %3611 = vmatprep.subr.mxu0 0.0
        %3612 = vmatpush1.xpose.msra.mxu0 0.0
        %3613 = vmatprep.subr.mxu0 0.0
        %3614 = vmatpush1.xpose.msra.mxu0 0.0
        %3615 = vmatprep.subr.mxu0 0.0
        %3616 = vmatpush1.xpose.msra.mxu0 0.0
        %3617 = vmatprep.subr.mxu0 0.0
        %3618 = vmatpush1.xpose.msra.mxu0 0.0
        %3619 = vmatprep.subr.mxu0 0.0
        %3620 = vmatpush1.xpose.msra.mxu0 0.0
        %3621 = vmatprep.subr.mxu0 0.0
        %3622 = vmatpush1.xpose.msra.mxu0 0.0
        %3623 = vmatprep.subr.mxu0 0.0
        %3624 = vmatpush1.xpose.msra.mxu0 0.0
        %3625 = vmatprep.subr.mxu0 0.0
        %3626 = vmatpush1.xpose.msra.mxu0 0.0
        %3627 = vmatprep.subr.mxu0 0.0
        %3628 = vmatpush1.xpose.msra.mxu0 0.0
        %3629 = vmatprep.subr.mxu0 0.0
        %3630 = vmatpush1.xpose.msra.mxu0 0.0
        %3631 = vmatprep.subr.mxu0 0.0
        %3632 = vmatpush1.xpose.msra.mxu0 0.0
        %3633 = vmatprep.subr.mxu0 0.0
        %3634 = vmatpush1.xpose.msra.mxu0 0.0
        %3635 = vmatprep.subr.mxu0 0.0
        %3636 = vmatpush1.xpose.msra.mxu0 %v3460
        %3637 = vmatprep.subr.mxu0 0.0
        %3638 = vmatpush1.xpose.msra.mxu0 %v3457
        %3639 = vmatprep.subr.mxu0 0.0
        %3640 = vmatpush1.xpose.msra.mxu0 %v3454
        %3641 = vmatprep.subr.mxu0 0.0
        %3642 = vmatpush1.xpose.msra.mxu0 %v3451
        %3643 = vmatprep.subr.mxu0 0.0
        %3644 = vmatpush2.xpose.msra.mxu0 0.0
        %3645 = vmatprep.subr.mxu0 0.0
        %3646 = vmatpush2.xpose.msra.mxu0 0.0
        %3647 = vmatprep.subr.mxu0 0.0
        %3648 = vmatpush2.xpose.msra.mxu0 0.0
        %3649 = vmatprep.subr.mxu0 0.0
        %3650 = vmatpush2.xpose.msra.mxu0 0.0
        %3651 = vmatprep.subr.mxu0 0.0
        %3652 = vmatpush2.xpose.msra.mxu0 0.0
        %3653 = vmatprep.subr.mxu0 0.0
        %3654 = vmatpush2.xpose.msra.mxu0 0.0
        %3655 = vmatprep.subr.mxu0 0.0
        %3656 = vmatpush2.xpose.msra.mxu0 0.0
        %3657 = vmatprep.subr.mxu0 0.0
        %3658 = vmatpush2.xpose.msra.mxu0 0.0
        %3659 = vmatprep.subr.mxu0 0.0
        %3660 = vmatpush2.xpose.msra.mxu0 0.0
        %3661 = vmatprep.subr.mxu0 0.0
        %3662 = vmatpush2.xpose.msra.mxu0 0.0
        %3663 = vmatprep.subr.mxu0 0.0
        %3664 = vmatpush2.xpose.msra.mxu0 0.0
        %3665 = vmatprep.subr.mxu0 0.0
        %3666 = vmatpush2.xpose.msra.mxu0 0.0
        %3667 = vmatprep.subr.mxu0 0.0
        %3668 = vmatpush2.xpose.msra.mxu0 0.0
        %3669 = vmatprep.subr.mxu0 0.0
        %3670 = vmatpush2.xpose.msra.mxu0 0.0
        %3671 = vmatprep.subr.mxu0 0.0
        %3672 = vmatpush2.xpose.msra.mxu0 0.0
        %3673 = vmatprep.subr.mxu0 0.0
        %3674 = vmatpush2.xpose.msra.mxu0 0.0
        %3675 = vmatprep.mubr.f32.mxu0 0.0
        %3676 = vmatmul.mubr.f32.gmra.mxu0 %v3600
        %v3677 = vpop.f32.mrf.mxu0
        %v3678 = vadd.f32 %v1593, %v3677
        %v3679 = vpop.f32.mrf.mxu0
        %3680 = vmatprep.mubr.f32.mxu0 0.0
        %3681 = vmatmul.mubr.f32.gmra.mxu0 %v3603
        %v3682 = vpop.f32.mrf.mxu0
        %v3683 = vadd.f32 %v1594, %v3682
        %v3684 = vpop.f32.mrf.mxu0
        %3685 = vmatprep.mubr.f32.mxu0 0.0
        %3686 = vmatmul.mubr.f32.gmra.mxu0 %v3606
        %v3687 = vpop.f32.mrf.mxu0
        %v3688 = vadd.f32 %v1595, %v3687
        %v3689 = vpop.f32.mrf.mxu0
        %3690 = vmatprep.mubr.f32.mxu0 0.0
        %3691 = vmatmul.mubr.f32.gmra.mxu0 %v3609
        %v3692 = vpop.f32.mrf.mxu0
        %v3693 = vadd.f32 %v1596, %v3692
        %v3694 = vpop.f32.mrf.mxu0
        %3695 = vdwg.mxu0
        %v3696 = vsel %vm2021, %v3678, -inf
        %3697 = vmax.xlane.f32.xlu0 %v3696
        %v3698 = vpop.xlane.xlu0 %3697
        %v3699 = vsel %vm2021, %v3683, -inf
        %3700 = vmax.xlane.f32.xlu0 %v3699
        %v3701 = vpop.xlane.xlu0 %3700
        %v3702 = vsel %vm2021, %v3688, -inf
        %3703 = vmax.xlane.f32.xlu0 %v3702
        %v3704 = vpop.xlane.xlu0 %3703
        %v3705 = vsel %vm2031, %v3693, -inf
        %3706 = vmax.xlane.f32.xlu0 %v3705
        %v3707 = vpop.xlane.xlu0 %3706
        %v3708 = vsub.f32 %v3678, %v3698
        %v3709 = vsub.f32 %v3683, %v3701
        %v3710 = vsub.f32 %v3688, %v3704
        %v3711 = vsub.f32 %v3693, %v3707
        %v3712 = vmul.f32 %v3708, 1.442695
        %v3713 = vpow.pop %v3712
        %v3714 = vmul.f32 %v3709, 1.442695
        %v3715 = vpow.pop %v3714
        %v3716 = vmul.f32 %v3710, 1.442695
        %v3717 = vpow.pop %v3716
        %v3718 = vmul.f32 %v3711, 1.442695
        %v3719 = vpow.pop %v3718
        %v3720 = vsel %vm2021, %v3713, 0.0
        %3721 = vadd.xlane.f32.xlu0 %v3720
        %v3722 = vpop.xlane.xlu0 %3721
        %v3723 = vsel %vm2021, %v3715, 0.0
        %3724 = vadd.xlane.f32.xlu0 %v3723
        %v3725 = vpop.xlane.xlu0 %3724
        %v3726 = vsel %vm2021, %v3717, 0.0
        %3727 = vadd.xlane.f32.xlu0 %v3726
        %v3728 = vpop.xlane.xlu0 %3727
        %v3729 = vsel %vm2031, %v3719, 0.0
        %3730 = vadd.xlane.f32.xlu0 %v3729
        %v3731 = vpop.xlane.xlu0 %3730
        %v3732 = vrcp.pop %v3722
        %v3733 = vmul.f32 %v3713, %v3732
        %v3734 = vrcp.pop %v3725
        %v3735 = vmul.f32 %v3715, %v3734
        %v3736 = vrcp.pop %v3728
        %v3737 = vmul.f32 %v3717, %v3736
        %v3738 = vrcp.pop %v3731
        %v3739 = vmul.f32 %v3719, %v3738
        %v3740 = vmul.f32 %v3416, %v1584
        %v3741 = vmul.f32 %v3421, %v1584
        %v3742 = vmul.f32 %v3426, %v1584
        %v3743 = vmul.f32 %v3431, %v1584
        %v3745 = vsel %vm2021, %v3733, 0
        %v3748 = vsel %vm2021, %v3735, 0
        %v3751 = vsel %vm2021, %v3737, 0
        %v3754 = vsel %vm2021, %v3739, 0
        %v3757 = vsel %vm2233, %v3743, 0
        %3759 = vmatprep.subr.mxu0 0.0
        %3760 = vmatpush1.msra.mxu0 0.0
        %3761 = vmatprep.subr.mxu0 0.0
        %3762 = vmatpush1.msra.mxu0 0.0
        %3763 = vmatprep.subr.mxu0 0.0
        %3764 = vmatpush1.msra.mxu0 0.0
        %3765 = vmatprep.subr.mxu0 0.0
        %3766 = vmatpush1.msra.mxu0 0.0
        %3767 = vmatprep.subr.mxu0 0.0
        %3768 = vmatpush1.msra.mxu0 0.0
        %3769 = vmatprep.subr.mxu0 0.0
        %3770 = vmatpush1.msra.mxu0 0.0
        %3771 = vmatprep.subr.mxu0 0.0
        %3772 = vmatpush1.msra.mxu0 0.0
        %3773 = vmatprep.subr.mxu0 0.0
        %3774 = vmatpush1.msra.mxu0 0.0
        %3775 = vmatprep.subr.mxu0 0.0
        %3776 = vmatpush1.msra.mxu0 0.0
        %3777 = vmatprep.subr.mxu0 0.0
        %3778 = vmatpush1.msra.mxu0 0.0
        %3779 = vmatprep.subr.mxu0 0.0
        %3780 = vmatpush1.msra.mxu0 0.0
        %3781 = vmatprep.subr.mxu0 0.0
        %3782 = vmatpush1.msra.mxu0 0.0
        %3783 = vmatprep.subr.mxu0 0.0
        %3784 = vmatpush1.msra.mxu0 %v3757
        %3785 = vmatprep.subr.mxu0 0.0
        %3786 = vmatpush1.msra.mxu0 %v3742
        %3787 = vmatprep.subr.mxu0 0.0
        %3788 = vmatpush1.msra.mxu0 %v3741
        %3789 = vmatprep.subr.mxu0 0.0
        %3790 = vmatpush1.msra.mxu0 %v3740
        %3791 = vmatprep.subr.mxu0 0.0
        %3792 = vmatpush2.msra.mxu0 0.0
        %3793 = vmatprep.subr.mxu0 0.0
        %3794 = vmatpush2.msra.mxu0 0.0
        %3795 = vmatprep.subr.mxu0 0.0
        %3796 = vmatpush2.msra.mxu0 0.0
        %3797 = vmatprep.subr.mxu0 0.0
        %3798 = vmatpush2.msra.mxu0 0.0
        %3799 = vmatprep.subr.mxu0 0.0
        %3800 = vmatpush2.msra.mxu0 0.0
        %3801 = vmatprep.subr.mxu0 0.0
        %3802 = vmatpush2.msra.mxu0 0.0
        %3803 = vmatprep.subr.mxu0 0.0
        %3804 = vmatpush2.msra.mxu0 0.0
        %3805 = vmatprep.subr.mxu0 0.0
        %3806 = vmatpush2.msra.mxu0 0.0
        %3807 = vmatprep.subr.mxu0 0.0
        %3808 = vmatpush2.msra.mxu0 0.0
        %3809 = vmatprep.subr.mxu0 0.0
        %3810 = vmatpush2.msra.mxu0 0.0
        %3811 = vmatprep.subr.mxu0 0.0
        %3812 = vmatpush2.msra.mxu0 0.0
        %3813 = vmatprep.subr.mxu0 0.0
        %3814 = vmatpush2.msra.mxu0 0.0
        %3815 = vmatprep.subr.mxu0 0.0
        %3816 = vmatpush2.msra.mxu0 0.0
        %3817 = vmatprep.subr.mxu0 0.0
        %3818 = vmatpush2.msra.mxu0 0.0
        %3819 = vmatprep.subr.mxu0 0.0
        %3820 = vmatpush2.msra.mxu0 0.0
        %3821 = vmatprep.subr.mxu0 0.0
        %3822 = vmatpush2.msra.mxu0 0.0
        %3823 = vmatprep.mubr.f32.mxu0 0.0
        %3824 = vmatmul.mubr.f32.gmra.mxu0 %v3745
        %v3825 = vpop.f32.mrf.mxu0
        %v3826 = vadd.f32 0.0, %v3825
        %v3827 = vpop.f32.mrf.mxu0
        %3828 = vmatprep.mubr.f32.mxu0 0.0
        %3829 = vmatmul.mubr.f32.gmra.mxu0 %v3748
        %v3830 = vpop.f32.mrf.mxu0
        %v3831 = vadd.f32 0.0, %v3830
        %v3832 = vpop.f32.mrf.mxu0
        %3833 = vmatprep.mubr.f32.mxu0 0.0
        %3834 = vmatmul.mubr.f32.gmra.mxu0 %v3751
        %v3835 = vpop.f32.mrf.mxu0
        %v3836 = vadd.f32 0.0, %v3835
        %v3837 = vpop.f32.mrf.mxu0
        %3838 = vmatprep.mubr.f32.mxu0 0.0
        %3839 = vmatmul.mubr.f32.gmra.mxu0 %v3754
        %v3840 = vpop.f32.mrf.mxu0
        %v3841 = vadd.f32 0.0, %v3840
        %v3842 = vpop.f32.mrf.mxu0
        %3843 = vdwg.mxu0
        %v3845 = vsel %vm2021, %v3584, 0
        %v3848 = vsel %vm2021, %v3586, 0
        %v3851 = vsel %vm2021, %v3588, 0
        %v3854 = vsel %vm2021, %v3590, 0
        %v3857 = vsel %vm2233, %v3594, 0
        %3859 = vmatprep.subr.mxu0 0.0
        %3860 = vmatpush1.msra.mxu0 0.0
        %3861 = vmatprep.subr.mxu0 0.0
        %3862 = vmatpush1.msra.mxu0 0.0
        %3863 = vmatprep.subr.mxu0 0.0
        %3864 = vmatpush1.msra.mxu0 0.0
        %3865 = vmatprep.subr.mxu0 0.0
        %3866 = vmatpush1.msra.mxu0 0.0
        %3867 = vmatprep.subr.mxu0 0.0
        %3868 = vmatpush1.msra.mxu0 0.0
        %3869 = vmatprep.subr.mxu0 0.0
        %3870 = vmatpush1.msra.mxu0 0.0
        %3871 = vmatprep.subr.mxu0 0.0
        %3872 = vmatpush1.msra.mxu0 0.0
        %3873 = vmatprep.subr.mxu0 0.0
        %3874 = vmatpush1.msra.mxu0 0.0
        %3875 = vmatprep.subr.mxu0 0.0
        %3876 = vmatpush1.msra.mxu0 0.0
        %3877 = vmatprep.subr.mxu0 0.0
        %3878 = vmatpush1.msra.mxu0 0.0
        %3879 = vmatprep.subr.mxu0 0.0
        %3880 = vmatpush1.msra.mxu0 0.0
        %3881 = vmatprep.subr.mxu0 0.0
        %3882 = vmatpush1.msra.mxu0 0.0
        %3883 = vmatprep.subr.mxu0 0.0
        %3884 = vmatpush1.msra.mxu0 %v3857
        %3885 = vmatprep.subr.mxu0 0.0
        %3886 = vmatpush1.msra.mxu0 %v3593
        %3887 = vmatprep.subr.mxu0 0.0
        %3888 = vmatpush1.msra.mxu0 %v3592
        %3889 = vmatprep.subr.mxu0 0.0
        %3890 = vmatpush1.msra.mxu0 %v3591
        %3891 = vmatprep.subr.mxu0 0.0
        %3892 = vmatpush2.msra.mxu0 0.0
        %3893 = vmatprep.subr.mxu0 0.0
        %3894 = vmatpush2.msra.mxu0 0.0
        %3895 = vmatprep.subr.mxu0 0.0
        %3896 = vmatpush2.msra.mxu0 0.0
        %3897 = vmatprep.subr.mxu0 0.0
        %3898 = vmatpush2.msra.mxu0 0.0
        %3899 = vmatprep.subr.mxu0 0.0
        %3900 = vmatpush2.msra.mxu0 0.0
        %3901 = vmatprep.subr.mxu0 0.0
        %3902 = vmatpush2.msra.mxu0 0.0
        %3903 = vmatprep.subr.mxu0 0.0
        %3904 = vmatpush2.msra.mxu0 0.0
        %3905 = vmatprep.subr.mxu0 0.0
        %3906 = vmatpush2.msra.mxu0 0.0
        %3907 = vmatprep.subr.mxu0 0.0
        %3908 = vmatpush2.msra.mxu0 0.0
        %3909 = vmatprep.subr.mxu0 0.0
        %3910 = vmatpush2.msra.mxu0 0.0
        %3911 = vmatprep.subr.mxu0 0.0
        %3912 = vmatpush2.msra.mxu0 0.0
        %3913 = vmatprep.subr.mxu0 0.0
        %3914 = vmatpush2.msra.mxu0 0.0
        %3915 = vmatprep.subr.mxu0 0.0
        %3916 = vmatpush2.msra.mxu0 0.0
        %3917 = vmatprep.subr.mxu0 0.0
        %3918 = vmatpush2.msra.mxu0 0.0
        %3919 = vmatprep.subr.mxu0 0.0
        %3920 = vmatpush2.msra.mxu0 0.0
        %3921 = vmatprep.subr.mxu0 0.0
        %3922 = vmatpush2.msra.mxu0 0.0
        %3923 = vmatprep.mubr.f32.mxu0 0.0
        %3924 = vmatmul.mubr.f32.gmra.mxu0 %v3845
        %v3925 = vpop.f32.mrf.mxu0
        %v3926 = vadd.f32 %v3826, %v3925
        %v3927 = vpop.f32.mrf.mxu0
        %3928 = vmatprep.mubr.f32.mxu0 0.0
        %3929 = vmatmul.mubr.f32.gmra.mxu0 %v3848
        %v3930 = vpop.f32.mrf.mxu0
        %v3931 = vadd.f32 %v3831, %v3930
        %v3932 = vpop.f32.mrf.mxu0
        %3933 = vmatprep.mubr.f32.mxu0 0.0
        %3934 = vmatmul.mubr.f32.gmra.mxu0 %v3851
        %v3935 = vpop.f32.mrf.mxu0
        %v3936 = vadd.f32 %v3836, %v3935
        %v3937 = vpop.f32.mrf.mxu0
        %3938 = vmatprep.mubr.f32.mxu0 0.0
        %3939 = vmatmul.mubr.f32.gmra.mxu0 %v3854
        %v3940 = vpop.f32.mrf.mxu0
        %v3941 = vadd.f32 %v3841, %v3940
        %v3942 = vpop.f32.mrf.mxu0
        %3943 = vdwg.mxu0
        %v3944 = vmul.f32 %v3222, %v2422
        %v3945 = vmul.f32 %v3227, %v2422
        %v3946 = vmul.f32 %v3232, %v2422
        %v3947 = vmul.f32 %v3237, %v2422
        %v3949 = vsel %vm1627, %v3944, 0
        %v3952 = vsel %vm1627, %v3945, 0
        %v3955 = vsel %vm1627, %v3946, 0
        %v3958 = vsel %vm1627, %v3947, 0
        %3960 = vmatprep.subr.mxu0 0.0
        %3961 = vmatpush1.xpose.msra.mxu0 0.0
        %3962 = vmatprep.subr.mxu0 0.0
        %3963 = vmatpush1.xpose.msra.mxu0 0.0
        %3964 = vmatprep.subr.mxu0 0.0
        %3965 = vmatpush1.xpose.msra.mxu0 0.0
        %3966 = vmatprep.subr.mxu0 0.0
        %3967 = vmatpush1.xpose.msra.mxu0 0.0
        %3968 = vmatprep.subr.mxu0 0.0
        %3969 = vmatpush1.xpose.msra.mxu0 0.0
        %3970 = vmatprep.subr.mxu0 0.0
        %3971 = vmatpush1.xpose.msra.mxu0 0.0
        %3972 = vmatprep.subr.mxu0 0.0
        %3973 = vmatpush1.xpose.msra.mxu0 0.0
        %3974 = vmatprep.subr.mxu0 0.0
        %3975 = vmatpush1.xpose.msra.mxu0 0.0
        %3976 = vmatprep.subr.mxu0 0.0
        %3977 = vmatpush1.xpose.msra.mxu0 0.0
        %3978 = vmatprep.subr.mxu0 0.0
        %3979 = vmatpush1.xpose.msra.mxu0 0.0
        %3980 = vmatprep.subr.mxu0 0.0
        %3981 = vmatpush1.xpose.msra.mxu0 0.0
        %3982 = vmatprep.subr.mxu0 0.0
        %3983 = vmatpush1.xpose.msra.mxu0 0.0
        %3984 = vmatprep.subr.mxu0 0.0
        %3985 = vmatpush1.xpose.msra.mxu0 %v3460
        %3986 = vmatprep.subr.mxu0 0.0
        %3987 = vmatpush1.xpose.msra.mxu0 %v3457
        %3988 = vmatprep.subr.mxu0 0.0
        %3989 = vmatpush1.xpose.msra.mxu0 %v3454
        %3990 = vmatprep.subr.mxu0 0.0
        %3991 = vmatpush1.xpose.msra.mxu0 %v3451
        %3992 = vmatprep.subr.mxu0 0.0
        %3993 = vmatpush2.xpose.msra.mxu0 0.0
        %3994 = vmatprep.subr.mxu0 0.0
        %3995 = vmatpush2.xpose.msra.mxu0 0.0
        %3996 = vmatprep.subr.mxu0 0.0
        %3997 = vmatpush2.xpose.msra.mxu0 0.0
        %3998 = vmatprep.subr.mxu0 0.0
        %3999 = vmatpush2.xpose.msra.mxu0 0.0
        %4000 = vmatprep.subr.mxu0 0.0
        %4001 = vmatpush2.xpose.msra.mxu0 0.0
        %4002 = vmatprep.subr.mxu0 0.0
        %4003 = vmatpush2.xpose.msra.mxu0 0.0
        %4004 = vmatprep.subr.mxu0 0.0
        %4005 = vmatpush2.xpose.msra.mxu0 0.0
        %4006 = vmatprep.subr.mxu0 0.0
        %4007 = vmatpush2.xpose.msra.mxu0 0.0
        %4008 = vmatprep.subr.mxu0 0.0
        %4009 = vmatpush2.xpose.msra.mxu0 0.0
        %4010 = vmatprep.subr.mxu0 0.0
        %4011 = vmatpush2.xpose.msra.mxu0 0.0
        %4012 = vmatprep.subr.mxu0 0.0
        %4013 = vmatpush2.xpose.msra.mxu0 0.0
        %4014 = vmatprep.subr.mxu0 0.0
        %4015 = vmatpush2.xpose.msra.mxu0 0.0
        %4016 = vmatprep.subr.mxu0 0.0
        %4017 = vmatpush2.xpose.msra.mxu0 0.0
        %4018 = vmatprep.subr.mxu0 0.0
        %4019 = vmatpush2.xpose.msra.mxu0 0.0
        %4020 = vmatprep.subr.mxu0 0.0
        %4021 = vmatpush2.xpose.msra.mxu0 0.0
        %4022 = vmatprep.subr.mxu0 0.0
        %4023 = vmatpush2.xpose.msra.mxu0 0.0
        %4024 = vmatprep.mubr.f32.mxu0 0.0
        %4025 = vmatmul.mubr.f32.gmra.mxu0 %v3949
        %v4026 = vpop.f32.mrf.mxu0
        %v4027 = vadd.f32 %v1593, %v4026
        %v4028 = vpop.f32.mrf.mxu0
        %4029 = vmatprep.mubr.f32.mxu0 0.0
        %4030 = vmatmul.mubr.f32.gmra.mxu0 %v3952
        %v4031 = vpop.f32.mrf.mxu0
        %v4032 = vadd.f32 %v1594, %v4031
        %v4033 = vpop.f32.mrf.mxu0
        %4034 = vmatprep.mubr.f32.mxu0 0.0
        %4035 = vmatmul.mubr.f32.gmra.mxu0 %v3955
        %v4036 = vpop.f32.mrf.mxu0
        %v4037 = vadd.f32 %v1595, %v4036
        %v4038 = vpop.f32.mrf.mxu0
        %4039 = vmatprep.mubr.f32.mxu0 0.0
        %4040 = vmatmul.mubr.f32.gmra.mxu0 %v3958
        %v4041 = vpop.f32.mrf.mxu0
        %v4042 = vadd.f32 %v1596, %v4041
        %v4043 = vpop.f32.mrf.mxu0
        %4044 = vdwg.mxu0
        %v4045 = vsel %vm2021, %v4027, -inf
        %4046 = vmax.xlane.f32.xlu0 %v4045
        %v4047 = vpop.xlane.xlu0 %4046
        %v4048 = vsel %vm2021, %v4032, -inf
        %4049 = vmax.xlane.f32.xlu0 %v4048
        %v4050 = vpop.xlane.xlu0 %4049
        %v4051 = vsel %vm2021, %v4037, -inf
        %4052 = vmax.xlane.f32.xlu0 %v4051
        %v4053 = vpop.xlane.xlu0 %4052
        %v4054 = vsel %vm2031, %v4042, -inf
        %4055 = vmax.xlane.f32.xlu0 %v4054
        %v4056 = vpop.xlane.xlu0 %4055
        %v4057 = vsub.f32 %v4027, %v4047
        %v4058 = vsub.f32 %v4032, %v4050
        %v4059 = vsub.f32 %v4037, %v4053
        %v4060 = vsub.f32 %v4042, %v4056
        %v4061 = vmul.f32 %v4057, 1.442695
        %v4062 = vpow.pop %v4061
        %v4063 = vmul.f32 %v4058, 1.442695
        %v4064 = vpow.pop %v4063
        %v4065 = vmul.f32 %v4059, 1.442695
        %v4066 = vpow.pop %v4065
        %v4067 = vmul.f32 %v4060, 1.442695
        %v4068 = vpow.pop %v4067
        %v4069 = vsel %vm2021, %v4062, 0.0
        %4070 = vadd.xlane.f32.xlu0 %v4069
        %v4071 = vpop.xlane.xlu0 %4070
        %v4072 = vsel %vm2021, %v4064, 0.0
        %4073 = vadd.xlane.f32.xlu0 %v4072
        %v4074 = vpop.xlane.xlu0 %4073
        %v4075 = vsel %vm2021, %v4066, 0.0
        %4076 = vadd.xlane.f32.xlu0 %v4075
        %v4077 = vpop.xlane.xlu0 %4076
        %v4078 = vsel %vm2031, %v4068, 0.0
        %4079 = vadd.xlane.f32.xlu0 %v4078
        %v4080 = vpop.xlane.xlu0 %4079
        %v4081 = vrcp.pop %v4071
        %v4082 = vmul.f32 %v4062, %v4081
        %v4083 = vrcp.pop %v4074
        %v4084 = vmul.f32 %v4064, %v4083
        %v4085 = vrcp.pop %v4077
        %v4086 = vmul.f32 %v4066, %v4085
        %v4087 = vrcp.pop %v4080
        %v4088 = vmul.f32 %v4068, %v4087
        %v4089 = vmul.f32 %v3416, %v1588
        %v4090 = vmul.f32 %v3421, %v1588
        %v4091 = vmul.f32 %v3426, %v1588
        %v4092 = vmul.f32 %v3431, %v1588
        %v4094 = vsel %vm2021, %v4082, 0
        %v4097 = vsel %vm2021, %v4084, 0
        %v4100 = vsel %vm2021, %v4086, 0
        %v4103 = vsel %vm2021, %v4088, 0
        %v4106 = vsel %vm2233, %v4092, 0
        %4108 = vmatprep.subr.mxu0 0.0
        %4109 = vmatpush1.msra.mxu0 0.0
        %4110 = vmatprep.subr.mxu0 0.0
        %4111 = vmatpush1.msra.mxu0 0.0
        %4112 = vmatprep.subr.mxu0 0.0
        %4113 = vmatpush1.msra.mxu0 0.0
        %4114 = vmatprep.subr.mxu0 0.0
        %4115 = vmatpush1.msra.mxu0 0.0
        %4116 = vmatprep.subr.mxu0 0.0
        %4117 = vmatpush1.msra.mxu0 0.0
        %4118 = vmatprep.subr.mxu0 0.0
        %4119 = vmatpush1.msra.mxu0 0.0
        %4120 = vmatprep.subr.mxu0 0.0
        %4121 = vmatpush1.msra.mxu0 0.0
        %4122 = vmatprep.subr.mxu0 0.0
        %4123 = vmatpush1.msra.mxu0 0.0
        %4124 = vmatprep.subr.mxu0 0.0
        %4125 = vmatpush1.msra.mxu0 0.0
        %4126 = vmatprep.subr.mxu0 0.0
        %4127 = vmatpush1.msra.mxu0 0.0
        %4128 = vmatprep.subr.mxu0 0.0
        %4129 = vmatpush1.msra.mxu0 0.0
        %4130 = vmatprep.subr.mxu0 0.0
        %4131 = vmatpush1.msra.mxu0 0.0
        %4132 = vmatprep.subr.mxu0 0.0
        %4133 = vmatpush1.msra.mxu0 %v4106
        %4134 = vmatprep.subr.mxu0 0.0
        %4135 = vmatpush1.msra.mxu0 %v4091
        %4136 = vmatprep.subr.mxu0 0.0
        %4137 = vmatpush1.msra.mxu0 %v4090
        %4138 = vmatprep.subr.mxu0 0.0
        %4139 = vmatpush1.msra.mxu0 %v4089
        %4140 = vmatprep.subr.mxu0 0.0
        %4141 = vmatpush2.msra.mxu0 0.0
        %4142 = vmatprep.subr.mxu0 0.0
        %4143 = vmatpush2.msra.mxu0 0.0
        %4144 = vmatprep.subr.mxu0 0.0
        %4145 = vmatpush2.msra.mxu0 0.0
        %4146 = vmatprep.subr.mxu0 0.0
        %4147 = vmatpush2.msra.mxu0 0.0
        %4148 = vmatprep.subr.mxu0 0.0
        %4149 = vmatpush2.msra.mxu0 0.0
        %4150 = vmatprep.subr.mxu0 0.0
        %4151 = vmatpush2.msra.mxu0 0.0
        %4152 = vmatprep.subr.mxu0 0.0
        %4153 = vmatpush2.msra.mxu0 0.0
        %4154 = vmatprep.subr.mxu0 0.0
        %4155 = vmatpush2.msra.mxu0 0.0
        %4156 = vmatprep.subr.mxu0 0.0
        %4157 = vmatpush2.msra.mxu0 0.0
        %4158 = vmatprep.subr.mxu0 0.0
        %4159 = vmatpush2.msra.mxu0 0.0
        %4160 = vmatprep.subr.mxu0 0.0
        %4161 = vmatpush2.msra.mxu0 0.0
        %4162 = vmatprep.subr.mxu0 0.0
        %4163 = vmatpush2.msra.mxu0 0.0
        %4164 = vmatprep.subr.mxu0 0.0
        %4165 = vmatpush2.msra.mxu0 0.0
        %4166 = vmatprep.subr.mxu0 0.0
        %4167 = vmatpush2.msra.mxu0 0.0
        %4168 = vmatprep.subr.mxu0 0.0
        %4169 = vmatpush2.msra.mxu0 0.0
        %4170 = vmatprep.subr.mxu0 0.0
        %4171 = vmatpush2.msra.mxu0 0.0
        %4172 = vmatprep.mubr.f32.mxu0 0.0
        %4173 = vmatmul.mubr.f32.gmra.mxu0 %v4094
        %v4174 = vpop.f32.mrf.mxu0
        %v4175 = vadd.f32 0.0, %v4174
        %v4176 = vpop.f32.mrf.mxu0
        %4177 = vmatprep.mubr.f32.mxu0 0.0
        %4178 = vmatmul.mubr.f32.gmra.mxu0 %v4097
        %v4179 = vpop.f32.mrf.mxu0
        %v4180 = vadd.f32 0.0, %v4179
        %v4181 = vpop.f32.mrf.mxu0
        %4182 = vmatprep.mubr.f32.mxu0 0.0
        %4183 = vmatmul.mubr.f32.gmra.mxu0 %v4100
        %v4184 = vpop.f32.mrf.mxu0
        %v4185 = vadd.f32 0.0, %v4184
        %v4186 = vpop.f32.mrf.mxu0
        %4187 = vmatprep.mubr.f32.mxu0 0.0
        %4188 = vmatmul.mubr.f32.gmra.mxu0 %v4103
        %v4189 = vpop.f32.mrf.mxu0
        %v4190 = vadd.f32 0.0, %v4189
        %v4191 = vpop.f32.mrf.mxu0
        %4192 = vdwg.mxu0
        %v4193 = vadd.f32 %v3926, %v4175
        %v4194 = vadd.f32 %v3931, %v4180
        %v4195 = vadd.f32 %v3936, %v4185
        %v4196 = vadd.f32 %v3941, %v4190
        %v4197 = vmul.f32 %v3222, %v2676
        %v4198 = vmul.f32 %v3227, %v2676
        %v4199 = vmul.f32 %v3232, %v2676
        %v4200 = vmul.f32 %v3237, %v2676
        %v4202 = vsel %vm1627, %v4197, 0
        %v4205 = vsel %vm1627, %v4198, 0
        %v4208 = vsel %vm1627, %v4199, 0
        %v4211 = vsel %vm1627, %v4200, 0
        %4213 = vmatprep.subr.mxu0 0.0
        %4214 = vmatpush1.xpose.msra.mxu0 0.0
        %4215 = vmatprep.subr.mxu0 0.0
        %4216 = vmatpush1.xpose.msra.mxu0 0.0
        %4217 = vmatprep.subr.mxu0 0.0
        %4218 = vmatpush1.xpose.msra.mxu0 0.0
        %4219 = vmatprep.subr.mxu0 0.0
        %4220 = vmatpush1.xpose.msra.mxu0 0.0
        %4221 = vmatprep.subr.mxu0 0.0
        %4222 = vmatpush1.xpose.msra.mxu0 0.0
        %4223 = vmatprep.subr.mxu0 0.0
        %4224 = vmatpush1.xpose.msra.mxu0 0.0
        %4225 = vmatprep.subr.mxu0 0.0
        %4226 = vmatpush1.xpose.msra.mxu0 0.0
        %4227 = vmatprep.subr.mxu0 0.0
        %4228 = vmatpush1.xpose.msra.mxu0 0.0
        %4229 = vmatprep.subr.mxu0 0.0
        %4230 = vmatpush1.xpose.msra.mxu0 0.0
        %4231 = vmatprep.subr.mxu0 0.0
        %4232 = vmatpush1.xpose.msra.mxu0 0.0
        %4233 = vmatprep.subr.mxu0 0.0
        %4234 = vmatpush1.xpose.msra.mxu0 0.0
        %4235 = vmatprep.subr.mxu0 0.0
        %4236 = vmatpush1.xpose.msra.mxu0 0.0
        %4237 = vmatprep.subr.mxu0 0.0
        %4238 = vmatpush1.xpose.msra.mxu0 %v3460
        %4239 = vmatprep.subr.mxu0 0.0
        %4240 = vmatpush1.xpose.msra.mxu0 %v3457
        %4241 = vmatprep.subr.mxu0 0.0
        %4242 = vmatpush1.xpose.msra.mxu0 %v3454
        %4243 = vmatprep.subr.mxu0 0.0
        %4244 = vmatpush1.xpose.msra.mxu0 %v3451
        %4245 = vmatprep.subr.mxu0 0.0
        %4246 = vmatpush2.xpose.msra.mxu0 0.0
        %4247 = vmatprep.subr.mxu0 0.0
        %4248 = vmatpush2.xpose.msra.mxu0 0.0
        %4249 = vmatprep.subr.mxu0 0.0
        %4250 = vmatpush2.xpose.msra.mxu0 0.0
        %4251 = vmatprep.subr.mxu0 0.0
        %4252 = vmatpush2.xpose.msra.mxu0 0.0
        %4253 = vmatprep.subr.mxu0 0.0
        %4254 = vmatpush2.xpose.msra.mxu0 0.0
        %4255 = vmatprep.subr.mxu0 0.0
        %4256 = vmatpush2.xpose.msra.mxu0 0.0
        %4257 = vmatprep.subr.mxu0 0.0
        %4258 = vmatpush2.xpose.msra.mxu0 0.0
        %4259 = vmatprep.subr.mxu0 0.0
        %4260 = vmatpush2.xpose.msra.mxu0 0.0
        %4261 = vmatprep.subr.mxu0 0.0
        %4262 = vmatpush2.xpose.msra.mxu0 0.0
        %4263 = vmatprep.subr.mxu0 0.0
        %4264 = vmatpush2.xpose.msra.mxu0 0.0
        %4265 = vmatprep.subr.mxu0 0.0
        %4266 = vmatpush2.xpose.msra.mxu0 0.0
        %4267 = vmatprep.subr.mxu0 0.0
        %4268 = vmatpush2.xpose.msra.mxu0 0.0
        %4269 = vmatprep.subr.mxu0 0.0
        %4270 = vmatpush2.xpose.msra.mxu0 0.0
        %4271 = vmatprep.subr.mxu0 0.0
        %4272 = vmatpush2.xpose.msra.mxu0 0.0
        %4273 = vmatprep.subr.mxu0 0.0
        %4274 = vmatpush2.xpose.msra.mxu0 0.0
        %4275 = vmatprep.subr.mxu0 0.0
        %4276 = vmatpush2.xpose.msra.mxu0 0.0
        %4277 = vmatprep.mubr.f32.mxu0 0.0
        %4278 = vmatmul.mubr.f32.gmra.mxu0 %v4202
        %v4279 = vpop.f32.mrf.mxu0
        %v4280 = vadd.f32 %v1593, %v4279
        %v4281 = vpop.f32.mrf.mxu0
        %4282 = vmatprep.mubr.f32.mxu0 0.0
        %4283 = vmatmul.mubr.f32.gmra.mxu0 %v4205
        %v4284 = vpop.f32.mrf.mxu0
        %v4285 = vadd.f32 %v1594, %v4284
        %v4286 = vpop.f32.mrf.mxu0
        %4287 = vmatprep.mubr.f32.mxu0 0.0
        %4288 = vmatmul.mubr.f32.gmra.mxu0 %v4208
        %v4289 = vpop.f32.mrf.mxu0
        %v4290 = vadd.f32 %v1595, %v4289
        %v4291 = vpop.f32.mrf.mxu0
        %4292 = vmatprep.mubr.f32.mxu0 0.0
        %4293 = vmatmul.mubr.f32.gmra.mxu0 %v4211
        %v4294 = vpop.f32.mrf.mxu0
        %v4295 = vadd.f32 %v1596, %v4294
        %v4296 = vpop.f32.mrf.mxu0
        %4297 = vdwg.mxu0
        %v4298 = vsel %vm2021, %v4280, -inf
        %4299 = vmax.xlane.f32.xlu0 %v4298
        %v4300 = vpop.xlane.xlu0 %4299
        %v4301 = vsel %vm2021, %v4285, -inf
        %4302 = vmax.xlane.f32.xlu0 %v4301
        %v4303 = vpop.xlane.xlu0 %4302
        %v4304 = vsel %vm2021, %v4290, -inf
        %4305 = vmax.xlane.f32.xlu0 %v4304
        %v4306 = vpop.xlane.xlu0 %4305
        %v4307 = vsel %vm2031, %v4295, -inf
        %4308 = vmax.xlane.f32.xlu0 %v4307
        %v4309 = vpop.xlane.xlu0 %4308
        %v4310 = vsub.f32 %v4280, %v4300
        %v4311 = vsub.f32 %v4285, %v4303
        %v4312 = vsub.f32 %v4290, %v4306
        %v4313 = vsub.f32 %v4295, %v4309
        %v4314 = vmul.f32 %v4310, 1.442695
        %v4315 = vpow.pop %v4314
        %v4316 = vmul.f32 %v4311, 1.442695
        %v4317 = vpow.pop %v4316
        %v4318 = vmul.f32 %v4312, 1.442695
        %v4319 = vpow.pop %v4318
        %v4320 = vmul.f32 %v4313, 1.442695
        %v4321 = vpow.pop %v4320
        %v4322 = vsel %vm2021, %v4315, 0.0
        %4323 = vadd.xlane.f32.xlu0 %v4322
        %v4324 = vpop.xlane.xlu0 %4323
        %v4325 = vsel %vm2021, %v4317, 0.0
        %4326 = vadd.xlane.f32.xlu0 %v4325
        %v4327 = vpop.xlane.xlu0 %4326
        %v4328 = vsel %vm2021, %v4319, 0.0
        %4329 = vadd.xlane.f32.xlu0 %v4328
        %v4330 = vpop.xlane.xlu0 %4329
        %v4331 = vsel %vm2031, %v4321, 0.0
        %4332 = vadd.xlane.f32.xlu0 %v4331
        %v4333 = vpop.xlane.xlu0 %4332
        %v4334 = vrcp.pop %v4324
        %v4335 = vmul.f32 %v4315, %v4334
        %v4336 = vrcp.pop %v4327
        %v4337 = vmul.f32 %v4317, %v4336
        %v4338 = vrcp.pop %v4330
        %v4339 = vmul.f32 %v4319, %v4338
        %v4340 = vrcp.pop %v4333
        %v4341 = vmul.f32 %v4321, %v4340
        %v4342 = vmul.f32 %v3416, %v1592
        %v4343 = vmul.f32 %v3421, %v1592
        %v4344 = vmul.f32 %v3426, %v1592
        %v4345 = vmul.f32 %v3431, %v1592
        %v4347 = vsel %vm2021, %v4335, 0
        %v4350 = vsel %vm2021, %v4337, 0
        %v4353 = vsel %vm2021, %v4339, 0
        %v4356 = vsel %vm2021, %v4341, 0
        %v4359 = vsel %vm2233, %v4345, 0
        %4361 = vmatprep.subr.mxu0 0.0
        %4362 = vmatpush1.msra.mxu0 0.0
        %4363 = vmatprep.subr.mxu0 0.0
        %4364 = vmatpush1.msra.mxu0 0.0
        %4365 = vmatprep.subr.mxu0 0.0
        %4366 = vmatpush1.msra.mxu0 0.0
        %4367 = vmatprep.subr.mxu0 0.0
        %4368 = vmatpush1.msra.mxu0 0.0
        %4369 = vmatprep.subr.mxu0 0.0
        %4370 = vmatpush1.msra.mxu0 0.0
        %4371 = vmatprep.subr.mxu0 0.0
        %4372 = vmatpush1.msra.mxu0 0.0
        %4373 = vmatprep.subr.mxu0 0.0
        %4374 = vmatpush1.msra.mxu0 0.0
        %4375 = vmatprep.subr.mxu0 0.0
        %4376 = vmatpush1.msra.mxu0 0.0
        %4377 = vmatprep.subr.mxu0 0.0
        %4378 = vmatpush1.msra.mxu0 0.0
        %4379 = vmatprep.subr.mxu0 0.0
        %4380 = vmatpush1.msra.mxu0 0.0
        %4381 = vmatprep.subr.mxu0 0.0
        %4382 = vmatpush1.msra.mxu0 0.0
        %4383 = vmatprep.subr.mxu0 0.0
        %4384 = vmatpush1.msra.mxu0 0.0
        %4385 = vmatprep.subr.mxu0 0.0
        %4386 = vmatpush1.msra.mxu0 %v4359
        %4387 = vmatprep.subr.mxu0 0.0
        %4388 = vmatpush1.msra.mxu0 %v4344
        %4389 = vmatprep.subr.mxu0 0.0
        %4390 = vmatpush1.msra.mxu0 %v4343
        %4391 = vmatprep.subr.mxu0 0.0
        %4392 = vmatpush1.msra.mxu0 %v4342
        %4393 = vmatprep.subr.mxu0 0.0
        %4394 = vmatpush2.msra.mxu0 0.0
        %4395 = vmatprep.subr.mxu0 0.0
        %4396 = vmatpush2.msra.mxu0 0.0
        %4397 = vmatprep.subr.mxu0 0.0
        %4398 = vmatpush2.msra.mxu0 0.0
        %4399 = vmatprep.subr.mxu0 0.0
        %4400 = vmatpush2.msra.mxu0 0.0
        %4401 = vmatprep.subr.mxu0 0.0
        %4402 = vmatpush2.msra.mxu0 0.0
        %4403 = vmatprep.subr.mxu0 0.0
        %4404 = vmatpush2.msra.mxu0 0.0
        %4405 = vmatprep.subr.mxu0 0.0
        %4406 = vmatpush2.msra.mxu0 0.0
        %4407 = vmatprep.subr.mxu0 0.0
        %4408 = vmatpush2.msra.mxu0 0.0
        %4409 = vmatprep.subr.mxu0 0.0
        %4410 = vmatpush2.msra.mxu0 0.0
        %4411 = vmatprep.subr.mxu0 0.0
        %4412 = vmatpush2.msra.mxu0 0.0
        %4413 = vmatprep.subr.mxu0 0.0
        %4414 = vmatpush2.msra.mxu0 0.0
        %4415 = vmatprep.subr.mxu0 0.0
        %4416 = vmatpush2.msra.mxu0 0.0
        %4417 = vmatprep.subr.mxu0 0.0
        %4418 = vmatpush2.msra.mxu0 0.0
        %4419 = vmatprep.subr.mxu0 0.0
        %4420 = vmatpush2.msra.mxu0 0.0
        %4421 = vmatprep.subr.mxu0 0.0
        %4422 = vmatpush2.msra.mxu0 0.0
        %4423 = vmatprep.subr.mxu0 0.0
        %4424 = vmatpush2.msra.mxu0 0.0
        %4425 = vmatprep.mubr.f32.mxu0 0.0
        %4426 = vmatmul.mubr.f32.gmra.mxu0 %v4347
        %v4427 = vpop.f32.mrf.mxu0
        %v4428 = vadd.f32 0.0, %v4427
        %v4429 = vpop.f32.mrf.mxu0
        %4430 = vmatprep.mubr.f32.mxu0 0.0
        %4431 = vmatmul.mubr.f32.gmra.mxu0 %v4350
        %v4432 = vpop.f32.mrf.mxu0
        %v4433 = vadd.f32 0.0, %v4432
        %v4434 = vpop.f32.mrf.mxu0
        %4435 = vmatprep.mubr.f32.mxu0 0.0
        %4436 = vmatmul.mubr.f32.gmra.mxu0 %v4353
        %v4437 = vpop.f32.mrf.mxu0
        %v4438 = vadd.f32 0.0, %v4437
        %v4439 = vpop.f32.mrf.mxu0
        %4440 = vmatprep.mubr.f32.mxu0 0.0
        %4441 = vmatmul.mubr.f32.gmra.mxu0 %v4356
        %v4442 = vpop.f32.mrf.mxu0
        %v4443 = vadd.f32 0.0, %v4442
        %v4444 = vpop.f32.mrf.mxu0
        %4445 = vdwg.mxu0
        %v4446 = vadd.f32 %v4193, %v4428
        %v4447 = vadd.f32 %v4194, %v4433
        %v4448 = vadd.f32 %v4195, %v4438
        %v4449 = vadd.f32 %v4196, %v4443
        %v4451 = vlaneseq
        %v4452 = vshrl.u32 %v4451, 7
        %v4453 = vsub.s32 0, %v4452
        %v4454 = vrot.slane %v3136, %v4453
        %v4457 = vsel %vm1627, %v4446, 0
        %v4460 = vsel %vm1627, %v4447, 0
        %v4463 = vsel %vm1627, %v4448, 0
        %v4466 = vsel %vm1627, %v4449, 0
        %4468 = vmatprep.subr.mxu0 0.0
        %4469 = vmatpush1.msra.mxu0 0.0
        %4470 = vmatprep.subr.mxu0 0.0
        %4471 = vmatpush1.msra.mxu0 0.0
        %4472 = vmatprep.subr.mxu0 0.0
        %4473 = vmatpush1.msra.mxu0 0.0
        %4474 = vmatprep.subr.mxu0 0.0
        %4475 = vmatpush1.msra.mxu0 0.0
        %4476 = vmatprep.subr.mxu0 0.0
        %4477 = vmatpush1.msra.mxu0 0.0
        %4478 = vmatprep.subr.mxu0 0.0
        %4479 = vmatpush1.msra.mxu0 0.0
        %4480 = vmatprep.subr.mxu0 0.0
        %4481 = vmatpush1.msra.mxu0 0.0
        %4482 = vmatprep.subr.mxu0 0.0
        %4483 = vmatpush1.msra.mxu0 0.0
        %4484 = vmatprep.subr.mxu0 0.0
        %4485 = vmatpush1.msra.mxu0 0.0
        %4486 = vmatprep.subr.mxu0 0.0
        %4487 = vmatpush1.msra.mxu0 0.0
        %4488 = vmatprep.subr.mxu0 0.0
        %4489 = vmatpush1.msra.mxu0 0.0
        %4490 = vmatprep.subr.mxu0 0.0
        %4491 = vmatpush1.msra.mxu0 0.0
        %4492 = vmatprep.subr.mxu0 0.0
        %4493 = vmatpush1.msra.mxu0 %v3135
        %4494 = vmatprep.subr.mxu0 0.0
        %4495 = vmatpush1.msra.mxu0 %v3134
        %4496 = vmatprep.subr.mxu0 0.0
        %4497 = vmatpush1.msra.mxu0 %v3133
        %4498 = vmatprep.subr.mxu0 0.0
        %4499 = vmatpush1.msra.mxu0 %v3132
        %4500 = vmatprep.subr.mxu0 0.0
        %4501 = vmatpush2.msra.mxu0 0.0
        %4502 = vmatprep.subr.mxu0 0.0
        %4503 = vmatpush2.msra.mxu0 0.0
        %4504 = vmatprep.subr.mxu0 0.0
        %4505 = vmatpush2.msra.mxu0 0.0
        %4506 = vmatprep.subr.mxu0 0.0
        %4507 = vmatpush2.msra.mxu0 0.0
        %4508 = vmatprep.subr.mxu0 0.0
        %4509 = vmatpush2.msra.mxu0 0.0
        %4510 = vmatprep.subr.mxu0 0.0
        %4511 = vmatpush2.msra.mxu0 0.0
        %4512 = vmatprep.subr.mxu0 0.0
        %4513 = vmatpush2.msra.mxu0 0.0
        %4514 = vmatprep.subr.mxu0 0.0
        %4515 = vmatpush2.msra.mxu0 0.0
        %4516 = vmatprep.subr.mxu0 0.0
        %4517 = vmatpush2.msra.mxu0 0.0
        %4518 = vmatprep.subr.mxu0 0.0
        %4519 = vmatpush2.msra.mxu0 0.0
        %4520 = vmatprep.subr.mxu0 0.0
        %4521 = vmatpush2.msra.mxu0 0.0
        %4522 = vmatprep.subr.mxu0 0.0
        %4523 = vmatpush2.msra.mxu0 0.0
        %4524 = vmatprep.subr.mxu0 0.0
        %4525 = vmatpush2.msra.mxu0 0.0
        %4526 = vmatprep.subr.mxu0 0.0
        %4527 = vmatpush2.msra.mxu0 0.0
        %4528 = vmatprep.subr.mxu0 0.0
        %4529 = vmatpush2.msra.mxu0 0.0
        %4530 = vmatprep.subr.mxu0 0.0
        %4531 = vmatpush2.msra.mxu0 0.0
        %4532 = vmatprep.mubr.f32.mxu0 0.0
        %4533 = vmatmul.mubr.f32.gmra.mxu0 %v4457
        %v4534 = vpop.f32.mrf.mxu0
        %v4535 = vadd.f32 %v4454, %v4534
        %v4536 = vpop.f32.mrf.mxu0
        %4537 = vmatprep.mubr.f32.mxu0 0.0
        %4538 = vmatmul.mubr.f32.gmra.mxu0 %v4460
        %v4539 = vpop.f32.mrf.mxu0
        %v4540 = vadd.f32 %v4454, %v4539
        %v4541 = vpop.f32.mrf.mxu0
        %4542 = vmatprep.mubr.f32.mxu0 0.0
        %4543 = vmatmul.mubr.f32.gmra.mxu0 %v4463
        %v4544 = vpop.f32.mrf.mxu0
        %v4545 = vadd.f32 %v4454, %v4544
        %v4546 = vpop.f32.mrf.mxu0
        %4547 = vmatprep.mubr.f32.mxu0 0.0
        %4548 = vmatmul.mubr.f32.gmra.mxu0 %v4466
        %v4549 = vpop.f32.mrf.mxu0
        %v4550 = vadd.f32 %v4454, %v4549
        %v4551 = vpop.f32.mrf.mxu0
        %4552 = vdwg.mxu0
        %v4553 = vadd.f32 %v3109, %v4535
        %v4554 = vadd.f32 %v3110, %v4540
        %v4555 = vadd.f32 %v3111, %v4545
        %v4556 = vadd.f32 %v3112, %v4550
        %v4557 = vld [vmem:[%s1268] sm:$0x1]
        %v4558 = vld [vmem:[%s1276] sm:$0x1]
        %v4559 = vsel %vm1627, %v4553, 0.0
        %4560 = vadd.xlane.f32.xlu0 %v4559
        %v4561 = vpop.xlane.xlu0 %4560
        %v4562 = vsel %vm1627, %v4554, 0.0
        %4563 = vadd.xlane.f32.xlu0 %v4562
        %v4564 = vpop.xlane.xlu0 %4563
        %v4565 = vsel %vm1627, %v4555, 0.0
        %4566 = vadd.xlane.f32.xlu0 %v4565
        %v4567 = vpop.xlane.xlu0 %4566
        %v4568 = vsel %vm3048, %v4556, 0.0
        %4569 = vadd.xlane.f32.xlu0 %v4568
        %v4570 = vpop.xlane.xlu0 %4569
        %v4571 = vmul.f32 %v4561, %v3052
        %v4572 = vmul.f32 %v4564, %v3052
        %v4573 = vmul.f32 %v4567, %v3052
        %v4574 = vmul.f32 %v4570, %v3052
        %v4575 = vsub.f32 %v4553, %v4571
        %v4576 = vsub.f32 %v4554, %v4572
        %v4577 = vsub.f32 %v4555, %v4573
        %v4578 = vsub.f32 %v4556, %v4574
        %v4579 = vmul.f32 %v4575, %v4575
        %v4580 = vmul.f32 %v4576, %v4576
        %v4581 = vmul.f32 %v4577, %v4577
        %v4582 = vmul.f32 %v4578, %v4578
        %v4583 = vsel %vm1627, %v4579, 0.0
        %4584 = vadd.xlane.f32.xlu0 %v4583
        %v4585 = vpop.xlane.xlu0 %4584
        %v4586 = vsel %vm1627, %v4580, 0.0
        %4587 = vadd.xlane.f32.xlu0 %v4586
        %v4588 = vpop.xlane.xlu0 %4587
        %v4589 = vsel %vm1627, %v4581, 0.0
        %4590 = vadd.xlane.f32.xlu0 %v4589
        %v4591 = vpop.xlane.xlu0 %4590
        %v4592 = vsel %vm3048, %v4582, 0.0
        %4593 = vadd.xlane.f32.xlu0 %v4592
        %v4594 = vpop.xlane.xlu0 %4593
        %v4595 = vmul.f32 %v4585, %v3052
        %v4596 = vmul.f32 %v4588, %v3052
        %v4597 = vmul.f32 %v4591, %v3052
        %v4598 = vmul.f32 %v4594, %v3052
        %v4599 = vadd.f32 %v4595, 1e-05
        %v4600 = vadd.f32 %v4596, 1e-05
        %v4601 = vadd.f32 %v4597, 1e-05
        %v4602 = vadd.f32 %v4598, 1e-05
        %v4603 = vrsqrt.pop %v4599
        %v4604 = vrsqrt.pop %v4600
        %v4605 = vrsqrt.pop %v4601
        %v4606 = vrsqrt.pop %v4602
        %v4607 = vmul.f32 %v4575, %v4603
        %v4608 = vmul.f32 %v4576, %v4604
        %v4609 = vmul.f32 %v4577, %v4605
        %v4610 = vmul.f32 %v4578, %v4606
        %v4612 = vlaneseq
        %v4613 = vshrl.u32 %v4612, 7
        %v4614 = vsub.s32 0, %v4613
        %v4615 = vrot.slane %v4557, %v4614
        %v4617 = vmul.f32 %v4607, %v4615
        %v4618 = vmul.f32 %v4608, %v4615
        %v4619 = vmul.f32 %v4609, %v4615
        %v4620 = vmul.f32 %v4610, %v4615
        %v4622 = vlaneseq
        %v4623 = vshrl.u32 %v4622, 7
        %v4624 = vsub.s32 0, %v4623
        %v4625 = vrot.slane %v4558, %v4624
        %v4627 = vadd.f32 %v4617, %v4625
        %v4628 = vadd.f32 %v4618, %v4625
        %v4629 = vadd.f32 %v4619, %v4625
        %v4630 = vadd.f32 %v4620, %v4625
        %v4631 = vld [vmem:[%s1555] sm:$0xff]
        %v4632 = vld [vmem:[%s1555 + $0x8] sm:$0xff]
        %v4633 = vld [vmem:[%s1555 + $0x10] sm:$0xff]
        %v4634 = vld [vmem:[%s1555 + $0x18] sm:$0xff]
        %v4635 = vld [vmem:[%s1300] sm:$0x1]
        %v4637 = vlaneseq
        %v4638 = vshrl.u32 %v4637, 7
        %v4639 = vsub.s32 0, %v4638
        %v4640 = vrot.slane %v4635, %v4639
        %v4643 = vsel %vm1627, %v4627, 0
        %v4646 = vsel %vm1627, %v4628, 0
        %v4649 = vsel %vm1627, %v4629, 0
        %v4652 = vsel %vm1627, %v4630, 0
        %4654 = vmatprep.subr.mxu0 0.0
        %4655 = vmatpush1.msra.mxu0 0.0
        %4656 = vmatprep.subr.mxu0 0.0
        %4657 = vmatpush1.msra.mxu0 0.0
        %4658 = vmatprep.subr.mxu0 0.0
        %4659 = vmatpush1.msra.mxu0 0.0
        %4660 = vmatprep.subr.mxu0 0.0
        %4661 = vmatpush1.msra.mxu0 0.0
        %4662 = vmatprep.subr.mxu0 0.0
        %4663 = vmatpush1.msra.mxu0 0.0
        %4664 = vmatprep.subr.mxu0 0.0
        %4665 = vmatpush1.msra.mxu0 0.0
        %4666 = vmatprep.subr.mxu0 0.0
        %4667 = vmatpush1.msra.mxu0 0.0
        %4668 = vmatprep.subr.mxu0 0.0
        %4669 = vmatpush1.msra.mxu0 0.0
        %4670 = vmatprep.subr.mxu0 0.0
        %4671 = vmatpush1.msra.mxu0 0.0
        %4672 = vmatprep.subr.mxu0 0.0
        %4673 = vmatpush1.msra.mxu0 0.0
        %4674 = vmatprep.subr.mxu0 0.0
        %4675 = vmatpush1.msra.mxu0 0.0
        %4676 = vmatprep.subr.mxu0 0.0
        %4677 = vmatpush1.msra.mxu0 0.0
        %4678 = vmatprep.subr.mxu0 0.0
        %4679 = vmatpush1.msra.mxu0 %v4634
        %4680 = vmatprep.subr.mxu0 0.0
        %4681 = vmatpush1.msra.mxu0 %v4633
        %4682 = vmatprep.subr.mxu0 0.0
        %4683 = vmatpush1.msra.mxu0 %v4632
        %4684 = vmatprep.subr.mxu0 0.0
        %4685 = vmatpush1.msra.mxu0 %v4631
        %4686 = vmatprep.subr.mxu0 0.0
        %4687 = vmatpush2.msra.mxu0 0.0
        %4688 = vmatprep.subr.mxu0 0.0
        %4689 = vmatpush2.msra.mxu0 0.0
        %4690 = vmatprep.subr.mxu0 0.0
        %4691 = vmatpush2.msra.mxu0 0.0
        %4692 = vmatprep.subr.mxu0 0.0
        %4693 = vmatpush2.msra.mxu0 0.0
        %4694 = vmatprep.subr.mxu0 0.0
        %4695 = vmatpush2.msra.mxu0 0.0
        %4696 = vmatprep.subr.mxu0 0.0
        %4697 = vmatpush2.msra.mxu0 0.0
        %4698 = vmatprep.subr.mxu0 0.0
        %4699 = vmatpush2.msra.mxu0 0.0
        %4700 = vmatprep.subr.mxu0 0.0
        %4701 = vmatpush2.msra.mxu0 0.0
        %4702 = vmatprep.subr.mxu0 0.0
        %4703 = vmatpush2.msra.mxu0 0.0
        %4704 = vmatprep.subr.mxu0 0.0
        %4705 = vmatpush2.msra.mxu0 0.0
        %4706 = vmatprep.subr.mxu0 0.0
        %4707 = vmatpush2.msra.mxu0 0.0
        %4708 = vmatprep.subr.mxu0 0.0
        %4709 = vmatpush2.msra.mxu0 0.0
        %4710 = vmatprep.subr.mxu0 0.0
        %4711 = vmatpush2.msra.mxu0 0.0
        %4712 = vmatprep.subr.mxu0 0.0
        %4713 = vmatpush2.msra.mxu0 0.0
        %4714 = vmatprep.subr.mxu0 0.0
        %4715 = vmatpush2.msra.mxu0 0.0
        %4716 = vmatprep.subr.mxu0 0.0
        %4717 = vmatpush2.msra.mxu0 0.0
        %4718 = vmatprep.mubr.f32.mxu0 0.0
        %4719 = vmatmul.mubr.f32.gmra.mxu0 %v4643
        %v4720 = vpop.f32.mrf.mxu0
        %v4721 = vadd.f32 %v4640, %v4720
        %v4722 = vpop.f32.mrf.mxu0
        %4723 = vmatprep.mubr.f32.mxu0 0.0
        %4724 = vmatmul.mubr.f32.gmra.mxu0 %v4646
        %v4725 = vpop.f32.mrf.mxu0
        %v4726 = vadd.f32 %v4640, %v4725
        %v4727 = vpop.f32.mrf.mxu0
        %4728 = vmatprep.mubr.f32.mxu0 0.0
        %4729 = vmatmul.mubr.f32.gmra.mxu0 %v4649
        %v4730 = vpop.f32.mrf.mxu0
        %v4731 = vadd.f32 %v4640, %v4730
        %v4732 = vpop.f32.mrf.mxu0
        %4733 = vmatprep.mubr.f32.mxu0 0.0
        %4734 = vmatmul.mubr.f32.gmra.mxu0 %v4652
        %v4735 = vpop.f32.mrf.mxu0
        %v4736 = vadd.f32 %v4640, %v4735
        %v4737 = vpop.f32.mrf.mxu0
        %4738 = vdwg.mxu0
        %v4739 = vmax.f32 %v4721, 0.0
        %v4740 = vmax.f32 %v4726, 0.0
        %v4741 = vmax.f32 %v4731, 0.0
        %v4742 = vmax.f32 %v4736, 0.0
        %v4743 = vld [vmem:[%s1560] sm:$0xff]
        %v4744 = vld [vmem:[%s1560 + $0x8] sm:$0xff]
        %v4745 = vld [vmem:[%s1560 + $0x10] sm:$0xff]
        %v4746 = vld [vmem:[%s1560 + $0x18] sm:$0xff]
        %v4747 = vld [vmem:[%s1560 + $0x20] sm:$0xff]
        %v4748 = vld [vmem:[%s1560 + $0x28] sm:$0xff]
        %v4749 = vld [vmem:[%s1560 + $0x30] sm:$0xff]
        %v4750 = vld [vmem:[%s1560 + $0x38] sm:$0xff]
        %v4751 = vld [vmem:[%s1308] sm:$0x1]
        %v4753 = vlaneseq
        %v4754 = vshrl.u32 %v4753, 7
        %v4755 = vsub.s32 0, %v4754
        %v4756 = vrot.slane %v4751, %v4755
        %vm4758 = vcmask 523264
        %v4760 = vsel %vm4758, %v4739, 0
        %v4763 = vsel %vm4758, %v4740, 0
        %v4766 = vsel %vm4758, %v4741, 0
        %v4769 = vsel %vm4758, %v4742, 0
        %4771 = vmatprep.subr.mxu0 0.0
        %4772 = vmatpush1.msra.mxu0 0.0
        %4773 = vmatprep.subr.mxu0 0.0
        %4774 = vmatpush1.msra.mxu0 0.0
        %4775 = vmatprep.subr.mxu0 0.0
        %4776 = vmatpush1.msra.mxu0 0.0
        %4777 = vmatprep.subr.mxu0 0.0
        %4778 = vmatpush1.msra.mxu0 0.0
        %4779 = vmatprep.subr.mxu0 0.0
        %4780 = vmatpush1.msra.mxu0 0.0
        %4781 = vmatprep.subr.mxu0 0.0
        %4782 = vmatpush1.msra.mxu0 0.0
        %4783 = vmatprep.subr.mxu0 0.0
        %4784 = vmatpush1.msra.mxu0 0.0
        %4785 = vmatprep.subr.mxu0 0.0
        %4786 = vmatpush1.msra.mxu0 0.0
        %4787 = vmatprep.subr.mxu0 0.0
        %4788 = vmatpush1.msra.mxu0 %v4750
        %4789 = vmatprep.subr.mxu0 0.0
        %4790 = vmatpush1.msra.mxu0 %v4749
        %4791 = vmatprep.subr.mxu0 0.0
        %4792 = vmatpush1.msra.mxu0 %v4748
        %4793 = vmatprep.subr.mxu0 0.0
        %4794 = vmatpush1.msra.mxu0 %v4747
        %4795 = vmatprep.subr.mxu0 0.0
        %4796 = vmatpush1.msra.mxu0 %v4746
        %4797 = vmatprep.subr.mxu0 0.0
        %4798 = vmatpush1.msra.mxu0 %v4745
        %4799 = vmatprep.subr.mxu0 0.0
        %4800 = vmatpush1.msra.mxu0 %v4744
        %4801 = vmatprep.subr.mxu0 0.0
        %4802 = vmatpush1.msra.mxu0 %v4743
        %4803 = vmatprep.subr.mxu0 0.0
        %4804 = vmatpush2.msra.mxu0 0.0
        %4805 = vmatprep.subr.mxu0 0.0
        %4806 = vmatpush2.msra.mxu0 0.0
        %4807 = vmatprep.subr.mxu0 0.0
        %4808 = vmatpush2.msra.mxu0 0.0
        %4809 = vmatprep.subr.mxu0 0.0
        %4810 = vmatpush2.msra.mxu0 0.0
        %4811 = vmatprep.subr.mxu0 0.0
        %4812 = vmatpush2.msra.mxu0 0.0
        %4813 = vmatprep.subr.mxu0 0.0
        %4814 = vmatpush2.msra.mxu0 0.0
        %4815 = vmatprep.subr.mxu0 0.0
        %4816 = vmatpush2.msra.mxu0 0.0
        %4817 = vmatprep.subr.mxu0 0.0
        %4818 = vmatpush2.msra.mxu0 0.0
        %4819 = vmatprep.subr.mxu0 0.0
        %4820 = vmatpush2.msra.mxu0 0.0
        %4821 = vmatprep.subr.mxu0 0.0
        %4822 = vmatpush2.msra.mxu0 0.0
        %4823 = vmatprep.subr.mxu0 0.0
        %4824 = vmatpush2.msra.mxu0 0.0
        %4825 = vmatprep.subr.mxu0 0.0
        %4826 = vmatpush2.msra.mxu0 0.0
        %4827 = vmatprep.subr.mxu0 0.0
        %4828 = vmatpush2.msra.mxu0 0.0
        %4829 = vmatprep.subr.mxu0 0.0
        %4830 = vmatpush2.msra.mxu0 0.0
        %4831 = vmatprep.subr.mxu0 0.0
        %4832 = vmatpush2.msra.mxu0 0.0
        %4833 = vmatprep.subr.mxu0 0.0
        %4834 = vmatpush2.msra.mxu0 0.0
        %4835 = vmatprep.mubr.f32.mxu0 0.0
        %4836 = vmatmul.mubr.f32.gmra.mxu0 %v4760
        %v4837 = vpop.f32.mrf.mxu0
        %v4838 = vadd.f32 %v4756, %v4837
        %v4839 = vpop.f32.mrf.mxu0
        %4840 = vmatprep.mubr.f32.mxu0 0.0
        %4841 = vmatmul.mubr.f32.gmra.mxu0 %v4763
        %v4842 = vpop.f32.mrf.mxu0
        %v4843 = vadd.f32 %v4756, %v4842
        %v4844 = vpop.f32.mrf.mxu0
        %4845 = vmatprep.mubr.f32.mxu0 0.0
        %4846 = vmatmul.mubr.f32.gmra.mxu0 %v4766
        %v4847 = vpop.f32.mrf.mxu0
        %v4848 = vadd.f32 %v4756, %v4847
        %v4849 = vpop.f32.mrf.mxu0
        %4850 = vmatprep.mubr.f32.mxu0 0.0
        %4851 = vmatmul.mubr.f32.gmra.mxu0 %v4769
        %v4852 = vpop.f32.mrf.mxu0
        %v4853 = vadd.f32 %v4756, %v4852
        %v4854 = vpop.f32.mrf.mxu0
        %4855 = vdwg.mxu0
        %v4856 = vadd.f32 %v4627, %v4838
        %v4857 = vadd.f32 %v4628, %v4843
        %v4858 = vadd.f32 %v4629, %v4848
        %v4859 = vadd.f32 %v4630, %v4853
        %v4860 = vld [vmem:[%s1284] sm:$0x1]
        %v4861 = vld [vmem:[%s1292] sm:$0x1]
        %v4862 = vsel %vm1627, %v4856, 0.0
        %4863 = vadd.xlane.f32.xlu0 %v4862
        %v4864 = vpop.xlane.xlu0 %4863
        %v4865 = vsel %vm1627, %v4857, 0.0
        %4866 = vadd.xlane.f32.xlu0 %v4865
        %v4867 = vpop.xlane.xlu0 %4866
        %v4868 = vsel %vm1627, %v4858, 0.0
        %4869 = vadd.xlane.f32.xlu0 %v4868
        %v4870 = vpop.xlane.xlu0 %4869
        %v4871 = vsel %vm3048, %v4859, 0.0
        %4872 = vadd.xlane.f32.xlu0 %v4871
        %v4873 = vpop.xlane.xlu0 %4872
        %v4874 = vmul.f32 %v4864, %v3052
        %v4875 = vmul.f32 %v4867, %v3052
        %v4876 = vmul.f32 %v4870, %v3052
        %v4877 = vmul.f32 %v4873, %v3052
        %v4878 = vsub.f32 %v4856, %v4874
        %v4879 = vsub.f32 %v4857, %v4875
        %v4880 = vsub.f32 %v4858, %v4876
        %v4881 = vsub.f32 %v4859, %v4877
        %v4882 = vmul.f32 %v4878, %v4878
        %v4883 = vmul.f32 %v4879, %v4879
        %v4884 = vmul.f32 %v4880, %v4880
        %v4885 = vmul.f32 %v4881, %v4881
        %v4886 = vsel %vm1627, %v4882, 0.0
        %4887 = vadd.xlane.f32.xlu0 %v4886
        %v4888 = vpop.xlane.xlu0 %4887
        %v4889 = vsel %vm1627, %v4883, 0.0
        %4890 = vadd.xlane.f32.xlu0 %v4889
        %v4891 = vpop.xlane.xlu0 %4890
        %v4892 = vsel %vm1627, %v4884, 0.0
        %4893 = vadd.xlane.f32.xlu0 %v4892
        %v4894 = vpop.xlane.xlu0 %4893
        %v4895 = vsel %vm3048, %v4885, 0.0
        %4896 = vadd.xlane.f32.xlu0 %v4895
        %v4897 = vpop.xlane.xlu0 %4896
        %v4898 = vmul.f32 %v4888, %v3052
        %v4899 = vmul.f32 %v4891, %v3052
        %v4900 = vmul.f32 %v4894, %v3052
        %v4901 = vmul.f32 %v4897, %v3052
        %v4902 = vadd.f32 %v4898, 1e-05
        %v4903 = vadd.f32 %v4899, 1e-05
        %v4904 = vadd.f32 %v4900, 1e-05
        %v4905 = vadd.f32 %v4901, 1e-05
        %v4906 = vrsqrt.pop %v4902
        %v4907 = vrsqrt.pop %v4903
        %v4908 = vrsqrt.pop %v4904
        %v4909 = vrsqrt.pop %v4905
        %v4910 = vmul.f32 %v4878, %v4906
        %v4911 = vmul.f32 %v4879, %v4907
        %v4912 = vmul.f32 %v4880, %v4908
        %v4913 = vmul.f32 %v4881, %v4909
        %v4915 = vlaneseq
        %v4916 = vshrl.u32 %v4915, 7
        %v4917 = vsub.s32 0, %v4916
        %v4918 = vrot.slane %v4860, %v4917
        %v4920 = vmul.f32 %v4910, %v4918
        %v4921 = vmul.f32 %v4911, %v4918
        %v4922 = vmul.f32 %v4912, %v4918
        %v4923 = vmul.f32 %v4913, %v4918
        %v4925 = vlaneseq
        %v4926 = vshrl.u32 %v4925, 7
        %v4927 = vsub.s32 0, %v4926
        %v4928 = vrot.slane %v4861, %v4927
        %v4930 = vadd.f32 %v4920, %v4928
        %v4931 = vadd.f32 %v4921, %v4928
        %v4932 = vadd.f32 %v4922, %v4928
        %v4933 = vadd.f32 %v4923, %v4928
        %4934 = vst.msk [vmem:[#allocation2] sm:$0xff] %vm1627, %v4930
        %4935 = vst.msk [vmem:[#allocation2 + $0x8] sm:$0xff] %vm1627, %v4931
        %4936 = vst.msk [vmem:[#allocation2 + $0x10] sm:$0xff] %vm1627, %v4932
        %4937 = vst.msk [vmem:[#allocation2 + $0x18] sm:$0x3f] %vm3048, %v4933
        %4938 = vst.msk [vmem:[%s63] sm:$0xff] %vm1627, %v4930
        %4939 = vst.msk [vmem:[%s63 + $0x8] sm:$0xff] %vm1627, %v4931
        %4940 = vst.msk [vmem:[%s63 + $0x10] sm:$0xff] %vm1627, %v4932
        %4941 = vst.msk [vmem:[%s63 + $0x18] sm:$0x3f] %vm3048, %v4933
        %p4942 = scmp.eq.s32.totalorder %s93, 5
        // Predicated region
        $region197: #{transformer_forward.4} parent=143 // pred_check
          %p4943 = pneg %p4942
        $region198: #{transformer_forward.4} parent=143 // pred_check_branch
          %4945 = sbr.rel (%p4943) target = $region200
        $region199: #{transformer_forward.4} parent=143 // pred_region
          %v4946 = vld [vmem:[#allocation19] sm:$0x1]
          %v4947 = vld [vmem:[#allocation20] sm:$0x1]
          %v4948 = vsel %vm1627, %v4930, 0.0
          %4949 = vadd.xlane.f32.xlu0 %v4948
          %v4950 = vpop.xlane.xlu0 %4949
          %v4951 = vsel %vm1627, %v4931, 0.0
          %4952 = vadd.xlane.f32.xlu0 %v4951
          %v4953 = vpop.xlane.xlu0 %4952
          %v4954 = vsel %vm1627, %v4932, 0.0
          %4955 = vadd.xlane.f32.xlu0 %v4954
          %v4956 = vpop.xlane.xlu0 %4955
          %v4957 = vsel %vm3048, %v4933, 0.0
          %4958 = vadd.xlane.f32.xlu0 %v4957
          %v4959 = vpop.xlane.xlu0 %4958
          %v4960 = vmul.f32 %v4950, %v3052
          %v4961 = vmul.f32 %v4953, %v3052
          %v4962 = vmul.f32 %v4956, %v3052
          %v4963 = vmul.f32 %v4959, %v3052
          %v4964 = vsub.f32 %v4930, %v4960
          %v4965 = vsub.f32 %v4931, %v4961
          %v4966 = vsub.f32 %v4932, %v4962
          %v4967 = vsub.f32 %v4933, %v4963
          %v4968 = vmul.f32 %v4964, %v4964
          %v4969 = vmul.f32 %v4965, %v4965
          %v4970 = vmul.f32 %v4966, %v4966
          %v4971 = vmul.f32 %v4967, %v4967
          %v4972 = vsel %vm1627, %v4968, 0.0
          %4973 = vadd.xlane.f32.xlu0 %v4972
          %v4974 = vpop.xlane.xlu0 %4973
          %v4975 = vsel %vm1627, %v4969, 0.0
          %4976 = vadd.xlane.f32.xlu0 %v4975
          %v4977 = vpop.xlane.xlu0 %4976
          %v4978 = vsel %vm1627, %v4970, 0.0
          %4979 = vadd.xlane.f32.xlu0 %v4978
          %v4980 = vpop.xlane.xlu0 %4979
          %v4981 = vsel %vm3048, %v4971, 0.0
          %4982 = vadd.xlane.f32.xlu0 %v4981
          %v4983 = vpop.xlane.xlu0 %4982
          %v4984 = vmul.f32 %v4974, %v3052
          %v4985 = vmul.f32 %v4977, %v3052
          %v4986 = vmul.f32 %v4980, %v3052
          %v4987 = vmul.f32 %v4983, %v3052
          %v4988 = vadd.f32 %v4984, 1e-05
          %v4989 = vadd.f32 %v4985, 1e-05
          %v4990 = vadd.f32 %v4986, 1e-05
          %v4991 = vadd.f32 %v4987, 1e-05
          %v4992 = vrsqrt.pop %v4988
          %v4993 = vrsqrt.pop %v4989
          %v4994 = vrsqrt.pop %v4990
          %v4995 = vrsqrt.pop %v4991
          %v4996 = vmul.f32 %v4964, %v4992
          %v4997 = vmul.f32 %v4965, %v4993
          %v4998 = vmul.f32 %v4966, %v4994
          %v4999 = vmul.f32 %v4967, %v4995
          %v5001 = vlaneseq
          %v5002 = vshrl.u32 %v5001, 7
          %v5003 = vsub.s32 0, %v5002
          %v5004 = vrot.slane %v4946, %v5003
          %v5006 = vmul.f32 %v4996, %v5004
          %v5007 = vmul.f32 %v4997, %v5004
          %v5008 = vmul.f32 %v4998, %v5004
          %v5009 = vmul.f32 %v4999, %v5004
          %v5011 = vlaneseq
          %v5012 = vshrl.u32 %v5011, 7
          %v5013 = vsub.s32 0, %v5012
          %v5014 = vrot.slane %v4947, %v5013
          %v5016 = vadd.f32 %v5006, %v5014
          %v5017 = vadd.f32 %v5007, %v5014
          %v5018 = vadd.f32 %v5008, %v5014
          %v5019 = vadd.f32 %v5009, %v5014
          %5020 = vst.msk [vmem:[%s63] sm:$0xff] %vm1627, %v5016
          %5021 = vst.msk [vmem:[%s63 + $0x8] sm:$0xff] %vm1627, %v5017
          %5022 = vst.msk [vmem:[%s63 + $0x10] sm:$0xff] %vm1627, %v5018
          %5023 = vst.msk [vmem:[%s63 + $0x18] sm:$0x3f] %vm3048, %v5019
        $region200: #{transformer_forward.4} parent=143 // pred_fallthru
          _
        // Predicated region
        $region201: #{transformer_forward.4} parent=143 // pred_check
          %p5024 = pneg %p887
        $region202: #{transformer_forward.4} parent=143 // pred_check_branch
          %5026 = sbr.rel (%p5024) target = $region204
        $region203: #{transformer_forward.4} parent=143 // pred_region
          _
        $region204: #{transformer_forward.4} parent=143 // pred_fallthru
          _
        // Predicated region
        $region205: #{transformer_forward.4} parent=143 // pred_check
          %p5027 = pneg %p887
        $region206: #{transformer_forward.4} parent=143 // pred_check_branch
          %5029 = sbr.rel (%p5027) target = $region208
        $region207: #{transformer_forward.4} parent=143 // pred_region
          _
        $region208: #{transformer_forward.4} parent=143 // pred_fallthru
          _
      $region144: #{transformer_forward.4} parent=5 // pred_fallthru
        _
      %p5030 = scmp.le.s32.totalorder 2, %s88
      // Predicated region
      $region209: #{transformer_forward.4} parent=5 // pred_check
        %p5031 = pneg %p5030
      $region210: #{transformer_forward.4} parent=5 // pred_check_branch
        %5033 = sbr.rel (%p5031) target = $region212
      $region211: #{transformer_forward.4} parent=5 // pred_region
        %s5034 = ssub.s32 %s88, 2
      $region212: #{transformer_forward.4} parent=5 // pred_fallthru
        _
    $region6: #{transformer_forward.4} parent=1 // loop_footer
      %s92 = sadd.s32 1, %s88
    $region7: #{transformer_forward.4} parent=1 // loop_footer_branch
      %87 = sbr.rel target = $region3
    $region8: #{transformer_forward.4} parent=1 // loop_exit
      _
    %5035 = vsyncpa [#allocation4], 1
    %s5036 = scalar_lea.sflag [#allocation4], 1
    %5037 = vsyncpa %s5036, 1
    %5038 = vsyncpa [#allocation6], 1
    %s5039 = scalar_lea.sflag [#allocation6], 1
    %5040 = vsyncpa %s5039, 1
    %5041 = vsyncpa [#allocation9], 1
    %s5042 = scalar_lea.sflag [#allocation9], 1
    %5043 = vsyncpa %s5042, 1
    %5044 = vsyncpa [#allocation12], 1
    %s5045 = scalar_lea.sflag [#allocation12], 1
    %5046 = vsyncpa %s5045, 1
    %5047 = vsyncpa [#allocation15], 1
    %s5048 = scalar_lea.sflag [#allocation15], 1
    %5049 = vsyncpa %s5048, 1
    %5050 = vsyncpa [#allocation18], 1
    %s5051 = scalar_lea.sflag [#allocation18], 1
    %5052 = vsyncpa %s5051, 1
    %5053 = vsyncpa [#allocation21], 1

</llo_original>
